<compile_context>
chip_gen: v7x
topology: tpu7x:2x2x1
jax: 0.10.0
libtpu: 0.0.40
codegen_flags: <defaults>
</compile_context>

<pallas_src>
import functools
import math

import jax
import jax.numpy as jnp
from jax.experimental import pallas as pl
from jax.experimental.pallas import tpu as pltpu


def _rnd_up(a, b):
    return (a + b - 1) // b * b


def _row_tile(m):
    return 512 if m >= 512 else _rnd_up(m, 8)


def _mparams():
    return pltpu.CompilerParams(dimension_semantics=("parallel",))


# ----------------------------------------------------------------------------
# Pallas kernels
# ----------------------------------------------------------------------------
def _front_kernel(x_ref, a_ref, w1a_ref, w1b_ref, b1_ref, fusion_ref, c1_ref, *, C):
    """fusion = concat([x, attw*x], -1);  c1_ = fusion @ W1 + b1 (ESA conv1)."""
    x = x_ref[...]                                   # (tm, C)  f32
    y = x * a_ref[...]                               # (tm, C) * (tm, 1)
    fusion_ref[:, :C] = x.astype(fusion_ref.dtype)
    fusion_ref[:, C:] = y.astype(fusion_ref.dtype)
    c1 = (jnp.dot(x.astype(jnp.bfloat16), w1a_ref[...],
                  preferred_element_type=jnp.float32)
          + jnp.dot(y.astype(jnp.bfloat16), w1b_ref[...],
                    preferred_element_type=jnp.float32)
          + b1_ref[...])
    c1_ref[...] = c1.astype(c1_ref.dtype)


def _mm_kernel(x_ref, w_ref, b_ref, o_ref, *, act):
    """(tm,K)@(K,N) with K,N fully VMEM-resident; bias + activation fused."""
    r = jnp.dot(x_ref[...], w_ref[...],
                preferred_element_type=jnp.float32) + b_ref[...]
    if act == "relu":
        r = jnp.maximum(r, 0.0)
    o_ref[...] = r.astype(o_ref.dtype)


def _back_kernel(c1_ref, c3_ref, fu_ref, wf_ref, bf_ref, w4_ref, b4_ref,
                 w1_ref, b1_ref, o_ref):
    """cf = conv_f(c1_); g = sigmoid(conv4(c3 + cf)); out = conv1x1(fusion * g)."""
    cf = jnp.dot(c1_ref[...], wf_ref[...],
                 preferred_element_type=jnp.float32) + bf_ref[...]
    z = c3_ref[...] + cf
    g = jax.nn.sigmoid(
        jnp.dot(z.astype(jnp.bfloat16), w4_ref[...],
                preferred_element_type=jnp.float32) + b4_ref[...])
    fm = fu_ref[...].astype(jnp.float32) * g
    o = jnp.dot(fm.astype(jnp.bfloat16), w1_ref[...],
                preferred_element_type=jnp.float32) + b1_ref[...]
    o_ref[...] = o.astype(o_ref.dtype)


# ----------------------------------------------------------------------------
# Pallas wrappers
# ----------------------------------------------------------------------------
def front_fused(x2d, attw_col, w1, b1):
    """x2d (M,C) f32, attw_col (M,1) f32, w1 (2C,f) -> (fusion (M,2C) bf16, c1_ (M,f) bf16)."""
    M, C = x2d.shape
    f = w1.shape[1]
    tm = _row_tile(M)
    Mp = _rnd_up(M, tm)
    x_p = jnp.pad(x2d, ((0, Mp - M), (0, 0)))
    a_p = jnp.pad(attw_col, ((0, Mp - M), (0, 0)))
    w1a = w1[:C].astype(jnp.bfloat16)                # rows multiplying x
    w1b = w1[C:].astype(jnp.bfloat16)                # rows multiplying attw*x
    b1r = b1.astype(jnp.float32).reshape(1, f)
    fusion, c1 = pl.pallas_call(
        functools.partial(_front_kernel, C=C),
        out_shape=(jax.ShapeDtypeStruct((Mp, 2 * C), jnp.bfloat16),
                   jax.ShapeDtypeStruct((Mp, f), jnp.bfloat16)),
        grid=(Mp // tm,),
        in_specs=[pl.BlockSpec((tm, C), lambda i: (i, 0)),
                  pl.BlockSpec((tm, 1), lambda i: (i, 0)),
                  pl.BlockSpec((C, f), lambda i: (0, 0)),
                  pl.BlockSpec((C, f), lambda i: (0, 0)),
                  pl.BlockSpec((1, f), lambda i: (0, 0))],
        out_specs=(pl.BlockSpec((tm, 2 * C), lambda i: (i, 0)),
                   pl.BlockSpec((tm, f), lambda i: (i, 0))),
        compiler_params=_mparams(),
    )(x_p, a_p, w1a, w1b, b1r)
    return fusion[:M], c1[:M]


def matmul_bias_act(lhs, rhs, bias, act="none"):
    """(M,K)@(K,N)+bias, bf16 operands / f32 accumulation, K and N resident."""
    M, K = lhs.shape
    _, N = rhs.shape
    Kp = _rnd_up(K, 128)
    tm = _row_tile(M)
    Mp = _rnd_up(M, tm)
    lhs_p = jnp.pad(lhs.astype(jnp.bfloat16), ((0, Mp - M), (0, Kp - K)))
    rhs_p = jnp.pad(rhs.astype(jnp.bfloat16), ((0, Kp - K), (0, 0)))
    b_p = bias.astype(jnp.float32).reshape(1, N)
    out = pl.pallas_call(
        functools.partial(_mm_kernel, act=act),
        out_shape=jax.ShapeDtypeStruct((Mp, N), jnp.float32),
        grid=(Mp // tm,),
        in_specs=[pl.BlockSpec((tm, Kp), lambda i: (i, 0)),
                  pl.BlockSpec((Kp, N), lambda i: (0, 0)),
                  pl.BlockSpec((1, N), lambda i: (0, 0))],
        out_specs=pl.BlockSpec((tm, N), lambda i: (i, 0)),
        compiler_params=_mparams(),
    )(lhs_p, rhs_p, b_p)
    return out[:M]


def back_fused(c1_2d, c3_2d, fusion_2d, wf, bf_, w4, b4, w1x1, b1x1):
    """out = conv1x1(fusion * sigmoid(conv4(c3 + conv_f(c1_)))) in one kernel."""
    M, f = c1_2d.shape
    nf = fusion_2d.shape[1]
    cout = w1x1.shape[1]
    tm = _row_tile(M)
    Mp = _rnd_up(M, tm)
    pad = lambda t: jnp.pad(t, ((0, Mp - M), (0, 0)))
    out = pl.pallas_call(
        _back_kernel,
        out_shape=jax.ShapeDtypeStruct((Mp, cout), jnp.float32),
        grid=(Mp // tm,),
        in_specs=[pl.BlockSpec((tm, f), lambda i: (i, 0)),      # c1_
                  pl.BlockSpec((tm, f), lambda i: (i, 0)),      # c3 (upsampled)
                  pl.BlockSpec((tm, nf), lambda i: (i, 0)),     # fusion
                  pl.BlockSpec((f, f), lambda i: (0, 0)),       # W_f
                  pl.BlockSpec((1, f), lambda i: (0, 0)),       # b_f
                  pl.BlockSpec((f, nf), lambda i: (0, 0)),      # W_4
                  pl.BlockSpec((1, nf), lambda i: (0, 0)),      # b_4
                  pl.BlockSpec((nf, cout), lambda i: (0, 0)),   # W_1x1
                  pl.BlockSpec((1, cout), lambda i: (0, 0))],   # b_1x1
        out_specs=pl.BlockSpec((tm, cout), lambda i: (i, 0)),
        compiler_params=_mparams(),
    )(pad(c1_2d), pad(c3_2d), pad(fusion_2d),
      wf.astype(jnp.bfloat16), bf_.astype(jnp.float32).reshape(1, f),
      w4.astype(jnp.bfloat16), b4.astype(jnp.float32).reshape(1, nf),
      w1x1.astype(jnp.bfloat16), b1x1.astype(jnp.float32).reshape(1, cout))
    return out[:M]


# ----------------------------------------------------------------------------
# Conv / pooling glue built on the Pallas matmul
# ----------------------------------------------------------------------------
def conv2d(x, w, b, stride=1, padding=0, act="none"):
    """x: (B,H,W,Cin) NHWC; w: (kh,kw,Cin,Cout).  bf16 im2col -> Pallas matmul."""
    kh, kw, cin, cout = w.shape
    if padding > 0:
        x = jnp.pad(x, ((0, 0), (padding, padding), (padding, padding), (0, 0)))
    B, H, W, _ = x.shape
    Ho = (H - kh) // stride + 1
    Wo = (W - kw) // stride + 1
    if kh == 1 and kw == 1 and stride == 1:
        lhs = x.reshape(B * H * W, cin)
    else:
        xs = x.astype(jnp.bfloat16)
        cols = [jax.lax.slice(
                    xs, (0, i, j, 0),
                    (B, i + (Ho - 1) * stride + 1, j + (Wo - 1) * stride + 1, cin),
                    (1, stride, stride, 1))
                for i in range(kh) for j in range(kw)]
        lhs = jnp.concatenate(cols, axis=-1).reshape(B * Ho * Wo, kh * kw * cin)
    out = matmul_bias_act(lhs, w.reshape(kh * kw * cin, cout), b, act=act)
    return out.reshape(B, Ho, Wo, cout)


def maxpool(x, k, s):
    return jax.lax.reduce_window(x, -jnp.inf, jax.lax.max,
                                 (1, k, k, 1), (1, s, s, 1), "VALID")


# ----------------------------------------------------------------------------
# Model blocks
# ----------------------------------------------------------------------------
def esa_trunk(c1_nhwc, p, out_hw):
    """conv2(s2) -> maxpool(7,3) -> conv_max+relu -> conv3+relu -> conv3_ -> bilinear up."""
    c1 = conv2d(c1_nhwc, p["conv2"], p["conv2_b"], stride=2, padding=0)
    v_max = maxpool(c1, 7, 3)
    v_range = conv2d(v_max, p["conv_max"], p["conv_max_b"], padding=1, act="relu")
    c3 = conv2d(v_range, p["conv3"], p["conv3_b"], padding=1, act="relu")
    c3 = conv2d(c3, p["conv3_"], p["conv3__b"], padding=1)
    B = c3.shape[0]
    # F.interpolate(..., mode='bilinear', align_corners=False)
    return jax.image.resize(c3, (B, out_hw[0], out_hw[1], c3.shape[-1]),
                            method="bilinear")


def weight_upsample_forward(params, x_nchw):
    x = jnp.transpose(x_nchw, (0, 2, 3, 1)).astype(jnp.float32)   # NCHW -> NHWC
    B, H, W, C = x.shape
    M = B * H * W
    esa = params["esa"]
    f = esa["conv1"].shape[-1]

    x2d = x.reshape(M, C)
    attw_col = jnp.broadcast_to(
        params["attw_row"].astype(jnp.float32).reshape(1, H, 1),
        (B, H, W)).reshape(M, 1)

    # FRONT: attention multiply + channel concat + ESA conv1, fused.
    fusion2d, c1_2d = front_fused(x2d, attw_col,
                                  esa["conv1"].reshape(2 * C, f), esa["conv1_b"])

    # ESA trunk (tiny spatial tensors).
    c3 = esa_trunk(c1_2d.reshape(B, H, W, f), esa, (H, W))

    # BACK: conv_f + add + conv4-sigmoid gate + final conv1x1, fused.
    out2d = back_fused(c1_2d, c3.reshape(M, f), fusion2d,
                       esa["conv_f"].reshape(f, f), esa["conv_f_b"],
                       esa["conv4"].reshape(f, 2 * C), esa["conv4_b"],
                       params["conv1x1"].reshape(2 * C, C), params["conv1x1_b"])
    return jnp.transpose(out2d.reshape(B, H, W, C), (0, 3, 1, 2))  # NHWC -> NCHW


# ----------------------------------------------------------------------------
# Deterministic parameter init
# ----------------------------------------------------------------------------
_KEY = [jax.random.PRNGKey(0)]


def _next_key():
    _KEY[0], k = jax.random.split(_KEY[0])
    return k


def conv_w(kh, kw, cin, cout):
    std = math.sqrt(2.0 / (kh * kw * cout))
    return jax.random.normal(_next_key(), (kh, kw, cin, cout), jnp.float32) * std


def zeros(n):
    return jnp.zeros((n,), jnp.float32)


def make_esa(nf):
    f = nf // 4
    return dict(
        conv1=conv_w(1, 1, nf, f), conv1_b=zeros(f),
        conv_f=conv_w(1, 1, f, f), conv_f_b=zeros(f),
        conv_max=conv_w(3, 3, f, f), conv_max_b=zeros(f),
        conv2=conv_w(3, 3, f, f), conv2_b=zeros(f),
        conv3=conv_w(3, 3, f, f), conv3_b=zeros(f),
        conv3_=conv_w(3, 3, f, f), conv3__b=zeros(f),
        conv4=conv_w(1, 1, f, nf), conv4_b=zeros(nf))


def make_weight_upsample(C, width):
    H = width // 2
    lat = jnp.pi / 2 - (jnp.arange(H, dtype=jnp.float32) + 0.5) / H * jnp.pi
    # TODO(synk): exact S360 theta_confidence formula unavailable; cos(latitude) used.
    attw_row = jnp.cos(lat)
    return dict(attw_row=attw_row, esa=make_esa(2 * C),
                conv1x1=conv_w(1, 1, 2 * C, C), conv1x1_b=zeros(C))


# ----------------------------------------------------------------------------
if __name__ == "__main__":
    # Equirectangular feature map: width=64 -> (H, W) = (32, 64).
    # ESA needs H >= 15 so the stride-2 conv + 7/3 max-pool stay non-empty.
    B, C, WIDTH = 2, 16, 64
    H, W = WIDTH // 2, WIDTH

    params = make_weight_upsample(C, WIDTH)
    x = jax.random.uniform(jax.random.PRNGKey(0), (B, C, H, W), jnp.float32)

    fwd = jax.jit(weight_upsample_forward)
    out = fwd(params, x)
    jax.block_until_ready(out)

    assert out.shape == (B, C, H, W)
    assert bool(jnp.all(jnp.isfinite(out)))
    print("KERNEL_OK")
</pallas_src>

<mosaic_0001>
module attributes {stable_mosaic.version = 11 : i64} {
  func.func @_front_kernel(%arg0: i32, %arg1: memref<512x16xf32, #tpu.memory_space<vmem>>, %arg2: memref<512x1xf32, #tpu.memory_space<vmem>>, %arg3: memref<16x8xbf16, #tpu.memory_space<vmem>>, %arg4: memref<16x8xbf16, #tpu.memory_space<vmem>>, %arg5: memref<1x8xf32, #tpu.memory_space<vmem>>, %arg6: memref<512x32xbf16, #tpu.memory_space<vmem>>, %arg7: memref<512x8xbf16, #tpu.memory_space<vmem>>) attributes {dimension_semantics = [#tpu.dimension_semantics<parallel>], iteration_bounds = array<i64: 8>, scalar_prefetch = 0 : i64, scratch_operands = 0 : i64, tpu.core_type = #tpu.core_type<tc>, window_params = [{transform_indices = @transform_0, window_bounds = array<i64: 512, 16>}, {transform_indices = @transform_1, window_bounds = array<i64: 512, 1>}, {pipeline_mode = #tpu.pipeline_mode<synchronous>, transform_indices = @transform_2, window_bounds = array<i64: 16, 8>}, {pipeline_mode = #tpu.pipeline_mode<synchronous>, transform_indices = @transform_3, window_bounds = array<i64: 16, 8>}, {pipeline_mode = #tpu.pipeline_mode<synchronous>, transform_indices = @transform_4, window_bounds = array<i64: 1, 8>}, {transform_indices = @transform_5, window_bounds = array<i64: 512, 32>}, {transform_indices = @transform_6, window_bounds = array<i64: 512, 8>}]} {
    %c0 = arith.constant 0 : index
    %c0_0 = arith.constant 0 : index
    %0 = vector.load %arg1[%c0, %c0_0] : memref<512x16xf32, #tpu.memory_space<vmem>>, vector<512x16xf32>
    %c0_1 = arith.constant 0 : index
    %c0_2 = arith.constant 0 : index
    %1 = vector.load %arg2[%c0_1, %c0_2] : memref<512x1xf32, #tpu.memory_space<vmem>>, vector<512x1xf32>
    %2 = vector.broadcast %1 : vector<512x1xf32> to vector<512x16xf32>
    %3 = arith.mulf %0, %2 : vector<512x16xf32>
    %4 = arith.truncf %0 : vector<512x16xf32> to vector<512x16xbf16>
    %c0_3 = arith.constant 0 : index
    %c0_4 = arith.constant 0 : index
    %5 = vector.load %arg6[%c0_3, %c0_4] : memref<512x32xbf16, #tpu.memory_space<vmem>>, vector<512x16xbf16>
    tpu.vector_store %arg6[%c0_3, %c0_4], %4 {strides = array<i32>} : memref<512x32xbf16, #tpu.memory_space<vmem>>, vector<512x16xbf16>,
    %6 = arith.truncf %3 : vector<512x16xf32> to vector<512x16xbf16>
    %c0_5 = arith.constant 0 : index
    %c16 = arith.constant 16 : index
    %7 = vector.load %arg6[%c0_5, %c16] : memref<512x32xbf16, #tpu.memory_space<vmem>>, vector<512x16xbf16>
    tpu.vector_store %arg6[%c0_5, %c16], %6 {strides = array<i32>} : memref<512x32xbf16, #tpu.memory_space<vmem>>, vector<512x16xbf16>,
    %8 = arith.truncf %0 : vector<512x16xf32> to vector<512x16xbf16>
    %c0_6 = arith.constant 0 : index
    %c0_7 = arith.constant 0 : index
    %9 = vector.load %arg3[%c0_6, %c0_7] : memref<16x8xbf16, #tpu.memory_space<vmem>>, vector<16x8xbf16>
    %cst = arith.constant dense<0.000000e+00> : vector<512x8xf32>
    %10 = tpu.matmul %8, %9, %cst {dimension_numbers = #tpu.dot_dimension_numbers<[1], [0], [0], [1], [0, 0, 1, 1], [], []>} : vector<512x16xbf16>, vector<16x8xbf16>, vector<512x8xf32> -> vector<512x8xf32>
    %11 = arith.truncf %3 : vector<512x16xf32> to vector<512x16xbf16>
    %c0_8 = arith.constant 0 : index
    %c0_9 = arith.constant 0 : index
    %12 = vector.load %arg4[%c0_8, %c0_9] : memref<16x8xbf16, #tpu.memory_space<vmem>>, vector<16x8xbf16>
    %cst_10 = arith.constant dense<0.000000e+00> : vector<512x8xf32>
    %13 = tpu.matmul %11, %12, %cst_10 {dimension_numbers = #tpu.dot_dimension_numbers<[1], [0], [0], [1], [0, 0, 1, 1], [], []>} : vector<512x16xbf16>, vector<16x8xbf16>, vector<512x8xf32> -> vector<512x8xf32>
    %14 = arith.addf %10, %13 : vector<512x8xf32>
    %c0_11 = arith.constant 0 : index
    %c0_12 = arith.constant 0 : index
    %15 = vector.load %arg5[%c0_11, %c0_12] : memref<1x8xf32, #tpu.memory_space<vmem>>, vector<1x8xf32>
    %16 = vector.broadcast %15 : vector<1x8xf32> to vector<512x8xf32>
    %17 = arith.addf %14, %16 : vector<512x8xf32>
    %18 = arith.truncf %17 : vector<512x8xf32> to vector<512x8xbf16>
    %c0_13 = arith.constant 0 : index
    %c0_14 = arith.constant 0 : index
    %19 = vector.load %arg7[%c0_13, %c0_14] : memref<512x8xbf16, #tpu.memory_space<vmem>>, vector<512x8xbf16>
    tpu.vector_store %arg7[%c0_13, %c0_14], %18 {strides = array<i32>} : memref<512x8xbf16, #tpu.memory_space<vmem>>, vector<512x8xbf16>,
    return
  }
  func.func @transform_0(%arg0: i32) -> (i32, i32) {
    %c0_i32 = arith.constant 0 : i32
    %c0_i32_0 = arith.constant 0 : i32
    return %arg0, %c0_i32 : i32, i32
  }
  func.func @transform_1(%arg0: i32) -> (i32, i32) {
    %c0_i32 = arith.constant 0 : i32
    %c0_i32_0 = arith.constant 0 : i32
    return %arg0, %c0_i32 : i32, i32
  }
  func.func @transform_2(%arg0: i32) -> (i32, i32) {
    %c0_i32 = arith.constant 0 : i32
    %c0_i32_0 = arith.constant 0 : i32
    %c0_i32_1 = arith.constant 0 : i32
    return %c0_i32, %c0_i32_0 : i32, i32
  }
  func.func @transform_3(%arg0: i32) -> (i32, i32) {
    %c0_i32 = arith.constant 0 : i32
    %c0_i32_0 = arith.constant 0 : i32
    %c0_i32_1 = arith.constant 0 : i32
    return %c0_i32, %c0_i32_0 : i32, i32
  }
  func.func @transform_4(%arg0: i32) -> (i32, i32) {
    %c0_i32 = arith.constant 0 : i32
    %c0_i32_0 = arith.constant 0 : i32
    %c0_i32_1 = arith.constant 0 : i32
    return %c0_i32, %c0_i32_0 : i32, i32
  }
  func.func @transform_5(%arg0: i32) -> (i32, i32) {
    %c0_i32 = arith.constant 0 : i32
    %c0_i32_0 = arith.constant 0 : i32
    return %arg0, %c0_i32 : i32, i32
  }
  func.func @transform_6(%arg0: i32) -> (i32, i32) {
    %c0_i32 = arith.constant 0 : i32
    %c0_i32_0 = arith.constant 0 : i32
    return %arg0, %c0_i32 : i32, i32
  }
}

module attributes {stable_mosaic.version = 11 : i64} {
  func.func @_mm_kernel(%arg0: i32, %arg1: memref<512x128xbf16, #tpu.memory_space<vmem>>, %arg2: memref<128x8xbf16, #tpu.memory_space<vmem>>, %arg3: memref<1x8xf32, #tpu.memory_space<vmem>>, %arg4: memref<512x8xf32, #tpu.memory_space<vmem>>) attributes {dimension_semantics = [#tpu.dimension_semantics<parallel>], iteration_bounds = array<i64: 2>, scalar_prefetch = 0 : i64, scratch_operands = 0 : i64, tpu.core_type = #tpu.core_type<tc>, window_params = [{transform_indices = @transform_0, window_bounds = array<i64: 512, 128>}, {pipeline_mode = #tpu.pipeline_mode<synchronous>, transform_indices = @transform_1, window_bounds = array<i64: 128, 8>}, {pipeline_mode = #tpu.pipeline_mode<synchronous>, transform_indices = @transform_2, window_bounds = array<i64: 1, 8>}, {transform_indices = @transform_3, window_bounds = array<i64: 512, 8>}]} {
    %c0 = arith.constant 0 : index
    %c0_0 = arith.constant 0 : index
    %0 = vector.load %arg1[%c0, %c0_0] : memref<512x128xbf16, #tpu.memory_space<vmem>>, vector<512x128xbf16>
    %c0_1 = arith.constant 0 : index
    %c0_2 = arith.constant 0 : index
    %1 = vector.load %arg2[%c0_1, %c0_2] : memref<128x8xbf16, #tpu.memory_space<vmem>>, vector<128x8xbf16>
    %cst = arith.constant dense<0.000000e+00> : vector<512x8xf32>
    %2 = tpu.matmul %0, %1, %cst {dimension_numbers = #tpu.dot_dimension_numbers<[1], [0], [0], [1], [0, 0, 1, 1], [], []>} : vector<512x128xbf16>, vector<128x8xbf16>, vector<512x8xf32> -> vector<512x8xf32>
    %c0_3 = arith.constant 0 : index
    %c0_4 = arith.constant 0 : index
    %3 = vector.load %arg3[%c0_3, %c0_4] : memref<1x8xf32, #tpu.memory_space<vmem>>, vector<1x8xf32>
    %4 = vector.broadcast %3 : vector<1x8xf32> to vector<512x8xf32>
    %5 = arith.addf %2, %4 : vector<512x8xf32>
    %c0_5 = arith.constant 0 : index
    %c0_6 = arith.constant 0 : index
    %6 = vector.load %arg4[%c0_5, %c0_6] : memref<512x8xf32, #tpu.memory_space<vmem>>, vector<512x8xf32>
    tpu.vector_store %arg4[%c0_5, %c0_6], %5 {strides = array<i32>} : memref<512x8xf32, #tpu.memory_space<vmem>>, vector<512x8xf32>,
    return
  }
  func.func @transform_0(%arg0: i32) -> (i32, i32) {
    %c0_i32 = arith.constant 0 : i32
    %c0_i32_0 = arith.constant 0 : i32
    return %arg0, %c0_i32 : i32, i32
  }
  func.func @transform_1(%arg0: i32) -> (i32, i32) {
    %c0_i32 = arith.constant 0 : i32
    %c0_i32_0 = arith.constant 0 : i32
    %c0_i32_1 = arith.constant 0 : i32
    return %c0_i32, %c0_i32_0 : i32, i32
  }
  func.func @transform_2(%arg0: i32) -> (i32, i32) {
    %c0_i32 = arith.constant 0 : i32
    %c0_i32_0 = arith.constant 0 : i32
    %c0_i32_1 = arith.constant 0 : i32
    return %c0_i32, %c0_i32_0 : i32, i32
  }
  func.func @transform_3(%arg0: i32) -> (i32, i32) {
    %c0_i32 = arith.constant 0 : i32
    %c0_i32_0 = arith.constant 0 : i32
    return %arg0, %c0_i32 : i32, i32
  }
}

module attributes {stable_mosaic.version = 11 : i64} {
  func.func @_mm_kernel(%arg0: i32, %arg1: memref<56x128xbf16, #tpu.memory_space<vmem>>, %arg2: memref<128x8xbf16, #tpu.memory_space<vmem>>, %arg3: memref<1x8xf32, #tpu.memory_space<vmem>>, %arg4: memref<56x8xf32, #tpu.memory_space<vmem>>) attributes {dimension_semantics = [#tpu.dimension_semantics<parallel>], iteration_bounds = array<i64: 1>, scalar_prefetch = 0 : i64, scratch_operands = 0 : i64, tpu.core_type = #tpu.core_type<tc>, window_params = [{transform_indices = @transform_0, window_bounds = array<i64: 56, 128>}, {pipeline_mode = #tpu.pipeline_mode<synchronous>, transform_indices = @transform_1, window_bounds = array<i64: 128, 8>}, {pipeline_mode = #tpu.pipeline_mode<synchronous>, transform_indices = @transform_2, window_bounds = array<i64: 1, 8>}, {transform_indices = @transform_3, window_bounds = array<i64: 56, 8>}]} {
    %c0 = arith.constant 0 : index
    %c0_0 = arith.constant 0 : index
    %0 = vector.load %arg1[%c0, %c0_0] : memref<56x128xbf16, #tpu.memory_space<vmem>>, vector<56x128xbf16>
    %c0_1 = arith.constant 0 : index
    %c0_2 = arith.constant 0 : index
    %1 = vector.load %arg2[%c0_1, %c0_2] : memref<128x8xbf16, #tpu.memory_space<vmem>>, vector<128x8xbf16>
    %cst = arith.constant dense<0.000000e+00> : vector<56x8xf32>
    %2 = tpu.matmul %0, %1, %cst {dimension_numbers = #tpu.dot_dimension_numbers<[1], [0], [0], [1], [0, 0, 1, 1], [], []>} : vector<56x128xbf16>, vector<128x8xbf16>, vector<56x8xf32> -> vector<56x8xf32>
    %c0_3 = arith.constant 0 : index
    %c0_4 = arith.constant 0 : index
    %3 = vector.load %arg3[%c0_3, %c0_4] : memref<1x8xf32, #tpu.memory_space<vmem>>, vector<1x8xf32>
    %4 = vector.broadcast %3 : vector<1x8xf32> to vector<56x8xf32>
    %5 = arith.addf %2, %4 : vector<56x8xf32>
    %cst_5 = arith.constant 0.000000e+00 : f32
    %6 = vector.broadcast %cst_5 : f32 to vector<56x8xf32>
    %7 = arith.maximumf %5, %6 : vector<56x8xf32>
    %c0_6 = arith.constant 0 : index
    %c0_7 = arith.constant 0 : index
    %8 = vector.load %arg4[%c0_6, %c0_7] : memref<56x8xf32, #tpu.memory_space<vmem>>, vector<56x8xf32>
    tpu.vector_store %arg4[%c0_6, %c0_7], %7 {strides = array<i32>} : memref<56x8xf32, #tpu.memory_space<vmem>>, vector<56x8xf32>,
    return
  }
  func.func @transform_0(%arg0: i32) -> (i32, i32) {
    %c0_i32 = arith.constant 0 : i32
    %c0_i32_0 = arith.constant 0 : i32
    return %arg0, %c0_i32 : i32, i32
  }
  func.func @transform_1(%arg0: i32) -> (i32, i32) {
    %c0_i32 = arith.constant 0 : i32
    %c0_i32_0 = arith.constant 0 : i32
    %c0_i32_1 = arith.constant 0 : i32
    return %c0_i32, %c0_i32_0 : i32, i32
  }
  func.func @transform_2(%arg0: i32) -> (i32, i32) {
    %c0_i32 = arith.constant 0 : i32
    %c0_i32_0 = arith.constant 0 : i32
    %c0_i32_1 = arith.constant 0 : i32
    return %c0_i32, %c0_i32_0 : i32, i32
  }
  func.func @transform_3(%arg0: i32) -> (i32, i32) {
    %c0_i32 = arith.constant 0 : i32
    %c0_i32_0 = arith.constant 0 : i32
    return %arg0, %c0_i32 : i32, i32
  }
}

module attributes {stable_mosaic.version = 11 : i64} {
  func.func @_mm_kernel(%arg0: i32, %arg1: memref<56x128xbf16, #tpu.memory_space<vmem>>, %arg2: memref<128x8xbf16, #tpu.memory_space<vmem>>, %arg3: memref<1x8xf32, #tpu.memory_space<vmem>>, %arg4: memref<56x8xf32, #tpu.memory_space<vmem>>) attributes {dimension_semantics = [#tpu.dimension_semantics<parallel>], iteration_bounds = array<i64: 1>, scalar_prefetch = 0 : i64, scratch_operands = 0 : i64, tpu.core_type = #tpu.core_type<tc>, window_params = [{transform_indices = @transform_0, window_bounds = array<i64: 56, 128>}, {pipeline_mode = #tpu.pipeline_mode<synchronous>, transform_indices = @transform_1, window_bounds = array<i64: 128, 8>}, {pipeline_mode = #tpu.pipeline_mode<synchronous>, transform_indices = @transform_2, window_bounds = array<i64: 1, 8>}, {transform_indices = @transform_3, window_bounds = array<i64: 56, 8>}]} {
    %c0 = arith.constant 0 : index
    %c0_0 = arith.constant 0 : index
    %0 = vector.load %arg1[%c0, %c0_0] : memref<56x128xbf16, #tpu.memory_space<vmem>>, vector<56x128xbf16>
    %c0_1 = arith.constant 0 : index
    %c0_2 = arith.constant 0 : index
    %1 = vector.load %arg2[%c0_1, %c0_2] : memref<128x8xbf16, #tpu.memory_space<vmem>>, vector<128x8xbf16>
    %cst = arith.constant dense<0.000000e+00> : vector<56x8xf32>
    %2 = tpu.matmul %0, %1, %cst {dimension_numbers = #tpu.dot_dimension_numbers<[1], [0], [0], [1], [0, 0, 1, 1], [], []>} : vector<56x128xbf16>, vector<128x8xbf16>, vector<56x8xf32> -> vector<56x8xf32>
    %c0_3 = arith.constant 0 : index
    %c0_4 = arith.constant 0 : index
    %3 = vector.load %arg3[%c0_3, %c0_4] : memref<1x8xf32, #tpu.memory_space<vmem>>, vector<1x8xf32>
    %4 = vector.broadcast %3 : vector<1x8xf32> to vector<56x8xf32>
    %5 = arith.addf %2, %4 : vector<56x8xf32>
    %c0_5 = arith.constant 0 : index
    %c0_6 = arith.constant 0 : index
    %6 = vector.load %arg4[%c0_5, %c0_6] : memref<56x8xf32, #tpu.memory_space<vmem>>, vector<56x8xf32>
    tpu.vector_store %arg4[%c0_5, %c0_6], %5 {strides = array<i32>} : memref<56x8xf32, #tpu.memory_space<vmem>>, vector<56x8xf32>,
    return
  }
  func.func @transform_0(%arg0: i32) -> (i32, i32) {
    %c0_i32 = arith.constant 0 : i32
    %c0_i32_0 = arith.constant 0 : i32
    return %arg0, %c0_i32 : i32, i32
  }
  func.func @transform_1(%arg0: i32) -> (i32, i32) {
    %c0_i32 = arith.constant 0 : i32
    %c0_i32_0 = arith.constant 0 : i32
    %c0_i32_1 = arith.constant 0 : i32
    return %c0_i32, %c0_i32_0 : i32, i32
  }
  func.func @transform_2(%arg0: i32) -> (i32, i32) {
    %c0_i32 = arith.constant 0 : i32
    %c0_i32_0 = arith.constant 0 : i32
    %c0_i32_1 = arith.constant 0 : i32
    return %c0_i32, %c0_i32_0 : i32, i32
  }
  func.func @transform_3(%arg0: i32) -> (i32, i32) {
    %c0_i32 = arith.constant 0 : i32
    %c0_i32_0 = arith.constant 0 : i32
    return %arg0, %c0_i32 : i32, i32
  }
}

module attributes {stable_mosaic.version = 11 : i64} {
  func.func @_back_kernel(%arg0: i32, %arg1: memref<512x8xbf16, #tpu.memory_space<vmem>>, %arg2: memref<512x8xf32, #tpu.memory_space<vmem>>, %arg3: memref<512x32xbf16, #tpu.memory_space<vmem>>, %arg4: memref<8x8xbf16, #tpu.memory_space<vmem>>, %arg5: memref<1x8xf32, #tpu.memory_space<vmem>>, %arg6: memref<8x32xbf16, #tpu.memory_space<vmem>>, %arg7: memref<1x32xf32, #tpu.memory_space<vmem>>, %arg8: memref<32x16xbf16, #tpu.memory_space<vmem>>, %arg9: memref<1x16xf32, #tpu.memory_space<vmem>>, %arg10: memref<512x16xf32, #tpu.memory_space<vmem>>) attributes {dimension_semantics = [#tpu.dimension_semantics<parallel>], iteration_bounds = array<i64: 8>, scalar_prefetch = 0 : i64, scratch_operands = 0 : i64, tpu.core_type = #tpu.core_type<tc>, window_params = [{transform_indices = @transform_0, window_bounds = array<i64: 512, 8>}, {transform_indices = @transform_1, window_bounds = array<i64: 512, 8>}, {transform_indices = @transform_2, window_bounds = array<i64: 512, 32>}, {pipeline_mode = #tpu.pipeline_mode<synchronous>, transform_indices = @transform_3, window_bounds = array<i64: 8, 8>}, {pipeline_mode = #tpu.pipeline_mode<synchronous>, transform_indices = @transform_4, window_bounds = array<i64: 1, 8>}, {pipeline_mode = #tpu.pipeline_mode<synchronous>, transform_indices = @transform_5, window_bounds = array<i64: 8, 32>}, {pipeline_mode = #tpu.pipeline_mode<synchronous>, transform_indices = @transform_6, window_bounds = array<i64: 1, 32>}, {pipeline_mode = #tpu.pipeline_mode<synchronous>, transform_indices = @transform_7, window_bounds = array<i64: 32, 16>}, {pipeline_mode = #tpu.pipeline_mode<synchronous>, transform_indices = @transform_8, window_bounds = array<i64: 1, 16>}, {transform_indices = @transform_9, window_bounds = array<i64: 512, 16>}]} {
    %c0 = arith.constant 0 : index
    %c0_0 = arith.constant 0 : index
    %0 = vector.load %arg1[%c0, %c0_0] : memref<512x8xbf16, #tpu.memory_space<vmem>>, vector<512x8xbf16>
    %c0_1 = arith.constant 0 : index
    %c0_2 = arith.constant 0 : index
    %1 = vector.load %arg4[%c0_1, %c0_2] : memref<8x8xbf16, #tpu.memory_space<vmem>>, vector<8x8xbf16>
    %cst = arith.constant dense<0.000000e+00> : vector<512x8xf32>
    %2 = tpu.matmul %0, %1, %cst {dimension_numbers = #tpu.dot_dimension_numbers<[1], [0], [0], [1], [0, 0, 1, 1], [], []>} : vector<512x8xbf16>, vector<8x8xbf16>, vector<512x8xf32> -> vector<512x8xf32>
    %c0_3 = arith.constant 0 : index
    %c0_4 = arith.constant 0 : index
    %3 = vector.load %arg5[%c0_3, %c0_4] : memref<1x8xf32, #tpu.memory_space<vmem>>, vector<1x8xf32>
    %4 = vector.broadcast %3 : vector<1x8xf32> to vector<512x8xf32>
    %5 = arith.addf %2, %4 : vector<512x8xf32>
    %c0_5 = arith.constant 0 : index
    %c0_6 = arith.constant 0 : index
    %6 = vector.load %arg2[%c0_5, %c0_6] : memref<512x8xf32, #tpu.memory_space<vmem>>, vector<512x8xf32>
    %7 = arith.addf %6, %5 : vector<512x8xf32>
    %8 = arith.truncf %7 : vector<512x8xf32> to vector<512x8xbf16>
    %c0_7 = arith.constant 0 : index
    %c0_8 = arith.constant 0 : index
    %9 = vector.load %arg6[%c0_7, %c0_8] : memref<8x32xbf16, #tpu.memory_space<vmem>>, vector<8x32xbf16>
    %cst_9 = arith.constant dense<0.000000e+00> : vector<512x32xf32>
    %10 = tpu.matmul %8, %9, %cst_9 {dimension_numbers = #tpu.dot_dimension_numbers<[1], [0], [0], [1], [0, 0, 1, 1], [], []>} : vector<512x8xbf16>, vector<8x32xbf16>, vector<512x32xf32> -> vector<512x32xf32>
    %c0_10 = arith.constant 0 : index
    %c0_11 = arith.constant 0 : index
    %11 = vector.load %arg7[%c0_10, %c0_11] : memref<1x32xf32, #tpu.memory_space<vmem>>, vector<1x32xf32>
    %12 = vector.broadcast %11 : vector<1x32xf32> to vector<512x32xf32>
    %13 = arith.addf %10, %12 : vector<512x32xf32>
    %14 = arith.negf %13 : vector<512x32xf32>
    %15 = math.exp %14 : vector<512x32xf32>
    %cst_12 = arith.constant 1.000000e+00 : f32
    %16 = vector.broadcast %cst_12 : f32 to vector<512x32xf32>
    %17 = arith.addf %16, %15 : vector<512x32xf32>
    %18 = arith.divf %16, %17 : vector<512x32xf32>
    %c0_13 = arith.constant 0 : index
    %c0_14 = arith.constant 0 : index
    %19 = vector.load %arg3[%c0_13, %c0_14] : memref<512x32xbf16, #tpu.memory_space<vmem>>, vector<512x32xbf16>
    %20 = arith.extf %19 : vector<512x32xbf16> to vector<512x32xf32>
    %21 = arith.mulf %20, %18 : vector<512x32xf32>
    %22 = arith.truncf %21 : vector<512x32xf32> to vector<512x32xbf16>
    %c0_15 = arith.constant 0 : index
    %c0_16 = arith.constant 0 : index
    %23 = vector.load %arg8[%c0_15, %c0_16] : memref<32x16xbf16, #tpu.memory_space<vmem>>, vector<32x16xbf16>
    %cst_17 = arith.constant dense<0.000000e+00> : vector<512x16xf32>
    %24 = tpu.matmul %22, %23, %cst_17 {dimension_numbers = #tpu.dot_dimension_numbers<[1], [0], [0], [1], [0, 0, 1, 1], [], []>} : vector<512x32xbf16>, vector<32x16xbf16>, vector<512x16xf32> -> vector<512x16xf32>
    %c0_18 = arith.constant 0 : index
    %c0_19 = arith.constant 0 : index
    %25 = vector.load %arg9[%c0_18, %c0_19] : memref<1x16xf32, #tpu.memory_space<vmem>>, vector<1x16xf32>
    %26 = vector.broadcast %25 : vector<1x16xf32> to vector<512x16xf32>
    %27 = arith.addf %24, %26 : vector<512x16xf32>
    %c0_20 = arith.constant 0 : index
    %c0_21 = arith.constant 0 : index
    %28 = vector.load %arg10[%c0_20, %c0_21] : memref<512x16xf32, #tpu.memory_space<vmem>>, vector<512x16xf32>
    tpu.vector_store %arg10[%c0_20, %c0_21], %27 {strides = array<i32>} : memref<512x16xf32, #tpu.memory_space<vmem>>, vector<512x16xf32>,
    return
  }
  func.func @transform_0(%arg0: i32) -> (i32, i32) {
    %c0_i32 = arith.constant 0 : i32
    %c0_i32_0 = arith.constant 0 : i32
    return %arg0, %c0_i32 : i32, i32
  }
  func.func @transform_1(%arg0: i32) -> (i32, i32) {
    %c0_i32 = arith.constant 0 : i32
    %c0_i32_0 = arith.constant 0 : i32
    return %arg0, %c0_i32 : i32, i32
  }
  func.func @transform_2(%arg0: i32) -> (i32, i32) {
    %c0_i32 = arith.constant 0 : i32
    %c0_i32_0 = arith.constant 0 : i32
    return %arg0, %c0_i32 : i32, i32
  }
  func.func @transform_3(%arg0: i32) -> (i32, i32) {
    %c0_i32 = arith.constant 0 : i32
    %c0_i32_0 = arith.constant 0 : i32
    %c0_i32_1 = arith.constant 0 : i32
    return %c0_i32, %c0_i32_0 : i32, i32
  }
  func.func @transform_4(%arg0: i32) -> (i32, i32) {
    %c0_i32 = arith.constant 0 : i32
    %c0_i32_0 = arith.constant 0 : i32
    %c0_i32_1 = arith.constant 0 : i32
    return %c0_i32, %c0_i32_0 : i32, i32
  }
  func.func @transform_5(%arg0: i32) -> (i32, i32) {
    %c0_i32 = arith.constant 0 : i32
    %c0_i32_0 = arith.constant 0 : i32
    %c0_i32_1 = arith.constant 0 : i32
    return %c0_i32, %c0_i32_0 : i32, i32
  }
  func.func @transform_6(%arg0: i32) -> (i32, i32) {
    %c0_i32 = arith.constant 0 : i32
    %c0_i32_0 = arith.constant 0 : i32
    %c0_i32_1 = arith.constant 0 : i32
    return %c0_i32, %c0_i32_0 : i32, i32
  }
  func.func @transform_7(%arg0: i32) -> (i32, i32) {
    %c0_i32 = arith.constant 0 : i32
    %c0_i32_0 = arith.constant 0 : i32
    %c0_i32_1 = arith.constant 0 : i32
    return %c0_i32, %c0_i32_0 : i32, i32
  }
  func.func @transform_8(%arg0: i32) -> (i32, i32) {
    %c0_i32 = arith.constant 0 : i32
    %c0_i32_0 = arith.constant 0 : i32
    %c0_i32_1 = arith.constant 0 : i32
    return %c0_i32, %c0_i32_0 : i32, i32
  }
  func.func @transform_9(%arg0: i32) -> (i32, i32) {
    %c0_i32 = arith.constant 0 : i32
    %c0_i32_0 = arith.constant 0 : i32
    return %arg0, %c0_i32 : i32, i32
  }
}

</mosaic_0001>

<llo_original>
// kernel: weight_upsample_forward.6
$region0: #{weight_upsample_forward.6}
  #allocation0 [shape = 'u32[]', space=smem, size = 0x4, offset = 0x4, fixed_abs, tag = 'smem constant byte address 0x4 - core index']
  #allocation1 [shape = 'u32[144,128]{1,0:T(1,128)}', space=vmem, size = 0x12000, scoped, tag = 'internal scratch']
  %s0 = inlined_call_operand.vmem [shape: f32[4096,16], index: 0, kind: input, shape index: {}]
  %s1 = inlined_call_operand.vmem [shape: f32[4096,1], index: 1, kind: input, shape index: {}]
  %s2 = inlined_call_operand.vmem [shape: bf16[16,8], index: 2, kind: input, shape index: {}]
  %s3 = inlined_call_operand.vmem [shape: bf16[16,8], index: 3, kind: input, shape index: {}]
  %s4 = inlined_call_operand.vmem [shape: f32[1,8], index: 4, kind: input, shape index: {}]
  %s5 = inlined_call_operand.vmem [shape: bf16[4096,32], index: 5, kind: output, shape index: {0}]
  %s6 = inlined_call_operand.vmem [shape: bf16[4096,8], index: 6, kind: output, shape index: {1}]
  %7 = xla_tuple %s5, %s6
  %s8 = sld [smem:[#allocation0]]
  $region61: #{weight_upsample_forward.6} parent=0
    _
  %s10 = ssub.s32 1, %s8
  %s11 = scalar_select 0, %s10, %s8
  loop: start=0, step=1, limit=10
  $region2: #{weight_upsample_forward.6} parent=0 // loop_pre_header
    _
  $region3: #{weight_upsample_forward.6} parent=0 // loop_header
    %s13 = sphi 0, %s17
    %p14 = scmp.ge.s32.totalorder %s13, 10
    %s23 = sphi 0, %s25
    %s26 = sphi 0, %s23
    %s27 = sphi 0, %s26
    %s43 = sphi 0, %s27
    %s49 = sphi 0, %s51
    %s52 = sphi 0, %s49
    %s53 = sphi 0, %s52
    %s69 = sphi 0, %s53
    %s73 = sphi 0, %s73
    %s75 = sphi 0, %s73
    %s76 = sphi 0, %s75
    %s90 = sphi 0, %s76
    %s94 = sphi 0, %s94
    %s96 = sphi 0, %s94
    %s97 = sphi 0, %s96
    %s111 = sphi 0, %s97
    %s115 = sphi 0, %s115
    %s117 = sphi 0, %s115
    %s118 = sphi 0, %s117
    %s132 = sphi 0, %s118
    %s138 = sphi 0, %s140
    %s141 = sphi 0, %s138
    %s142 = sphi 0, %s141
    %s158 = sphi 0, %s142
    %s164 = sphi 0, %s166
    %s167 = sphi 0, %s164
    %s168 = sphi 0, %s167
    %s184 = sphi 0, %s168
  $region4: #{weight_upsample_forward.6} parent=0 // loop_header_branch
    %16 = sbr.rel (%p14) target = $region8
  $region5: #{weight_upsample_forward.6} parent=0 // loop_body
    %s18 = ssub.s32 %s13, 1
    %s19 = ssub.s32 %s13, 2
    %s20 = sadd.s32 %s13, 1
    %s21 = ssub.s32 %s13, %s20
    %p22 = scmp.eq.s32.totalorder %s21, 0
    %s24 = sadd.s32 %s23, 1
    %s25 = scalar_select %p22, %s23, %s24
    %p28 = pneg %p22
    %p29 = scmp.eq.s32.totalorder %s13, 7
    %p30 = por %p28, %p29
    %p31 = scmp.ne.s32.totalorder %s23, %s26
    %p32 = scmp.eq.s32.totalorder %s13, 0
    %p33 = por %p31, %p32
    %p34 = scmp.ne.s32.totalorder %s23, %s26
    %p35 = scmp.eq.s32.totalorder %s18, 7
    %p36 = por %p34, %p35
    %p37 = scmp.ne.s32.totalorder %s26, %s27
    %p38 = scmp.eq.s32.totalorder %s18, 0
    %p39 = por %p37, %p38
    %p40 = scmp.ne.s32.totalorder %s26, %s27
    %p41 = scmp.eq.s32.totalorder %s19, 7
    %p42 = por %p40, %p41
    %p44 = scmp.ne.s32.totalorder %s27, %s43
    %p45 = scmp.eq.s32.totalorder %s19, 0
    %p46 = por %p44, %p45
    %s47 = ssub.s32 %s13, %s20
    %p48 = scmp.eq.s32.totalorder %s47, 0
    %s50 = sadd.s32 %s49, 1
    %s51 = scalar_select %p48, %s49, %s50
    %p54 = pneg %p48
    %p55 = scmp.eq.s32.totalorder %s13, 7
    %p56 = por %p54, %p55
    %p57 = scmp.ne.s32.totalorder %s49, %s52
    %p58 = scmp.eq.s32.totalorder %s13, 0
    %p59 = por %p57, %p58
    %p60 = scmp.ne.s32.totalorder %s49, %s52
    %p61 = scmp.eq.s32.totalorder %s18, 7
    %p62 = por %p60, %p61
    %p63 = scmp.ne.s32.totalorder %s52, %s53
    %p64 = scmp.eq.s32.totalorder %s18, 0
    %p65 = por %p63, %p64
    %p66 = scmp.ne.s32.totalorder %s52, %s53
    %p67 = scmp.eq.s32.totalorder %s19, 7
    %p68 = por %p66, %p67
    %p70 = scmp.ne.s32.totalorder %s53, %s69
    %p71 = scmp.eq.s32.totalorder %s19, 0
    %p72 = por %p70, %p71
    %s74 = sadd.s32 %s73, 1
    %p77 = scmp.eq.s32.totalorder %s13, 7
    %p78 = scmp.ne.s32.totalorder %s73, %s75
    %p79 = scmp.eq.s32.totalorder %s13, 0
    %p80 = por %p78, %p79
    %p81 = scmp.ne.s32.totalorder %s73, %s75
    %p82 = scmp.eq.s32.totalorder %s18, 7
    %p83 = por %p81, %p82
    %p84 = scmp.ne.s32.totalorder %s75, %s76
    %p85 = scmp.eq.s32.totalorder %s18, 0
    %p86 = por %p84, %p85
    %p87 = scmp.ne.s32.totalorder %s75, %s76
    %p88 = scmp.eq.s32.totalorder %s19, 7
    %p89 = por %p87, %p88
    %p91 = scmp.ne.s32.totalorder %s76, %s90
    %p92 = scmp.eq.s32.totalorder %s19, 0
    %p93 = por %p91, %p92
    %s95 = sadd.s32 %s94, 1
    %p98 = scmp.eq.s32.totalorder %s13, 7
    %p99 = scmp.ne.s32.totalorder %s94, %s96
    %p100 = scmp.eq.s32.totalorder %s13, 0
    %p101 = por %p99, %p100
    %p102 = scmp.ne.s32.totalorder %s94, %s96
    %p103 = scmp.eq.s32.totalorder %s18, 7
    %p104 = por %p102, %p103
    %p105 = scmp.ne.s32.totalorder %s96, %s97
    %p106 = scmp.eq.s32.totalorder %s18, 0
    %p107 = por %p105, %p106
    %p108 = scmp.ne.s32.totalorder %s96, %s97
    %p109 = scmp.eq.s32.totalorder %s19, 7
    %p110 = por %p108, %p109
    %p112 = scmp.ne.s32.totalorder %s97, %s111
    %p113 = scmp.eq.s32.totalorder %s19, 0
    %p114 = por %p112, %p113
    %s116 = sadd.s32 %s115, 1
    %p119 = scmp.eq.s32.totalorder %s13, 7
    %p120 = scmp.ne.s32.totalorder %s115, %s117
    %p121 = scmp.eq.s32.totalorder %s13, 0
    %p122 = por %p120, %p121
    %p123 = scmp.ne.s32.totalorder %s115, %s117
    %p124 = scmp.eq.s32.totalorder %s18, 7
    %p125 = por %p123, %p124
    %p126 = scmp.ne.s32.totalorder %s117, %s118
    %p127 = scmp.eq.s32.totalorder %s18, 0
    %p128 = por %p126, %p127
    %p129 = scmp.ne.s32.totalorder %s117, %s118
    %p130 = scmp.eq.s32.totalorder %s19, 7
    %p131 = por %p129, %p130
    %p133 = scmp.ne.s32.totalorder %s118, %s132
    %p134 = scmp.eq.s32.totalorder %s19, 0
    %p135 = por %p133, %p134
    %s136 = ssub.s32 %s13, %s20
    %p137 = scmp.eq.s32.totalorder %s136, 0
    %s139 = sadd.s32 %s138, 1
    %s140 = scalar_select %p137, %s138, %s139
    %p143 = pneg %p137
    %p144 = scmp.eq.s32.totalorder %s13, 7
    %p145 = por %p143, %p144
    %p146 = scmp.ne.s32.totalorder %s138, %s141
    %p147 = scmp.eq.s32.totalorder %s13, 0
    %p148 = por %p146, %p147
    %p149 = scmp.ne.s32.totalorder %s138, %s141
    %p150 = scmp.eq.s32.totalorder %s18, 7
    %p151 = por %p149, %p150
    %p152 = scmp.ne.s32.totalorder %s141, %s142
    %p153 = scmp.eq.s32.totalorder %s18, 0
    %p154 = por %p152, %p153
    %p155 = scmp.ne.s32.totalorder %s141, %s142
    %p156 = scmp.eq.s32.totalorder %s19, 7
    %p157 = por %p155, %p156
    %p159 = scmp.ne.s32.totalorder %s142, %s158
    %p160 = scmp.eq.s32.totalorder %s19, 0
    %p161 = por %p159, %p160
    %s162 = ssub.s32 %s13, %s20
    %p163 = scmp.eq.s32.totalorder %s162, 0
    %s165 = sadd.s32 %s164, 1
    %s166 = scalar_select %p163, %s164, %s165
    %p169 = pneg %p163
    %p170 = scmp.eq.s32.totalorder %s13, 7
    %p171 = por %p169, %p170
    %p172 = scmp.ne.s32.totalorder %s164, %s167
    %p173 = scmp.eq.s32.totalorder %s13, 0
    %p174 = por %p172, %p173
    %p175 = scmp.ne.s32.totalorder %s164, %s167
    %p176 = scmp.eq.s32.totalorder %s18, 7
    %p177 = por %p175, %p176
    %p178 = scmp.ne.s32.totalorder %s167, %s168
    %p179 = scmp.eq.s32.totalorder %s18, 0
    %p180 = por %p178, %p179
    %p181 = scmp.ne.s32.totalorder %s167, %s168
    %p182 = scmp.eq.s32.totalorder %s19, 7
    %p183 = por %p181, %p182
    %p185 = scmp.ne.s32.totalorder %s168, %s184
    %p186 = scmp.eq.s32.totalorder %s19, 0
    %p187 = por %p185, %p186
    %p188 = scmp.le.s32.totalorder 1, %s13
    %p189 = scmp.lt.s32.totalorder %s13, 9
    %p190 = pnand %p188, %p189
    %p191 = pneg %p190
    // Predicated region
    $region9: #{weight_upsample_forward.6} parent=5 // pred_check
      _
    $region10: #{weight_upsample_forward.6} parent=5 // pred_check_branch
      %193 = sbr.rel (%p190) target = $region12
    $region11: #{weight_upsample_forward.6} parent=5 // pred_region
      %s194 = ssub.s32 %s13, 1
      // Predicated region
      $region13: #{weight_upsample_forward.6} parent=11 // pred_check
        %p195 = pneg %p86
      $region14: #{weight_upsample_forward.6} parent=11 // pred_check_branch
        %197 = sbr.rel (%p195) target = $region16
      $region15: #{weight_upsample_forward.6} parent=11 // pred_region
        _
      $region16: #{weight_upsample_forward.6} parent=11 // pred_fallthru
        _
      // Predicated region
      $region17: #{weight_upsample_forward.6} parent=11 // pred_check
        %p198 = pneg %p107
      $region18: #{weight_upsample_forward.6} parent=11 // pred_check_branch
        %200 = sbr.rel (%p198) target = $region20
      $region19: #{weight_upsample_forward.6} parent=11 // pred_region
        _
      $region20: #{weight_upsample_forward.6} parent=11 // pred_fallthru
        _
      // Predicated region
      $region21: #{weight_upsample_forward.6} parent=11 // pred_check
        %p201 = pneg %p128
      $region22: #{weight_upsample_forward.6} parent=11 // pred_check_branch
        %203 = sbr.rel (%p201) target = $region24
      $region23: #{weight_upsample_forward.6} parent=11 // pred_region
        _
      $region24: #{weight_upsample_forward.6} parent=11 // pred_fallthru
        _
    $region12: #{weight_upsample_forward.6} parent=5 // pred_fallthru
      _
    %p204 = scmp.lt.s32.totalorder %s13, 8
    // Predicated region
    $region25: #{weight_upsample_forward.6} parent=5 // pred_check
      %p205 = pneg %p204
    $region26: #{weight_upsample_forward.6} parent=5 // pred_check_branch
      %207 = sbr.rel (%p205) target = $region28
    $region27: #{weight_upsample_forward.6} parent=5 // pred_region
      // Predicated region
      $region29: #{weight_upsample_forward.6} parent=27 // pred_check
        %p208 = pneg %p33
      $region30: #{weight_upsample_forward.6} parent=27 // pred_check_branch
        %210 = sbr.rel (%p208) target = $region32
      $region31: #{weight_upsample_forward.6} parent=27 // pred_region
        %s211 = smul.u32 64, %s13
        %p212 = scmp.lt.s32.totalorder %s211, 511
        %s213 = scalar_select %p212, %s211, 511
        %s214 = smul.addr %s213, 8
        %s215 = scalar_lea.vmem %s0, %s214
        %s216 = smul.u32 64, %s13
      $region32: #{weight_upsample_forward.6} parent=27 // pred_fallthru
        _
      // Predicated region
      $region33: #{weight_upsample_forward.6} parent=27 // pred_check
        %p217 = pneg %p59
      $region34: #{weight_upsample_forward.6} parent=27 // pred_check_branch
        %219 = sbr.rel (%p217) target = $region36
      $region35: #{weight_upsample_forward.6} parent=27 // pred_region
        %s220 = smul.u32 64, %s13
        %p221 = scmp.lt.s32.totalorder %s220, 511
        %s222 = scalar_select %p221, %s220, 511
        %s223 = smul.addr %s222, 8
        %s224 = scalar_lea.vmem %s1, %s223
        %s225 = smul.u32 64, %s13
      $region36: #{weight_upsample_forward.6} parent=27 // pred_fallthru
        _
    $region28: #{weight_upsample_forward.6} parent=5 // pred_fallthru
      _
    %p226 = scmp.le.s32.totalorder 1, %s13
    %p227 = scmp.lt.s32.totalorder %s13, 9
    %p228 = pnand %p226, %p227
    %p229 = pneg %p228
    // Predicated region
    $region37: #{weight_upsample_forward.6} parent=5 // pred_check
      _
    $region38: #{weight_upsample_forward.6} parent=5 // pred_check_branch
      %231 = sbr.rel (%p228) target = $region40
    $region39: #{weight_upsample_forward.6} parent=5 // pred_region
      %s232 = ssub.s32 %s13, 1
      %s233 = smul.u32 64, %s18
      %p234 = scmp.lt.s32.totalorder %s233, 511
      %s235 = scalar_select %p234, %s233, 511
      %s236 = smul.addr %s235, 8
      %s237 = scalar_lea.vmem %s0, %s236
      %p238 = pneg %p39
      %p239 = pneg %p36
      %s240 = smul.u32 64, %s18
      %p241 = scmp.lt.s32.totalorder %s240, 511
      %s242 = scalar_select %p241, %s240, 511
      %s243 = smul.addr %s242, 8
      %s244 = scalar_lea.vmem %s1, %s243
      %p245 = pneg %p65
      %p246 = pneg %p62
      %p247 = pneg %p86
      %p248 = pneg %p83
      %p249 = pneg %p107
      %p250 = pneg %p104
      %p251 = pneg %p128
      %p252 = pneg %p125
      %p253 = pneg %p154
      %p254 = pneg %p151
      %s255 = smul.u32 64, %s18
      %p256 = scmp.lt.s32.totalorder %s255, 511
      %s257 = scalar_select %p256, %s255, 511
      %s258 = smul.addr %s257, 4
      %s259 = scalar_lea.vmem %s5, %s258
      %p260 = pneg %p180
      %p261 = pneg %p177
      %s262 = smul.u32 64, %s18
      %p263 = scmp.lt.s32.totalorder %s262, 511
      %s264 = scalar_select %p263, %s262, 511
      %s265 = smul.addr %s264, 4
      %s266 = scalar_lea.vmem %s6, %s265
      %s267 = smul.u32 64, %s18
      %p268 = scmp.lt.s32.totalorder %s267, 511
      %s269 = scalar_select %p268, %s267, 511
      %s270 = smul.addr %s269, 8
      %s271 = scalar_lea.vmem %s0, %s270
      %s272 = smul.u32 64, %s18
      %s273 = smul.u32 64, %s18
      %p274 = scmp.lt.s32.totalorder %s273, 511
      %s275 = scalar_select %p274, %s273, 511
      %s276 = smul.addr %s275, 8
      %s277 = scalar_lea.vmem %s1, %s276
      %s278 = smul.u32 64, %s18
      %s279 = smul.u32 64, %s18
      %p280 = scmp.lt.s32.totalorder %s279, 511
      %s281 = scalar_select %p280, %s279, 511
      %s282 = smul.addr %s281, 4
      %s283 = scalar_lea.vmem %s5, %s282
      %s284 = smul.u32 64, %s18
      %s285 = smul.u32 64, %s18
      %p286 = scmp.lt.s32.totalorder %s285, 511
      %s287 = scalar_select %p286, %s285, 511
      %s288 = smul.addr %s287, 4
      %s289 = scalar_lea.vmem %s6, %s288
      %s290 = smul.u32 64, %s18
      %v292 = vld [vmem:[%s271] sm:$0xff]
      %v293 = vld [vmem:[%s271 + $0x8] sm:$0xff]
      %v294 = vld [vmem:[%s271 + $0x10] sm:$0xff]
      %v295 = vld [vmem:[%s271 + $0x18] sm:$0xff]
      %v296 = vld [vmem:[%s271 + $0x20] sm:$0xff]
      %v297 = vld [vmem:[%s271 + $0x28] sm:$0xff]
      %v298 = vld [vmem:[%s271 + $0x30] sm:$0xff]
      %v299 = vld [vmem:[%s271 + $0x38] sm:$0xff]
      %v300 = vld [vmem:[%s271 + $0x40] sm:$0xff]
      %v301 = vld [vmem:[%s271 + $0x48] sm:$0xff]
      %v302 = vld [vmem:[%s271 + $0x50] sm:$0xff]
      %v303 = vld [vmem:[%s271 + $0x58] sm:$0xff]
      %v304 = vld [vmem:[%s271 + $0x60] sm:$0xff]
      %v305 = vld [vmem:[%s271 + $0x68] sm:$0xff]
      %v306 = vld [vmem:[%s271 + $0x70] sm:$0xff]
      %v307 = vld [vmem:[%s271 + $0x78] sm:$0xff]
      %v308 = vld [vmem:[%s271 + $0x80] sm:$0xff]
      %v309 = vld [vmem:[%s271 + $0x88] sm:$0xff]
      %v310 = vld [vmem:[%s271 + $0x90] sm:$0xff]
      %v311 = vld [vmem:[%s271 + $0x98] sm:$0xff]
      %v312 = vld [vmem:[%s271 + $0xa0] sm:$0xff]
      %v313 = vld [vmem:[%s271 + $0xa8] sm:$0xff]
      %v314 = vld [vmem:[%s271 + $0xb0] sm:$0xff]
      %v315 = vld [vmem:[%s271 + $0xb8] sm:$0xff]
      %v316 = vld [vmem:[%s271 + $0xc0] sm:$0xff]
      %v317 = vld [vmem:[%s271 + $0xc8] sm:$0xff]
      %v318 = vld [vmem:[%s271 + $0xd0] sm:$0xff]
      %v319 = vld [vmem:[%s271 + $0xd8] sm:$0xff]
      %v320 = vld [vmem:[%s271 + $0xe0] sm:$0xff]
      %v321 = vld [vmem:[%s271 + $0xe8] sm:$0xff]
      %v322 = vld [vmem:[%s271 + $0xf0] sm:$0xff]
      %v323 = vld [vmem:[%s271 + $0xf8] sm:$0xff]
      %v324 = vld [vmem:[%s271 + $0x100] sm:$0xff]
      %v325 = vld [vmem:[%s271 + $0x108] sm:$0xff]
      %v326 = vld [vmem:[%s271 + $0x110] sm:$0xff]
      %v327 = vld [vmem:[%s271 + $0x118] sm:$0xff]
      %v328 = vld [vmem:[%s271 + $0x120] sm:$0xff]
      %v329 = vld [vmem:[%s271 + $0x128] sm:$0xff]
      %v330 = vld [vmem:[%s271 + $0x130] sm:$0xff]
      %v331 = vld [vmem:[%s271 + $0x138] sm:$0xff]
      %v332 = vld [vmem:[%s271 + $0x140] sm:$0xff]
      %v333 = vld [vmem:[%s271 + $0x148] sm:$0xff]
      %v334 = vld [vmem:[%s271 + $0x150] sm:$0xff]
      %v335 = vld [vmem:[%s271 + $0x158] sm:$0xff]
      %v336 = vld [vmem:[%s271 + $0x160] sm:$0xff]
      %v337 = vld [vmem:[%s271 + $0x168] sm:$0xff]
      %v338 = vld [vmem:[%s271 + $0x170] sm:$0xff]
      %v339 = vld [vmem:[%s271 + $0x178] sm:$0xff]
      %v340 = vld [vmem:[%s271 + $0x180] sm:$0xff]
      %v341 = vld [vmem:[%s271 + $0x188] sm:$0xff]
      %v342 = vld [vmem:[%s271 + $0x190] sm:$0xff]
      %v343 = vld [vmem:[%s271 + $0x198] sm:$0xff]
      %v344 = vld [vmem:[%s271 + $0x1a0] sm:$0xff]
      %v345 = vld [vmem:[%s271 + $0x1a8] sm:$0xff]
      %v346 = vld [vmem:[%s271 + $0x1b0] sm:$0xff]
      %v347 = vld [vmem:[%s271 + $0x1b8] sm:$0xff]
      %v348 = vld [vmem:[%s271 + $0x1c0] sm:$0xff]
      %v349 = vld [vmem:[%s271 + $0x1c8] sm:$0xff]
      %v350 = vld [vmem:[%s271 + $0x1d0] sm:$0xff]
      %v351 = vld [vmem:[%s271 + $0x1d8] sm:$0xff]
      %v352 = vld [vmem:[%s271 + $0x1e0] sm:$0xff]
      %v353 = vld [vmem:[%s271 + $0x1e8] sm:$0xff]
      %v354 = vld [vmem:[%s271 + $0x1f0] sm:$0xff]
      %v355 = vld [vmem:[%s271 + $0x1f8] sm:$0xff]
      %v356 = vld [vmem:[%s277] sm:$0xff]
      %v357 = vld [vmem:[%s277 + $0x8] sm:$0xff]
      %v358 = vld [vmem:[%s277 + $0x10] sm:$0xff]
      %v359 = vld [vmem:[%s277 + $0x18] sm:$0xff]
      %v360 = vld [vmem:[%s277 + $0x20] sm:$0xff]
      %v361 = vld [vmem:[%s277 + $0x28] sm:$0xff]
      %v362 = vld [vmem:[%s277 + $0x30] sm:$0xff]
      %v363 = vld [vmem:[%s277 + $0x38] sm:$0xff]
      %v364 = vld [vmem:[%s277 + $0x40] sm:$0xff]
      %v365 = vld [vmem:[%s277 + $0x48] sm:$0xff]
      %v366 = vld [vmem:[%s277 + $0x50] sm:$0xff]
      %v367 = vld [vmem:[%s277 + $0x58] sm:$0xff]
      %v368 = vld [vmem:[%s277 + $0x60] sm:$0xff]
      %v369 = vld [vmem:[%s277 + $0x68] sm:$0xff]
      %v370 = vld [vmem:[%s277 + $0x70] sm:$0xff]
      %v371 = vld [vmem:[%s277 + $0x78] sm:$0xff]
      %v372 = vld [vmem:[%s277 + $0x80] sm:$0xff]
      %v373 = vld [vmem:[%s277 + $0x88] sm:$0xff]
      %v374 = vld [vmem:[%s277 + $0x90] sm:$0xff]
      %v375 = vld [vmem:[%s277 + $0x98] sm:$0xff]
      %v376 = vld [vmem:[%s277 + $0xa0] sm:$0xff]
      %v377 = vld [vmem:[%s277 + $0xa8] sm:$0xff]
      %v378 = vld [vmem:[%s277 + $0xb0] sm:$0xff]
      %v379 = vld [vmem:[%s277 + $0xb8] sm:$0xff]
      %v380 = vld [vmem:[%s277 + $0xc0] sm:$0xff]
      %v381 = vld [vmem:[%s277 + $0xc8] sm:$0xff]
      %v382 = vld [vmem:[%s277 + $0xd0] sm:$0xff]
      %v383 = vld [vmem:[%s277 + $0xd8] sm:$0xff]
      %v384 = vld [vmem:[%s277 + $0xe0] sm:$0xff]
      %v385 = vld [vmem:[%s277 + $0xe8] sm:$0xff]
      %v386 = vld [vmem:[%s277 + $0xf0] sm:$0xff]
      %v387 = vld [vmem:[%s277 + $0xf8] sm:$0xff]
      %v388 = vld [vmem:[%s277 + $0x100] sm:$0xff]
      %v389 = vld [vmem:[%s277 + $0x108] sm:$0xff]
      %v390 = vld [vmem:[%s277 + $0x110] sm:$0xff]
      %v391 = vld [vmem:[%s277 + $0x118] sm:$0xff]
      %v392 = vld [vmem:[%s277 + $0x120] sm:$0xff]
      %v393 = vld [vmem:[%s277 + $0x128] sm:$0xff]
      %v394 = vld [vmem:[%s277 + $0x130] sm:$0xff]
      %v395 = vld [vmem:[%s277 + $0x138] sm:$0xff]
      %v396 = vld [vmem:[%s277 + $0x140] sm:$0xff]
      %v397 = vld [vmem:[%s277 + $0x148] sm:$0xff]
      %v398 = vld [vmem:[%s277 + $0x150] sm:$0xff]
      %v399 = vld [vmem:[%s277 + $0x158] sm:$0xff]
      %v400 = vld [vmem:[%s277 + $0x160] sm:$0xff]
      %v401 = vld [vmem:[%s277 + $0x168] sm:$0xff]
      %v402 = vld [vmem:[%s277 + $0x170] sm:$0xff]
      %v403 = vld [vmem:[%s277 + $0x178] sm:$0xff]
      %v404 = vld [vmem:[%s277 + $0x180] sm:$0xff]
      %v405 = vld [vmem:[%s277 + $0x188] sm:$0xff]
      %v406 = vld [vmem:[%s277 + $0x190] sm:$0xff]
      %v407 = vld [vmem:[%s277 + $0x198] sm:$0xff]
      %v408 = vld [vmem:[%s277 + $0x1a0] sm:$0xff]
      %v409 = vld [vmem:[%s277 + $0x1a8] sm:$0xff]
      %v410 = vld [vmem:[%s277 + $0x1b0] sm:$0xff]
      %v411 = vld [vmem:[%s277 + $0x1b8] sm:$0xff]
      %v412 = vld [vmem:[%s277 + $0x1c0] sm:$0xff]
      %v413 = vld [vmem:[%s277 + $0x1c8] sm:$0xff]
      %v414 = vld [vmem:[%s277 + $0x1d0] sm:$0xff]
      %v415 = vld [vmem:[%s277 + $0x1d8] sm:$0xff]
      %v416 = vld [vmem:[%s277 + $0x1e0] sm:$0xff]
      %v417 = vld [vmem:[%s277 + $0x1e8] sm:$0xff]
      %v418 = vld [vmem:[%s277 + $0x1f0] sm:$0xff]
      %v419 = vld [vmem:[%s277 + $0x1f8] sm:$0xff]
      %421 = vset.pattern.permute.xlu0 0
      %422 = vperm.xlu0 %421, %v356
      %v423 = vpop.permute.xlu0 %422
      %426 = vset.pattern.permute.xlu0 0
      %427 = vperm.xlu0 %426, %v357
      %v428 = vpop.permute.xlu0 %427
      %431 = vset.pattern.permute.xlu0 0
      %432 = vperm.xlu0 %431, %v358
      %v433 = vpop.permute.xlu0 %432
      %436 = vset.pattern.permute.xlu0 0
      %437 = vperm.xlu0 %436, %v359
      %v438 = vpop.permute.xlu0 %437
      %441 = vset.pattern.permute.xlu0 0
      %442 = vperm.xlu0 %441, %v360
      %v443 = vpop.permute.xlu0 %442
      %446 = vset.pattern.permute.xlu0 0
      %447 = vperm.xlu0 %446, %v361
      %v448 = vpop.permute.xlu0 %447
      %451 = vset.pattern.permute.xlu0 0
      %452 = vperm.xlu0 %451, %v362
      %v453 = vpop.permute.xlu0 %452
      %456 = vset.pattern.permute.xlu0 0
      %457 = vperm.xlu0 %456, %v363
      %v458 = vpop.permute.xlu0 %457
      %461 = vset.pattern.permute.xlu0 0
      %462 = vperm.xlu0 %461, %v364
      %v463 = vpop.permute.xlu0 %462
      %466 = vset.pattern.permute.xlu0 0
      %467 = vperm.xlu0 %466, %v365
      %v468 = vpop.permute.xlu0 %467
      %471 = vset.pattern.permute.xlu0 0
      %472 = vperm.xlu0 %471, %v366
      %v473 = vpop.permute.xlu0 %472
      %476 = vset.pattern.permute.xlu0 0
      %477 = vperm.xlu0 %476, %v367
      %v478 = vpop.permute.xlu0 %477
      %481 = vset.pattern.permute.xlu0 0
      %482 = vperm.xlu0 %481, %v368
      %v483 = vpop.permute.xlu0 %482
      %486 = vset.pattern.permute.xlu0 0
      %487 = vperm.xlu0 %486, %v369
      %v488 = vpop.permute.xlu0 %487
      %491 = vset.pattern.permute.xlu0 0
      %492 = vperm.xlu0 %491, %v370
      %v493 = vpop.permute.xlu0 %492
      %496 = vset.pattern.permute.xlu0 0
      %497 = vperm.xlu0 %496, %v371
      %v498 = vpop.permute.xlu0 %497
      %501 = vset.pattern.permute.xlu0 0
      %502 = vperm.xlu0 %501, %v372
      %v503 = vpop.permute.xlu0 %502
      %506 = vset.pattern.permute.xlu0 0
      %507 = vperm.xlu0 %506, %v373
      %v508 = vpop.permute.xlu0 %507
      %511 = vset.pattern.permute.xlu0 0
      %512 = vperm.xlu0 %511, %v374
      %v513 = vpop.permute.xlu0 %512
      %516 = vset.pattern.permute.xlu0 0
      %517 = vperm.xlu0 %516, %v375
      %v518 = vpop.permute.xlu0 %517
      %521 = vset.pattern.permute.xlu0 0
      %522 = vperm.xlu0 %521, %v376
      %v523 = vpop.permute.xlu0 %522
      %526 = vset.pattern.permute.xlu0 0
      %527 = vperm.xlu0 %526, %v377
      %v528 = vpop.permute.xlu0 %527
      %531 = vset.pattern.permute.xlu0 0
      %532 = vperm.xlu0 %531, %v378
      %v533 = vpop.permute.xlu0 %532
      %536 = vset.pattern.permute.xlu0 0
      %537 = vperm.xlu0 %536, %v379
      %v538 = vpop.permute.xlu0 %537
      %541 = vset.pattern.permute.xlu0 0
      %542 = vperm.xlu0 %541, %v380
      %v543 = vpop.permute.xlu0 %542
      %546 = vset.pattern.permute.xlu0 0
      %547 = vperm.xlu0 %546, %v381
      %v548 = vpop.permute.xlu0 %547
      %551 = vset.pattern.permute.xlu0 0
      %552 = vperm.xlu0 %551, %v382
      %v553 = vpop.permute.xlu0 %552
      %556 = vset.pattern.permute.xlu0 0
      %557 = vperm.xlu0 %556, %v383
      %v558 = vpop.permute.xlu0 %557
      %561 = vset.pattern.permute.xlu0 0
      %562 = vperm.xlu0 %561, %v384
      %v563 = vpop.permute.xlu0 %562
      %566 = vset.pattern.permute.xlu0 0
      %567 = vperm.xlu0 %566, %v385
      %v568 = vpop.permute.xlu0 %567
      %571 = vset.pattern.permute.xlu0 0
      %572 = vperm.xlu0 %571, %v386
      %v573 = vpop.permute.xlu0 %572
      %576 = vset.pattern.permute.xlu0 0
      %577 = vperm.xlu0 %576, %v387
      %v578 = vpop.permute.xlu0 %577
      %581 = vset.pattern.permute.xlu0 0
      %582 = vperm.xlu0 %581, %v388
      %v583 = vpop.permute.xlu0 %582
      %586 = vset.pattern.permute.xlu0 0
      %587 = vperm.xlu0 %586, %v389
      %v588 = vpop.permute.xlu0 %587
      %591 = vset.pattern.permute.xlu0 0
      %592 = vperm.xlu0 %591, %v390
      %v593 = vpop.permute.xlu0 %592
      %596 = vset.pattern.permute.xlu0 0
      %597 = vperm.xlu0 %596, %v391
      %v598 = vpop.permute.xlu0 %597
      %601 = vset.pattern.permute.xlu0 0
      %602 = vperm.xlu0 %601, %v392
      %v603 = vpop.permute.xlu0 %602
      %606 = vset.pattern.permute.xlu0 0
      %607 = vperm.xlu0 %606, %v393
      %v608 = vpop.permute.xlu0 %607
      %611 = vset.pattern.permute.xlu0 0
      %612 = vperm.xlu0 %611, %v394
      %v613 = vpop.permute.xlu0 %612
      %616 = vset.pattern.permute.xlu0 0
      %617 = vperm.xlu0 %616, %v395
      %v618 = vpop.permute.xlu0 %617
      %621 = vset.pattern.permute.xlu0 0
      %622 = vperm.xlu0 %621, %v396
      %v623 = vpop.permute.xlu0 %622
      %626 = vset.pattern.permute.xlu0 0
      %627 = vperm.xlu0 %626, %v397
      %v628 = vpop.permute.xlu0 %627
      %631 = vset.pattern.permute.xlu0 0
      %632 = vperm.xlu0 %631, %v398
      %v633 = vpop.permute.xlu0 %632
      %636 = vset.pattern.permute.xlu0 0
      %637 = vperm.xlu0 %636, %v399
      %v638 = vpop.permute.xlu0 %637
      %641 = vset.pattern.permute.xlu0 0
      %642 = vperm.xlu0 %641, %v400
      %v643 = vpop.permute.xlu0 %642
      %646 = vset.pattern.permute.xlu0 0
      %647 = vperm.xlu0 %646, %v401
      %v648 = vpop.permute.xlu0 %647
      %651 = vset.pattern.permute.xlu0 0
      %652 = vperm.xlu0 %651, %v402
      %v653 = vpop.permute.xlu0 %652
      %656 = vset.pattern.permute.xlu0 0
      %657 = vperm.xlu0 %656, %v403
      %v658 = vpop.permute.xlu0 %657
      %661 = vset.pattern.permute.xlu0 0
      %662 = vperm.xlu0 %661, %v404
      %v663 = vpop.permute.xlu0 %662
      %666 = vset.pattern.permute.xlu0 0
      %667 = vperm.xlu0 %666, %v405
      %v668 = vpop.permute.xlu0 %667
      %671 = vset.pattern.permute.xlu0 0
      %672 = vperm.xlu0 %671, %v406
      %v673 = vpop.permute.xlu0 %672
      %676 = vset.pattern.permute.xlu0 0
      %677 = vperm.xlu0 %676, %v407
      %v678 = vpop.permute.xlu0 %677
      %681 = vset.pattern.permute.xlu0 0
      %682 = vperm.xlu0 %681, %v408
      %v683 = vpop.permute.xlu0 %682
      %686 = vset.pattern.permute.xlu0 0
      %687 = vperm.xlu0 %686, %v409
      %v688 = vpop.permute.xlu0 %687
      %691 = vset.pattern.permute.xlu0 0
      %692 = vperm.xlu0 %691, %v410
      %v693 = vpop.permute.xlu0 %692
      %696 = vset.pattern.permute.xlu0 0
      %697 = vperm.xlu0 %696, %v411
      %v698 = vpop.permute.xlu0 %697
      %701 = vset.pattern.permute.xlu0 0
      %702 = vperm.xlu0 %701, %v412
      %v703 = vpop.permute.xlu0 %702
      %706 = vset.pattern.permute.xlu0 0
      %707 = vperm.xlu0 %706, %v413
      %v708 = vpop.permute.xlu0 %707
      %711 = vset.pattern.permute.xlu0 0
      %712 = vperm.xlu0 %711, %v414
      %v713 = vpop.permute.xlu0 %712
      %716 = vset.pattern.permute.xlu0 0
      %717 = vperm.xlu0 %716, %v415
      %v718 = vpop.permute.xlu0 %717
      %721 = vset.pattern.permute.xlu0 0
      %722 = vperm.xlu0 %721, %v416
      %v723 = vpop.permute.xlu0 %722
      %726 = vset.pattern.permute.xlu0 0
      %727 = vperm.xlu0 %726, %v417
      %v728 = vpop.permute.xlu0 %727
      %731 = vset.pattern.permute.xlu0 0
      %732 = vperm.xlu0 %731, %v418
      %v733 = vpop.permute.xlu0 %732
      %736 = vset.pattern.permute.xlu0 0
      %737 = vperm.xlu0 %736, %v419
      %v738 = vpop.permute.xlu0 %737
      %v740 = vmul.f32 %v292, %v423
      %v741 = vmul.f32 %v293, %v428
      %v742 = vmul.f32 %v294, %v433
      %v743 = vmul.f32 %v295, %v438
      %v744 = vmul.f32 %v296, %v443
      %v745 = vmul.f32 %v297, %v448
      %v746 = vmul.f32 %v298, %v453
      %v747 = vmul.f32 %v299, %v458
      %v748 = vmul.f32 %v300, %v463
      %v749 = vmul.f32 %v301, %v468
      %v750 = vmul.f32 %v302, %v473
      %v751 = vmul.f32 %v303, %v478
      %v752 = vmul.f32 %v304, %v483
      %v753 = vmul.f32 %v305, %v488
      %v754 = vmul.f32 %v306, %v493
      %v755 = vmul.f32 %v307, %v498
      %v756 = vmul.f32 %v308, %v503
      %v757 = vmul.f32 %v309, %v508
      %v758 = vmul.f32 %v310, %v513
      %v759 = vmul.f32 %v311, %v518
      %v760 = vmul.f32 %v312, %v523
      %v761 = vmul.f32 %v313, %v528
      %v762 = vmul.f32 %v314, %v533
      %v763 = vmul.f32 %v315, %v538
      %v764 = vmul.f32 %v316, %v543
      %v765 = vmul.f32 %v317, %v548
      %v766 = vmul.f32 %v318, %v553
      %v767 = vmul.f32 %v319, %v558
      %v768 = vmul.f32 %v320, %v563
      %v769 = vmul.f32 %v321, %v568
      %v770 = vmul.f32 %v322, %v573
      %v771 = vmul.f32 %v323, %v578
      %v772 = vmul.f32 %v324, %v583
      %v773 = vmul.f32 %v325, %v588
      %v774 = vmul.f32 %v326, %v593
      %v775 = vmul.f32 %v327, %v598
      %v776 = vmul.f32 %v328, %v603
      %v777 = vmul.f32 %v329, %v608
      %v778 = vmul.f32 %v330, %v613
      %v779 = vmul.f32 %v331, %v618
      %v780 = vmul.f32 %v332, %v623
      %v781 = vmul.f32 %v333, %v628
      %v782 = vmul.f32 %v334, %v633
      %v783 = vmul.f32 %v335, %v638
      %v784 = vmul.f32 %v336, %v643
      %v785 = vmul.f32 %v337, %v648
      %v786 = vmul.f32 %v338, %v653
      %v787 = vmul.f32 %v339, %v658
      %v788 = vmul.f32 %v340, %v663
      %v789 = vmul.f32 %v341, %v668
      %v790 = vmul.f32 %v342, %v673
      %v791 = vmul.f32 %v343, %v678
      %v792 = vmul.f32 %v344, %v683
      %v793 = vmul.f32 %v345, %v688
      %v794 = vmul.f32 %v346, %v693
      %v795 = vmul.f32 %v347, %v698
      %v796 = vmul.f32 %v348, %v703
      %v797 = vmul.f32 %v349, %v708
      %v798 = vmul.f32 %v350, %v713
      %v799 = vmul.f32 %v351, %v718
      %v800 = vmul.f32 %v352, %v723
      %v801 = vmul.f32 %v353, %v728
      %v802 = vmul.f32 %v354, %v733
      %v803 = vmul.f32 %v355, %v738
      %v804 = vpack.c.bf16 %v293, %v292
      %v805 = vpack.c.bf16 %v295, %v294
      %v806 = vpack.c.bf16 %v297, %v296
      %v807 = vpack.c.bf16 %v299, %v298
      %v808 = vpack.c.bf16 %v301, %v300
      %v809 = vpack.c.bf16 %v303, %v302
      %v810 = vpack.c.bf16 %v305, %v304
      %v811 = vpack.c.bf16 %v307, %v306
      %v812 = vpack.c.bf16 %v309, %v308
      %v813 = vpack.c.bf16 %v311, %v310
      %v814 = vpack.c.bf16 %v313, %v312
      %v815 = vpack.c.bf16 %v315, %v314
      %v816 = vpack.c.bf16 %v317, %v316
      %v817 = vpack.c.bf16 %v319, %v318
      %v818 = vpack.c.bf16 %v321, %v320
      %v819 = vpack.c.bf16 %v323, %v322
      %v820 = vpack.c.bf16 %v325, %v324
      %v821 = vpack.c.bf16 %v327, %v326
      %v822 = vpack.c.bf16 %v329, %v328
      %v823 = vpack.c.bf16 %v331, %v330
      %v824 = vpack.c.bf16 %v333, %v332
      %v825 = vpack.c.bf16 %v335, %v334
      %v826 = vpack.c.bf16 %v337, %v336
      %v827 = vpack.c.bf16 %v339, %v338
      %v828 = vpack.c.bf16 %v341, %v340
      %v829 = vpack.c.bf16 %v343, %v342
      %v830 = vpack.c.bf16 %v345, %v344
      %v831 = vpack.c.bf16 %v347, %v346
      %v832 = vpack.c.bf16 %v349, %v348
      %v833 = vpack.c.bf16 %v351, %v350
      %v834 = vpack.c.bf16 %v353, %v352
      %v835 = vpack.c.bf16 %v355, %v354
      %v868 = vunpack.c.l.b16 %v804
      %v869 = vunpack.c.h.b16 %v804
      %v870 = vunpack.c.l.b16 %v805
      %v871 = vunpack.c.h.b16 %v805
      %v872 = vunpack.c.l.b16 %v806
      %v873 = vunpack.c.h.b16 %v806
      %v874 = vunpack.c.l.b16 %v807
      %v875 = vunpack.c.h.b16 %v807
      %v876 = vunpack.c.l.b16 %v808
      %v877 = vunpack.c.h.b16 %v808
      %v878 = vunpack.c.l.b16 %v809
      %v879 = vunpack.c.h.b16 %v809
      %v880 = vunpack.c.l.b16 %v810
      %v881 = vunpack.c.h.b16 %v810
      %v882 = vunpack.c.l.b16 %v811
      %v883 = vunpack.c.h.b16 %v811
      %v884 = vunpack.c.l.b16 %v812
      %v885 = vunpack.c.h.b16 %v812
      %v886 = vunpack.c.l.b16 %v813
      %v887 = vunpack.c.h.b16 %v813
      %v888 = vunpack.c.l.b16 %v814
      %v889 = vunpack.c.h.b16 %v814
      %v890 = vunpack.c.l.b16 %v815
      %v891 = vunpack.c.h.b16 %v815
      %v892 = vunpack.c.l.b16 %v816
      %v893 = vunpack.c.h.b16 %v816
      %v894 = vunpack.c.l.b16 %v817
      %v895 = vunpack.c.h.b16 %v817
      %v896 = vunpack.c.l.b16 %v818
      %v897 = vunpack.c.h.b16 %v818
      %v898 = vunpack.c.l.b16 %v819
      %v899 = vunpack.c.h.b16 %v819
      %v900 = vunpack.c.l.b16 %v820
      %v901 = vunpack.c.h.b16 %v820
      %v902 = vunpack.c.l.b16 %v821
      %v903 = vunpack.c.h.b16 %v821
      %v904 = vunpack.c.l.b16 %v822
      %v905 = vunpack.c.h.b16 %v822
      %v906 = vunpack.c.l.b16 %v823
      %v907 = vunpack.c.h.b16 %v823
      %v908 = vunpack.c.l.b16 %v824
      %v909 = vunpack.c.h.b16 %v824
      %v910 = vunpack.c.l.b16 %v825
      %v911 = vunpack.c.h.b16 %v825
      %v912 = vunpack.c.l.b16 %v826
      %v913 = vunpack.c.h.b16 %v826
      %v914 = vunpack.c.l.b16 %v827
      %v915 = vunpack.c.h.b16 %v827
      %v916 = vunpack.c.l.b16 %v828
      %v917 = vunpack.c.h.b16 %v828
      %v918 = vunpack.c.l.b16 %v829
      %v919 = vunpack.c.h.b16 %v829
      %v920 = vunpack.c.l.b16 %v830
      %v921 = vunpack.c.h.b16 %v830
      %v922 = vunpack.c.l.b16 %v831
      %v923 = vunpack.c.h.b16 %v831
      %v924 = vunpack.c.l.b16 %v832
      %v925 = vunpack.c.h.b16 %v832
      %v926 = vunpack.c.l.b16 %v833
      %v927 = vunpack.c.h.b16 %v833
      %v928 = vunpack.c.l.b16 %v834
      %v929 = vunpack.c.h.b16 %v834
      %v930 = vunpack.c.l.b16 %v835
      %v931 = vunpack.c.h.b16 %v835
      %v932 = vpack.c.b16 %v868, %v868
      %v933 = vpack.c.b16 %v869, %v869
      %v934 = vpack.c.b16 %v870, %v870
      %v935 = vpack.c.b16 %v871, %v871
      %v936 = vpack.c.b16 %v872, %v872
      %v937 = vpack.c.b16 %v873, %v873
      %v938 = vpack.c.b16 %v874, %v874
      %v939 = vpack.c.b16 %v875, %v875
      %v940 = vpack.c.b16 %v876, %v876
      %v941 = vpack.c.b16 %v877, %v877
      %v942 = vpack.c.b16 %v878, %v878
      %v943 = vpack.c.b16 %v879, %v879
      %v944 = vpack.c.b16 %v880, %v880
      %v945 = vpack.c.b16 %v881, %v881
      %v946 = vpack.c.b16 %v882, %v882
      %v947 = vpack.c.b16 %v883, %v883
      %v948 = vpack.c.b16 %v884, %v884
      %v949 = vpack.c.b16 %v885, %v885
      %v950 = vpack.c.b16 %v886, %v886
      %v951 = vpack.c.b16 %v887, %v887
      %v952 = vpack.c.b16 %v888, %v888
      %v953 = vpack.c.b16 %v889, %v889
      %v954 = vpack.c.b16 %v890, %v890
      %v955 = vpack.c.b16 %v891, %v891
      %v956 = vpack.c.b16 %v892, %v892
      %v957 = vpack.c.b16 %v893, %v893
      %v958 = vpack.c.b16 %v894, %v894
      %v959 = vpack.c.b16 %v895, %v895
      %v960 = vpack.c.b16 %v896, %v896
      %v961 = vpack.c.b16 %v897, %v897
      %v962 = vpack.c.b16 %v898, %v898
      %v963 = vpack.c.b16 %v899, %v899
      %v964 = vpack.c.b16 %v900, %v900
      %v965 = vpack.c.b16 %v901, %v901
      %v966 = vpack.c.b16 %v902, %v902
      %v967 = vpack.c.b16 %v903, %v903
      %v968 = vpack.c.b16 %v904, %v904
      %v969 = vpack.c.b16 %v905, %v905
      %v970 = vpack.c.b16 %v906, %v906
      %v971 = vpack.c.b16 %v907, %v907
      %v972 = vpack.c.b16 %v908, %v908
      %v973 = vpack.c.b16 %v909, %v909
      %v974 = vpack.c.b16 %v910, %v910
      %v975 = vpack.c.b16 %v911, %v911
      %v976 = vpack.c.b16 %v912, %v912
      %v977 = vpack.c.b16 %v913, %v913
      %v978 = vpack.c.b16 %v914, %v914
      %v979 = vpack.c.b16 %v915, %v915
      %v980 = vpack.c.b16 %v916, %v916
      %v981 = vpack.c.b16 %v917, %v917
      %v982 = vpack.c.b16 %v918, %v918
      %v983 = vpack.c.b16 %v919, %v919
      %v984 = vpack.c.b16 %v920, %v920
      %v985 = vpack.c.b16 %v921, %v921
      %v986 = vpack.c.b16 %v922, %v922
      %v987 = vpack.c.b16 %v923, %v923
      %v988 = vpack.c.b16 %v924, %v924
      %v989 = vpack.c.b16 %v925, %v925
      %v990 = vpack.c.b16 %v926, %v926
      %v991 = vpack.c.b16 %v927, %v927
      %v992 = vpack.c.b16 %v928, %v928
      %v993 = vpack.c.b16 %v929, %v929
      %v994 = vpack.c.b16 %v930, %v930
      %v995 = vpack.c.b16 %v931, %v931
      %vm1060 = vcmask 125952
      %1061 = vst.msk [vmem:[%s283] sm:$0xf] %vm1060, %v932
      %1062 = vst.msk [vmem:[%s283 + $0x4] sm:$0xf] %vm1060, %v933
      %1063 = vst.msk [vmem:[%s283 + $0x8] sm:$0xf] %vm1060, %v934
      %1064 = vst.msk [vmem:[%s283 + $0xc] sm:$0xf] %vm1060, %v935
      %1065 = vst.msk [vmem:[%s283 + $0x10] sm:$0xf] %vm1060, %v936
      %1066 = vst.msk [vmem:[%s283 + $0x14] sm:$0xf] %vm1060, %v937
      %1067 = vst.msk [vmem:[%s283 + $0x18] sm:$0xf] %vm1060, %v938
      %1068 = vst.msk [vmem:[%s283 + $0x1c] sm:$0xf] %vm1060, %v939
      %1069 = vst.msk [vmem:[%s283 + $0x20] sm:$0xf] %vm1060, %v940
      %1070 = vst.msk [vmem:[%s283 + $0x24] sm:$0xf] %vm1060, %v941
      %1071 = vst.msk [vmem:[%s283 + $0x28] sm:$0xf] %vm1060, %v942
      %1072 = vst.msk [vmem:[%s283 + $0x2c] sm:$0xf] %vm1060, %v943
      %1073 = vst.msk [vmem:[%s283 + $0x30] sm:$0xf] %vm1060, %v944
      %1074 = vst.msk [vmem:[%s283 + $0x34] sm:$0xf] %vm1060, %v945
      %1075 = vst.msk [vmem:[%s283 + $0x38] sm:$0xf] %vm1060, %v946
      %1076 = vst.msk [vmem:[%s283 + $0x3c] sm:$0xf] %vm1060, %v947
      %1077 = vst.msk [vmem:[%s283 + $0x40] sm:$0xf] %vm1060, %v948
      %1078 = vst.msk [vmem:[%s283 + $0x44] sm:$0xf] %vm1060, %v949
      %1079 = vst.msk [vmem:[%s283 + $0x48] sm:$0xf] %vm1060, %v950
      %1080 = vst.msk [vmem:[%s283 + $0x4c] sm:$0xf] %vm1060, %v951
      %1081 = vst.msk [vmem:[%s283 + $0x50] sm:$0xf] %vm1060, %v952
      %1082 = vst.msk [vmem:[%s283 + $0x54] sm:$0xf] %vm1060, %v953
      %1083 = vst.msk [vmem:[%s283 + $0x58] sm:$0xf] %vm1060, %v954
      %1084 = vst.msk [vmem:[%s283 + $0x5c] sm:$0xf] %vm1060, %v955
      %1085 = vst.msk [vmem:[%s283 + $0x60] sm:$0xf] %vm1060, %v956
      %1086 = vst.msk [vmem:[%s283 + $0x64] sm:$0xf] %vm1060, %v957
      %1087 = vst.msk [vmem:[%s283 + $0x68] sm:$0xf] %vm1060, %v958
      %1088 = vst.msk [vmem:[%s283 + $0x6c] sm:$0xf] %vm1060, %v959
      %1089 = vst.msk [vmem:[%s283 + $0x70] sm:$0xf] %vm1060, %v960
      %1090 = vst.msk [vmem:[%s283 + $0x74] sm:$0xf] %vm1060, %v961
      %1091 = vst.msk [vmem:[%s283 + $0x78] sm:$0xf] %vm1060, %v962
      %1092 = vst.msk [vmem:[%s283 + $0x7c] sm:$0xf] %vm1060, %v963
      %1093 = vst.msk [vmem:[%s283 + $0x80] sm:$0xf] %vm1060, %v964
      %1094 = vst.msk [vmem:[%s283 + $0x84] sm:$0xf] %vm1060, %v965
      %1095 = vst.msk [vmem:[%s283 + $0x88] sm:$0xf] %vm1060, %v966
      %1096 = vst.msk [vmem:[%s283 + $0x8c] sm:$0xf] %vm1060, %v967
      %1097 = vst.msk [vmem:[%s283 + $0x90] sm:$0xf] %vm1060, %v968
      %1098 = vst.msk [vmem:[%s283 + $0x94] sm:$0xf] %vm1060, %v969
      %1099 = vst.msk [vmem:[%s283 + $0x98] sm:$0xf] %vm1060, %v970
      %1100 = vst.msk [vmem:[%s283 + $0x9c] sm:$0xf] %vm1060, %v971
      %1101 = vst.msk [vmem:[%s283 + $0xa0] sm:$0xf] %vm1060, %v972
      %1102 = vst.msk [vmem:[%s283 + $0xa4] sm:$0xf] %vm1060, %v973
      %1103 = vst.msk [vmem:[%s283 + $0xa8] sm:$0xf] %vm1060, %v974
      %1104 = vst.msk [vmem:[%s283 + $0xac] sm:$0xf] %vm1060, %v975
      %1105 = vst.msk [vmem:[%s283 + $0xb0] sm:$0xf] %vm1060, %v976
      %1106 = vst.msk [vmem:[%s283 + $0xb4] sm:$0xf] %vm1060, %v977
      %1107 = vst.msk [vmem:[%s283 + $0xb8] sm:$0xf] %vm1060, %v978
      %1108 = vst.msk [vmem:[%s283 + $0xbc] sm:$0xf] %vm1060, %v979
      %1109 = vst.msk [vmem:[%s283 + $0xc0] sm:$0xf] %vm1060, %v980
      %1110 = vst.msk [vmem:[%s283 + $0xc4] sm:$0xf] %vm1060, %v981
      %1111 = vst.msk [vmem:[%s283 + $0xc8] sm:$0xf] %vm1060, %v982
      %1112 = vst.msk [vmem:[%s283 + $0xcc] sm:$0xf] %vm1060, %v983
      %1113 = vst.msk [vmem:[%s283 + $0xd0] sm:$0xf] %vm1060, %v984
      %1114 = vst.msk [vmem:[%s283 + $0xd4] sm:$0xf] %vm1060, %v985
      %1115 = vst.msk [vmem:[%s283 + $0xd8] sm:$0xf] %vm1060, %v986
      %1116 = vst.msk [vmem:[%s283 + $0xdc] sm:$0xf] %vm1060, %v987
      %1117 = vst.msk [vmem:[%s283 + $0xe0] sm:$0xf] %vm1060, %v988
      %1118 = vst.msk [vmem:[%s283 + $0xe4] sm:$0xf] %vm1060, %v989
      %1119 = vst.msk [vmem:[%s283 + $0xe8] sm:$0xf] %vm1060, %v990
      %1120 = vst.msk [vmem:[%s283 + $0xec] sm:$0xf] %vm1060, %v991
      %1121 = vst.msk [vmem:[%s283 + $0xf0] sm:$0xf] %vm1060, %v992
      %1122 = vst.msk [vmem:[%s283 + $0xf4] sm:$0xf] %vm1060, %v993
      %1123 = vst.msk [vmem:[%s283 + $0xf8] sm:$0xf] %vm1060, %v994
      %1124 = vst.msk [vmem:[%s283 + $0xfc] sm:$0xf] %vm1060, %v995
      %v1125 = vpack.c.bf16 %v741, %v740
      %v1126 = vpack.c.bf16 %v743, %v742
      %v1127 = vpack.c.bf16 %v745, %v744
      %v1128 = vpack.c.bf16 %v747, %v746
      %v1129 = vpack.c.bf16 %v749, %v748
      %v1130 = vpack.c.bf16 %v751, %v750
      %v1131 = vpack.c.bf16 %v753, %v752
      %v1132 = vpack.c.bf16 %v755, %v754
      %v1133 = vpack.c.bf16 %v757, %v756
      %v1134 = vpack.c.bf16 %v759, %v758
      %v1135 = vpack.c.bf16 %v761, %v760
      %v1136 = vpack.c.bf16 %v763, %v762
      %v1137 = vpack.c.bf16 %v765, %v764
      %v1138 = vpack.c.bf16 %v767, %v766
      %v1139 = vpack.c.bf16 %v769, %v768
      %v1140 = vpack.c.bf16 %v771, %v770
      %v1141 = vpack.c.bf16 %v773, %v772
      %v1142 = vpack.c.bf16 %v775, %v774
      %v1143 = vpack.c.bf16 %v777, %v776
      %v1144 = vpack.c.bf16 %v779, %v778
      %v1145 = vpack.c.bf16 %v781, %v780
      %v1146 = vpack.c.bf16 %v783, %v782
      %v1147 = vpack.c.bf16 %v785, %v784
      %v1148 = vpack.c.bf16 %v787, %v786
      %v1149 = vpack.c.bf16 %v789, %v788
      %v1150 = vpack.c.bf16 %v791, %v790
      %v1151 = vpack.c.bf16 %v793, %v792
      %v1152 = vpack.c.bf16 %v795, %v794
      %v1153 = vpack.c.bf16 %v797, %v796
      %v1154 = vpack.c.bf16 %v799, %v798
      %v1155 = vpack.c.bf16 %v801, %v800
      %v1156 = vpack.c.bf16 %v803, %v802
      %v1189 = vunpack.c.l.b16 %v1125
      %v1190 = vunpack.c.h.b16 %v1125
      %v1191 = vunpack.c.l.b16 %v1126
      %v1192 = vunpack.c.h.b16 %v1126
      %v1193 = vunpack.c.l.b16 %v1127
      %v1194 = vunpack.c.h.b16 %v1127
      %v1195 = vunpack.c.l.b16 %v1128
      %v1196 = vunpack.c.h.b16 %v1128
      %v1197 = vunpack.c.l.b16 %v1129
      %v1198 = vunpack.c.h.b16 %v1129
      %v1199 = vunpack.c.l.b16 %v1130
      %v1200 = vunpack.c.h.b16 %v1130
      %v1201 = vunpack.c.l.b16 %v1131
      %v1202 = vunpack.c.h.b16 %v1131
      %v1203 = vunpack.c.l.b16 %v1132
      %v1204 = vunpack.c.h.b16 %v1132
      %v1205 = vunpack.c.l.b16 %v1133
      %v1206 = vunpack.c.h.b16 %v1133
      %v1207 = vunpack.c.l.b16 %v1134
      %v1208 = vunpack.c.h.b16 %v1134
      %v1209 = vunpack.c.l.b16 %v1135
      %v1210 = vunpack.c.h.b16 %v1135
      %v1211 = vunpack.c.l.b16 %v1136
      %v1212 = vunpack.c.h.b16 %v1136
      %v1213 = vunpack.c.l.b16 %v1137
      %v1214 = vunpack.c.h.b16 %v1137
      %v1215 = vunpack.c.l.b16 %v1138
      %v1216 = vunpack.c.h.b16 %v1138
      %v1217 = vunpack.c.l.b16 %v1139
      %v1218 = vunpack.c.h.b16 %v1139
      %v1219 = vunpack.c.l.b16 %v1140
      %v1220 = vunpack.c.h.b16 %v1140
      %v1221 = vunpack.c.l.b16 %v1141
      %v1222 = vunpack.c.h.b16 %v1141
      %v1223 = vunpack.c.l.b16 %v1142
      %v1224 = vunpack.c.h.b16 %v1142
      %v1225 = vunpack.c.l.b16 %v1143
      %v1226 = vunpack.c.h.b16 %v1143
      %v1227 = vunpack.c.l.b16 %v1144
      %v1228 = vunpack.c.h.b16 %v1144
      %v1229 = vunpack.c.l.b16 %v1145
      %v1230 = vunpack.c.h.b16 %v1145
      %v1231 = vunpack.c.l.b16 %v1146
      %v1232 = vunpack.c.h.b16 %v1146
      %v1233 = vunpack.c.l.b16 %v1147
      %v1234 = vunpack.c.h.b16 %v1147
      %v1235 = vunpack.c.l.b16 %v1148
      %v1236 = vunpack.c.h.b16 %v1148
      %v1237 = vunpack.c.l.b16 %v1149
      %v1238 = vunpack.c.h.b16 %v1149
      %v1239 = vunpack.c.l.b16 %v1150
      %v1240 = vunpack.c.h.b16 %v1150
      %v1241 = vunpack.c.l.b16 %v1151
      %v1242 = vunpack.c.h.b16 %v1151
      %v1243 = vunpack.c.l.b16 %v1152
      %v1244 = vunpack.c.h.b16 %v1152
      %v1245 = vunpack.c.l.b16 %v1153
      %v1246 = vunpack.c.h.b16 %v1153
      %v1247 = vunpack.c.l.b16 %v1154
      %v1248 = vunpack.c.h.b16 %v1154
      %v1249 = vunpack.c.l.b16 %v1155
      %v1250 = vunpack.c.h.b16 %v1155
      %v1251 = vunpack.c.l.b16 %v1156
      %v1252 = vunpack.c.h.b16 %v1156
      %v1253 = vpack.c.b16 %v1189, %v1189
      %v1254 = vpack.c.b16 %v1190, %v1190
      %v1255 = vpack.c.b16 %v1191, %v1191
      %v1256 = vpack.c.b16 %v1192, %v1192
      %v1257 = vpack.c.b16 %v1193, %v1193
      %v1258 = vpack.c.b16 %v1194, %v1194
      %v1259 = vpack.c.b16 %v1195, %v1195
      %v1260 = vpack.c.b16 %v1196, %v1196
      %v1261 = vpack.c.b16 %v1197, %v1197
      %v1262 = vpack.c.b16 %v1198, %v1198
      %v1263 = vpack.c.b16 %v1199, %v1199
      %v1264 = vpack.c.b16 %v1200, %v1200
      %v1265 = vpack.c.b16 %v1201, %v1201
      %v1266 = vpack.c.b16 %v1202, %v1202
      %v1267 = vpack.c.b16 %v1203, %v1203
      %v1268 = vpack.c.b16 %v1204, %v1204
      %v1269 = vpack.c.b16 %v1205, %v1205
      %v1270 = vpack.c.b16 %v1206, %v1206
      %v1271 = vpack.c.b16 %v1207, %v1207
      %v1272 = vpack.c.b16 %v1208, %v1208
      %v1273 = vpack.c.b16 %v1209, %v1209
      %v1274 = vpack.c.b16 %v1210, %v1210
      %v1275 = vpack.c.b16 %v1211, %v1211
      %v1276 = vpack.c.b16 %v1212, %v1212
      %v1277 = vpack.c.b16 %v1213, %v1213
      %v1278 = vpack.c.b16 %v1214, %v1214
      %v1279 = vpack.c.b16 %v1215, %v1215
      %v1280 = vpack.c.b16 %v1216, %v1216
      %v1281 = vpack.c.b16 %v1217, %v1217
      %v1282 = vpack.c.b16 %v1218, %v1218
      %v1283 = vpack.c.b16 %v1219, %v1219
      %v1284 = vpack.c.b16 %v1220, %v1220
      %v1285 = vpack.c.b16 %v1221, %v1221
      %v1286 = vpack.c.b16 %v1222, %v1222
      %v1287 = vpack.c.b16 %v1223, %v1223
      %v1288 = vpack.c.b16 %v1224, %v1224
      %v1289 = vpack.c.b16 %v1225, %v1225
      %v1290 = vpack.c.b16 %v1226, %v1226
      %v1291 = vpack.c.b16 %v1227, %v1227
      %v1292 = vpack.c.b16 %v1228, %v1228
      %v1293 = vpack.c.b16 %v1229, %v1229
      %v1294 = vpack.c.b16 %v1230, %v1230
      %v1295 = vpack.c.b16 %v1231, %v1231
      %v1296 = vpack.c.b16 %v1232, %v1232
      %v1297 = vpack.c.b16 %v1233, %v1233
      %v1298 = vpack.c.b16 %v1234, %v1234
      %v1299 = vpack.c.b16 %v1235, %v1235
      %v1300 = vpack.c.b16 %v1236, %v1236
      %v1301 = vpack.c.b16 %v1237, %v1237
      %v1302 = vpack.c.b16 %v1238, %v1238
      %v1303 = vpack.c.b16 %v1239, %v1239
      %v1304 = vpack.c.b16 %v1240, %v1240
      %v1305 = vpack.c.b16 %v1241, %v1241
      %v1306 = vpack.c.b16 %v1242, %v1242
      %v1307 = vpack.c.b16 %v1243, %v1243
      %v1308 = vpack.c.b16 %v1244, %v1244
      %v1309 = vpack.c.b16 %v1245, %v1245
      %v1310 = vpack.c.b16 %v1246, %v1246
      %v1311 = vpack.c.b16 %v1247, %v1247
      %v1312 = vpack.c.b16 %v1248, %v1248
      %v1313 = vpack.c.b16 %v1249, %v1249
      %v1314 = vpack.c.b16 %v1250, %v1250
      %v1315 = vpack.c.b16 %v1251, %v1251
      %v1316 = vpack.c.b16 %v1252, %v1252
      %1317 = vrot.lane.b32.xlu0 %v1253, 16
      %v1318 = vpop.permute.xlu0 %1317
      %1319 = vrot.lane.b32.xlu0 %v1254, 16
      %v1320 = vpop.permute.xlu0 %1319
      %1321 = vrot.lane.b32.xlu0 %v1255, 16
      %v1322 = vpop.permute.xlu0 %1321
      %1323 = vrot.lane.b32.xlu0 %v1256, 16
      %v1324 = vpop.permute.xlu0 %1323
      %1325 = vrot.lane.b32.xlu0 %v1257, 16
      %v1326 = vpop.permute.xlu0 %1325
      %1327 = vrot.lane.b32.xlu0 %v1258, 16
      %v1328 = vpop.permute.xlu0 %1327
      %1329 = vrot.lane.b32.xlu0 %v1259, 16
      %v1330 = vpop.permute.xlu0 %1329
      %1331 = vrot.lane.b32.xlu0 %v1260, 16
      %v1332 = vpop.permute.xlu0 %1331
      %1333 = vrot.lane.b32.xlu0 %v1261, 16
      %v1334 = vpop.permute.xlu0 %1333
      %1335 = vrot.lane.b32.xlu0 %v1262, 16
      %v1336 = vpop.permute.xlu0 %1335
      %1337 = vrot.lane.b32.xlu0 %v1263, 16
      %v1338 = vpop.permute.xlu0 %1337
      %1339 = vrot.lane.b32.xlu0 %v1264, 16
      %v1340 = vpop.permute.xlu0 %1339
      %1341 = vrot.lane.b32.xlu0 %v1265, 16
      %v1342 = vpop.permute.xlu0 %1341
      %1343 = vrot.lane.b32.xlu0 %v1266, 16
      %v1344 = vpop.permute.xlu0 %1343
      %1345 = vrot.lane.b32.xlu0 %v1267, 16
      %v1346 = vpop.permute.xlu0 %1345
      %1347 = vrot.lane.b32.xlu0 %v1268, 16
      %v1348 = vpop.permute.xlu0 %1347
      %1349 = vrot.lane.b32.xlu0 %v1269, 16
      %v1350 = vpop.permute.xlu0 %1349
      %1351 = vrot.lane.b32.xlu0 %v1270, 16
      %v1352 = vpop.permute.xlu0 %1351
      %1353 = vrot.lane.b32.xlu0 %v1271, 16
      %v1354 = vpop.permute.xlu0 %1353
      %1355 = vrot.lane.b32.xlu0 %v1272, 16
      %v1356 = vpop.permute.xlu0 %1355
      %1357 = vrot.lane.b32.xlu0 %v1273, 16
      %v1358 = vpop.permute.xlu0 %1357
      %1359 = vrot.lane.b32.xlu0 %v1274, 16
      %v1360 = vpop.permute.xlu0 %1359
      %1361 = vrot.lane.b32.xlu0 %v1275, 16
      %v1362 = vpop.permute.xlu0 %1361
      %1363 = vrot.lane.b32.xlu0 %v1276, 16
      %v1364 = vpop.permute.xlu0 %1363
      %1365 = vrot.lane.b32.xlu0 %v1277, 16
      %v1366 = vpop.permute.xlu0 %1365
      %1367 = vrot.lane.b32.xlu0 %v1278, 16
      %v1368 = vpop.permute.xlu0 %1367
      %1369 = vrot.lane.b32.xlu0 %v1279, 16
      %v1370 = vpop.permute.xlu0 %1369
      %1371 = vrot.lane.b32.xlu0 %v1280, 16
      %v1372 = vpop.permute.xlu0 %1371
      %1373 = vrot.lane.b32.xlu0 %v1281, 16
      %v1374 = vpop.permute.xlu0 %1373
      %1375 = vrot.lane.b32.xlu0 %v1282, 16
      %v1376 = vpop.permute.xlu0 %1375
      %1377 = vrot.lane.b32.xlu0 %v1283, 16
      %v1378 = vpop.permute.xlu0 %1377
      %1379 = vrot.lane.b32.xlu0 %v1284, 16
      %v1380 = vpop.permute.xlu0 %1379
      %1381 = vrot.lane.b32.xlu0 %v1285, 16
      %v1382 = vpop.permute.xlu0 %1381
      %1383 = vrot.lane.b32.xlu0 %v1286, 16
      %v1384 = vpop.permute.xlu0 %1383
      %1385 = vrot.lane.b32.xlu0 %v1287, 16
      %v1386 = vpop.permute.xlu0 %1385
      %1387 = vrot.lane.b32.xlu0 %v1288, 16
      %v1388 = vpop.permute.xlu0 %1387
      %1389 = vrot.lane.b32.xlu0 %v1289, 16
      %v1390 = vpop.permute.xlu0 %1389
      %1391 = vrot.lane.b32.xlu0 %v1290, 16
      %v1392 = vpop.permute.xlu0 %1391
      %1393 = vrot.lane.b32.xlu0 %v1291, 16
      %v1394 = vpop.permute.xlu0 %1393
      %1395 = vrot.lane.b32.xlu0 %v1292, 16
      %v1396 = vpop.permute.xlu0 %1395
      %1397 = vrot.lane.b32.xlu0 %v1293, 16
      %v1398 = vpop.permute.xlu0 %1397
      %1399 = vrot.lane.b32.xlu0 %v1294, 16
      %v1400 = vpop.permute.xlu0 %1399
      %1401 = vrot.lane.b32.xlu0 %v1295, 16
      %v1402 = vpop.permute.xlu0 %1401
      %1403 = vrot.lane.b32.xlu0 %v1296, 16
      %v1404 = vpop.permute.xlu0 %1403
      %1405 = vrot.lane.b32.xlu0 %v1297, 16
      %v1406 = vpop.permute.xlu0 %1405
      %1407 = vrot.lane.b32.xlu0 %v1298, 16
      %v1408 = vpop.permute.xlu0 %1407
      %1409 = vrot.lane.b32.xlu0 %v1299, 16
      %v1410 = vpop.permute.xlu0 %1409
      %1411 = vrot.lane.b32.xlu0 %v1300, 16
      %v1412 = vpop.permute.xlu0 %1411
      %1413 = vrot.lane.b32.xlu0 %v1301, 16
      %v1414 = vpop.permute.xlu0 %1413
      %1415 = vrot.lane.b32.xlu0 %v1302, 16
      %v1416 = vpop.permute.xlu0 %1415
      %1417 = vrot.lane.b32.xlu0 %v1303, 16
      %v1418 = vpop.permute.xlu0 %1417
      %1419 = vrot.lane.b32.xlu0 %v1304, 16
      %v1420 = vpop.permute.xlu0 %1419
      %1421 = vrot.lane.b32.xlu0 %v1305, 16
      %v1422 = vpop.permute.xlu0 %1421
      %1423 = vrot.lane.b32.xlu0 %v1306, 16
      %v1424 = vpop.permute.xlu0 %1423
      %1425 = vrot.lane.b32.xlu0 %v1307, 16
      %v1426 = vpop.permute.xlu0 %1425
      %1427 = vrot.lane.b32.xlu0 %v1308, 16
      %v1428 = vpop.permute.xlu0 %1427
      %1429 = vrot.lane.b32.xlu0 %v1309, 16
      %v1430 = vpop.permute.xlu0 %1429
      %1431 = vrot.lane.b32.xlu0 %v1310, 16
      %v1432 = vpop.permute.xlu0 %1431
      %1433 = vrot.lane.b32.xlu0 %v1311, 16
      %v1434 = vpop.permute.xlu0 %1433
      %1435 = vrot.lane.b32.xlu0 %v1312, 16
      %v1436 = vpop.permute.xlu0 %1435
      %1437 = vrot.lane.b32.xlu0 %v1313, 16
      %v1438 = vpop.permute.xlu0 %1437
      %1439 = vrot.lane.b32.xlu0 %v1314, 16
      %v1440 = vpop.permute.xlu0 %1439
      %1441 = vrot.lane.b32.xlu0 %v1315, 16
      %v1442 = vpop.permute.xlu0 %1441
      %1443 = vrot.lane.b32.xlu0 %v1316, 16
      %v1444 = vpop.permute.xlu0 %1443
      %vm1509 = vcmask 257152
      %1510 = vst.msk [vmem:[%s283] sm:$0xf] %vm1509, %v1318
      %1511 = vst.msk [vmem:[%s283 + $0x4] sm:$0xf] %vm1509, %v1320
      %1512 = vst.msk [vmem:[%s283 + $0x8] sm:$0xf] %vm1509, %v1322
      %1513 = vst.msk [vmem:[%s283 + $0xc] sm:$0xf] %vm1509, %v1324
      %1514 = vst.msk [vmem:[%s283 + $0x10] sm:$0xf] %vm1509, %v1326
      %1515 = vst.msk [vmem:[%s283 + $0x14] sm:$0xf] %vm1509, %v1328
      %1516 = vst.msk [vmem:[%s283 + $0x18] sm:$0xf] %vm1509, %v1330
      %1517 = vst.msk [vmem:[%s283 + $0x1c] sm:$0xf] %vm1509, %v1332
      %1518 = vst.msk [vmem:[%s283 + $0x20] sm:$0xf] %vm1509, %v1334
      %1519 = vst.msk [vmem:[%s283 + $0x24] sm:$0xf] %vm1509, %v1336
      %1520 = vst.msk [vmem:[%s283 + $0x28] sm:$0xf] %vm1509, %v1338
      %1521 = vst.msk [vmem:[%s283 + $0x2c] sm:$0xf] %vm1509, %v1340
      %1522 = vst.msk [vmem:[%s283 + $0x30] sm:$0xf] %vm1509, %v1342
      %1523 = vst.msk [vmem:[%s283 + $0x34] sm:$0xf] %vm1509, %v1344
      %1524 = vst.msk [vmem:[%s283 + $0x38] sm:$0xf] %vm1509, %v1346
      %1525 = vst.msk [vmem:[%s283 + $0x3c] sm:$0xf] %vm1509, %v1348
      %1526 = vst.msk [vmem:[%s283 + $0x40] sm:$0xf] %vm1509, %v1350
      %1527 = vst.msk [vmem:[%s283 + $0x44] sm:$0xf] %vm1509, %v1352
      %1528 = vst.msk [vmem:[%s283 + $0x48] sm:$0xf] %vm1509, %v1354
      %1529 = vst.msk [vmem:[%s283 + $0x4c] sm:$0xf] %vm1509, %v1356
      %1530 = vst.msk [vmem:[%s283 + $0x50] sm:$0xf] %vm1509, %v1358
      %1531 = vst.msk [vmem:[%s283 + $0x54] sm:$0xf] %vm1509, %v1360
      %1532 = vst.msk [vmem:[%s283 + $0x58] sm:$0xf] %vm1509, %v1362
      %1533 = vst.msk [vmem:[%s283 + $0x5c] sm:$0xf] %vm1509, %v1364
      %1534 = vst.msk [vmem:[%s283 + $0x60] sm:$0xf] %vm1509, %v1366
      %1535 = vst.msk [vmem:[%s283 + $0x64] sm:$0xf] %vm1509, %v1368
      %1536 = vst.msk [vmem:[%s283 + $0x68] sm:$0xf] %vm1509, %v1370
      %1537 = vst.msk [vmem:[%s283 + $0x6c] sm:$0xf] %vm1509, %v1372
      %1538 = vst.msk [vmem:[%s283 + $0x70] sm:$0xf] %vm1509, %v1374
      %1539 = vst.msk [vmem:[%s283 + $0x74] sm:$0xf] %vm1509, %v1376
      %1540 = vst.msk [vmem:[%s283 + $0x78] sm:$0xf] %vm1509, %v1378
      %1541 = vst.msk [vmem:[%s283 + $0x7c] sm:$0xf] %vm1509, %v1380
      %1542 = vst.msk [vmem:[%s283 + $0x80] sm:$0xf] %vm1509, %v1382
      %1543 = vst.msk [vmem:[%s283 + $0x84] sm:$0xf] %vm1509, %v1384
      %1544 = vst.msk [vmem:[%s283 + $0x88] sm:$0xf] %vm1509, %v1386
      %1545 = vst.msk [vmem:[%s283 + $0x8c] sm:$0xf] %vm1509, %v1388
      %1546 = vst.msk [vmem:[%s283 + $0x90] sm:$0xf] %vm1509, %v1390
      %1547 = vst.msk [vmem:[%s283 + $0x94] sm:$0xf] %vm1509, %v1392
      %1548 = vst.msk [vmem:[%s283 + $0x98] sm:$0xf] %vm1509, %v1394
      %1549 = vst.msk [vmem:[%s283 + $0x9c] sm:$0xf] %vm1509, %v1396
      %1550 = vst.msk [vmem:[%s283 + $0xa0] sm:$0xf] %vm1509, %v1398
      %1551 = vst.msk [vmem:[%s283 + $0xa4] sm:$0xf] %vm1509, %v1400
      %1552 = vst.msk [vmem:[%s283 + $0xa8] sm:$0xf] %vm1509, %v1402
      %1553 = vst.msk [vmem:[%s283 + $0xac] sm:$0xf] %vm1509, %v1404
      %1554 = vst.msk [vmem:[%s283 + $0xb0] sm:$0xf] %vm1509, %v1406
      %1555 = vst.msk [vmem:[%s283 + $0xb4] sm:$0xf] %vm1509, %v1408
      %1556 = vst.msk [vmem:[%s283 + $0xb8] sm:$0xf] %vm1509, %v1410
      %1557 = vst.msk [vmem:[%s283 + $0xbc] sm:$0xf] %vm1509, %v1412
      %1558 = vst.msk [vmem:[%s283 + $0xc0] sm:$0xf] %vm1509, %v1414
      %1559 = vst.msk [vmem:[%s283 + $0xc4] sm:$0xf] %vm1509, %v1416
      %1560 = vst.msk [vmem:[%s283 + $0xc8] sm:$0xf] %vm1509, %v1418
      %1561 = vst.msk [vmem:[%s283 + $0xcc] sm:$0xf] %vm1509, %v1420
      %1562 = vst.msk [vmem:[%s283 + $0xd0] sm:$0xf] %vm1509, %v1422
      %1563 = vst.msk [vmem:[%s283 + $0xd4] sm:$0xf] %vm1509, %v1424
      %1564 = vst.msk [vmem:[%s283 + $0xd8] sm:$0xf] %vm1509, %v1426
      %1565 = vst.msk [vmem:[%s283 + $0xdc] sm:$0xf] %vm1509, %v1428
      %1566 = vst.msk [vmem:[%s283 + $0xe0] sm:$0xf] %vm1509, %v1430
      %1567 = vst.msk [vmem:[%s283 + $0xe4] sm:$0xf] %vm1509, %v1432
      %1568 = vst.msk [vmem:[%s283 + $0xe8] sm:$0xf] %vm1509, %v1434
      %1569 = vst.msk [vmem:[%s283 + $0xec] sm:$0xf] %vm1509, %v1436
      %1570 = vst.msk [vmem:[%s283 + $0xf0] sm:$0xf] %vm1509, %v1438
      %1571 = vst.msk [vmem:[%s283 + $0xf4] sm:$0xf] %vm1509, %v1440
      %1572 = vst.msk [vmem:[%s283 + $0xf8] sm:$0xf] %vm1509, %v1442
      %1573 = vst.msk [vmem:[%s283 + $0xfc] sm:$0xf] %vm1509, %v1444
      %v1574 = vld [vmem:[%s2] sm:$0xf]
      %v1575 = vld [vmem:[%s2 + $0x4] sm:$0xf]
      %v1576 = vld [vmem:[%s3] sm:$0xf]
      %v1577 = vld [vmem:[%s3 + $0x4] sm:$0xf]
      %v1580 = vunpack.c.l.b16 %v1576
      %v1581 = vunpack.c.l.b16 %v1577
      %v1582 = vpack.c.b16 %v1581, %v1580
      %vm1584 = vcmask 130048
      %v1586 = vsel %vm1584, %v1125, 0
      %v1589 = vsel %vm1584, %v1126, 0
      %v1592 = vsel %vm1584, %v1127, 0
      %v1595 = vsel %vm1584, %v1128, 0
      %v1598 = vsel %vm1584, %v1129, 0
      %v1601 = vsel %vm1584, %v1130, 0
      %v1604 = vsel %vm1584, %v1131, 0
      %v1607 = vsel %vm1584, %v1132, 0
      %v1610 = vsel %vm1584, %v1133, 0
      %v1613 = vsel %vm1584, %v1134, 0
      %v1616 = vsel %vm1584, %v1135, 0
      %v1619 = vsel %vm1584, %v1136, 0
      %v1622 = vsel %vm1584, %v1137, 0
      %v1625 = vsel %vm1584, %v1138, 0
      %v1628 = vsel %vm1584, %v1139, 0
      %v1631 = vsel %vm1584, %v1140, 0
      %v1634 = vsel %vm1584, %v1141, 0
      %v1637 = vsel %vm1584, %v1142, 0
      %v1640 = vsel %vm1584, %v1143, 0
      %v1643 = vsel %vm1584, %v1144, 0
      %v1646 = vsel %vm1584, %v1145, 0
      %v1649 = vsel %vm1584, %v1146, 0
      %v1652 = vsel %vm1584, %v1147, 0
      %v1655 = vsel %vm1584, %v1148, 0
      %v1658 = vsel %vm1584, %v1149, 0
      %v1661 = vsel %vm1584, %v1150, 0
      %v1664 = vsel %vm1584, %v1151, 0
      %v1667 = vsel %vm1584, %v1152, 0
      %v1670 = vsel %vm1584, %v1153, 0
      %v1673 = vsel %vm1584, %v1154, 0
      %v1676 = vsel %vm1584, %v1155, 0
      %v1679 = vsel %vm1584, %v1156, 0
      %1681 = vmatprep.subr.bf16.mxu0 0
      %1682 = vmatpush1.bf16.msra.mxu0 %v1582
      %1683 = vmatprep.subr.bf16.mxu0 0
      %1684 = vmatpush1.bf16.msra.mxu0 0
      %1685 = vmatprep.subr.bf16.mxu0 0
      %1686 = vmatpush1.bf16.msra.mxu0 0
      %1687 = vmatprep.subr.bf16.mxu0 0
      %1688 = vmatpush1.bf16.msra.mxu0 0
      %1689 = vmatprep.subr.bf16.mxu0 0
      %1690 = vmatpush1.bf16.msra.mxu0 0
      %1691 = vmatprep.subr.bf16.mxu0 0
      %1692 = vmatpush1.bf16.msra.mxu0 0
      %1693 = vmatprep.subr.bf16.mxu0 0
      %1694 = vmatpush1.bf16.msra.mxu0 0
      %1695 = vmatprep.subr.bf16.mxu0 0
      %1696 = vmatpush1.bf16.msra.mxu0 0
      %1697 = vmatprep.subr.bf16.mxu0 0
      %1698 = vmatpush1.bf16.msra.mxu0 0
      %1699 = vmatprep.subr.bf16.mxu0 0
      %1700 = vmatpush1.bf16.msra.mxu0 0
      %1701 = vmatprep.subr.bf16.mxu0 0
      %1702 = vmatpush1.bf16.msra.mxu0 0
      %1703 = vmatprep.subr.bf16.mxu0 0
      %1704 = vmatpush1.bf16.msra.mxu0 0
      %1705 = vmatprep.subr.bf16.mxu0 0
      %1706 = vmatpush1.bf16.msra.mxu0 0
      %1707 = vmatprep.subr.bf16.mxu0 0
      %1708 = vmatpush1.bf16.msra.mxu0 0
      %1709 = vmatprep.subr.bf16.mxu0 0
      %1710 = vmatpush1.bf16.msra.mxu0 0
      %1711 = vmatprep.subr.bf16.mxu0 0
      %1712 = vmatpush1.bf16.msra.mxu0 0
      %1713 = vmatprep.mubr.bf16.mxu0 0
      %1714 = vmatmul.mubr.bf16.gmra.mrb[0].mxu0 %v1586
      %v1715 = vpop.f32.mrb[0].mxu0
      %v1716 = vadd.f32 0.0, %v1715
      %v1717 = vpop.f32.mrb[0].mxu0
      %v1718 = vpop.f32.mrb[0].mxu0
      %v1719 = vadd.f32 0.0, %v1718
      %v1720 = vpop.f32.mrb[0].mxu0
      %1721 = vmatprep.mubr.bf16.mxu0 0
      %1722 = vmatmul.mubr.bf16.gmra.mrb[0].mxu0 %v1589
      %v1723 = vpop.f32.mrb[0].mxu0
      %v1724 = vadd.f32 0.0, %v1723
      %v1725 = vpop.f32.mrb[0].mxu0
      %v1726 = vpop.f32.mrb[0].mxu0
      %v1727 = vadd.f32 0.0, %v1726
      %v1728 = vpop.f32.mrb[0].mxu0
      %1729 = vmatprep.mubr.bf16.mxu0 0
      %1730 = vmatmul.mubr.bf16.gmra.mrb[0].mxu0 %v1592
      %v1731 = vpop.f32.mrb[0].mxu0
      %v1732 = vadd.f32 0.0, %v1731
      %v1733 = vpop.f32.mrb[0].mxu0
      %v1734 = vpop.f32.mrb[0].mxu0
      %v1735 = vadd.f32 0.0, %v1734
      %v1736 = vpop.f32.mrb[0].mxu0
      %1737 = vmatprep.mubr.bf16.mxu0 0
      %1738 = vmatmul.mubr.bf16.gmra.mrb[0].mxu0 %v1595
      %v1739 = vpop.f32.mrb[0].mxu0
      %v1740 = vadd.f32 0.0, %v1739
      %v1741 = vpop.f32.mrb[0].mxu0
      %v1742 = vpop.f32.mrb[0].mxu0
      %v1743 = vadd.f32 0.0, %v1742
      %v1744 = vpop.f32.mrb[0].mxu0
      %1745 = vmatprep.mubr.bf16.mxu0 0
      %1746 = vmatmul.mubr.bf16.gmra.mrb[0].mxu0 %v1598
      %v1747 = vpop.f32.mrb[0].mxu0
      %v1748 = vadd.f32 0.0, %v1747
      %v1749 = vpop.f32.mrb[0].mxu0
      %v1750 = vpop.f32.mrb[0].mxu0
      %v1751 = vadd.f32 0.0, %v1750
      %v1752 = vpop.f32.mrb[0].mxu0
      %1753 = vmatprep.mubr.bf16.mxu0 0
      %1754 = vmatmul.mubr.bf16.gmra.mrb[0].mxu0 %v1601
      %v1755 = vpop.f32.mrb[0].mxu0
      %v1756 = vadd.f32 0.0, %v1755
      %v1757 = vpop.f32.mrb[0].mxu0
      %v1758 = vpop.f32.mrb[0].mxu0
      %v1759 = vadd.f32 0.0, %v1758
      %v1760 = vpop.f32.mrb[0].mxu0
      %1761 = vmatprep.mubr.bf16.mxu0 0
      %1762 = vmatmul.mubr.bf16.gmra.mrb[0].mxu0 %v1604
      %v1763 = vpop.f32.mrb[0].mxu0
      %v1764 = vadd.f32 0.0, %v1763
      %v1765 = vpop.f32.mrb[0].mxu0
      %v1766 = vpop.f32.mrb[0].mxu0
      %v1767 = vadd.f32 0.0, %v1766
      %v1768 = vpop.f32.mrb[0].mxu0
      %1769 = vmatprep.mubr.bf16.mxu0 0
      %1770 = vmatmul.mubr.bf16.gmra.mrb[0].mxu0 %v1607
      %v1771 = vpop.f32.mrb[0].mxu0
      %v1772 = vadd.f32 0.0, %v1771
      %v1773 = vpop.f32.mrb[0].mxu0
      %v1774 = vpop.f32.mrb[0].mxu0
      %v1775 = vadd.f32 0.0, %v1774
      %v1776 = vpop.f32.mrb[0].mxu0
      %1777 = vmatprep.mubr.bf16.mxu0 0
      %1778 = vmatmul.mubr.bf16.gmra.mrb[0].mxu0 %v1610
      %v1779 = vpop.f32.mrb[0].mxu0
      %v1780 = vadd.f32 0.0, %v1779
      %v1781 = vpop.f32.mrb[0].mxu0
      %v1782 = vpop.f32.mrb[0].mxu0
      %v1783 = vadd.f32 0.0, %v1782
      %v1784 = vpop.f32.mrb[0].mxu0
      %1785 = vmatprep.mubr.bf16.mxu0 0
      %1786 = vmatmul.mubr.bf16.gmra.mrb[0].mxu0 %v1613
      %v1787 = vpop.f32.mrb[0].mxu0
      %v1788 = vadd.f32 0.0, %v1787
      %v1789 = vpop.f32.mrb[0].mxu0
      %v1790 = vpop.f32.mrb[0].mxu0
      %v1791 = vadd.f32 0.0, %v1790
      %v1792 = vpop.f32.mrb[0].mxu0
      %1793 = vmatprep.mubr.bf16.mxu0 0
      %1794 = vmatmul.mubr.bf16.gmra.mrb[0].mxu0 %v1616
      %v1795 = vpop.f32.mrb[0].mxu0
      %v1796 = vadd.f32 0.0, %v1795
      %v1797 = vpop.f32.mrb[0].mxu0
      %v1798 = vpop.f32.mrb[0].mxu0
      %v1799 = vadd.f32 0.0, %v1798
      %v1800 = vpop.f32.mrb[0].mxu0
      %1801 = vmatprep.mubr.bf16.mxu0 0
      %1802 = vmatmul.mubr.bf16.gmra.mrb[0].mxu0 %v1619
      %v1803 = vpop.f32.mrb[0].mxu0
      %v1804 = vadd.f32 0.0, %v1803
      %v1805 = vpop.f32.mrb[0].mxu0
      %v1806 = vpop.f32.mrb[0].mxu0
      %v1807 = vadd.f32 0.0, %v1806
      %v1808 = vpop.f32.mrb[0].mxu0
      %1809 = vmatprep.mubr.bf16.mxu0 0
      %1810 = vmatmul.mubr.bf16.gmra.mrb[0].mxu0 %v1622
      %v1811 = vpop.f32.mrb[0].mxu0
      %v1812 = vadd.f32 0.0, %v1811
      %v1813 = vpop.f32.mrb[0].mxu0
      %v1814 = vpop.f32.mrb[0].mxu0
      %v1815 = vadd.f32 0.0, %v1814
      %v1816 = vpop.f32.mrb[0].mxu0
      %1817 = vmatprep.mubr.bf16.mxu0 0
      %1818 = vmatmul.mubr.bf16.gmra.mrb[0].mxu0 %v1625
      %v1819 = vpop.f32.mrb[0].mxu0
      %v1820 = vadd.f32 0.0, %v1819
      %v1821 = vpop.f32.mrb[0].mxu0
      %v1822 = vpop.f32.mrb[0].mxu0
      %v1823 = vadd.f32 0.0, %v1822
      %v1824 = vpop.f32.mrb[0].mxu0
      %1825 = vmatprep.mubr.bf16.mxu0 0
      %1826 = vmatmul.mubr.bf16.gmra.mrb[0].mxu0 %v1628
      %v1827 = vpop.f32.mrb[0].mxu0
      %v1828 = vadd.f32 0.0, %v1827
      %v1829 = vpop.f32.mrb[0].mxu0
      %v1830 = vpop.f32.mrb[0].mxu0
      %v1831 = vadd.f32 0.0, %v1830
      %v1832 = vpop.f32.mrb[0].mxu0
      %1833 = vmatprep.mubr.bf16.mxu0 0
      %1834 = vmatmul.mubr.bf16.gmra.mrb[0].mxu0 %v1631
      %v1835 = vpop.f32.mrb[0].mxu0
      %v1836 = vadd.f32 0.0, %v1835
      %v1837 = vpop.f32.mrb[0].mxu0
      %v1838 = vpop.f32.mrb[0].mxu0
      %v1839 = vadd.f32 0.0, %v1838
      %v1840 = vpop.f32.mrb[0].mxu0
      %1841 = vmatprep.mubr.bf16.mxu0 0
      %1842 = vmatmul.mubr.bf16.gmra.mrb[0].mxu0 %v1634
      %v1843 = vpop.f32.mrb[0].mxu0
      %v1844 = vadd.f32 0.0, %v1843
      %v1845 = vpop.f32.mrb[0].mxu0
      %v1846 = vpop.f32.mrb[0].mxu0
      %v1847 = vadd.f32 0.0, %v1846
      %v1848 = vpop.f32.mrb[0].mxu0
      %1849 = vmatprep.mubr.bf16.mxu0 0
      %1850 = vmatmul.mubr.bf16.gmra.mrb[0].mxu0 %v1637
      %v1851 = vpop.f32.mrb[0].mxu0
      %v1852 = vadd.f32 0.0, %v1851
      %v1853 = vpop.f32.mrb[0].mxu0
      %v1854 = vpop.f32.mrb[0].mxu0
      %v1855 = vadd.f32 0.0, %v1854
      %v1856 = vpop.f32.mrb[0].mxu0
      %1857 = vmatprep.mubr.bf16.mxu0 0
      %1858 = vmatmul.mubr.bf16.gmra.mrb[0].mxu0 %v1640
      %v1859 = vpop.f32.mrb[0].mxu0
      %v1860 = vadd.f32 0.0, %v1859
      %v1861 = vpop.f32.mrb[0].mxu0
      %v1862 = vpop.f32.mrb[0].mxu0
      %v1863 = vadd.f32 0.0, %v1862
      %v1864 = vpop.f32.mrb[0].mxu0
      %1865 = vmatprep.mubr.bf16.mxu0 0
      %1866 = vmatmul.mubr.bf16.gmra.mrb[0].mxu0 %v1643
      %v1867 = vpop.f32.mrb[0].mxu0
      %v1868 = vadd.f32 0.0, %v1867
      %v1869 = vpop.f32.mrb[0].mxu0
      %v1870 = vpop.f32.mrb[0].mxu0
      %v1871 = vadd.f32 0.0, %v1870
      %v1872 = vpop.f32.mrb[0].mxu0
      %1873 = vmatprep.mubr.bf16.mxu0 0
      %1874 = vmatmul.mubr.bf16.gmra.mrb[0].mxu0 %v1646
      %v1875 = vpop.f32.mrb[0].mxu0
      %v1876 = vadd.f32 0.0, %v1875
      %v1877 = vpop.f32.mrb[0].mxu0
      %v1878 = vpop.f32.mrb[0].mxu0
      %v1879 = vadd.f32 0.0, %v1878
      %v1880 = vpop.f32.mrb[0].mxu0
      %1881 = vmatprep.mubr.bf16.mxu0 0
      %1882 = vmatmul.mubr.bf16.gmra.mrb[0].mxu0 %v1649
      %v1883 = vpop.f32.mrb[0].mxu0
      %v1884 = vadd.f32 0.0, %v1883
      %v1885 = vpop.f32.mrb[0].mxu0
      %v1886 = vpop.f32.mrb[0].mxu0
      %v1887 = vadd.f32 0.0, %v1886
      %v1888 = vpop.f32.mrb[0].mxu0
      %1889 = vmatprep.mubr.bf16.mxu0 0
      %1890 = vmatmul.mubr.bf16.gmra.mrb[0].mxu0 %v1652
      %v1891 = vpop.f32.mrb[0].mxu0
      %v1892 = vadd.f32 0.0, %v1891
      %v1893 = vpop.f32.mrb[0].mxu0
      %v1894 = vpop.f32.mrb[0].mxu0
      %v1895 = vadd.f32 0.0, %v1894
      %v1896 = vpop.f32.mrb[0].mxu0
      %1897 = vmatprep.mubr.bf16.mxu0 0
      %1898 = vmatmul.mubr.bf16.gmra.mrb[0].mxu0 %v1655
      %v1899 = vpop.f32.mrb[0].mxu0
      %v1900 = vadd.f32 0.0, %v1899
      %v1901 = vpop.f32.mrb[0].mxu0
      %v1902 = vpop.f32.mrb[0].mxu0
      %v1903 = vadd.f32 0.0, %v1902
      %v1904 = vpop.f32.mrb[0].mxu0
      %1905 = vmatprep.mubr.bf16.mxu0 0
      %1906 = vmatmul.mubr.bf16.gmra.mrb[0].mxu0 %v1658
      %v1907 = vpop.f32.mrb[0].mxu0
      %v1908 = vadd.f32 0.0, %v1907
      %v1909 = vpop.f32.mrb[0].mxu0
      %v1910 = vpop.f32.mrb[0].mxu0
      %v1911 = vadd.f32 0.0, %v1910
      %v1912 = vpop.f32.mrb[0].mxu0
      %1913 = vmatprep.mubr.bf16.mxu0 0
      %1914 = vmatmul.mubr.bf16.gmra.mrb[0].mxu0 %v1661
      %v1915 = vpop.f32.mrb[0].mxu0
      %v1916 = vadd.f32 0.0, %v1915
      %v1917 = vpop.f32.mrb[0].mxu0
      %v1918 = vpop.f32.mrb[0].mxu0
      %v1919 = vadd.f32 0.0, %v1918
      %v1920 = vpop.f32.mrb[0].mxu0
      %1921 = vmatprep.mubr.bf16.mxu0 0
      %1922 = vmatmul.mubr.bf16.gmra.mrb[0].mxu0 %v1664
      %v1923 = vpop.f32.mrb[0].mxu0
      %v1924 = vadd.f32 0.0, %v1923
      %v1925 = vpop.f32.mrb[0].mxu0
      %v1926 = vpop.f32.mrb[0].mxu0
      %v1927 = vadd.f32 0.0, %v1926
      %v1928 = vpop.f32.mrb[0].mxu0
      %1929 = vmatprep.mubr.bf16.mxu0 0
      %1930 = vmatmul.mubr.bf16.gmra.mrb[0].mxu0 %v1667
      %v1931 = vpop.f32.mrb[0].mxu0
      %v1932 = vadd.f32 0.0, %v1931
      %v1933 = vpop.f32.mrb[0].mxu0
      %v1934 = vpop.f32.mrb[0].mxu0
      %v1935 = vadd.f32 0.0, %v1934
      %v1936 = vpop.f32.mrb[0].mxu0
      %1937 = vmatprep.mubr.bf16.mxu0 0
      %1938 = vmatmul.mubr.bf16.gmra.mrb[0].mxu0 %v1670
      %v1939 = vpop.f32.mrb[0].mxu0
      %v1940 = vadd.f32 0.0, %v1939
      %v1941 = vpop.f32.mrb[0].mxu0
      %v1942 = vpop.f32.mrb[0].mxu0
      %v1943 = vadd.f32 0.0, %v1942
      %v1944 = vpop.f32.mrb[0].mxu0
      %1945 = vmatprep.mubr.bf16.mxu0 0
      %1946 = vmatmul.mubr.bf16.gmra.mrb[0].mxu0 %v1673
      %v1947 = vpop.f32.mrb[0].mxu0
      %v1948 = vadd.f32 0.0, %v1947
      %v1949 = vpop.f32.mrb[0].mxu0
      %v1950 = vpop.f32.mrb[0].mxu0
      %v1951 = vadd.f32 0.0, %v1950
      %v1952 = vpop.f32.mrb[0].mxu0
      %1953 = vmatprep.mubr.bf16.mxu0 0
      %1954 = vmatmul.mubr.bf16.gmra.mrb[0].mxu0 %v1676
      %v1955 = vpop.f32.mrb[0].mxu0
      %v1956 = vadd.f32 0.0, %v1955
      %v1957 = vpop.f32.mrb[0].mxu0
      %v1958 = vpop.f32.mrb[0].mxu0
      %v1959 = vadd.f32 0.0, %v1958
      %v1960 = vpop.f32.mrb[0].mxu0
      %1961 = vmatprep.mubr.bf16.mxu0 0
      %1962 = vmatmul.mubr.bf16.gmra.mrb[0].mxu0 %v1679
      %v1963 = vpop.f32.mrb[0].mxu0
      %v1964 = vadd.f32 0.0, %v1963
      %v1965 = vpop.f32.mrb[0].mxu0
      %v1966 = vpop.f32.mrb[0].mxu0
      %v1967 = vadd.f32 0.0, %v1966
      %v1968 = vpop.f32.mrb[0].mxu0
      %1969 = vdwg.mxu0
      %v1972 = vunpack.c.l.b16 %v1574
      %v1973 = vunpack.c.l.b16 %v1575
      %v1974 = vpack.c.b16 %v1973, %v1972
      %v1977 = vsel %vm1584, %v804, 0
      %v1980 = vsel %vm1584, %v805, 0
      %v1983 = vsel %vm1584, %v806, 0
      %v1986 = vsel %vm1584, %v807, 0
      %v1989 = vsel %vm1584, %v808, 0
      %v1992 = vsel %vm1584, %v809, 0
      %v1995 = vsel %vm1584, %v810, 0
      %v1998 = vsel %vm1584, %v811, 0
      %v2001 = vsel %vm1584, %v812, 0
      %v2004 = vsel %vm1584, %v813, 0
      %v2007 = vsel %vm1584, %v814, 0
      %v2010 = vsel %vm1584, %v815, 0
      %v2013 = vsel %vm1584, %v816, 0
      %v2016 = vsel %vm1584, %v817, 0
      %v2019 = vsel %vm1584, %v818, 0
      %v2022 = vsel %vm1584, %v819, 0
      %v2025 = vsel %vm1584, %v820, 0
      %v2028 = vsel %vm1584, %v821, 0
      %v2031 = vsel %vm1584, %v822, 0
      %v2034 = vsel %vm1584, %v823, 0
      %v2037 = vsel %vm1584, %v824, 0
      %v2040 = vsel %vm1584, %v825, 0
      %v2043 = vsel %vm1584, %v826, 0
      %v2046 = vsel %vm1584, %v827, 0
      %v2049 = vsel %vm1584, %v828, 0
      %v2052 = vsel %vm1584, %v829, 0
      %v2055 = vsel %vm1584, %v830, 0
      %v2058 = vsel %vm1584, %v831, 0
      %v2061 = vsel %vm1584, %v832, 0
      %v2064 = vsel %vm1584, %v833, 0
      %v2067 = vsel %vm1584, %v834, 0
      %v2070 = vsel %vm1584, %v835, 0
      %2072 = vmatprep.subr.bf16.mxu0 0
      %2073 = vmatpush1.bf16.msra.mxu0 %v1974
      %2074 = vmatprep.subr.bf16.mxu0 0
      %2075 = vmatpush1.bf16.msra.mxu0 0
      %2076 = vmatprep.subr.bf16.mxu0 0
      %2077 = vmatpush1.bf16.msra.mxu0 0
      %2078 = vmatprep.subr.bf16.mxu0 0
      %2079 = vmatpush1.bf16.msra.mxu0 0
      %2080 = vmatprep.subr.bf16.mxu0 0
      %2081 = vmatpush1.bf16.msra.mxu0 0
      %2082 = vmatprep.subr.bf16.mxu0 0
      %2083 = vmatpush1.bf16.msra.mxu0 0
      %2084 = vmatprep.subr.bf16.mxu0 0
      %2085 = vmatpush1.bf16.msra.mxu0 0
      %2086 = vmatprep.subr.bf16.mxu0 0
      %2087 = vmatpush1.bf16.msra.mxu0 0
      %2088 = vmatprep.subr.bf16.mxu0 0
      %2089 = vmatpush1.bf16.msra.mxu0 0
      %2090 = vmatprep.subr.bf16.mxu0 0
      %2091 = vmatpush1.bf16.msra.mxu0 0
      %2092 = vmatprep.subr.bf16.mxu0 0
      %2093 = vmatpush1.bf16.msra.mxu0 0
      %2094 = vmatprep.subr.bf16.mxu0 0
      %2095 = vmatpush1.bf16.msra.mxu0 0
      %2096 = vmatprep.subr.bf16.mxu0 0
      %2097 = vmatpush1.bf16.msra.mxu0 0
      %2098 = vmatprep.subr.bf16.mxu0 0
      %2099 = vmatpush1.bf16.msra.mxu0 0
      %2100 = vmatprep.subr.bf16.mxu0 0
      %2101 = vmatpush1.bf16.msra.mxu0 0
      %2102 = vmatprep.subr.bf16.mxu0 0
      %2103 = vmatpush1.bf16.msra.mxu0 0
      %2104 = vmatprep.mubr.bf16.mxu0 0
      %2105 = vmatmul.mubr.bf16.gmra.mrb[0].mxu0 %v1977
      %v2106 = vpop.f32.mrb[0].mxu0
      %v2107 = vadd.f32 %v1716, %v2106
      %v2108 = vpop.f32.mrb[0].mxu0
      %v2109 = vpop.f32.mrb[0].mxu0
      %v2110 = vadd.f32 %v1719, %v2109
      %v2111 = vpop.f32.mrb[0].mxu0
      %2112 = vmatprep.mubr.bf16.mxu0 0
      %2113 = vmatmul.mubr.bf16.gmra.mrb[0].mxu0 %v1980
      %v2114 = vpop.f32.mrb[0].mxu0
      %v2115 = vadd.f32 %v1724, %v2114
      %v2116 = vpop.f32.mrb[0].mxu0
      %v2117 = vpop.f32.mrb[0].mxu0
      %v2118 = vadd.f32 %v1727, %v2117
      %v2119 = vpop.f32.mrb[0].mxu0
      %2120 = vmatprep.mubr.bf16.mxu0 0
      %2121 = vmatmul.mubr.bf16.gmra.mrb[0].mxu0 %v1983
      %v2122 = vpop.f32.mrb[0].mxu0
      %v2123 = vadd.f32 %v1732, %v2122
      %v2124 = vpop.f32.mrb[0].mxu0
      %v2125 = vpop.f32.mrb[0].mxu0
      %v2126 = vadd.f32 %v1735, %v2125
      %v2127 = vpop.f32.mrb[0].mxu0
      %2128 = vmatprep.mubr.bf16.mxu0 0
      %2129 = vmatmul.mubr.bf16.gmra.mrb[0].mxu0 %v1986
      %v2130 = vpop.f32.mrb[0].mxu0
      %v2131 = vadd.f32 %v1740, %v2130
      %v2132 = vpop.f32.mrb[0].mxu0
      %v2133 = vpop.f32.mrb[0].mxu0
      %v2134 = vadd.f32 %v1743, %v2133
      %v2135 = vpop.f32.mrb[0].mxu0
      %2136 = vmatprep.mubr.bf16.mxu0 0
      %2137 = vmatmul.mubr.bf16.gmra.mrb[0].mxu0 %v1989
      %v2138 = vpop.f32.mrb[0].mxu0
      %v2139 = vadd.f32 %v1748, %v2138
      %v2140 = vpop.f32.mrb[0].mxu0
      %v2141 = vpop.f32.mrb[0].mxu0
      %v2142 = vadd.f32 %v1751, %v2141
      %v2143 = vpop.f32.mrb[0].mxu0
      %2144 = vmatprep.mubr.bf16.mxu0 0
      %2145 = vmatmul.mubr.bf16.gmra.mrb[0].mxu0 %v1992
      %v2146 = vpop.f32.mrb[0].mxu0
      %v2147 = vadd.f32 %v1756, %v2146
      %v2148 = vpop.f32.mrb[0].mxu0
      %v2149 = vpop.f32.mrb[0].mxu0
      %v2150 = vadd.f32 %v1759, %v2149
      %v2151 = vpop.f32.mrb[0].mxu0
      %2152 = vmatprep.mubr.bf16.mxu0 0
      %2153 = vmatmul.mubr.bf16.gmra.mrb[0].mxu0 %v1995
      %v2154 = vpop.f32.mrb[0].mxu0
      %v2155 = vadd.f32 %v1764, %v2154
      %v2156 = vpop.f32.mrb[0].mxu0
      %v2157 = vpop.f32.mrb[0].mxu0
      %v2158 = vadd.f32 %v1767, %v2157
      %v2159 = vpop.f32.mrb[0].mxu0
      %2160 = vmatprep.mubr.bf16.mxu0 0
      %2161 = vmatmul.mubr.bf16.gmra.mrb[0].mxu0 %v1998
      %v2162 = vpop.f32.mrb[0].mxu0
      %v2163 = vadd.f32 %v1772, %v2162
      %v2164 = vpop.f32.mrb[0].mxu0
      %v2165 = vpop.f32.mrb[0].mxu0
      %v2166 = vadd.f32 %v1775, %v2165
      %v2167 = vpop.f32.mrb[0].mxu0
      %2168 = vmatprep.mubr.bf16.mxu0 0
      %2169 = vmatmul.mubr.bf16.gmra.mrb[0].mxu0 %v2001
      %v2170 = vpop.f32.mrb[0].mxu0
      %v2171 = vadd.f32 %v1780, %v2170
      %v2172 = vpop.f32.mrb[0].mxu0
      %v2173 = vpop.f32.mrb[0].mxu0
      %v2174 = vadd.f32 %v1783, %v2173
      %v2175 = vpop.f32.mrb[0].mxu0
      %2176 = vmatprep.mubr.bf16.mxu0 0
      %2177 = vmatmul.mubr.bf16.gmra.mrb[0].mxu0 %v2004
      %v2178 = vpop.f32.mrb[0].mxu0
      %v2179 = vadd.f32 %v1788, %v2178
      %v2180 = vpop.f32.mrb[0].mxu0
      %v2181 = vpop.f32.mrb[0].mxu0
      %v2182 = vadd.f32 %v1791, %v2181
      %v2183 = vpop.f32.mrb[0].mxu0
      %2184 = vmatprep.mubr.bf16.mxu0 0
      %2185 = vmatmul.mubr.bf16.gmra.mrb[0].mxu0 %v2007
      %v2186 = vpop.f32.mrb[0].mxu0
      %v2187 = vadd.f32 %v1796, %v2186
      %v2188 = vpop.f32.mrb[0].mxu0
      %v2189 = vpop.f32.mrb[0].mxu0
      %v2190 = vadd.f32 %v1799, %v2189
      %v2191 = vpop.f32.mrb[0].mxu0
      %2192 = vmatprep.mubr.bf16.mxu0 0
      %2193 = vmatmul.mubr.bf16.gmra.mrb[0].mxu0 %v2010
      %v2194 = vpop.f32.mrb[0].mxu0
      %v2195 = vadd.f32 %v1804, %v2194
      %v2196 = vpop.f32.mrb[0].mxu0
      %v2197 = vpop.f32.mrb[0].mxu0
      %v2198 = vadd.f32 %v1807, %v2197
      %v2199 = vpop.f32.mrb[0].mxu0
      %2200 = vmatprep.mubr.bf16.mxu0 0
      %2201 = vmatmul.mubr.bf16.gmra.mrb[0].mxu0 %v2013
      %v2202 = vpop.f32.mrb[0].mxu0
      %v2203 = vadd.f32 %v1812, %v2202
      %v2204 = vpop.f32.mrb[0].mxu0
      %v2205 = vpop.f32.mrb[0].mxu0
      %v2206 = vadd.f32 %v1815, %v2205
      %v2207 = vpop.f32.mrb[0].mxu0
      %2208 = vmatprep.mubr.bf16.mxu0 0
      %2209 = vmatmul.mubr.bf16.gmra.mrb[0].mxu0 %v2016
      %v2210 = vpop.f32.mrb[0].mxu0
      %v2211 = vadd.f32 %v1820, %v2210
      %v2212 = vpop.f32.mrb[0].mxu0
      %v2213 = vpop.f32.mrb[0].mxu0
      %v2214 = vadd.f32 %v1823, %v2213
      %v2215 = vpop.f32.mrb[0].mxu0
      %2216 = vmatprep.mubr.bf16.mxu0 0
      %2217 = vmatmul.mubr.bf16.gmra.mrb[0].mxu0 %v2019
      %v2218 = vpop.f32.mrb[0].mxu0
      %v2219 = vadd.f32 %v1828, %v2218
      %v2220 = vpop.f32.mrb[0].mxu0
      %v2221 = vpop.f32.mrb[0].mxu0
      %v2222 = vadd.f32 %v1831, %v2221
      %v2223 = vpop.f32.mrb[0].mxu0
      %2224 = vmatprep.mubr.bf16.mxu0 0
      %2225 = vmatmul.mubr.bf16.gmra.mrb[0].mxu0 %v2022
      %v2226 = vpop.f32.mrb[0].mxu0
      %v2227 = vadd.f32 %v1836, %v2226
      %v2228 = vpop.f32.mrb[0].mxu0
      %v2229 = vpop.f32.mrb[0].mxu0
      %v2230 = vadd.f32 %v1839, %v2229
      %v2231 = vpop.f32.mrb[0].mxu0
      %2232 = vmatprep.mubr.bf16.mxu0 0
      %2233 = vmatmul.mubr.bf16.gmra.mrb[0].mxu0 %v2025
      %v2234 = vpop.f32.mrb[0].mxu0
      %v2235 = vadd.f32 %v1844, %v2234
      %v2236 = vpop.f32.mrb[0].mxu0
      %v2237 = vpop.f32.mrb[0].mxu0
      %v2238 = vadd.f32 %v1847, %v2237
      %v2239 = vpop.f32.mrb[0].mxu0
      %2240 = vmatprep.mubr.bf16.mxu0 0
      %2241 = vmatmul.mubr.bf16.gmra.mrb[0].mxu0 %v2028
      %v2242 = vpop.f32.mrb[0].mxu0
      %v2243 = vadd.f32 %v1852, %v2242
      %v2244 = vpop.f32.mrb[0].mxu0
      %v2245 = vpop.f32.mrb[0].mxu0
      %v2246 = vadd.f32 %v1855, %v2245
      %v2247 = vpop.f32.mrb[0].mxu0
      %2248 = vmatprep.mubr.bf16.mxu0 0
      %2249 = vmatmul.mubr.bf16.gmra.mrb[0].mxu0 %v2031
      %v2250 = vpop.f32.mrb[0].mxu0
      %v2251 = vadd.f32 %v1860, %v2250
      %v2252 = vpop.f32.mrb[0].mxu0
      %v2253 = vpop.f32.mrb[0].mxu0
      %v2254 = vadd.f32 %v1863, %v2253
      %v2255 = vpop.f32.mrb[0].mxu0
      %2256 = vmatprep.mubr.bf16.mxu0 0
      %2257 = vmatmul.mubr.bf16.gmra.mrb[0].mxu0 %v2034
      %v2258 = vpop.f32.mrb[0].mxu0
      %v2259 = vadd.f32 %v1868, %v2258
      %v2260 = vpop.f32.mrb[0].mxu0
      %v2261 = vpop.f32.mrb[0].mxu0
      %v2262 = vadd.f32 %v1871, %v2261
      %v2263 = vpop.f32.mrb[0].mxu0
      %2264 = vmatprep.mubr.bf16.mxu0 0
      %2265 = vmatmul.mubr.bf16.gmra.mrb[0].mxu0 %v2037
      %v2266 = vpop.f32.mrb[0].mxu0
      %v2267 = vadd.f32 %v1876, %v2266
      %v2268 = vpop.f32.mrb[0].mxu0
      %v2269 = vpop.f32.mrb[0].mxu0
      %v2270 = vadd.f32 %v1879, %v2269
      %v2271 = vpop.f32.mrb[0].mxu0
      %2272 = vmatprep.mubr.bf16.mxu0 0
      %2273 = vmatmul.mubr.bf16.gmra.mrb[0].mxu0 %v2040
      %v2274 = vpop.f32.mrb[0].mxu0
      %v2275 = vadd.f32 %v1884, %v2274
      %v2276 = vpop.f32.mrb[0].mxu0
      %v2277 = vpop.f32.mrb[0].mxu0
      %v2278 = vadd.f32 %v1887, %v2277
      %v2279 = vpop.f32.mrb[0].mxu0
      %2280 = vmatprep.mubr.bf16.mxu0 0
      %2281 = vmatmul.mubr.bf16.gmra.mrb[0].mxu0 %v2043
      %v2282 = vpop.f32.mrb[0].mxu0
      %v2283 = vadd.f32 %v1892, %v2282
      %v2284 = vpop.f32.mrb[0].mxu0
      %v2285 = vpop.f32.mrb[0].mxu0
      %v2286 = vadd.f32 %v1895, %v2285
      %v2287 = vpop.f32.mrb[0].mxu0
      %2288 = vmatprep.mubr.bf16.mxu0 0
      %2289 = vmatmul.mubr.bf16.gmra.mrb[0].mxu0 %v2046
      %v2290 = vpop.f32.mrb[0].mxu0
      %v2291 = vadd.f32 %v1900, %v2290
      %v2292 = vpop.f32.mrb[0].mxu0
      %v2293 = vpop.f32.mrb[0].mxu0
      %v2294 = vadd.f32 %v1903, %v2293
      %v2295 = vpop.f32.mrb[0].mxu0
      %2296 = vmatprep.mubr.bf16.mxu0 0
      %2297 = vmatmul.mubr.bf16.gmra.mrb[0].mxu0 %v2049
      %v2298 = vpop.f32.mrb[0].mxu0
      %v2299 = vadd.f32 %v1908, %v2298
      %v2300 = vpop.f32.mrb[0].mxu0
      %v2301 = vpop.f32.mrb[0].mxu0
      %v2302 = vadd.f32 %v1911, %v2301
      %v2303 = vpop.f32.mrb[0].mxu0
      %2304 = vmatprep.mubr.bf16.mxu0 0
      %2305 = vmatmul.mubr.bf16.gmra.mrb[0].mxu0 %v2052
      %v2306 = vpop.f32.mrb[0].mxu0
      %v2307 = vadd.f32 %v1916, %v2306
      %v2308 = vpop.f32.mrb[0].mxu0
      %v2309 = vpop.f32.mrb[0].mxu0
      %v2310 = vadd.f32 %v1919, %v2309
      %v2311 = vpop.f32.mrb[0].mxu0
      %2312 = vmatprep.mubr.bf16.mxu0 0
      %2313 = vmatmul.mubr.bf16.gmra.mrb[0].mxu0 %v2055
      %v2314 = vpop.f32.mrb[0].mxu0
      %v2315 = vadd.f32 %v1924, %v2314
      %v2316 = vpop.f32.mrb[0].mxu0
      %v2317 = vpop.f32.mrb[0].mxu0
      %v2318 = vadd.f32 %v1927, %v2317
      %v2319 = vpop.f32.mrb[0].mxu0
      %2320 = vmatprep.mubr.bf16.mxu0 0
      %2321 = vmatmul.mubr.bf16.gmra.mrb[0].mxu0 %v2058
      %v2322 = vpop.f32.mrb[0].mxu0
      %v2323 = vadd.f32 %v1932, %v2322
      %v2324 = vpop.f32.mrb[0].mxu0
      %v2325 = vpop.f32.mrb[0].mxu0
      %v2326 = vadd.f32 %v1935, %v2325
      %v2327 = vpop.f32.mrb[0].mxu0
      %2328 = vmatprep.mubr.bf16.mxu0 0
      %2329 = vmatmul.mubr.bf16.gmra.mrb[0].mxu0 %v2061
      %v2330 = vpop.f32.mrb[0].mxu0
      %v2331 = vadd.f32 %v1940, %v2330
      %v2332 = vpop.f32.mrb[0].mxu0
      %v2333 = vpop.f32.mrb[0].mxu0
      %v2334 = vadd.f32 %v1943, %v2333
      %v2335 = vpop.f32.mrb[0].mxu0
      %2336 = vmatprep.mubr.bf16.mxu0 0
      %2337 = vmatmul.mubr.bf16.gmra.mrb[0].mxu0 %v2064
      %v2338 = vpop.f32.mrb[0].mxu0
      %v2339 = vadd.f32 %v1948, %v2338
      %v2340 = vpop.f32.mrb[0].mxu0
      %v2341 = vpop.f32.mrb[0].mxu0
      %v2342 = vadd.f32 %v1951, %v2341
      %v2343 = vpop.f32.mrb[0].mxu0
      %2344 = vmatprep.mubr.bf16.mxu0 0
      %2345 = vmatmul.mubr.bf16.gmra.mrb[0].mxu0 %v2067
      %v2346 = vpop.f32.mrb[0].mxu0
      %v2347 = vadd.f32 %v1956, %v2346
      %v2348 = vpop.f32.mrb[0].mxu0
      %v2349 = vpop.f32.mrb[0].mxu0
      %v2350 = vadd.f32 %v1959, %v2349
      %v2351 = vpop.f32.mrb[0].mxu0
      %2352 = vmatprep.mubr.bf16.mxu0 0
      %2353 = vmatmul.mubr.bf16.gmra.mrb[0].mxu0 %v2070
      %v2354 = vpop.f32.mrb[0].mxu0
      %v2355 = vadd.f32 %v1964, %v2354
      %v2356 = vpop.f32.mrb[0].mxu0
      %v2357 = vpop.f32.mrb[0].mxu0
      %v2358 = vadd.f32 %v1967, %v2357
      %v2359 = vpop.f32.mrb[0].mxu0
      %2360 = vdwg.mxu0
      %v2361 = vld [vmem:[%s4] sm:$0x1]
      %v2363 = vlaneseq
      %v2364 = vshrl.u32 %v2363, 7
      %v2365 = vsub.s32 0, %v2364
      %v2366 = vrot.slane %v2361, %v2365
      %v2368 = vadd.f32 %v2107, %v2366
      %v2369 = vadd.f32 %v2110, %v2366
      %v2370 = vadd.f32 %v2115, %v2366
      %v2371 = vadd.f32 %v2118, %v2366
      %v2372 = vadd.f32 %v2123, %v2366
      %v2373 = vadd.f32 %v2126, %v2366
      %v2374 = vadd.f32 %v2131, %v2366
      %v2375 = vadd.f32 %v2134, %v2366
      %v2376 = vadd.f32 %v2139, %v2366
      %v2377 = vadd.f32 %v2142, %v2366
      %v2378 = vadd.f32 %v2147, %v2366
      %v2379 = vadd.f32 %v2150, %v2366
      %v2380 = vadd.f32 %v2155, %v2366
      %v2381 = vadd.f32 %v2158, %v2366
      %v2382 = vadd.f32 %v2163, %v2366
      %v2383 = vadd.f32 %v2166, %v2366
      %v2384 = vadd.f32 %v2171, %v2366
      %v2385 = vadd.f32 %v2174, %v2366
      %v2386 = vadd.f32 %v2179, %v2366
      %v2387 = vadd.f32 %v2182, %v2366
      %v2388 = vadd.f32 %v2187, %v2366
      %v2389 = vadd.f32 %v2190, %v2366
      %v2390 = vadd.f32 %v2195, %v2366
      %v2391 = vadd.f32 %v2198, %v2366
      %v2392 = vadd.f32 %v2203, %v2366
      %v2393 = vadd.f32 %v2206, %v2366
      %v2394 = vadd.f32 %v2211, %v2366
      %v2395 = vadd.f32 %v2214, %v2366
      %v2396 = vadd.f32 %v2219, %v2366
      %v2397 = vadd.f32 %v2222, %v2366
      %v2398 = vadd.f32 %v2227, %v2366
      %v2399 = vadd.f32 %v2230, %v2366
      %v2400 = vadd.f32 %v2235, %v2366
      %v2401 = vadd.f32 %v2238, %v2366
      %v2402 = vadd.f32 %v2243, %v2366
      %v2403 = vadd.f32 %v2246, %v2366
      %v2404 = vadd.f32 %v2251, %v2366
      %v2405 = vadd.f32 %v2254, %v2366
      %v2406 = vadd.f32 %v2259, %v2366
      %v2407 = vadd.f32 %v2262, %v2366
      %v2408 = vadd.f32 %v2267, %v2366
      %v2409 = vadd.f32 %v2270, %v2366
      %v2410 = vadd.f32 %v2275, %v2366
      %v2411 = vadd.f32 %v2278, %v2366
      %v2412 = vadd.f32 %v2283, %v2366
      %v2413 = vadd.f32 %v2286, %v2366
      %v2414 = vadd.f32 %v2291, %v2366
      %v2415 = vadd.f32 %v2294, %v2366
      %v2416 = vadd.f32 %v2299, %v2366
      %v2417 = vadd.f32 %v2302, %v2366
      %v2418 = vadd.f32 %v2307, %v2366
      %v2419 = vadd.f32 %v2310, %v2366
      %v2420 = vadd.f32 %v2315, %v2366
      %v2421 = vadd.f32 %v2318, %v2366
      %v2422 = vadd.f32 %v2323, %v2366
      %v2423 = vadd.f32 %v2326, %v2366
      %v2424 = vadd.f32 %v2331, %v2366
      %v2425 = vadd.f32 %v2334, %v2366
      %v2426 = vadd.f32 %v2339, %v2366
      %v2427 = vadd.f32 %v2342, %v2366
      %v2428 = vadd.f32 %v2347, %v2366
      %v2429 = vadd.f32 %v2350, %v2366
      %v2430 = vadd.f32 %v2355, %v2366
      %v2431 = vadd.f32 %v2358, %v2366
      %v2432 = vpack.c.bf16 %v2369, %v2368
      %v2433 = vpack.c.bf16 %v2371, %v2370
      %v2434 = vpack.c.bf16 %v2373, %v2372
      %v2435 = vpack.c.bf16 %v2375, %v2374
      %v2436 = vpack.c.bf16 %v2377, %v2376
      %v2437 = vpack.c.bf16 %v2379, %v2378
      %v2438 = vpack.c.bf16 %v2381, %v2380
      %v2439 = vpack.c.bf16 %v2383, %v2382
      %v2440 = vpack.c.bf16 %v2385, %v2384
      %v2441 = vpack.c.bf16 %v2387, %v2386
      %v2442 = vpack.c.bf16 %v2389, %v2388
      %v2443 = vpack.c.bf16 %v2391, %v2390
      %v2444 = vpack.c.bf16 %v2393, %v2392
      %v2445 = vpack.c.bf16 %v2395, %v2394
      %v2446 = vpack.c.bf16 %v2397, %v2396
      %v2447 = vpack.c.bf16 %v2399, %v2398
      %v2448 = vpack.c.bf16 %v2401, %v2400
      %v2449 = vpack.c.bf16 %v2403, %v2402
      %v2450 = vpack.c.bf16 %v2405, %v2404
      %v2451 = vpack.c.bf16 %v2407, %v2406
      %v2452 = vpack.c.bf16 %v2409, %v2408
      %v2453 = vpack.c.bf16 %v2411, %v2410
      %v2454 = vpack.c.bf16 %v2413, %v2412
      %v2455 = vpack.c.bf16 %v2415, %v2414
      %v2456 = vpack.c.bf16 %v2417, %v2416
      %v2457 = vpack.c.bf16 %v2419, %v2418
      %v2458 = vpack.c.bf16 %v2421, %v2420
      %v2459 = vpack.c.bf16 %v2423, %v2422
      %v2460 = vpack.c.bf16 %v2425, %v2424
      %v2461 = vpack.c.bf16 %v2427, %v2426
      %v2462 = vpack.c.bf16 %v2429, %v2428
      %v2463 = vpack.c.bf16 %v2431, %v2430
      %v2496 = vunpack.c.l.b16 %v2432
      %v2497 = vunpack.c.h.b16 %v2432
      %v2498 = vunpack.c.l.b16 %v2433
      %v2499 = vunpack.c.h.b16 %v2433
      %v2500 = vunpack.c.l.b16 %v2434
      %v2501 = vunpack.c.h.b16 %v2434
      %v2502 = vunpack.c.l.b16 %v2435
      %v2503 = vunpack.c.h.b16 %v2435
      %v2504 = vunpack.c.l.b16 %v2436
      %v2505 = vunpack.c.h.b16 %v2436
      %v2506 = vunpack.c.l.b16 %v2437
      %v2507 = vunpack.c.h.b16 %v2437
      %v2508 = vunpack.c.l.b16 %v2438
      %v2509 = vunpack.c.h.b16 %v2438
      %v2510 = vunpack.c.l.b16 %v2439
      %v2511 = vunpack.c.h.b16 %v2439
      %v2512 = vunpack.c.l.b16 %v2440
      %v2513 = vunpack.c.h.b16 %v2440
      %v2514 = vunpack.c.l.b16 %v2441
      %v2515 = vunpack.c.h.b16 %v2441
      %v2516 = vunpack.c.l.b16 %v2442
      %v2517 = vunpack.c.h.b16 %v2442
      %v2518 = vunpack.c.l.b16 %v2443
      %v2519 = vunpack.c.h.b16 %v2443
      %v2520 = vunpack.c.l.b16 %v2444
      %v2521 = vunpack.c.h.b16 %v2444
      %v2522 = vunpack.c.l.b16 %v2445
      %v2523 = vunpack.c.h.b16 %v2445
      %v2524 = vunpack.c.l.b16 %v2446
      %v2525 = vunpack.c.h.b16 %v2446
      %v2526 = vunpack.c.l.b16 %v2447
      %v2527 = vunpack.c.h.b16 %v2447
      %v2528 = vunpack.c.l.b16 %v2448
      %v2529 = vunpack.c.h.b16 %v2448
      %v2530 = vunpack.c.l.b16 %v2449
      %v2531 = vunpack.c.h.b16 %v2449
      %v2532 = vunpack.c.l.b16 %v2450
      %v2533 = vunpack.c.h.b16 %v2450
      %v2534 = vunpack.c.l.b16 %v2451
      %v2535 = vunpack.c.h.b16 %v2451
      %v2536 = vunpack.c.l.b16 %v2452
      %v2537 = vunpack.c.h.b16 %v2452
      %v2538 = vunpack.c.l.b16 %v2453
      %v2539 = vunpack.c.h.b16 %v2453
      %v2540 = vunpack.c.l.b16 %v2454
      %v2541 = vunpack.c.h.b16 %v2454
      %v2542 = vunpack.c.l.b16 %v2455
      %v2543 = vunpack.c.h.b16 %v2455
      %v2544 = vunpack.c.l.b16 %v2456
      %v2545 = vunpack.c.h.b16 %v2456
      %v2546 = vunpack.c.l.b16 %v2457
      %v2547 = vunpack.c.h.b16 %v2457
      %v2548 = vunpack.c.l.b16 %v2458
      %v2549 = vunpack.c.h.b16 %v2458
      %v2550 = vunpack.c.l.b16 %v2459
      %v2551 = vunpack.c.h.b16 %v2459
      %v2552 = vunpack.c.l.b16 %v2460
      %v2553 = vunpack.c.h.b16 %v2460
      %v2554 = vunpack.c.l.b16 %v2461
      %v2555 = vunpack.c.h.b16 %v2461
      %v2556 = vunpack.c.l.b16 %v2462
      %v2557 = vunpack.c.h.b16 %v2462
      %v2558 = vunpack.c.l.b16 %v2463
      %v2559 = vunpack.c.h.b16 %v2463
      %v2560 = vpack.c.b16 %v2496, %v2496
      %v2561 = vpack.c.b16 %v2497, %v2497
      %v2562 = vpack.c.b16 %v2498, %v2498
      %v2563 = vpack.c.b16 %v2499, %v2499
      %v2564 = vpack.c.b16 %v2500, %v2500
      %v2565 = vpack.c.b16 %v2501, %v2501
      %v2566 = vpack.c.b16 %v2502, %v2502
      %v2567 = vpack.c.b16 %v2503, %v2503
      %v2568 = vpack.c.b16 %v2504, %v2504
      %v2569 = vpack.c.b16 %v2505, %v2505
      %v2570 = vpack.c.b16 %v2506, %v2506
      %v2571 = vpack.c.b16 %v2507, %v2507
      %v2572 = vpack.c.b16 %v2508, %v2508
      %v2573 = vpack.c.b16 %v2509, %v2509
      %v2574 = vpack.c.b16 %v2510, %v2510
      %v2575 = vpack.c.b16 %v2511, %v2511
      %v2576 = vpack.c.b16 %v2512, %v2512
      %v2577 = vpack.c.b16 %v2513, %v2513
      %v2578 = vpack.c.b16 %v2514, %v2514
      %v2579 = vpack.c.b16 %v2515, %v2515
      %v2580 = vpack.c.b16 %v2516, %v2516
      %v2581 = vpack.c.b16 %v2517, %v2517
      %v2582 = vpack.c.b16 %v2518, %v2518
      %v2583 = vpack.c.b16 %v2519, %v2519
      %v2584 = vpack.c.b16 %v2520, %v2520
      %v2585 = vpack.c.b16 %v2521, %v2521
      %v2586 = vpack.c.b16 %v2522, %v2522
      %v2587 = vpack.c.b16 %v2523, %v2523
      %v2588 = vpack.c.b16 %v2524, %v2524
      %v2589 = vpack.c.b16 %v2525, %v2525
      %v2590 = vpack.c.b16 %v2526, %v2526
      %v2591 = vpack.c.b16 %v2527, %v2527
      %v2592 = vpack.c.b16 %v2528, %v2528
      %v2593 = vpack.c.b16 %v2529, %v2529
      %v2594 = vpack.c.b16 %v2530, %v2530
      %v2595 = vpack.c.b16 %v2531, %v2531
      %v2596 = vpack.c.b16 %v2532, %v2532
      %v2597 = vpack.c.b16 %v2533, %v2533
      %v2598 = vpack.c.b16 %v2534, %v2534
      %v2599 = vpack.c.b16 %v2535, %v2535
      %v2600 = vpack.c.b16 %v2536, %v2536
      %v2601 = vpack.c.b16 %v2537, %v2537
      %v2602 = vpack.c.b16 %v2538, %v2538
      %v2603 = vpack.c.b16 %v2539, %v2539
      %v2604 = vpack.c.b16 %v2540, %v2540
      %v2605 = vpack.c.b16 %v2541, %v2541
      %v2606 = vpack.c.b16 %v2542, %v2542
      %v2607 = vpack.c.b16 %v2543, %v2543
      %v2608 = vpack.c.b16 %v2544, %v2544
      %v2609 = vpack.c.b16 %v2545, %v2545
      %v2610 = vpack.c.b16 %v2546, %v2546
      %v2611 = vpack.c.b16 %v2547, %v2547
      %v2612 = vpack.c.b16 %v2548, %v2548
      %v2613 = vpack.c.b16 %v2549, %v2549
      %v2614 = vpack.c.b16 %v2550, %v2550
      %v2615 = vpack.c.b16 %v2551, %v2551
      %v2616 = vpack.c.b16 %v2552, %v2552
      %v2617 = vpack.c.b16 %v2553, %v2553
      %v2618 = vpack.c.b16 %v2554, %v2554
      %v2619 = vpack.c.b16 %v2555, %v2555
      %v2620 = vpack.c.b16 %v2556, %v2556
      %v2621 = vpack.c.b16 %v2557, %v2557
      %v2622 = vpack.c.b16 %v2558, %v2558
      %v2623 = vpack.c.b16 %v2559, %v2559
      %vm2688 = vcmask 60416
      %2689 = vst.msk [vmem:[%s289] sm:$0xf] %vm2688, %v2560
      %2690 = vst.msk [vmem:[%s289 + $0x4] sm:$0xf] %vm2688, %v2561
      %2691 = vst.msk [vmem:[%s289 + $0x8] sm:$0xf] %vm2688, %v2562
      %2692 = vst.msk [vmem:[%s289 + $0xc] sm:$0xf] %vm2688, %v2563
      %2693 = vst.msk [vmem:[%s289 + $0x10] sm:$0xf] %vm2688, %v2564
      %2694 = vst.msk [vmem:[%s289 + $0x14] sm:$0xf] %vm2688, %v2565
      %2695 = vst.msk [vmem:[%s289 + $0x18] sm:$0xf] %vm2688, %v2566
      %2696 = vst.msk [vmem:[%s289 + $0x1c] sm:$0xf] %vm2688, %v2567
      %2697 = vst.msk [vmem:[%s289 + $0x20] sm:$0xf] %vm2688, %v2568
      %2698 = vst.msk [vmem:[%s289 + $0x24] sm:$0xf] %vm2688, %v2569
      %2699 = vst.msk [vmem:[%s289 + $0x28] sm:$0xf] %vm2688, %v2570
      %2700 = vst.msk [vmem:[%s289 + $0x2c] sm:$0xf] %vm2688, %v2571
      %2701 = vst.msk [vmem:[%s289 + $0x30] sm:$0xf] %vm2688, %v2572
      %2702 = vst.msk [vmem:[%s289 + $0x34] sm:$0xf] %vm2688, %v2573
      %2703 = vst.msk [vmem:[%s289 + $0x38] sm:$0xf] %vm2688, %v2574
      %2704 = vst.msk [vmem:[%s289 + $0x3c] sm:$0xf] %vm2688, %v2575
      %2705 = vst.msk [vmem:[%s289 + $0x40] sm:$0xf] %vm2688, %v2576
      %2706 = vst.msk [vmem:[%s289 + $0x44] sm:$0xf] %vm2688, %v2577
      %2707 = vst.msk [vmem:[%s289 + $0x48] sm:$0xf] %vm2688, %v2578
      %2708 = vst.msk [vmem:[%s289 + $0x4c] sm:$0xf] %vm2688, %v2579
      %2709 = vst.msk [vmem:[%s289 + $0x50] sm:$0xf] %vm2688, %v2580
      %2710 = vst.msk [vmem:[%s289 + $0x54] sm:$0xf] %vm2688, %v2581
      %2711 = vst.msk [vmem:[%s289 + $0x58] sm:$0xf] %vm2688, %v2582
      %2712 = vst.msk [vmem:[%s289 + $0x5c] sm:$0xf] %vm2688, %v2583
      %2713 = vst.msk [vmem:[%s289 + $0x60] sm:$0xf] %vm2688, %v2584
      %2714 = vst.msk [vmem:[%s289 + $0x64] sm:$0xf] %vm2688, %v2585
      %2715 = vst.msk [vmem:[%s289 + $0x68] sm:$0xf] %vm2688, %v2586
      %2716 = vst.msk [vmem:[%s289 + $0x6c] sm:$0xf] %vm2688, %v2587
      %2717 = vst.msk [vmem:[%s289 + $0x70] sm:$0xf] %vm2688, %v2588
      %2718 = vst.msk [vmem:[%s289 + $0x74] sm:$0xf] %vm2688, %v2589
      %2719 = vst.msk [vmem:[%s289 + $0x78] sm:$0xf] %vm2688, %v2590
      %2720 = vst.msk [vmem:[%s289 + $0x7c] sm:$0xf] %vm2688, %v2591
      %2721 = vst.msk [vmem:[%s289 + $0x80] sm:$0xf] %vm2688, %v2592
      %2722 = vst.msk [vmem:[%s289 + $0x84] sm:$0xf] %vm2688, %v2593
      %2723 = vst.msk [vmem:[%s289 + $0x88] sm:$0xf] %vm2688, %v2594
      %2724 = vst.msk [vmem:[%s289 + $0x8c] sm:$0xf] %vm2688, %v2595
      %2725 = vst.msk [vmem:[%s289 + $0x90] sm:$0xf] %vm2688, %v2596
      %2726 = vst.msk [vmem:[%s289 + $0x94] sm:$0xf] %vm2688, %v2597
      %2727 = vst.msk [vmem:[%s289 + $0x98] sm:$0xf] %vm2688, %v2598
      %2728 = vst.msk [vmem:[%s289 + $0x9c] sm:$0xf] %vm2688, %v2599
      %2729 = vst.msk [vmem:[%s289 + $0xa0] sm:$0xf] %vm2688, %v2600
      %2730 = vst.msk [vmem:[%s289 + $0xa4] sm:$0xf] %vm2688, %v2601
      %2731 = vst.msk [vmem:[%s289 + $0xa8] sm:$0xf] %vm2688, %v2602
      %2732 = vst.msk [vmem:[%s289 + $0xac] sm:$0xf] %vm2688, %v2603
      %2733 = vst.msk [vmem:[%s289 + $0xb0] sm:$0xf] %vm2688, %v2604
      %2734 = vst.msk [vmem:[%s289 + $0xb4] sm:$0xf] %vm2688, %v2605
      %2735 = vst.msk [vmem:[%s289 + $0xb8] sm:$0xf] %vm2688, %v2606
      %2736 = vst.msk [vmem:[%s289 + $0xbc] sm:$0xf] %vm2688, %v2607
      %2737 = vst.msk [vmem:[%s289 + $0xc0] sm:$0xf] %vm2688, %v2608
      %2738 = vst.msk [vmem:[%s289 + $0xc4] sm:$0xf] %vm2688, %v2609
      %2739 = vst.msk [vmem:[%s289 + $0xc8] sm:$0xf] %vm2688, %v2610
      %2740 = vst.msk [vmem:[%s289 + $0xcc] sm:$0xf] %vm2688, %v2611
      %2741 = vst.msk [vmem:[%s289 + $0xd0] sm:$0xf] %vm2688, %v2612
      %2742 = vst.msk [vmem:[%s289 + $0xd4] sm:$0xf] %vm2688, %v2613
      %2743 = vst.msk [vmem:[%s289 + $0xd8] sm:$0xf] %vm2688, %v2614
      %2744 = vst.msk [vmem:[%s289 + $0xdc] sm:$0xf] %vm2688, %v2615
      %2745 = vst.msk [vmem:[%s289 + $0xe0] sm:$0xf] %vm2688, %v2616
      %2746 = vst.msk [vmem:[%s289 + $0xe4] sm:$0xf] %vm2688, %v2617
      %2747 = vst.msk [vmem:[%s289 + $0xe8] sm:$0xf] %vm2688, %v2618
      %2748 = vst.msk [vmem:[%s289 + $0xec] sm:$0xf] %vm2688, %v2619
      %2749 = vst.msk [vmem:[%s289 + $0xf0] sm:$0xf] %vm2688, %v2620
      %2750 = vst.msk [vmem:[%s289 + $0xf4] sm:$0xf] %vm2688, %v2621
      %2751 = vst.msk [vmem:[%s289 + $0xf8] sm:$0xf] %vm2688, %v2622
      %2752 = vst.msk [vmem:[%s289 + $0xfc] sm:$0xf] %vm2688, %v2623
      %s2753 = smul.u32 64, %s18
      %p2754 = scmp.lt.s32.totalorder %s2753, 511
      %s2755 = scalar_select %p2754, %s2753, 511
      %s2756 = smul.addr %s2755, 4
      %s2757 = scalar_lea.vmem %s5, %s2756
      %s2758 = smul.u32 64, %s18
      %p2759 = scmp.lt.s32.totalorder %s2758, 511
      %s2760 = scalar_select %p2759, %s2758, 511
      %s2761 = smul.addr %s2760, 4
      %s2762 = scalar_lea.vmem %s6, %s2761
      // Predicated region
      $region41: #{weight_upsample_forward.6} parent=39 // pred_check
        %p2763 = pneg %p151
      $region42: #{weight_upsample_forward.6} parent=39 // pred_check_branch
        %2765 = sbr.rel (%p2763) target = $region44
      $region43: #{weight_upsample_forward.6} parent=39 // pred_region
        %s2766 = smul.u32 64, %s18
      $region44: #{weight_upsample_forward.6} parent=39 // pred_fallthru
        _
      // Predicated region
      $region45: #{weight_upsample_forward.6} parent=39 // pred_check
        %p2767 = pneg %p177
      $region46: #{weight_upsample_forward.6} parent=39 // pred_check_branch
        %2769 = sbr.rel (%p2767) target = $region48
      $region47: #{weight_upsample_forward.6} parent=39 // pred_region
        %s2770 = smul.u32 64, %s18
      $region48: #{weight_upsample_forward.6} parent=39 // pred_fallthru
        _
    $region40: #{weight_upsample_forward.6} parent=5 // pred_fallthru
      _
    %p2771 = scmp.le.s32.totalorder 2, %s13
    // Predicated region
    $region49: #{weight_upsample_forward.6} parent=5 // pred_check
      %p2772 = pneg %p2771
    $region50: #{weight_upsample_forward.6} parent=5 // pred_check_branch
      %2774 = sbr.rel (%p2772) target = $region52
    $region51: #{weight_upsample_forward.6} parent=5 // pred_region
      %s2775 = ssub.s32 %s13, 2
      // Predicated region
      $region53: #{weight_upsample_forward.6} parent=51 // pred_check
        %p2776 = pneg %p157
      $region54: #{weight_upsample_forward.6} parent=51 // pred_check_branch
        %2778 = sbr.rel (%p2776) target = $region56
      $region55: #{weight_upsample_forward.6} parent=51 // pred_region
        %s2779 = smul.u32 64, %s19
        %p2780 = scmp.lt.s32.totalorder %s2779, 511
        %s2781 = scalar_select %p2780, %s2779, 511
        %s2782 = smul.addr %s2781, 4
        %s2783 = scalar_lea.vmem %s5, %s2782
      $region56: #{weight_upsample_forward.6} parent=51 // pred_fallthru
        _
      // Predicated region
      $region57: #{weight_upsample_forward.6} parent=51 // pred_check
        %p2784 = pneg %p183
      $region58: #{weight_upsample_forward.6} parent=51 // pred_check_branch
        %2786 = sbr.rel (%p2784) target = $region60
      $region59: #{weight_upsample_forward.6} parent=51 // pred_region
        %s2787 = smul.u32 64, %s19
        %p2788 = scmp.lt.s32.totalorder %s2787, 511
        %s2789 = scalar_select %p2788, %s2787, 511
        %s2790 = smul.addr %s2789, 4
        %s2791 = scalar_lea.vmem %s6, %s2790
      $region60: #{weight_upsample_forward.6} parent=51 // pred_fallthru
        _
    $region52: #{weight_upsample_forward.6} parent=5 // pred_fallthru
      _
  $region6: #{weight_upsample_forward.6} parent=0 // loop_footer
    %s17 = sadd.s32 1, %s13
  $region7: #{weight_upsample_forward.6} parent=0 // loop_footer_branch
    %12 = sbr.rel target = $region3
  $region8: #{weight_upsample_forward.6} parent=0 // loop_exit
    _

// kernel: weight_upsample_forward.7
$region0: #{weight_upsample_forward.7}
  #allocation0 [shape = 'u32[]', space=smem, size = 0x4, offset = 0x4, fixed_abs, tag = 'smem constant byte address 0x4 - core index']
  #allocation1 [shape = 'u32[144,128]{1,0:T(1,128)}', space=vmem, size = 0x12000, scoped, tag = 'internal scratch']
  %s0 = inlined_call_operand.vmem [shape: bf16[1024,128], index: 0, kind: input, shape index: {}]
  %s1 = inlined_call_operand.vmem [shape: bf16[128,8], index: 1, kind: input, shape index: {}]
  %s2 = inlined_call_operand.vmem [shape: f32[1,8], index: 2, kind: input, shape index: {}]
  %s3 = inlined_call_operand.vmem [shape: f32[1024,8], index: 3, kind: output, shape index: {}]
  %s4 = sld [smem:[#allocation0]]
  $region45: #{weight_upsample_forward.7} parent=0
    _
  %s6 = ssub.s32 1, %s4
  %s7 = scalar_select 0, %s6, %s4
  loop: start=0, step=1, limit=4
  $region2: #{weight_upsample_forward.7} parent=0 // loop_pre_header
    _
  $region3: #{weight_upsample_forward.7} parent=0 // loop_header
    %s9 = sphi 0, %s13
    %p10 = scmp.ge.s32.totalorder %s9, 4
    %s19 = sphi 0, %s21
    %s22 = sphi 0, %s19
    %s23 = sphi 0, %s22
    %s39 = sphi 0, %s23
    %s43 = sphi 0, %s43
    %s45 = sphi 0, %s43
    %s46 = sphi 0, %s45
    %s60 = sphi 0, %s46
    %s64 = sphi 0, %s64
    %s66 = sphi 0, %s64
    %s67 = sphi 0, %s66
    %s81 = sphi 0, %s67
    %s87 = sphi 0, %s89
    %s90 = sphi 0, %s87
    %s91 = sphi 0, %s90
    %s107 = sphi 0, %s91
  $region4: #{weight_upsample_forward.7} parent=0 // loop_header_branch
    %12 = sbr.rel (%p10) target = $region8
  $region5: #{weight_upsample_forward.7} parent=0 // loop_body
    %s14 = ssub.s32 %s9, 1
    %s15 = ssub.s32 %s9, 2
    %s16 = sadd.s32 %s9, 1
    %s17 = ssub.s32 %s9, %s16
    %p18 = scmp.eq.s32.totalorder %s17, 0
    %s20 = sadd.s32 %s19, 1
    %s21 = scalar_select %p18, %s19, %s20
    %p24 = pneg %p18
    %p25 = scmp.eq.s32.totalorder %s9, 1
    %p26 = por %p24, %p25
    %p27 = scmp.ne.s32.totalorder %s19, %s22
    %p28 = scmp.eq.s32.totalorder %s9, 0
    %p29 = por %p27, %p28
    %p30 = scmp.ne.s32.totalorder %s19, %s22
    %p31 = scmp.eq.s32.totalorder %s14, 1
    %p32 = por %p30, %p31
    %p33 = scmp.ne.s32.totalorder %s22, %s23
    %p34 = scmp.eq.s32.totalorder %s14, 0
    %p35 = por %p33, %p34
    %p36 = scmp.ne.s32.totalorder %s22, %s23
    %p37 = scmp.eq.s32.totalorder %s15, 1
    %p38 = por %p36, %p37
    %p40 = scmp.ne.s32.totalorder %s23, %s39
    %p41 = scmp.eq.s32.totalorder %s15, 0
    %p42 = por %p40, %p41
    %s44 = sadd.s32 %s43, 1
    %p47 = scmp.eq.s32.totalorder %s9, 1
    %p48 = scmp.ne.s32.totalorder %s43, %s45
    %p49 = scmp.eq.s32.totalorder %s9, 0
    %p50 = por %p48, %p49
    %p51 = scmp.ne.s32.totalorder %s43, %s45
    %p52 = scmp.eq.s32.totalorder %s14, 1
    %p53 = por %p51, %p52
    %p54 = scmp.ne.s32.totalorder %s45, %s46
    %p55 = scmp.eq.s32.totalorder %s14, 0
    %p56 = por %p54, %p55
    %p57 = scmp.ne.s32.totalorder %s45, %s46
    %p58 = scmp.eq.s32.totalorder %s15, 1
    %p59 = por %p57, %p58
    %p61 = scmp.ne.s32.totalorder %s46, %s60
    %p62 = scmp.eq.s32.totalorder %s15, 0
    %p63 = por %p61, %p62
    %s65 = sadd.s32 %s64, 1
    %p68 = scmp.eq.s32.totalorder %s9, 1
    %p69 = scmp.ne.s32.totalorder %s64, %s66
    %p70 = scmp.eq.s32.totalorder %s9, 0
    %p71 = por %p69, %p70
    %p72 = scmp.ne.s32.totalorder %s64, %s66
    %p73 = scmp.eq.s32.totalorder %s14, 1
    %p74 = por %p72, %p73
    %p75 = scmp.ne.s32.totalorder %s66, %s67
    %p76 = scmp.eq.s32.totalorder %s14, 0
    %p77 = por %p75, %p76
    %p78 = scmp.ne.s32.totalorder %s66, %s67
    %p79 = scmp.eq.s32.totalorder %s15, 1
    %p80 = por %p78, %p79
    %p82 = scmp.ne.s32.totalorder %s67, %s81
    %p83 = scmp.eq.s32.totalorder %s15, 0
    %p84 = por %p82, %p83
    %s85 = ssub.s32 %s9, %s16
    %p86 = scmp.eq.s32.totalorder %s85, 0
    %s88 = sadd.s32 %s87, 1
    %s89 = scalar_select %p86, %s87, %s88
    %p92 = pneg %p86
    %p93 = scmp.eq.s32.totalorder %s9, 1
    %p94 = por %p92, %p93
    %p95 = scmp.ne.s32.totalorder %s87, %s90
    %p96 = scmp.eq.s32.totalorder %s9, 0
    %p97 = por %p95, %p96
    %p98 = scmp.ne.s32.totalorder %s87, %s90
    %p99 = scmp.eq.s32.totalorder %s14, 1
    %p100 = por %p98, %p99
    %p101 = scmp.ne.s32.totalorder %s90, %s91
    %p102 = scmp.eq.s32.totalorder %s14, 0
    %p103 = por %p101, %p102
    %p104 = scmp.ne.s32.totalorder %s90, %s91
    %p105 = scmp.eq.s32.totalorder %s15, 1
    %p106 = por %p104, %p105
    %p108 = scmp.ne.s32.totalorder %s91, %s107
    %p109 = scmp.eq.s32.totalorder %s15, 0
    %p110 = por %p108, %p109
    %p111 = scmp.le.s32.totalorder 1, %s9
    %p112 = scmp.lt.s32.totalorder %s9, 3
    %p113 = pnand %p111, %p112
    %p114 = pneg %p113
    // Predicated region
    $region9: #{weight_upsample_forward.7} parent=5 // pred_check
      _
    $region10: #{weight_upsample_forward.7} parent=5 // pred_check_branch
      %116 = sbr.rel (%p113) target = $region12
    $region11: #{weight_upsample_forward.7} parent=5 // pred_region
      %s117 = ssub.s32 %s9, 1
      // Predicated region
      $region13: #{weight_upsample_forward.7} parent=11 // pred_check
        %p118 = pneg %p56
      $region14: #{weight_upsample_forward.7} parent=11 // pred_check_branch
        %120 = sbr.rel (%p118) target = $region16
      $region15: #{weight_upsample_forward.7} parent=11 // pred_region
        _
      $region16: #{weight_upsample_forward.7} parent=11 // pred_fallthru
        _
      // Predicated region
      $region17: #{weight_upsample_forward.7} parent=11 // pred_check
        %p121 = pneg %p77
      $region18: #{weight_upsample_forward.7} parent=11 // pred_check_branch
        %123 = sbr.rel (%p121) target = $region20
      $region19: #{weight_upsample_forward.7} parent=11 // pred_region
        _
      $region20: #{weight_upsample_forward.7} parent=11 // pred_fallthru
        _
    $region12: #{weight_upsample_forward.7} parent=5 // pred_fallthru
      _
    %p124 = scmp.lt.s32.totalorder %s9, 2
    // Predicated region
    $region21: #{weight_upsample_forward.7} parent=5 // pred_check
      %p125 = pneg %p124
    $region22: #{weight_upsample_forward.7} parent=5 // pred_check_branch
      %127 = sbr.rel (%p125) target = $region24
    $region23: #{weight_upsample_forward.7} parent=5 // pred_region
      // Predicated region
      $region25: #{weight_upsample_forward.7} parent=23 // pred_check
        %p128 = pneg %p29
      $region26: #{weight_upsample_forward.7} parent=23 // pred_check_branch
        %130 = sbr.rel (%p128) target = $region28
      $region27: #{weight_upsample_forward.7} parent=23 // pred_region
        %s131 = smul.u32 64, %s9
        %p132 = scmp.lt.s32.totalorder %s131, 127
        %s133 = scalar_select %p132, %s131, 127
        %s134 = smul.addr %s133, 4
        %s135 = scalar_lea.vmem %s0, %s134
        %s136 = smul.u32 64, %s9
      $region28: #{weight_upsample_forward.7} parent=23 // pred_fallthru
        _
    $region24: #{weight_upsample_forward.7} parent=5 // pred_fallthru
      _
    %p137 = scmp.le.s32.totalorder 1, %s9
    %p138 = scmp.lt.s32.totalorder %s9, 3
    %p139 = pnand %p137, %p138
    %p140 = pneg %p139
    // Predicated region
    $region29: #{weight_upsample_forward.7} parent=5 // pred_check
      _
    $region30: #{weight_upsample_forward.7} parent=5 // pred_check_branch
      %142 = sbr.rel (%p139) target = $region32
    $region31: #{weight_upsample_forward.7} parent=5 // pred_region
      %s143 = ssub.s32 %s9, 1
      %s144 = smul.u32 64, %s14
      %p145 = scmp.lt.s32.totalorder %s144, 127
      %s146 = scalar_select %p145, %s144, 127
      %s147 = smul.addr %s146, 4
      %s148 = scalar_lea.vmem %s0, %s147
      %p149 = pneg %p35
      %p150 = pneg %p32
      %p151 = pneg %p56
      %p152 = pneg %p53
      %p153 = pneg %p77
      %p154 = pneg %p74
      %p155 = pneg %p103
      %p156 = pneg %p100
      %s157 = smul.u32 64, %s14
      %p158 = scmp.lt.s32.totalorder %s157, 127
      %s159 = scalar_select %p158, %s157, 127
      %s160 = smul.addr %s159, 8
      %s161 = scalar_lea.vmem %s3, %s160
      %s162 = smul.u32 64, %s14
      %p163 = scmp.lt.s32.totalorder %s162, 127
      %s164 = scalar_select %p163, %s162, 127
      %s165 = smul.addr %s164, 4
      %s166 = scalar_lea.vmem %s0, %s165
      %s167 = smul.u32 64, %s14
      %s168 = smul.u32 64, %s14
      %p169 = scmp.lt.s32.totalorder %s168, 127
      %s170 = scalar_select %p169, %s168, 127
      %s171 = smul.addr %s170, 8
      %s172 = scalar_lea.vmem %s3, %s171
      %s173 = smul.u32 64, %s14
      %v175 = vld [vmem:[%s166] sm:$0xf]
      %v176 = vld [vmem:[%s166 + $0x4] sm:$0xf]
      %v177 = vld [vmem:[%s166 + $0x8] sm:$0xf]
      %v178 = vld [vmem:[%s166 + $0xc] sm:$0xf]
      %v179 = vld [vmem:[%s166 + $0x10] sm:$0xf]
      %v180 = vld [vmem:[%s166 + $0x14] sm:$0xf]
      %v181 = vld [vmem:[%s166 + $0x18] sm:$0xf]
      %v182 = vld [vmem:[%s166 + $0x1c] sm:$0xf]
      %v183 = vld [vmem:[%s166 + $0x20] sm:$0xf]
      %v184 = vld [vmem:[%s166 + $0x24] sm:$0xf]
      %v185 = vld [vmem:[%s166 + $0x28] sm:$0xf]
      %v186 = vld [vmem:[%s166 + $0x2c] sm:$0xf]
      %v187 = vld [vmem:[%s166 + $0x30] sm:$0xf]
      %v188 = vld [vmem:[%s166 + $0x34] sm:$0xf]
      %v189 = vld [vmem:[%s166 + $0x38] sm:$0xf]
      %v190 = vld [vmem:[%s166 + $0x3c] sm:$0xf]
      %v191 = vld [vmem:[%s166 + $0x40] sm:$0xf]
      %v192 = vld [vmem:[%s166 + $0x44] sm:$0xf]
      %v193 = vld [vmem:[%s166 + $0x48] sm:$0xf]
      %v194 = vld [vmem:[%s166 + $0x4c] sm:$0xf]
      %v195 = vld [vmem:[%s166 + $0x50] sm:$0xf]
      %v196 = vld [vmem:[%s166 + $0x54] sm:$0xf]
      %v197 = vld [vmem:[%s166 + $0x58] sm:$0xf]
      %v198 = vld [vmem:[%s166 + $0x5c] sm:$0xf]
      %v199 = vld [vmem:[%s166 + $0x60] sm:$0xf]
      %v200 = vld [vmem:[%s166 + $0x64] sm:$0xf]
      %v201 = vld [vmem:[%s166 + $0x68] sm:$0xf]
      %v202 = vld [vmem:[%s166 + $0x6c] sm:$0xf]
      %v203 = vld [vmem:[%s166 + $0x70] sm:$0xf]
      %v204 = vld [vmem:[%s166 + $0x74] sm:$0xf]
      %v205 = vld [vmem:[%s166 + $0x78] sm:$0xf]
      %v206 = vld [vmem:[%s166 + $0x7c] sm:$0xf]
      %v207 = vld [vmem:[%s166 + $0x80] sm:$0xf]
      %v208 = vld [vmem:[%s166 + $0x84] sm:$0xf]
      %v209 = vld [vmem:[%s166 + $0x88] sm:$0xf]
      %v210 = vld [vmem:[%s166 + $0x8c] sm:$0xf]
      %v211 = vld [vmem:[%s166 + $0x90] sm:$0xf]
      %v212 = vld [vmem:[%s166 + $0x94] sm:$0xf]
      %v213 = vld [vmem:[%s166 + $0x98] sm:$0xf]
      %v214 = vld [vmem:[%s166 + $0x9c] sm:$0xf]
      %v215 = vld [vmem:[%s166 + $0xa0] sm:$0xf]
      %v216 = vld [vmem:[%s166 + $0xa4] sm:$0xf]
      %v217 = vld [vmem:[%s166 + $0xa8] sm:$0xf]
      %v218 = vld [vmem:[%s166 + $0xac] sm:$0xf]
      %v219 = vld [vmem:[%s166 + $0xb0] sm:$0xf]
      %v220 = vld [vmem:[%s166 + $0xb4] sm:$0xf]
      %v221 = vld [vmem:[%s166 + $0xb8] sm:$0xf]
      %v222 = vld [vmem:[%s166 + $0xbc] sm:$0xf]
      %v223 = vld [vmem:[%s166 + $0xc0] sm:$0xf]
      %v224 = vld [vmem:[%s166 + $0xc4] sm:$0xf]
      %v225 = vld [vmem:[%s166 + $0xc8] sm:$0xf]
      %v226 = vld [vmem:[%s166 + $0xcc] sm:$0xf]
      %v227 = vld [vmem:[%s166 + $0xd0] sm:$0xf]
      %v228 = vld [vmem:[%s166 + $0xd4] sm:$0xf]
      %v229 = vld [vmem:[%s166 + $0xd8] sm:$0xf]
      %v230 = vld [vmem:[%s166 + $0xdc] sm:$0xf]
      %v231 = vld [vmem:[%s166 + $0xe0] sm:$0xf]
      %v232 = vld [vmem:[%s166 + $0xe4] sm:$0xf]
      %v233 = vld [vmem:[%s166 + $0xe8] sm:$0xf]
      %v234 = vld [vmem:[%s166 + $0xec] sm:$0xf]
      %v235 = vld [vmem:[%s166 + $0xf0] sm:$0xf]
      %v236 = vld [vmem:[%s166 + $0xf4] sm:$0xf]
      %v237 = vld [vmem:[%s166 + $0xf8] sm:$0xf]
      %v238 = vld [vmem:[%s166 + $0xfc] sm:$0xf]
      %v239 = vld [vmem:[%s1] sm:$0xf]
      %v240 = vld [vmem:[%s1 + $0x4] sm:$0xf]
      %v241 = vld [vmem:[%s1 + $0x8] sm:$0xf]
      %v242 = vld [vmem:[%s1 + $0xc] sm:$0xf]
      %v243 = vld [vmem:[%s1 + $0x10] sm:$0xf]
      %v244 = vld [vmem:[%s1 + $0x14] sm:$0xf]
      %v245 = vld [vmem:[%s1 + $0x18] sm:$0xf]
      %v246 = vld [vmem:[%s1 + $0x1c] sm:$0xf]
      %v247 = vld [vmem:[%s1 + $0x20] sm:$0xf]
      %v248 = vld [vmem:[%s1 + $0x24] sm:$0xf]
      %v249 = vld [vmem:[%s1 + $0x28] sm:$0xf]
      %v250 = vld [vmem:[%s1 + $0x2c] sm:$0xf]
      %v251 = vld [vmem:[%s1 + $0x30] sm:$0xf]
      %v252 = vld [vmem:[%s1 + $0x34] sm:$0xf]
      %v253 = vld [vmem:[%s1 + $0x38] sm:$0xf]
      %v254 = vld [vmem:[%s1 + $0x3c] sm:$0xf]
      %v255 = vld [vmem:[%s2] sm:$0x1]
      %v257 = vlaneseq
      %v258 = vshrl.u32 %v257, 7
      %v259 = vsub.s32 0, %v258
      %v260 = vrot.slane %v255, %v259
      %v326 = vunpack.c.l.b16 %v175
      %v327 = vunpack.c.l.b16 %v176
      %v328 = vunpack.c.l.b16 %v177
      %v329 = vunpack.c.l.b16 %v178
      %v330 = vunpack.c.l.b16 %v179
      %v331 = vunpack.c.l.b16 %v180
      %v332 = vunpack.c.l.b16 %v181
      %v333 = vunpack.c.l.b16 %v182
      %v334 = vunpack.c.l.b16 %v183
      %v335 = vunpack.c.l.b16 %v184
      %v336 = vunpack.c.l.b16 %v185
      %v337 = vunpack.c.l.b16 %v186
      %v338 = vunpack.c.l.b16 %v187
      %v339 = vunpack.c.l.b16 %v188
      %v340 = vunpack.c.l.b16 %v189
      %v341 = vunpack.c.l.b16 %v190
      %v342 = vunpack.c.l.b16 %v191
      %v343 = vunpack.c.l.b16 %v192
      %v344 = vunpack.c.l.b16 %v193
      %v345 = vunpack.c.l.b16 %v194
      %v346 = vunpack.c.l.b16 %v195
      %v347 = vunpack.c.l.b16 %v196
      %v348 = vunpack.c.l.b16 %v197
      %v349 = vunpack.c.l.b16 %v198
      %v350 = vunpack.c.l.b16 %v199
      %v351 = vunpack.c.l.b16 %v200
      %v352 = vunpack.c.l.b16 %v201
      %v353 = vunpack.c.l.b16 %v202
      %v354 = vunpack.c.l.b16 %v203
      %v355 = vunpack.c.l.b16 %v204
      %v356 = vunpack.c.l.b16 %v205
      %v357 = vunpack.c.l.b16 %v206
      %v358 = vunpack.c.l.b16 %v207
      %v359 = vunpack.c.l.b16 %v208
      %v360 = vunpack.c.l.b16 %v209
      %v361 = vunpack.c.l.b16 %v210
      %v362 = vunpack.c.l.b16 %v211
      %v363 = vunpack.c.l.b16 %v212
      %v364 = vunpack.c.l.b16 %v213
      %v365 = vunpack.c.l.b16 %v214
      %v366 = vunpack.c.l.b16 %v215
      %v367 = vunpack.c.l.b16 %v216
      %v368 = vunpack.c.l.b16 %v217
      %v369 = vunpack.c.l.b16 %v218
      %v370 = vunpack.c.l.b16 %v219
      %v371 = vunpack.c.l.b16 %v220
      %v372 = vunpack.c.l.b16 %v221
      %v373 = vunpack.c.l.b16 %v222
      %v374 = vunpack.c.l.b16 %v223
      %v375 = vunpack.c.l.b16 %v224
      %v376 = vunpack.c.l.b16 %v225
      %v377 = vunpack.c.l.b16 %v226
      %v378 = vunpack.c.l.b16 %v227
      %v379 = vunpack.c.l.b16 %v228
      %v380 = vunpack.c.l.b16 %v229
      %v381 = vunpack.c.l.b16 %v230
      %v382 = vunpack.c.l.b16 %v231
      %v383 = vunpack.c.l.b16 %v232
      %v384 = vunpack.c.l.b16 %v233
      %v385 = vunpack.c.l.b16 %v234
      %v386 = vunpack.c.l.b16 %v235
      %v387 = vunpack.c.l.b16 %v236
      %v388 = vunpack.c.l.b16 %v237
      %v389 = vunpack.c.l.b16 %v238
      %v390 = vpack.c.b16 %v327, %v326
      %v391 = vpack.c.b16 %v329, %v328
      %v392 = vpack.c.b16 %v331, %v330
      %v393 = vpack.c.b16 %v333, %v332
      %v394 = vpack.c.b16 %v335, %v334
      %v395 = vpack.c.b16 %v337, %v336
      %v396 = vpack.c.b16 %v339, %v338
      %v397 = vpack.c.b16 %v341, %v340
      %v398 = vpack.c.b16 %v343, %v342
      %v399 = vpack.c.b16 %v345, %v344
      %v400 = vpack.c.b16 %v347, %v346
      %v401 = vpack.c.b16 %v349, %v348
      %v402 = vpack.c.b16 %v351, %v350
      %v403 = vpack.c.b16 %v353, %v352
      %v404 = vpack.c.b16 %v355, %v354
      %v405 = vpack.c.b16 %v357, %v356
      %v406 = vpack.c.b16 %v359, %v358
      %v407 = vpack.c.b16 %v361, %v360
      %v408 = vpack.c.b16 %v363, %v362
      %v409 = vpack.c.b16 %v365, %v364
      %v410 = vpack.c.b16 %v367, %v366
      %v411 = vpack.c.b16 %v369, %v368
      %v412 = vpack.c.b16 %v371, %v370
      %v413 = vpack.c.b16 %v373, %v372
      %v414 = vpack.c.b16 %v375, %v374
      %v415 = vpack.c.b16 %v377, %v376
      %v416 = vpack.c.b16 %v379, %v378
      %v417 = vpack.c.b16 %v381, %v380
      %v418 = vpack.c.b16 %v383, %v382
      %v419 = vpack.c.b16 %v385, %v384
      %v420 = vpack.c.b16 %v387, %v386
      %v421 = vpack.c.b16 %v389, %v388
      %v470 = vunpack.c.l.b16 %v239
      %v471 = vunpack.c.l.b16 %v240
      %v472 = vunpack.c.l.b16 %v241
      %v473 = vunpack.c.l.b16 %v242
      %v474 = vunpack.c.l.b16 %v243
      %v475 = vunpack.c.l.b16 %v244
      %v476 = vunpack.c.l.b16 %v245
      %v477 = vunpack.c.l.b16 %v246
      %v478 = vunpack.c.l.b16 %v247
      %v479 = vunpack.c.l.b16 %v248
      %v480 = vunpack.c.l.b16 %v249
      %v481 = vunpack.c.l.b16 %v250
      %v482 = vunpack.c.l.b16 %v251
      %v483 = vunpack.c.l.b16 %v252
      %v484 = vunpack.c.l.b16 %v253
      %v485 = vunpack.c.l.b16 %v254
      %v486 = vpack.c.b16 %v471, %v470
      %v487 = vpack.c.b16 %v473, %v472
      %v488 = vpack.c.b16 %v475, %v474
      %v489 = vpack.c.b16 %v477, %v476
      %v490 = vpack.c.b16 %v479, %v478
      %v491 = vpack.c.b16 %v481, %v480
      %v492 = vpack.c.b16 %v483, %v482
      %v493 = vpack.c.b16 %v485, %v484
      %502 = vmatprep.subr.bf16.mxu0 0
      %503 = vmatpush1.bf16.msra.mxu0 %v486
      %504 = vmatprep.subr.bf16.mxu0 0
      %505 = vmatpush1.bf16.msra.mxu0 %v487
      %506 = vmatprep.subr.bf16.mxu0 0
      %507 = vmatpush1.bf16.msra.mxu0 %v488
      %508 = vmatprep.subr.bf16.mxu0 0
      %509 = vmatpush1.bf16.msra.mxu0 %v489
      %510 = vmatprep.subr.bf16.mxu0 0
      %511 = vmatpush1.bf16.msra.mxu0 %v490
      %512 = vmatprep.subr.bf16.mxu0 0
      %513 = vmatpush1.bf16.msra.mxu0 %v491
      %514 = vmatprep.subr.bf16.mxu0 0
      %515 = vmatpush1.bf16.msra.mxu0 %v492
      %516 = vmatprep.subr.bf16.mxu0 0
      %517 = vmatpush1.bf16.msra.mxu0 %v493
      %518 = vmatprep.subr.bf16.mxu0 0
      %519 = vmatpush1.bf16.msra.mxu0 0
      %520 = vmatprep.subr.bf16.mxu0 0
      %521 = vmatpush1.bf16.msra.mxu0 0
      %522 = vmatprep.subr.bf16.mxu0 0
      %523 = vmatpush1.bf16.msra.mxu0 0
      %524 = vmatprep.subr.bf16.mxu0 0
      %525 = vmatpush1.bf16.msra.mxu0 0
      %526 = vmatprep.subr.bf16.mxu0 0
      %527 = vmatpush1.bf16.msra.mxu0 0
      %528 = vmatprep.subr.bf16.mxu0 0
      %529 = vmatpush1.bf16.msra.mxu0 0
      %530 = vmatprep.subr.bf16.mxu0 0
      %531 = vmatpush1.bf16.msra.mxu0 0
      %532 = vmatprep.subr.bf16.mxu0 0
      %533 = vmatpush1.bf16.msra.mxu0 0
      %534 = vmatprep.mubr.bf16.mxu0 0
      %535 = vmatmul.mubr.bf16.gmra.mrb[0].mxu0 %v390
      %v536 = vpop.f32.mrb[0].mxu0
      %v537 = vadd.f32 %v260, %v536
      %v538 = vpop.f32.mrb[0].mxu0
      %v539 = vpop.f32.mrb[0].mxu0
      %v540 = vadd.f32 %v260, %v539
      %v541 = vpop.f32.mrb[0].mxu0
      %542 = vmatprep.mubr.bf16.mxu0 0
      %543 = vmatmul.mubr.bf16.gmra.mrb[0].mxu0 %v391
      %v544 = vpop.f32.mrb[0].mxu0
      %v545 = vadd.f32 %v260, %v544
      %v546 = vpop.f32.mrb[0].mxu0
      %v547 = vpop.f32.mrb[0].mxu0
      %v548 = vadd.f32 %v260, %v547
      %v549 = vpop.f32.mrb[0].mxu0
      %550 = vmatprep.mubr.bf16.mxu0 0
      %551 = vmatmul.mubr.bf16.gmra.mrb[0].mxu0 %v392
      %v552 = vpop.f32.mrb[0].mxu0
      %v553 = vadd.f32 %v260, %v552
      %v554 = vpop.f32.mrb[0].mxu0
      %v555 = vpop.f32.mrb[0].mxu0
      %v556 = vadd.f32 %v260, %v555
      %v557 = vpop.f32.mrb[0].mxu0
      %558 = vmatprep.mubr.bf16.mxu0 0
      %559 = vmatmul.mubr.bf16.gmra.mrb[0].mxu0 %v393
      %v560 = vpop.f32.mrb[0].mxu0
      %v561 = vadd.f32 %v260, %v560
      %v562 = vpop.f32.mrb[0].mxu0
      %v563 = vpop.f32.mrb[0].mxu0
      %v564 = vadd.f32 %v260, %v563
      %v565 = vpop.f32.mrb[0].mxu0
      %566 = vmatprep.mubr.bf16.mxu0 0
      %567 = vmatmul.mubr.bf16.gmra.mrb[0].mxu0 %v394
      %v568 = vpop.f32.mrb[0].mxu0
      %v569 = vadd.f32 %v260, %v568
      %v570 = vpop.f32.mrb[0].mxu0
      %v571 = vpop.f32.mrb[0].mxu0
      %v572 = vadd.f32 %v260, %v571
      %v573 = vpop.f32.mrb[0].mxu0
      %574 = vmatprep.mubr.bf16.mxu0 0
      %575 = vmatmul.mubr.bf16.gmra.mrb[0].mxu0 %v395
      %v576 = vpop.f32.mrb[0].mxu0
      %v577 = vadd.f32 %v260, %v576
      %v578 = vpop.f32.mrb[0].mxu0
      %v579 = vpop.f32.mrb[0].mxu0
      %v580 = vadd.f32 %v260, %v579
      %v581 = vpop.f32.mrb[0].mxu0
      %582 = vmatprep.mubr.bf16.mxu0 0
      %583 = vmatmul.mubr.bf16.gmra.mrb[0].mxu0 %v396
      %v584 = vpop.f32.mrb[0].mxu0
      %v585 = vadd.f32 %v260, %v584
      %v586 = vpop.f32.mrb[0].mxu0
      %v587 = vpop.f32.mrb[0].mxu0
      %v588 = vadd.f32 %v260, %v587
      %v589 = vpop.f32.mrb[0].mxu0
      %590 = vmatprep.mubr.bf16.mxu0 0
      %591 = vmatmul.mubr.bf16.gmra.mrb[0].mxu0 %v397
      %v592 = vpop.f32.mrb[0].mxu0
      %v593 = vadd.f32 %v260, %v592
      %v594 = vpop.f32.mrb[0].mxu0
      %v595 = vpop.f32.mrb[0].mxu0
      %v596 = vadd.f32 %v260, %v595
      %v597 = vpop.f32.mrb[0].mxu0
      %598 = vmatprep.mubr.bf16.mxu0 0
      %599 = vmatmul.mubr.bf16.gmra.mrb[0].mxu0 %v398
      %v600 = vpop.f32.mrb[0].mxu0
      %v601 = vadd.f32 %v260, %v600
      %v602 = vpop.f32.mrb[0].mxu0
      %v603 = vpop.f32.mrb[0].mxu0
      %v604 = vadd.f32 %v260, %v603
      %v605 = vpop.f32.mrb[0].mxu0
      %606 = vmatprep.mubr.bf16.mxu0 0
      %607 = vmatmul.mubr.bf16.gmra.mrb[0].mxu0 %v399
      %v608 = vpop.f32.mrb[0].mxu0
      %v609 = vadd.f32 %v260, %v608
      %v610 = vpop.f32.mrb[0].mxu0
      %v611 = vpop.f32.mrb[0].mxu0
      %v612 = vadd.f32 %v260, %v611
      %v613 = vpop.f32.mrb[0].mxu0
      %614 = vmatprep.mubr.bf16.mxu0 0
      %615 = vmatmul.mubr.bf16.gmra.mrb[0].mxu0 %v400
      %v616 = vpop.f32.mrb[0].mxu0
      %v617 = vadd.f32 %v260, %v616
      %v618 = vpop.f32.mrb[0].mxu0
      %v619 = vpop.f32.mrb[0].mxu0
      %v620 = vadd.f32 %v260, %v619
      %v621 = vpop.f32.mrb[0].mxu0
      %622 = vmatprep.mubr.bf16.mxu0 0
      %623 = vmatmul.mubr.bf16.gmra.mrb[0].mxu0 %v401
      %v624 = vpop.f32.mrb[0].mxu0
      %v625 = vadd.f32 %v260, %v624
      %v626 = vpop.f32.mrb[0].mxu0
      %v627 = vpop.f32.mrb[0].mxu0
      %v628 = vadd.f32 %v260, %v627
      %v629 = vpop.f32.mrb[0].mxu0
      %630 = vmatprep.mubr.bf16.mxu0 0
      %631 = vmatmul.mubr.bf16.gmra.mrb[0].mxu0 %v402
      %v632 = vpop.f32.mrb[0].mxu0
      %v633 = vadd.f32 %v260, %v632
      %v634 = vpop.f32.mrb[0].mxu0
      %v635 = vpop.f32.mrb[0].mxu0
      %v636 = vadd.f32 %v260, %v635
      %v637 = vpop.f32.mrb[0].mxu0
      %638 = vmatprep.mubr.bf16.mxu0 0
      %639 = vmatmul.mubr.bf16.gmra.mrb[0].mxu0 %v403
      %v640 = vpop.f32.mrb[0].mxu0
      %v641 = vadd.f32 %v260, %v640
      %v642 = vpop.f32.mrb[0].mxu0
      %v643 = vpop.f32.mrb[0].mxu0
      %v644 = vadd.f32 %v260, %v643
      %v645 = vpop.f32.mrb[0].mxu0
      %646 = vmatprep.mubr.bf16.mxu0 0
      %647 = vmatmul.mubr.bf16.gmra.mrb[0].mxu0 %v404
      %v648 = vpop.f32.mrb[0].mxu0
      %v649 = vadd.f32 %v260, %v648
      %v650 = vpop.f32.mrb[0].mxu0
      %v651 = vpop.f32.mrb[0].mxu0
      %v652 = vadd.f32 %v260, %v651
      %v653 = vpop.f32.mrb[0].mxu0
      %654 = vmatprep.mubr.bf16.mxu0 0
      %655 = vmatmul.mubr.bf16.gmra.mrb[0].mxu0 %v405
      %v656 = vpop.f32.mrb[0].mxu0
      %v657 = vadd.f32 %v260, %v656
      %v658 = vpop.f32.mrb[0].mxu0
      %v659 = vpop.f32.mrb[0].mxu0
      %v660 = vadd.f32 %v260, %v659
      %v661 = vpop.f32.mrb[0].mxu0
      %662 = vmatprep.mubr.bf16.mxu0 0
      %663 = vmatmul.mubr.bf16.gmra.mrb[0].mxu0 %v406
      %v664 = vpop.f32.mrb[0].mxu0
      %v665 = vadd.f32 %v260, %v664
      %v666 = vpop.f32.mrb[0].mxu0
      %v667 = vpop.f32.mrb[0].mxu0
      %v668 = vadd.f32 %v260, %v667
      %v669 = vpop.f32.mrb[0].mxu0
      %670 = vmatprep.mubr.bf16.mxu0 0
      %671 = vmatmul.mubr.bf16.gmra.mrb[0].mxu0 %v407
      %v672 = vpop.f32.mrb[0].mxu0
      %v673 = vadd.f32 %v260, %v672
      %v674 = vpop.f32.mrb[0].mxu0
      %v675 = vpop.f32.mrb[0].mxu0
      %v676 = vadd.f32 %v260, %v675
      %v677 = vpop.f32.mrb[0].mxu0
      %678 = vmatprep.mubr.bf16.mxu0 0
      %679 = vmatmul.mubr.bf16.gmra.mrb[0].mxu0 %v408
      %v680 = vpop.f32.mrb[0].mxu0
      %v681 = vadd.f32 %v260, %v680
      %v682 = vpop.f32.mrb[0].mxu0
      %v683 = vpop.f32.mrb[0].mxu0
      %v684 = vadd.f32 %v260, %v683
      %v685 = vpop.f32.mrb[0].mxu0
      %686 = vmatprep.mubr.bf16.mxu0 0
      %687 = vmatmul.mubr.bf16.gmra.mrb[0].mxu0 %v409
      %v688 = vpop.f32.mrb[0].mxu0
      %v689 = vadd.f32 %v260, %v688
      %v690 = vpop.f32.mrb[0].mxu0
      %v691 = vpop.f32.mrb[0].mxu0
      %v692 = vadd.f32 %v260, %v691
      %v693 = vpop.f32.mrb[0].mxu0
      %694 = vmatprep.mubr.bf16.mxu0 0
      %695 = vmatmul.mubr.bf16.gmra.mrb[0].mxu0 %v410
      %v696 = vpop.f32.mrb[0].mxu0
      %v697 = vadd.f32 %v260, %v696
      %v698 = vpop.f32.mrb[0].mxu0
      %v699 = vpop.f32.mrb[0].mxu0
      %v700 = vadd.f32 %v260, %v699
      %v701 = vpop.f32.mrb[0].mxu0
      %702 = vmatprep.mubr.bf16.mxu0 0
      %703 = vmatmul.mubr.bf16.gmra.mrb[0].mxu0 %v411
      %v704 = vpop.f32.mrb[0].mxu0
      %v705 = vadd.f32 %v260, %v704
      %v706 = vpop.f32.mrb[0].mxu0
      %v707 = vpop.f32.mrb[0].mxu0
      %v708 = vadd.f32 %v260, %v707
      %v709 = vpop.f32.mrb[0].mxu0
      %710 = vmatprep.mubr.bf16.mxu0 0
      %711 = vmatmul.mubr.bf16.gmra.mrb[0].mxu0 %v412
      %v712 = vpop.f32.mrb[0].mxu0
      %v713 = vadd.f32 %v260, %v712
      %v714 = vpop.f32.mrb[0].mxu0
      %v715 = vpop.f32.mrb[0].mxu0
      %v716 = vadd.f32 %v260, %v715
      %v717 = vpop.f32.mrb[0].mxu0
      %718 = vmatprep.mubr.bf16.mxu0 0
      %719 = vmatmul.mubr.bf16.gmra.mrb[0].mxu0 %v413
      %v720 = vpop.f32.mrb[0].mxu0
      %v721 = vadd.f32 %v260, %v720
      %v722 = vpop.f32.mrb[0].mxu0
      %v723 = vpop.f32.mrb[0].mxu0
      %v724 = vadd.f32 %v260, %v723
      %v725 = vpop.f32.mrb[0].mxu0
      %726 = vmatprep.mubr.bf16.mxu0 0
      %727 = vmatmul.mubr.bf16.gmra.mrb[0].mxu0 %v414
      %v728 = vpop.f32.mrb[0].mxu0
      %v729 = vadd.f32 %v260, %v728
      %v730 = vpop.f32.mrb[0].mxu0
      %v731 = vpop.f32.mrb[0].mxu0
      %v732 = vadd.f32 %v260, %v731
      %v733 = vpop.f32.mrb[0].mxu0
      %734 = vmatprep.mubr.bf16.mxu0 0
      %735 = vmatmul.mubr.bf16.gmra.mrb[0].mxu0 %v415
      %v736 = vpop.f32.mrb[0].mxu0
      %v737 = vadd.f32 %v260, %v736
      %v738 = vpop.f32.mrb[0].mxu0
      %v739 = vpop.f32.mrb[0].mxu0
      %v740 = vadd.f32 %v260, %v739
      %v741 = vpop.f32.mrb[0].mxu0
      %742 = vmatprep.mubr.bf16.mxu0 0
      %743 = vmatmul.mubr.bf16.gmra.mrb[0].mxu0 %v416
      %v744 = vpop.f32.mrb[0].mxu0
      %v745 = vadd.f32 %v260, %v744
      %v746 = vpop.f32.mrb[0].mxu0
      %v747 = vpop.f32.mrb[0].mxu0
      %v748 = vadd.f32 %v260, %v747
      %v749 = vpop.f32.mrb[0].mxu0
      %750 = vmatprep.mubr.bf16.mxu0 0
      %751 = vmatmul.mubr.bf16.gmra.mrb[0].mxu0 %v417
      %v752 = vpop.f32.mrb[0].mxu0
      %v753 = vadd.f32 %v260, %v752
      %v754 = vpop.f32.mrb[0].mxu0
      %v755 = vpop.f32.mrb[0].mxu0
      %v756 = vadd.f32 %v260, %v755
      %v757 = vpop.f32.mrb[0].mxu0
      %758 = vmatprep.mubr.bf16.mxu0 0
      %759 = vmatmul.mubr.bf16.gmra.mrb[0].mxu0 %v418
      %v760 = vpop.f32.mrb[0].mxu0
      %v761 = vadd.f32 %v260, %v760
      %v762 = vpop.f32.mrb[0].mxu0
      %v763 = vpop.f32.mrb[0].mxu0
      %v764 = vadd.f32 %v260, %v763
      %v765 = vpop.f32.mrb[0].mxu0
      %766 = vmatprep.mubr.bf16.mxu0 0
      %767 = vmatmul.mubr.bf16.gmra.mrb[0].mxu0 %v419
      %v768 = vpop.f32.mrb[0].mxu0
      %v769 = vadd.f32 %v260, %v768
      %v770 = vpop.f32.mrb[0].mxu0
      %v771 = vpop.f32.mrb[0].mxu0
      %v772 = vadd.f32 %v260, %v771
      %v773 = vpop.f32.mrb[0].mxu0
      %774 = vmatprep.mubr.bf16.mxu0 0
      %775 = vmatmul.mubr.bf16.gmra.mrb[0].mxu0 %v420
      %v776 = vpop.f32.mrb[0].mxu0
      %v777 = vadd.f32 %v260, %v776
      %v778 = vpop.f32.mrb[0].mxu0
      %v779 = vpop.f32.mrb[0].mxu0
      %v780 = vadd.f32 %v260, %v779
      %v781 = vpop.f32.mrb[0].mxu0
      %782 = vmatprep.mubr.bf16.mxu0 0
      %783 = vmatmul.mubr.bf16.gmra.mrb[0].mxu0 %v421
      %v784 = vpop.f32.mrb[0].mxu0
      %v785 = vadd.f32 %v260, %v784
      %v786 = vpop.f32.mrb[0].mxu0
      %v787 = vpop.f32.mrb[0].mxu0
      %v788 = vadd.f32 %v260, %v787
      %v789 = vpop.f32.mrb[0].mxu0
      %790 = vdwg.mxu0
      %vm791 = vcmask 64512
      %792 = vst.msk [vmem:[%s172] sm:$0xff] %vm791, %v537
      %793 = vst.msk [vmem:[%s172 + $0x8] sm:$0xff] %vm791, %v540
      %794 = vst.msk [vmem:[%s172 + $0x10] sm:$0xff] %vm791, %v545
      %795 = vst.msk [vmem:[%s172 + $0x18] sm:$0xff] %vm791, %v548
      %796 = vst.msk [vmem:[%s172 + $0x20] sm:$0xff] %vm791, %v553
      %797 = vst.msk [vmem:[%s172 + $0x28] sm:$0xff] %vm791, %v556
      %798 = vst.msk [vmem:[%s172 + $0x30] sm:$0xff] %vm791, %v561
      %799 = vst.msk [vmem:[%s172 + $0x38] sm:$0xff] %vm791, %v564
      %800 = vst.msk [vmem:[%s172 + $0x40] sm:$0xff] %vm791, %v569
      %801 = vst.msk [vmem:[%s172 + $0x48] sm:$0xff] %vm791, %v572
      %802 = vst.msk [vmem:[%s172 + $0x50] sm:$0xff] %vm791, %v577
      %803 = vst.msk [vmem:[%s172 + $0x58] sm:$0xff] %vm791, %v580
      %804 = vst.msk [vmem:[%s172 + $0x60] sm:$0xff] %vm791, %v585
      %805 = vst.msk [vmem:[%s172 + $0x68] sm:$0xff] %vm791, %v588
      %806 = vst.msk [vmem:[%s172 + $0x70] sm:$0xff] %vm791, %v593
      %807 = vst.msk [vmem:[%s172 + $0x78] sm:$0xff] %vm791, %v596
      %808 = vst.msk [vmem:[%s172 + $0x80] sm:$0xff] %vm791, %v601
      %809 = vst.msk [vmem:[%s172 + $0x88] sm:$0xff] %vm791, %v604
      %810 = vst.msk [vmem:[%s172 + $0x90] sm:$0xff] %vm791, %v609
      %811 = vst.msk [vmem:[%s172 + $0x98] sm:$0xff] %vm791, %v612
      %812 = vst.msk [vmem:[%s172 + $0xa0] sm:$0xff] %vm791, %v617
      %813 = vst.msk [vmem:[%s172 + $0xa8] sm:$0xff] %vm791, %v620
      %814 = vst.msk [vmem:[%s172 + $0xb0] sm:$0xff] %vm791, %v625
      %815 = vst.msk [vmem:[%s172 + $0xb8] sm:$0xff] %vm791, %v628
      %816 = vst.msk [vmem:[%s172 + $0xc0] sm:$0xff] %vm791, %v633
      %817 = vst.msk [vmem:[%s172 + $0xc8] sm:$0xff] %vm791, %v636
      %818 = vst.msk [vmem:[%s172 + $0xd0] sm:$0xff] %vm791, %v641
      %819 = vst.msk [vmem:[%s172 + $0xd8] sm:$0xff] %vm791, %v644
      %820 = vst.msk [vmem:[%s172 + $0xe0] sm:$0xff] %vm791, %v649
      %821 = vst.msk [vmem:[%s172 + $0xe8] sm:$0xff] %vm791, %v652
      %822 = vst.msk [vmem:[%s172 + $0xf0] sm:$0xff] %vm791, %v657
      %823 = vst.msk [vmem:[%s172 + $0xf8] sm:$0xff] %vm791, %v660
      %824 = vst.msk [vmem:[%s172 + $0x100] sm:$0xff] %vm791, %v665
      %825 = vst.msk [vmem:[%s172 + $0x108] sm:$0xff] %vm791, %v668
      %826 = vst.msk [vmem:[%s172 + $0x110] sm:$0xff] %vm791, %v673
      %827 = vst.msk [vmem:[%s172 + $0x118] sm:$0xff] %vm791, %v676
      %828 = vst.msk [vmem:[%s172 + $0x120] sm:$0xff] %vm791, %v681
      %829 = vst.msk [vmem:[%s172 + $0x128] sm:$0xff] %vm791, %v684
      %830 = vst.msk [vmem:[%s172 + $0x130] sm:$0xff] %vm791, %v689
      %831 = vst.msk [vmem:[%s172 + $0x138] sm:$0xff] %vm791, %v692
      %832 = vst.msk [vmem:[%s172 + $0x140] sm:$0xff] %vm791, %v697
      %833 = vst.msk [vmem:[%s172 + $0x148] sm:$0xff] %vm791, %v700
      %834 = vst.msk [vmem:[%s172 + $0x150] sm:$0xff] %vm791, %v705
      %835 = vst.msk [vmem:[%s172 + $0x158] sm:$0xff] %vm791, %v708
      %836 = vst.msk [vmem:[%s172 + $0x160] sm:$0xff] %vm791, %v713
      %837 = vst.msk [vmem:[%s172 + $0x168] sm:$0xff] %vm791, %v716
      %838 = vst.msk [vmem:[%s172 + $0x170] sm:$0xff] %vm791, %v721
      %839 = vst.msk [vmem:[%s172 + $0x178] sm:$0xff] %vm791, %v724
      %840 = vst.msk [vmem:[%s172 + $0x180] sm:$0xff] %vm791, %v729
      %841 = vst.msk [vmem:[%s172 + $0x188] sm:$0xff] %vm791, %v732
      %842 = vst.msk [vmem:[%s172 + $0x190] sm:$0xff] %vm791, %v737
      %843 = vst.msk [vmem:[%s172 + $0x198] sm:$0xff] %vm791, %v740
      %844 = vst.msk [vmem:[%s172 + $0x1a0] sm:$0xff] %vm791, %v745
      %845 = vst.msk [vmem:[%s172 + $0x1a8] sm:$0xff] %vm791, %v748
      %846 = vst.msk [vmem:[%s172 + $0x1b0] sm:$0xff] %vm791, %v753
      %847 = vst.msk [vmem:[%s172 + $0x1b8] sm:$0xff] %vm791, %v756
      %848 = vst.msk [vmem:[%s172 + $0x1c0] sm:$0xff] %vm791, %v761
      %849 = vst.msk [vmem:[%s172 + $0x1c8] sm:$0xff] %vm791, %v764
      %850 = vst.msk [vmem:[%s172 + $0x1d0] sm:$0xff] %vm791, %v769
      %851 = vst.msk [vmem:[%s172 + $0x1d8] sm:$0xff] %vm791, %v772
      %852 = vst.msk [vmem:[%s172 + $0x1e0] sm:$0xff] %vm791, %v777
      %853 = vst.msk [vmem:[%s172 + $0x1e8] sm:$0xff] %vm791, %v780
      %854 = vst.msk [vmem:[%s172 + $0x1f0] sm:$0xff] %vm791, %v785
      %855 = vst.msk [vmem:[%s172 + $0x1f8] sm:$0xff] %vm791, %v788
      %s856 = smul.u32 64, %s14
      %p857 = scmp.lt.s32.totalorder %s856, 127
      %s858 = scalar_select %p857, %s856, 127
      %s859 = smul.addr %s858, 8
      %s860 = scalar_lea.vmem %s3, %s859
      // Predicated region
      $region33: #{weight_upsample_forward.7} parent=31 // pred_check
        %p861 = pneg %p100
      $region34: #{weight_upsample_forward.7} parent=31 // pred_check_branch
        %863 = sbr.rel (%p861) target = $region36
      $region35: #{weight_upsample_forward.7} parent=31 // pred_region
        %s864 = smul.u32 64, %s14
      $region36: #{weight_upsample_forward.7} parent=31 // pred_fallthru
        _
    $region32: #{weight_upsample_forward.7} parent=5 // pred_fallthru
      _
    %p865 = scmp.le.s32.totalorder 2, %s9
    // Predicated region
    $region37: #{weight_upsample_forward.7} parent=5 // pred_check
      %p866 = pneg %p865
    $region38: #{weight_upsample_forward.7} parent=5 // pred_check_branch
      %868 = sbr.rel (%p866) target = $region40
    $region39: #{weight_upsample_forward.7} parent=5 // pred_region
      %s869 = ssub.s32 %s9, 2
      // Predicated region
      $region41: #{weight_upsample_forward.7} parent=39 // pred_check
        %p870 = pneg %p106
      $region42: #{weight_upsample_forward.7} parent=39 // pred_check_branch
        %872 = sbr.rel (%p870) target = $region44
      $region43: #{weight_upsample_forward.7} parent=39 // pred_region
        %s873 = smul.u32 64, %s15
        %p874 = scmp.lt.s32.totalorder %s873, 127
        %s875 = scalar_select %p874, %s873, 127
        %s876 = smul.addr %s875, 8
        %s877 = scalar_lea.vmem %s3, %s876
      $region44: #{weight_upsample_forward.7} parent=39 // pred_fallthru
        _
    $region40: #{weight_upsample_forward.7} parent=5 // pred_fallthru
      _
  $region6: #{weight_upsample_forward.7} parent=0 // loop_footer
    %s13 = sadd.s32 1, %s9
  $region7: #{weight_upsample_forward.7} parent=0 // loop_footer_branch
    %8 = sbr.rel target = $region3
  $region8: #{weight_upsample_forward.7} parent=0 // loop_exit
    _

// kernel: weight_upsample_forward.8
$region0: #{weight_upsample_forward.8}
  #allocation0 [shape = 'u32[]', space=smem, size = 0x4, offset = 0x4, fixed_abs, tag = 'smem constant byte address 0x4 - core index']
  #allocation1 [shape = 'u32[144,128]{1,0:T(1,128)}', space=vmem, size = 0x12000, scoped, tag = 'internal scratch']
  %s0 = inlined_call_operand.vmem [shape: bf16[56,128], index: 0, kind: input, shape index: {}]
  %s1 = inlined_call_operand.vmem [shape: bf16[128,8], index: 1, kind: input, shape index: {}]
  %s2 = inlined_call_operand.vmem [shape: f32[1,8], index: 2, kind: input, shape index: {}]
  %s3 = inlined_call_operand.vmem [shape: f32[56,8], index: 3, kind: output, shape index: {}]
  %s4 = sld [smem:[#allocation0]]
  $region22: #{weight_upsample_forward.8} parent=0
    _
  %s6 = ssub.s32 1, %s4
  %s7 = scalar_select 0, %s6, %s4
  // Predicated region
  $region2: #{weight_upsample_forward.8} parent=0 // pred_check
    _
  $region3: #{weight_upsample_forward.8} parent=0 // pred_check_branch
    %9 = sbr.rel (0) target = $region5
  $region4: #{weight_upsample_forward.8} parent=0 // pred_region
    _
  $region5: #{weight_upsample_forward.8} parent=0 // pred_fallthru
    _
  // Predicated region
  $region6: #{weight_upsample_forward.8} parent=0 // pred_check
    _
  $region7: #{weight_upsample_forward.8} parent=0 // pred_check_branch
    %11 = sbr.rel (0) target = $region9
  $region8: #{weight_upsample_forward.8} parent=0 // pred_region
    _
  $region9: #{weight_upsample_forward.8} parent=0 // pred_fallthru
    _
  // Predicated region
  $region10: #{weight_upsample_forward.8} parent=0 // pred_check
    _
  $region11: #{weight_upsample_forward.8} parent=0 // pred_check_branch
    %13 = sbr.rel (0) target = $region13
  $region12: #{weight_upsample_forward.8} parent=0 // pred_region
    _
  $region13: #{weight_upsample_forward.8} parent=0 // pred_fallthru
    _
  %v15 = vld [vmem:[%s0] sm:$0xf]
  %v16 = vld [vmem:[%s0 + $0x4] sm:$0xf]
  %v17 = vld [vmem:[%s0 + $0x8] sm:$0xf]
  %v18 = vld [vmem:[%s0 + $0xc] sm:$0xf]
  %v19 = vld [vmem:[%s0 + $0x10] sm:$0xf]
  %v20 = vld [vmem:[%s0 + $0x14] sm:$0xf]
  %v21 = vld [vmem:[%s0 + $0x18] sm:$0xf]
  %v22 = vld [vmem:[%s1] sm:$0xf]
  %v23 = vld [vmem:[%s1 + $0x4] sm:$0xf]
  %v24 = vld [vmem:[%s1 + $0x8] sm:$0xf]
  %v25 = vld [vmem:[%s1 + $0xc] sm:$0xf]
  %v26 = vld [vmem:[%s1 + $0x10] sm:$0xf]
  %v27 = vld [vmem:[%s1 + $0x14] sm:$0xf]
  %v28 = vld [vmem:[%s1 + $0x18] sm:$0xf]
  %v29 = vld [vmem:[%s1 + $0x1c] sm:$0xf]
  %v30 = vld [vmem:[%s1 + $0x20] sm:$0xf]
  %v31 = vld [vmem:[%s1 + $0x24] sm:$0xf]
  %v32 = vld [vmem:[%s1 + $0x28] sm:$0xf]
  %v33 = vld [vmem:[%s1 + $0x2c] sm:$0xf]
  %v34 = vld [vmem:[%s1 + $0x30] sm:$0xf]
  %v35 = vld [vmem:[%s1 + $0x34] sm:$0xf]
  %v36 = vld [vmem:[%s1 + $0x38] sm:$0xf]
  %v37 = vld [vmem:[%s1 + $0x3c] sm:$0xf]
  %v38 = vld [vmem:[%s2] sm:$0x1]
  %v40 = vlaneseq
  %v41 = vshrl.u32 %v40, 7
  %v42 = vsub.s32 0, %v41
  %v43 = vrot.slane %v38, %v42
  %v52 = vunpack.c.l.b16 %v15
  %v53 = vunpack.c.l.b16 %v16
  %v54 = vunpack.c.l.b16 %v17
  %v55 = vunpack.c.l.b16 %v18
  %v56 = vunpack.c.l.b16 %v19
  %v57 = vunpack.c.l.b16 %v20
  %v58 = vunpack.c.l.b16 %v21
  %v59 = vpack.c.b16 %v53, %v52
  %v60 = vpack.c.b16 %v55, %v54
  %v61 = vpack.c.b16 %v57, %v56
  %v62 = vpack.c.b16 %v58, %v58
  %v83 = vunpack.c.l.b16 %v22
  %v84 = vunpack.c.l.b16 %v23
  %v85 = vunpack.c.l.b16 %v24
  %v86 = vunpack.c.l.b16 %v25
  %v87 = vunpack.c.l.b16 %v26
  %v88 = vunpack.c.l.b16 %v27
  %v89 = vunpack.c.l.b16 %v28
  %v90 = vunpack.c.l.b16 %v29
  %v91 = vunpack.c.l.b16 %v30
  %v92 = vunpack.c.l.b16 %v31
  %v93 = vunpack.c.l.b16 %v32
  %v94 = vunpack.c.l.b16 %v33
  %v95 = vunpack.c.l.b16 %v34
  %v96 = vunpack.c.l.b16 %v35
  %v97 = vunpack.c.l.b16 %v36
  %v98 = vunpack.c.l.b16 %v37
  %v99 = vpack.c.b16 %v84, %v83
  %v100 = vpack.c.b16 %v86, %v85
  %v101 = vpack.c.b16 %v88, %v87
  %v102 = vpack.c.b16 %v90, %v89
  %v103 = vpack.c.b16 %v92, %v91
  %v104 = vpack.c.b16 %v94, %v93
  %v105 = vpack.c.b16 %v96, %v95
  %v106 = vpack.c.b16 %v98, %v97
  %115 = vmatprep.subr.bf16.mxu0 0
  %116 = vmatpush1.bf16.msra.mxu0 %v99
  %117 = vmatprep.subr.bf16.mxu0 0
  %118 = vmatpush1.bf16.msra.mxu0 %v100
  %119 = vmatprep.subr.bf16.mxu0 0
  %120 = vmatpush1.bf16.msra.mxu0 %v101
  %121 = vmatprep.subr.bf16.mxu0 0
  %122 = vmatpush1.bf16.msra.mxu0 %v102
  %123 = vmatprep.subr.bf16.mxu0 0
  %124 = vmatpush1.bf16.msra.mxu0 %v103
  %125 = vmatprep.subr.bf16.mxu0 0
  %126 = vmatpush1.bf16.msra.mxu0 %v104
  %127 = vmatprep.subr.bf16.mxu0 0
  %128 = vmatpush1.bf16.msra.mxu0 %v105
  %129 = vmatprep.subr.bf16.mxu0 0
  %130 = vmatpush1.bf16.msra.mxu0 %v106
  %131 = vmatprep.subr.bf16.mxu0 0
  %132 = vmatpush1.bf16.msra.mxu0 0
  %133 = vmatprep.subr.bf16.mxu0 0
  %134 = vmatpush1.bf16.msra.mxu0 0
  %135 = vmatprep.subr.bf16.mxu0 0
  %136 = vmatpush1.bf16.msra.mxu0 0
  %137 = vmatprep.subr.bf16.mxu0 0
  %138 = vmatpush1.bf16.msra.mxu0 0
  %139 = vmatprep.subr.bf16.mxu0 0
  %140 = vmatpush1.bf16.msra.mxu0 0
  %141 = vmatprep.subr.bf16.mxu0 0
  %142 = vmatpush1.bf16.msra.mxu0 0
  %143 = vmatprep.subr.bf16.mxu0 0
  %144 = vmatpush1.bf16.msra.mxu0 0
  %145 = vmatprep.subr.bf16.mxu0 0
  %146 = vmatpush1.bf16.msra.mxu0 0
  %147 = vmatprep.mubr.bf16.mxu0 0
  %148 = vmatmul.mubr.bf16.gmra.mrb[0].mxu0 %v59
  %v149 = vpop.f32.mrb[0].mxu0
  %v150 = vadd.f32 %v43, %v149
  %v151 = vpop.f32.mrb[0].mxu0
  %v152 = vpop.f32.mrb[0].mxu0
  %v153 = vadd.f32 %v43, %v152
  %v154 = vpop.f32.mrb[0].mxu0
  %155 = vmatprep.mubr.bf16.mxu0 0
  %156 = vmatmul.mubr.bf16.gmra.mrb[0].mxu0 %v60
  %v157 = vpop.f32.mrb[0].mxu0
  %v158 = vadd.f32 %v43, %v157
  %v159 = vpop.f32.mrb[0].mxu0
  %v160 = vpop.f32.mrb[0].mxu0
  %v161 = vadd.f32 %v43, %v160
  %v162 = vpop.f32.mrb[0].mxu0
  %163 = vmatprep.mubr.bf16.mxu0 0
  %164 = vmatmul.mubr.bf16.gmra.mrb[0].mxu0 %v61
  %v165 = vpop.f32.mrb[0].mxu0
  %v166 = vadd.f32 %v43, %v165
  %v167 = vpop.f32.mrb[0].mxu0
  %v168 = vpop.f32.mrb[0].mxu0
  %v169 = vadd.f32 %v43, %v168
  %v170 = vpop.f32.mrb[0].mxu0
  %171 = vmatprep.mubr.bf16.mxu0 0
  %172 = vmatmul.mubr.bf16.gmra.mrb[0].mxu0 %v62
  %v173 = vpop.f32.mrb[0].mxu0
  %v174 = vadd.f32 %v43, %v173
  %v175 = vpop.f32.mrb[0].mxu0
  %v176 = vpop.f32.mrb[0].mxu0
  %v177 = vpop.f32.mrb[0].mxu0
  %178 = vdwg.mxu0
  %v179 = vmax.f32 %v150, 0.0
  %v180 = vmax.f32 %v153, 0.0
  %v181 = vmax.f32 %v158, 0.0
  %v182 = vmax.f32 %v161, 0.0
  %v183 = vmax.f32 %v166, 0.0
  %v184 = vmax.f32 %v169, 0.0
  %v185 = vmax.f32 %v174, 0.0
  %vm186 = vcmask 64512
  %187 = vst.msk [vmem:[%s3] sm:$0xff] %vm186, %v179
  %188 = vst.msk [vmem:[%s3 + $0x8] sm:$0xff] %vm186, %v180
  %189 = vst.msk [vmem:[%s3 + $0x10] sm:$0xff] %vm186, %v181
  %190 = vst.msk [vmem:[%s3 + $0x18] sm:$0xff] %vm186, %v182
  %191 = vst.msk [vmem:[%s3 + $0x20] sm:$0xff] %vm186, %v183
  %192 = vst.msk [vmem:[%s3 + $0x28] sm:$0xff] %vm186, %v184
  %193 = vst.msk [vmem:[%s3 + $0x30] sm:$0xff] %vm186, %v185
  // Predicated region
  $region14: #{weight_upsample_forward.8} parent=0 // pred_check
    _
  $region15: #{weight_upsample_forward.8} parent=0 // pred_check_branch
    %195 = sbr.rel (0) target = $region17
  $region16: #{weight_upsample_forward.8} parent=0 // pred_region
    _
  $region17: #{weight_upsample_forward.8} parent=0 // pred_fallthru
    _
  // Predicated region
  $region18: #{weight_upsample_forward.8} parent=0 // pred_check
    _
  $region19: #{weight_upsample_forward.8} parent=0 // pred_check_branch
    %197 = sbr.rel (0) target = $region21
  $region20: #{weight_upsample_forward.8} parent=0 // pred_region
    _
  $region21: #{weight_upsample_forward.8} parent=0 // pred_fallthru
    _

// kernel: weight_upsample_forward.10
$region0: #{weight_upsample_forward.10}
  #allocation0 [shape = 'u32[]', space=smem, size = 0x4, offset = 0x4, fixed_abs, tag = 'smem constant byte address 0x4 - core index']
  #allocation1 [shape = 'u32[144,128]{1,0:T(1,128)}', space=vmem, size = 0x12000, scoped, tag = 'internal scratch']
  %s0 = inlined_call_operand.vmem [shape: bf16[56,128], index: 0, kind: input, shape index: {}]
  %s1 = inlined_call_operand.vmem [shape: bf16[128,8], index: 1, kind: input, shape index: {}]
  %s2 = inlined_call_operand.vmem [shape: f32[1,8], index: 2, kind: input, shape index: {}]
  %s3 = inlined_call_operand.vmem [shape: f32[56,8], index: 3, kind: output, shape index: {}]
  %s4 = sld [smem:[#allocation0]]
  $region22: #{weight_upsample_forward.10} parent=0
    _
  %s6 = ssub.s32 1, %s4
  %s7 = scalar_select 0, %s6, %s4
  // Predicated region
  $region2: #{weight_upsample_forward.10} parent=0 // pred_check
    _
  $region3: #{weight_upsample_forward.10} parent=0 // pred_check_branch
    %9 = sbr.rel (0) target = $region5
  $region4: #{weight_upsample_forward.10} parent=0 // pred_region
    _
  $region5: #{weight_upsample_forward.10} parent=0 // pred_fallthru
    _
  // Predicated region
  $region6: #{weight_upsample_forward.10} parent=0 // pred_check
    _
  $region7: #{weight_upsample_forward.10} parent=0 // pred_check_branch
    %11 = sbr.rel (0) target = $region9
  $region8: #{weight_upsample_forward.10} parent=0 // pred_region
    _
  $region9: #{weight_upsample_forward.10} parent=0 // pred_fallthru
    _
  // Predicated region
  $region10: #{weight_upsample_forward.10} parent=0 // pred_check
    _
  $region11: #{weight_upsample_forward.10} parent=0 // pred_check_branch
    %13 = sbr.rel (0) target = $region13
  $region12: #{weight_upsample_forward.10} parent=0 // pred_region
    _
  $region13: #{weight_upsample_forward.10} parent=0 // pred_fallthru
    _
  %v15 = vld [vmem:[%s0] sm:$0xf]
  %v16 = vld [vmem:[%s0 + $0x4] sm:$0xf]
  %v17 = vld [vmem:[%s0 + $0x8] sm:$0xf]
  %v18 = vld [vmem:[%s0 + $0xc] sm:$0xf]
  %v19 = vld [vmem:[%s0 + $0x10] sm:$0xf]
  %v20 = vld [vmem:[%s0 + $0x14] sm:$0xf]
  %v21 = vld [vmem:[%s0 + $0x18] sm:$0xf]
  %v22 = vld [vmem:[%s1] sm:$0xf]
  %v23 = vld [vmem:[%s1 + $0x4] sm:$0xf]
  %v24 = vld [vmem:[%s1 + $0x8] sm:$0xf]
  %v25 = vld [vmem:[%s1 + $0xc] sm:$0xf]
  %v26 = vld [vmem:[%s1 + $0x10] sm:$0xf]
  %v27 = vld [vmem:[%s1 + $0x14] sm:$0xf]
  %v28 = vld [vmem:[%s1 + $0x18] sm:$0xf]
  %v29 = vld [vmem:[%s1 + $0x1c] sm:$0xf]
  %v30 = vld [vmem:[%s1 + $0x20] sm:$0xf]
  %v31 = vld [vmem:[%s1 + $0x24] sm:$0xf]
  %v32 = vld [vmem:[%s1 + $0x28] sm:$0xf]
  %v33 = vld [vmem:[%s1 + $0x2c] sm:$0xf]
  %v34 = vld [vmem:[%s1 + $0x30] sm:$0xf]
  %v35 = vld [vmem:[%s1 + $0x34] sm:$0xf]
  %v36 = vld [vmem:[%s1 + $0x38] sm:$0xf]
  %v37 = vld [vmem:[%s1 + $0x3c] sm:$0xf]
  %v38 = vld [vmem:[%s2] sm:$0x1]
  %v40 = vlaneseq
  %v41 = vshrl.u32 %v40, 7
  %v42 = vsub.s32 0, %v41
  %v43 = vrot.slane %v38, %v42
  %v52 = vunpack.c.l.b16 %v15
  %v53 = vunpack.c.l.b16 %v16
  %v54 = vunpack.c.l.b16 %v17
  %v55 = vunpack.c.l.b16 %v18
  %v56 = vunpack.c.l.b16 %v19
  %v57 = vunpack.c.l.b16 %v20
  %v58 = vunpack.c.l.b16 %v21
  %v59 = vpack.c.b16 %v53, %v52
  %v60 = vpack.c.b16 %v55, %v54
  %v61 = vpack.c.b16 %v57, %v56
  %v62 = vpack.c.b16 %v58, %v58
  %v83 = vunpack.c.l.b16 %v22
  %v84 = vunpack.c.l.b16 %v23
  %v85 = vunpack.c.l.b16 %v24
  %v86 = vunpack.c.l.b16 %v25
  %v87 = vunpack.c.l.b16 %v26
  %v88 = vunpack.c.l.b16 %v27
  %v89 = vunpack.c.l.b16 %v28
  %v90 = vunpack.c.l.b16 %v29
  %v91 = vunpack.c.l.b16 %v30
  %v92 = vunpack.c.l.b16 %v31
  %v93 = vunpack.c.l.b16 %v32
  %v94 = vunpack.c.l.b16 %v33
  %v95 = vunpack.c.l.b16 %v34
  %v96 = vunpack.c.l.b16 %v35
  %v97 = vunpack.c.l.b16 %v36
  %v98 = vunpack.c.l.b16 %v37
  %v99 = vpack.c.b16 %v84, %v83
  %v100 = vpack.c.b16 %v86, %v85
  %v101 = vpack.c.b16 %v88, %v87
  %v102 = vpack.c.b16 %v90, %v89
  %v103 = vpack.c.b16 %v92, %v91
  %v104 = vpack.c.b16 %v94, %v93
  %v105 = vpack.c.b16 %v96, %v95
  %v106 = vpack.c.b16 %v98, %v97
  %115 = vmatprep.subr.bf16.mxu0 0
  %116 = vmatpush1.bf16.msra.mxu0 %v99
  %117 = vmatprep.subr.bf16.mxu0 0
  %118 = vmatpush1.bf16.msra.mxu0 %v100
  %119 = vmatprep.subr.bf16.mxu0 0
  %120 = vmatpush1.bf16.msra.mxu0 %v101
  %121 = vmatprep.subr.bf16.mxu0 0
  %122 = vmatpush1.bf16.msra.mxu0 %v102
  %123 = vmatprep.subr.bf16.mxu0 0
  %124 = vmatpush1.bf16.msra.mxu0 %v103
  %125 = vmatprep.subr.bf16.mxu0 0
  %126 = vmatpush1.bf16.msra.mxu0 %v104
  %127 = vmatprep.subr.bf16.mxu0 0
  %128 = vmatpush1.bf16.msra.mxu0 %v105
  %129 = vmatprep.subr.bf16.mxu0 0
  %130 = vmatpush1.bf16.msra.mxu0 %v106
  %131 = vmatprep.subr.bf16.mxu0 0
  %132 = vmatpush1.bf16.msra.mxu0 0
  %133 = vmatprep.subr.bf16.mxu0 0
  %134 = vmatpush1.bf16.msra.mxu0 0
  %135 = vmatprep.subr.bf16.mxu0 0
  %136 = vmatpush1.bf16.msra.mxu0 0
  %137 = vmatprep.subr.bf16.mxu0 0
  %138 = vmatpush1.bf16.msra.mxu0 0
  %139 = vmatprep.subr.bf16.mxu0 0
  %140 = vmatpush1.bf16.msra.mxu0 0
  %141 = vmatprep.subr.bf16.mxu0 0
  %142 = vmatpush1.bf16.msra.mxu0 0
  %143 = vmatprep.subr.bf16.mxu0 0
  %144 = vmatpush1.bf16.msra.mxu0 0
  %145 = vmatprep.subr.bf16.mxu0 0
  %146 = vmatpush1.bf16.msra.mxu0 0
  %147 = vmatprep.mubr.bf16.mxu0 0
  %148 = vmatmul.mubr.bf16.gmra.mrb[0].mxu0 %v59
  %v149 = vpop.f32.mrb[0].mxu0
  %v150 = vadd.f32 %v43, %v149
  %v151 = vpop.f32.mrb[0].mxu0
  %v152 = vpop.f32.mrb[0].mxu0
  %v153 = vadd.f32 %v43, %v152
  %v154 = vpop.f32.mrb[0].mxu0
  %155 = vmatprep.mubr.bf16.mxu0 0
  %156 = vmatmul.mubr.bf16.gmra.mrb[0].mxu0 %v60
  %v157 = vpop.f32.mrb[0].mxu0
  %v158 = vadd.f32 %v43, %v157
  %v159 = vpop.f32.mrb[0].mxu0
  %v160 = vpop.f32.mrb[0].mxu0
  %v161 = vadd.f32 %v43, %v160
  %v162 = vpop.f32.mrb[0].mxu0
  %163 = vmatprep.mubr.bf16.mxu0 0
  %164 = vmatmul.mubr.bf16.gmra.mrb[0].mxu0 %v61
  %v165 = vpop.f32.mrb[0].mxu0
  %v166 = vadd.f32 %v43, %v165
  %v167 = vpop.f32.mrb[0].mxu0
  %v168 = vpop.f32.mrb[0].mxu0
  %v169 = vadd.f32 %v43, %v168
  %v170 = vpop.f32.mrb[0].mxu0
  %171 = vmatprep.mubr.bf16.mxu0 0
  %172 = vmatmul.mubr.bf16.gmra.mrb[0].mxu0 %v62
  %v173 = vpop.f32.mrb[0].mxu0
  %v174 = vadd.f32 %v43, %v173
  %v175 = vpop.f32.mrb[0].mxu0
  %v176 = vpop.f32.mrb[0].mxu0
  %v177 = vpop.f32.mrb[0].mxu0
  %178 = vdwg.mxu0
  %vm179 = vcmask 64512
  %180 = vst.msk [vmem:[%s3] sm:$0xff] %vm179, %v150
  %181 = vst.msk [vmem:[%s3 + $0x8] sm:$0xff] %vm179, %v153
  %182 = vst.msk [vmem:[%s3 + $0x10] sm:$0xff] %vm179, %v158
  %183 = vst.msk [vmem:[%s3 + $0x18] sm:$0xff] %vm179, %v161
  %184 = vst.msk [vmem:[%s3 + $0x20] sm:$0xff] %vm179, %v166
  %185 = vst.msk [vmem:[%s3 + $0x28] sm:$0xff] %vm179, %v169
  %186 = vst.msk [vmem:[%s3 + $0x30] sm:$0xff] %vm179, %v174
  // Predicated region
  $region14: #{weight_upsample_forward.10} parent=0 // pred_check
    _
  $region15: #{weight_upsample_forward.10} parent=0 // pred_check_branch
    %188 = sbr.rel (0) target = $region17
  $region16: #{weight_upsample_forward.10} parent=0 // pred_region
    _
  $region17: #{weight_upsample_forward.10} parent=0 // pred_fallthru
    _
  // Predicated region
  $region18: #{weight_upsample_forward.10} parent=0 // pred_check
    _
  $region19: #{weight_upsample_forward.10} parent=0 // pred_check_branch
    %190 = sbr.rel (0) target = $region21
  $region20: #{weight_upsample_forward.10} parent=0 // pred_region
    _
  $region21: #{weight_upsample_forward.10} parent=0 // pred_fallthru
    _

// kernel: weight_upsample_forward.11
$region0: #{weight_upsample_forward.11}
  #allocation0 [shape = 'u32[]', space=smem, size = 0x4, offset = 0x4, fixed_abs, tag = 'smem constant byte address 0x4 - core index']
  #allocation1 [shape = 'u32[144,128]{1,0:T(1,128)}', space=vmem, size = 0x12000, scoped, tag = 'internal scratch']
  %s0 = inlined_call_operand.vmem [shape: bf16[4096,8], index: 0, kind: input, shape index: {}]
  %s1 = inlined_call_operand.vmem [shape: f32[4096,8], index: 1, kind: input, shape index: {}]
  %s2 = inlined_call_operand.vmem [shape: bf16[4096,32], index: 2, kind: input, shape index: {}]
  %s3 = inlined_call_operand.vmem [shape: bf16[8,8], index: 3, kind: input, shape index: {}]
  %s4 = inlined_call_operand.vmem [shape: f32[1,8], index: 4, kind: input, shape index: {}]
  %s5 = inlined_call_operand.vmem [shape: bf16[8,32], index: 5, kind: input, shape index: {}]
  %s6 = inlined_call_operand.vmem [shape: f32[1,32], index: 6, kind: input, shape index: {}]
  %s7 = inlined_call_operand.vmem [shape: bf16[32,16], index: 7, kind: input, shape index: {}]
  %s8 = inlined_call_operand.vmem [shape: f32[1,16], index: 8, kind: input, shape index: {}]
  %s9 = inlined_call_operand.vmem [shape: f32[4096,16], index: 9, kind: output, shape index: {}]
  %s10 = sld [smem:[#allocation0]]
  $region69: #{weight_upsample_forward.11} parent=0
    _
  %s12 = ssub.s32 1, %s10
  %s13 = scalar_select 0, %s12, %s10
  loop: start=0, step=1, limit=10
  $region2: #{weight_upsample_forward.11} parent=0 // loop_pre_header
    _
  $region3: #{weight_upsample_forward.11} parent=0 // loop_header
    %s15 = sphi 0, %s19
    %p16 = scmp.ge.s32.totalorder %s15, 10
    %s25 = sphi 0, %s27
    %s28 = sphi 0, %s25
    %s29 = sphi 0, %s28
    %s45 = sphi 0, %s29
    %s51 = sphi 0, %s53
    %s54 = sphi 0, %s51
    %s55 = sphi 0, %s54
    %s71 = sphi 0, %s55
    %s77 = sphi 0, %s79
    %s80 = sphi 0, %s77
    %s81 = sphi 0, %s80
    %s97 = sphi 0, %s81
    %s101 = sphi 0, %s101
    %s103 = sphi 0, %s101
    %s104 = sphi 0, %s103
    %s118 = sphi 0, %s104
    %s122 = sphi 0, %s122
    %s124 = sphi 0, %s122
    %s125 = sphi 0, %s124
    %s139 = sphi 0, %s125
    %s143 = sphi 0, %s143
    %s145 = sphi 0, %s143
    %s146 = sphi 0, %s145
    %s160 = sphi 0, %s146
    %s164 = sphi 0, %s164
    %s166 = sphi 0, %s164
    %s167 = sphi 0, %s166
    %s181 = sphi 0, %s167
    %s185 = sphi 0, %s185
    %s187 = sphi 0, %s185
    %s188 = sphi 0, %s187
    %s202 = sphi 0, %s188
    %s206 = sphi 0, %s206
    %s208 = sphi 0, %s206
    %s209 = sphi 0, %s208
    %s223 = sphi 0, %s209
    %s229 = sphi 0, %s231
    %s232 = sphi 0, %s229
    %s233 = sphi 0, %s232
    %s249 = sphi 0, %s233
  $region4: #{weight_upsample_forward.11} parent=0 // loop_header_branch
    %18 = sbr.rel (%p16) target = $region8
  $region5: #{weight_upsample_forward.11} parent=0 // loop_body
    %s20 = ssub.s32 %s15, 1
    %s21 = ssub.s32 %s15, 2
    %s22 = sadd.s32 %s15, 1
    %s23 = ssub.s32 %s15, %s22
    %p24 = scmp.eq.s32.totalorder %s23, 0
    %s26 = sadd.s32 %s25, 1
    %s27 = scalar_select %p24, %s25, %s26
    %p30 = pneg %p24
    %p31 = scmp.eq.s32.totalorder %s15, 7
    %p32 = por %p30, %p31
    %p33 = scmp.ne.s32.totalorder %s25, %s28
    %p34 = scmp.eq.s32.totalorder %s15, 0
    %p35 = por %p33, %p34
    %p36 = scmp.ne.s32.totalorder %s25, %s28
    %p37 = scmp.eq.s32.totalorder %s20, 7
    %p38 = por %p36, %p37
    %p39 = scmp.ne.s32.totalorder %s28, %s29
    %p40 = scmp.eq.s32.totalorder %s20, 0
    %p41 = por %p39, %p40
    %p42 = scmp.ne.s32.totalorder %s28, %s29
    %p43 = scmp.eq.s32.totalorder %s21, 7
    %p44 = por %p42, %p43
    %p46 = scmp.ne.s32.totalorder %s29, %s45
    %p47 = scmp.eq.s32.totalorder %s21, 0
    %p48 = por %p46, %p47
    %s49 = ssub.s32 %s15, %s22
    %p50 = scmp.eq.s32.totalorder %s49, 0
    %s52 = sadd.s32 %s51, 1
    %s53 = scalar_select %p50, %s51, %s52
    %p56 = pneg %p50
    %p57 = scmp.eq.s32.totalorder %s15, 7
    %p58 = por %p56, %p57
    %p59 = scmp.ne.s32.totalorder %s51, %s54
    %p60 = scmp.eq.s32.totalorder %s15, 0
    %p61 = por %p59, %p60
    %p62 = scmp.ne.s32.totalorder %s51, %s54
    %p63 = scmp.eq.s32.totalorder %s20, 7
    %p64 = por %p62, %p63
    %p65 = scmp.ne.s32.totalorder %s54, %s55
    %p66 = scmp.eq.s32.totalorder %s20, 0
    %p67 = por %p65, %p66
    %p68 = scmp.ne.s32.totalorder %s54, %s55
    %p69 = scmp.eq.s32.totalorder %s21, 7
    %p70 = por %p68, %p69
    %p72 = scmp.ne.s32.totalorder %s55, %s71
    %p73 = scmp.eq.s32.totalorder %s21, 0
    %p74 = por %p72, %p73
    %s75 = ssub.s32 %s15, %s22
    %p76 = scmp.eq.s32.totalorder %s75, 0
    %s78 = sadd.s32 %s77, 1
    %s79 = scalar_select %p76, %s77, %s78
    %p82 = pneg %p76
    %p83 = scmp.eq.s32.totalorder %s15, 7
    %p84 = por %p82, %p83
    %p85 = scmp.ne.s32.totalorder %s77, %s80
    %p86 = scmp.eq.s32.totalorder %s15, 0
    %p87 = por %p85, %p86
    %p88 = scmp.ne.s32.totalorder %s77, %s80
    %p89 = scmp.eq.s32.totalorder %s20, 7
    %p90 = por %p88, %p89
    %p91 = scmp.ne.s32.totalorder %s80, %s81
    %p92 = scmp.eq.s32.totalorder %s20, 0
    %p93 = por %p91, %p92
    %p94 = scmp.ne.s32.totalorder %s80, %s81
    %p95 = scmp.eq.s32.totalorder %s21, 7
    %p96 = por %p94, %p95
    %p98 = scmp.ne.s32.totalorder %s81, %s97
    %p99 = scmp.eq.s32.totalorder %s21, 0
    %p100 = por %p98, %p99
    %s102 = sadd.s32 %s101, 1
    %p105 = scmp.eq.s32.totalorder %s15, 7
    %p106 = scmp.ne.s32.totalorder %s101, %s103
    %p107 = scmp.eq.s32.totalorder %s15, 0
    %p108 = por %p106, %p107
    %p109 = scmp.ne.s32.totalorder %s101, %s103
    %p110 = scmp.eq.s32.totalorder %s20, 7
    %p111 = por %p109, %p110
    %p112 = scmp.ne.s32.totalorder %s103, %s104
    %p113 = scmp.eq.s32.totalorder %s20, 0
    %p114 = por %p112, %p113
    %p115 = scmp.ne.s32.totalorder %s103, %s104
    %p116 = scmp.eq.s32.totalorder %s21, 7
    %p117 = por %p115, %p116
    %p119 = scmp.ne.s32.totalorder %s104, %s118
    %p120 = scmp.eq.s32.totalorder %s21, 0
    %p121 = por %p119, %p120
    %s123 = sadd.s32 %s122, 1
    %p126 = scmp.eq.s32.totalorder %s15, 7
    %p127 = scmp.ne.s32.totalorder %s122, %s124
    %p128 = scmp.eq.s32.totalorder %s15, 0
    %p129 = por %p127, %p128
    %p130 = scmp.ne.s32.totalorder %s122, %s124
    %p131 = scmp.eq.s32.totalorder %s20, 7
    %p132 = por %p130, %p131
    %p133 = scmp.ne.s32.totalorder %s124, %s125
    %p134 = scmp.eq.s32.totalorder %s20, 0
    %p135 = por %p133, %p134
    %p136 = scmp.ne.s32.totalorder %s124, %s125
    %p137 = scmp.eq.s32.totalorder %s21, 7
    %p138 = por %p136, %p137
    %p140 = scmp.ne.s32.totalorder %s125, %s139
    %p141 = scmp.eq.s32.totalorder %s21, 0
    %p142 = por %p140, %p141
    %s144 = sadd.s32 %s143, 1
    %p147 = scmp.eq.s32.totalorder %s15, 7
    %p148 = scmp.ne.s32.totalorder %s143, %s145
    %p149 = scmp.eq.s32.totalorder %s15, 0
    %p150 = por %p148, %p149
    %p151 = scmp.ne.s32.totalorder %s143, %s145
    %p152 = scmp.eq.s32.totalorder %s20, 7
    %p153 = por %p151, %p152
    %p154 = scmp.ne.s32.totalorder %s145, %s146
    %p155 = scmp.eq.s32.totalorder %s20, 0
    %p156 = por %p154, %p155
    %p157 = scmp.ne.s32.totalorder %s145, %s146
    %p158 = scmp.eq.s32.totalorder %s21, 7
    %p159 = por %p157, %p158
    %p161 = scmp.ne.s32.totalorder %s146, %s160
    %p162 = scmp.eq.s32.totalorder %s21, 0
    %p163 = por %p161, %p162
    %s165 = sadd.s32 %s164, 1
    %p168 = scmp.eq.s32.totalorder %s15, 7
    %p169 = scmp.ne.s32.totalorder %s164, %s166
    %p170 = scmp.eq.s32.totalorder %s15, 0
    %p171 = por %p169, %p170
    %p172 = scmp.ne.s32.totalorder %s164, %s166
    %p173 = scmp.eq.s32.totalorder %s20, 7
    %p174 = por %p172, %p173
    %p175 = scmp.ne.s32.totalorder %s166, %s167
    %p176 = scmp.eq.s32.totalorder %s20, 0
    %p177 = por %p175, %p176
    %p178 = scmp.ne.s32.totalorder %s166, %s167
    %p179 = scmp.eq.s32.totalorder %s21, 7
    %p180 = por %p178, %p179
    %p182 = scmp.ne.s32.totalorder %s167, %s181
    %p183 = scmp.eq.s32.totalorder %s21, 0
    %p184 = por %p182, %p183
    %s186 = sadd.s32 %s185, 1
    %p189 = scmp.eq.s32.totalorder %s15, 7
    %p190 = scmp.ne.s32.totalorder %s185, %s187
    %p191 = scmp.eq.s32.totalorder %s15, 0
    %p192 = por %p190, %p191
    %p193 = scmp.ne.s32.totalorder %s185, %s187
    %p194 = scmp.eq.s32.totalorder %s20, 7
    %p195 = por %p193, %p194
    %p196 = scmp.ne.s32.totalorder %s187, %s188
    %p197 = scmp.eq.s32.totalorder %s20, 0
    %p198 = por %p196, %p197
    %p199 = scmp.ne.s32.totalorder %s187, %s188
    %p200 = scmp.eq.s32.totalorder %s21, 7
    %p201 = por %p199, %p200
    %p203 = scmp.ne.s32.totalorder %s188, %s202
    %p204 = scmp.eq.s32.totalorder %s21, 0
    %p205 = por %p203, %p204
    %s207 = sadd.s32 %s206, 1
    %p210 = scmp.eq.s32.totalorder %s15, 7
    %p211 = scmp.ne.s32.totalorder %s206, %s208
    %p212 = scmp.eq.s32.totalorder %s15, 0
    %p213 = por %p211, %p212
    %p214 = scmp.ne.s32.totalorder %s206, %s208
    %p215 = scmp.eq.s32.totalorder %s20, 7
    %p216 = por %p214, %p215
    %p217 = scmp.ne.s32.totalorder %s208, %s209
    %p218 = scmp.eq.s32.totalorder %s20, 0
    %p219 = por %p217, %p218
    %p220 = scmp.ne.s32.totalorder %s208, %s209
    %p221 = scmp.eq.s32.totalorder %s21, 7
    %p222 = por %p220, %p221
    %p224 = scmp.ne.s32.totalorder %s209, %s223
    %p225 = scmp.eq.s32.totalorder %s21, 0
    %p226 = por %p224, %p225
    %s227 = ssub.s32 %s15, %s22
    %p228 = scmp.eq.s32.totalorder %s227, 0
    %s230 = sadd.s32 %s229, 1
    %s231 = scalar_select %p228, %s229, %s230
    %p234 = pneg %p228
    %p235 = scmp.eq.s32.totalorder %s15, 7
    %p236 = por %p234, %p235
    %p237 = scmp.ne.s32.totalorder %s229, %s232
    %p238 = scmp.eq.s32.totalorder %s15, 0
    %p239 = por %p237, %p238
    %p240 = scmp.ne.s32.totalorder %s229, %s232
    %p241 = scmp.eq.s32.totalorder %s20, 7
    %p242 = por %p240, %p241
    %p243 = scmp.ne.s32.totalorder %s232, %s233
    %p244 = scmp.eq.s32.totalorder %s20, 0
    %p245 = por %p243, %p244
    %p246 = scmp.ne.s32.totalorder %s232, %s233
    %p247 = scmp.eq.s32.totalorder %s21, 7
    %p248 = por %p246, %p247
    %p250 = scmp.ne.s32.totalorder %s233, %s249
    %p251 = scmp.eq.s32.totalorder %s21, 0
    %p252 = por %p250, %p251
    %p253 = scmp.le.s32.totalorder 1, %s15
    %p254 = scmp.lt.s32.totalorder %s15, 9
    %p255 = pnand %p253, %p254
    %p256 = pneg %p255
    // Predicated region
    $region9: #{weight_upsample_forward.11} parent=5 // pred_check
      _
    $region10: #{weight_upsample_forward.11} parent=5 // pred_check_branch
      %258 = sbr.rel (%p255) target = $region12
    $region11: #{weight_upsample_forward.11} parent=5 // pred_region
      %s259 = ssub.s32 %s15, 1
      // Predicated region
      $region13: #{weight_upsample_forward.11} parent=11 // pred_check
        %p260 = pneg %p114
      $region14: #{weight_upsample_forward.11} parent=11 // pred_check_branch
        %262 = sbr.rel (%p260) target = $region16
      $region15: #{weight_upsample_forward.11} parent=11 // pred_region
        _
      $region16: #{weight_upsample_forward.11} parent=11 // pred_fallthru
        _
      // Predicated region
      $region17: #{weight_upsample_forward.11} parent=11 // pred_check
        %p263 = pneg %p135
      $region18: #{weight_upsample_forward.11} parent=11 // pred_check_branch
        %265 = sbr.rel (%p263) target = $region20
      $region19: #{weight_upsample_forward.11} parent=11 // pred_region
        _
      $region20: #{weight_upsample_forward.11} parent=11 // pred_fallthru
        _
      // Predicated region
      $region21: #{weight_upsample_forward.11} parent=11 // pred_check
        %p266 = pneg %p156
      $region22: #{weight_upsample_forward.11} parent=11 // pred_check_branch
        %268 = sbr.rel (%p266) target = $region24
      $region23: #{weight_upsample_forward.11} parent=11 // pred_region
        _
      $region24: #{weight_upsample_forward.11} parent=11 // pred_fallthru
        _
      // Predicated region
      $region25: #{weight_upsample_forward.11} parent=11 // pred_check
        %p269 = pneg %p177
      $region26: #{weight_upsample_forward.11} parent=11 // pred_check_branch
        %271 = sbr.rel (%p269) target = $region28
      $region27: #{weight_upsample_forward.11} parent=11 // pred_region
        _
      $region28: #{weight_upsample_forward.11} parent=11 // pred_fallthru
        _
      // Predicated region
      $region29: #{weight_upsample_forward.11} parent=11 // pred_check
        %p272 = pneg %p198
      $region30: #{weight_upsample_forward.11} parent=11 // pred_check_branch
        %274 = sbr.rel (%p272) target = $region32
      $region31: #{weight_upsample_forward.11} parent=11 // pred_region
        _
      $region32: #{weight_upsample_forward.11} parent=11 // pred_fallthru
        _
      // Predicated region
      $region33: #{weight_upsample_forward.11} parent=11 // pred_check
        %p275 = pneg %p219
      $region34: #{weight_upsample_forward.11} parent=11 // pred_check_branch
        %277 = sbr.rel (%p275) target = $region36
      $region35: #{weight_upsample_forward.11} parent=11 // pred_region
        _
      $region36: #{weight_upsample_forward.11} parent=11 // pred_fallthru
        _
    $region12: #{weight_upsample_forward.11} parent=5 // pred_fallthru
      _
    %p278 = scmp.lt.s32.totalorder %s15, 8
    // Predicated region
    $region37: #{weight_upsample_forward.11} parent=5 // pred_check
      %p279 = pneg %p278
    $region38: #{weight_upsample_forward.11} parent=5 // pred_check_branch
      %281 = sbr.rel (%p279) target = $region40
    $region39: #{weight_upsample_forward.11} parent=5 // pred_region
      // Predicated region
      $region41: #{weight_upsample_forward.11} parent=39 // pred_check
        %p282 = pneg %p35
      $region42: #{weight_upsample_forward.11} parent=39 // pred_check_branch
        %284 = sbr.rel (%p282) target = $region44
      $region43: #{weight_upsample_forward.11} parent=39 // pred_region
        %s285 = smul.u32 64, %s15
        %p286 = scmp.lt.s32.totalorder %s285, 511
        %s287 = scalar_select %p286, %s285, 511
        %s288 = smul.addr %s287, 4
        %s289 = scalar_lea.vmem %s0, %s288
        %s290 = smul.u32 64, %s15
      $region44: #{weight_upsample_forward.11} parent=39 // pred_fallthru
        _
      // Predicated region
      $region45: #{weight_upsample_forward.11} parent=39 // pred_check
        %p291 = pneg %p61
      $region46: #{weight_upsample_forward.11} parent=39 // pred_check_branch
        %293 = sbr.rel (%p291) target = $region48
      $region47: #{weight_upsample_forward.11} parent=39 // pred_region
        %s294 = smul.u32 64, %s15
        %p295 = scmp.lt.s32.totalorder %s294, 511
        %s296 = scalar_select %p295, %s294, 511
        %s297 = smul.addr %s296, 8
        %s298 = scalar_lea.vmem %s1, %s297
        %s299 = smul.u32 64, %s15
      $region48: #{weight_upsample_forward.11} parent=39 // pred_fallthru
        _
      // Predicated region
      $region49: #{weight_upsample_forward.11} parent=39 // pred_check
        %p300 = pneg %p87
      $region50: #{weight_upsample_forward.11} parent=39 // pred_check_branch
        %302 = sbr.rel (%p300) target = $region52
      $region51: #{weight_upsample_forward.11} parent=39 // pred_region
        %s303 = smul.u32 64, %s15
        %p304 = scmp.lt.s32.totalorder %s303, 511
        %s305 = scalar_select %p304, %s303, 511
        %s306 = smul.addr %s305, 4
        %s307 = scalar_lea.vmem %s2, %s306
        %s308 = smul.u32 64, %s15
      $region52: #{weight_upsample_forward.11} parent=39 // pred_fallthru
        _
    $region40: #{weight_upsample_forward.11} parent=5 // pred_fallthru
      _
    %p309 = scmp.le.s32.totalorder 1, %s15
    %p310 = scmp.lt.s32.totalorder %s15, 9
    %p311 = pnand %p309, %p310
    %p312 = pneg %p311
    // Predicated region
    $region53: #{weight_upsample_forward.11} parent=5 // pred_check
      _
    $region54: #{weight_upsample_forward.11} parent=5 // pred_check_branch
      %314 = sbr.rel (%p311) target = $region56
    $region55: #{weight_upsample_forward.11} parent=5 // pred_region
      %s315 = ssub.s32 %s15, 1
      %s316 = smul.u32 64, %s20
      %p317 = scmp.lt.s32.totalorder %s316, 511
      %s318 = scalar_select %p317, %s316, 511
      %s319 = smul.addr %s318, 4
      %s320 = scalar_lea.vmem %s0, %s319
      %p321 = pneg %p41
      %p322 = pneg %p38
      %s323 = smul.u32 64, %s20
      %p324 = scmp.lt.s32.totalorder %s323, 511
      %s325 = scalar_select %p324, %s323, 511
      %s326 = smul.addr %s325, 8
      %s327 = scalar_lea.vmem %s1, %s326
      %p328 = pneg %p67
      %p329 = pneg %p64
      %s330 = smul.u32 64, %s20
      %p331 = scmp.lt.s32.totalorder %s330, 511
      %s332 = scalar_select %p331, %s330, 511
      %s333 = smul.addr %s332, 4
      %s334 = scalar_lea.vmem %s2, %s333
      %p335 = pneg %p93
      %p336 = pneg %p90
      %p337 = pneg %p114
      %p338 = pneg %p111
      %p339 = pneg %p135
      %p340 = pneg %p132
      %p341 = pneg %p156
      %p342 = pneg %p153
      %p343 = pneg %p177
      %p344 = pneg %p174
      %p345 = pneg %p198
      %p346 = pneg %p195
      %p347 = pneg %p219
      %p348 = pneg %p216
      %p349 = pneg %p245
      %p350 = pneg %p242
      %s351 = smul.u32 64, %s20
      %p352 = scmp.lt.s32.totalorder %s351, 511
      %s353 = scalar_select %p352, %s351, 511
      %s354 = smul.addr %s353, 8
      %s355 = scalar_lea.vmem %s9, %s354
      %s356 = smul.u32 64, %s20
      %p357 = scmp.lt.s32.totalorder %s356, 511
      %s358 = scalar_select %p357, %s356, 511
      %s359 = smul.addr %s358, 4
      %s360 = scalar_lea.vmem %s0, %s359
      %s361 = smul.u32 64, %s20
      %s362 = smul.u32 64, %s20
      %p363 = scmp.lt.s32.totalorder %s362, 511
      %s364 = scalar_select %p363, %s362, 511
      %s365 = smul.addr %s364, 8
      %s366 = scalar_lea.vmem %s1, %s365
      %s367 = smul.u32 64, %s20
      %s368 = smul.u32 64, %s20
      %p369 = scmp.lt.s32.totalorder %s368, 511
      %s370 = scalar_select %p369, %s368, 511
      %s371 = smul.addr %s370, 4
      %s372 = scalar_lea.vmem %s2, %s371
      %s373 = smul.u32 64, %s20
      %s374 = smul.u32 64, %s20
      %p375 = scmp.lt.s32.totalorder %s374, 511
      %s376 = scalar_select %p375, %s374, 511
      %s377 = smul.addr %s376, 8
      %s378 = scalar_lea.vmem %s9, %s377
      %s379 = smul.u32 64, %s20
      %v381 = vld [vmem:[%s360] sm:$0xf]
      %v382 = vld [vmem:[%s360 + $0x4] sm:$0xf]
      %v383 = vld [vmem:[%s360 + $0x8] sm:$0xf]
      %v384 = vld [vmem:[%s360 + $0xc] sm:$0xf]
      %v385 = vld [vmem:[%s360 + $0x10] sm:$0xf]
      %v386 = vld [vmem:[%s360 + $0x14] sm:$0xf]
      %v387 = vld [vmem:[%s360 + $0x18] sm:$0xf]
      %v388 = vld [vmem:[%s360 + $0x1c] sm:$0xf]
      %v389 = vld [vmem:[%s360 + $0x20] sm:$0xf]
      %v390 = vld [vmem:[%s360 + $0x24] sm:$0xf]
      %v391 = vld [vmem:[%s360 + $0x28] sm:$0xf]
      %v392 = vld [vmem:[%s360 + $0x2c] sm:$0xf]
      %v393 = vld [vmem:[%s360 + $0x30] sm:$0xf]
      %v394 = vld [vmem:[%s360 + $0x34] sm:$0xf]
      %v395 = vld [vmem:[%s360 + $0x38] sm:$0xf]
      %v396 = vld [vmem:[%s360 + $0x3c] sm:$0xf]
      %v397 = vld [vmem:[%s360 + $0x40] sm:$0xf]
      %v398 = vld [vmem:[%s360 + $0x44] sm:$0xf]
      %v399 = vld [vmem:[%s360 + $0x48] sm:$0xf]
      %v400 = vld [vmem:[%s360 + $0x4c] sm:$0xf]
      %v401 = vld [vmem:[%s360 + $0x50] sm:$0xf]
      %v402 = vld [vmem:[%s360 + $0x54] sm:$0xf]
      %v403 = vld [vmem:[%s360 + $0x58] sm:$0xf]
      %v404 = vld [vmem:[%s360 + $0x5c] sm:$0xf]
      %v405 = vld [vmem:[%s360 + $0x60] sm:$0xf]
      %v406 = vld [vmem:[%s360 + $0x64] sm:$0xf]
      %v407 = vld [vmem:[%s360 + $0x68] sm:$0xf]
      %v408 = vld [vmem:[%s360 + $0x6c] sm:$0xf]
      %v409 = vld [vmem:[%s360 + $0x70] sm:$0xf]
      %v410 = vld [vmem:[%s360 + $0x74] sm:$0xf]
      %v411 = vld [vmem:[%s360 + $0x78] sm:$0xf]
      %v412 = vld [vmem:[%s360 + $0x7c] sm:$0xf]
      %v413 = vld [vmem:[%s360 + $0x80] sm:$0xf]
      %v414 = vld [vmem:[%s360 + $0x84] sm:$0xf]
      %v415 = vld [vmem:[%s360 + $0x88] sm:$0xf]
      %v416 = vld [vmem:[%s360 + $0x8c] sm:$0xf]
      %v417 = vld [vmem:[%s360 + $0x90] sm:$0xf]
      %v418 = vld [vmem:[%s360 + $0x94] sm:$0xf]
      %v419 = vld [vmem:[%s360 + $0x98] sm:$0xf]
      %v420 = vld [vmem:[%s360 + $0x9c] sm:$0xf]
      %v421 = vld [vmem:[%s360 + $0xa0] sm:$0xf]
      %v422 = vld [vmem:[%s360 + $0xa4] sm:$0xf]
      %v423 = vld [vmem:[%s360 + $0xa8] sm:$0xf]
      %v424 = vld [vmem:[%s360 + $0xac] sm:$0xf]
      %v425 = vld [vmem:[%s360 + $0xb0] sm:$0xf]
      %v426 = vld [vmem:[%s360 + $0xb4] sm:$0xf]
      %v427 = vld [vmem:[%s360 + $0xb8] sm:$0xf]
      %v428 = vld [vmem:[%s360 + $0xbc] sm:$0xf]
      %v429 = vld [vmem:[%s360 + $0xc0] sm:$0xf]
      %v430 = vld [vmem:[%s360 + $0xc4] sm:$0xf]
      %v431 = vld [vmem:[%s360 + $0xc8] sm:$0xf]
      %v432 = vld [vmem:[%s360 + $0xcc] sm:$0xf]
      %v433 = vld [vmem:[%s360 + $0xd0] sm:$0xf]
      %v434 = vld [vmem:[%s360 + $0xd4] sm:$0xf]
      %v435 = vld [vmem:[%s360 + $0xd8] sm:$0xf]
      %v436 = vld [vmem:[%s360 + $0xdc] sm:$0xf]
      %v437 = vld [vmem:[%s360 + $0xe0] sm:$0xf]
      %v438 = vld [vmem:[%s360 + $0xe4] sm:$0xf]
      %v439 = vld [vmem:[%s360 + $0xe8] sm:$0xf]
      %v440 = vld [vmem:[%s360 + $0xec] sm:$0xf]
      %v441 = vld [vmem:[%s360 + $0xf0] sm:$0xf]
      %v442 = vld [vmem:[%s360 + $0xf4] sm:$0xf]
      %v443 = vld [vmem:[%s360 + $0xf8] sm:$0xf]
      %v444 = vld [vmem:[%s360 + $0xfc] sm:$0xf]
      %v445 = vld [vmem:[%s3] sm:$0xf]
      %v446 = vld [vmem:[%s4] sm:$0x1]
      %v448 = vlaneseq
      %v449 = vshrl.u32 %v448, 7
      %v450 = vsub.s32 0, %v449
      %v451 = vrot.slane %v446, %v450
      %v517 = vunpack.c.l.b16 %v381
      %v518 = vunpack.c.l.b16 %v382
      %v519 = vunpack.c.l.b16 %v383
      %v520 = vunpack.c.l.b16 %v384
      %v521 = vunpack.c.l.b16 %v385
      %v522 = vunpack.c.l.b16 %v386
      %v523 = vunpack.c.l.b16 %v387
      %v524 = vunpack.c.l.b16 %v388
      %v525 = vunpack.c.l.b16 %v389
      %v526 = vunpack.c.l.b16 %v390
      %v527 = vunpack.c.l.b16 %v391
      %v528 = vunpack.c.l.b16 %v392
      %v529 = vunpack.c.l.b16 %v393
      %v530 = vunpack.c.l.b16 %v394
      %v531 = vunpack.c.l.b16 %v395
      %v532 = vunpack.c.l.b16 %v396
      %v533 = vunpack.c.l.b16 %v397
      %v534 = vunpack.c.l.b16 %v398
      %v535 = vunpack.c.l.b16 %v399
      %v536 = vunpack.c.l.b16 %v400
      %v537 = vunpack.c.l.b16 %v401
      %v538 = vunpack.c.l.b16 %v402
      %v539 = vunpack.c.l.b16 %v403
      %v540 = vunpack.c.l.b16 %v404
      %v541 = vunpack.c.l.b16 %v405
      %v542 = vunpack.c.l.b16 %v406
      %v543 = vunpack.c.l.b16 %v407
      %v544 = vunpack.c.l.b16 %v408
      %v545 = vunpack.c.l.b16 %v409
      %v546 = vunpack.c.l.b16 %v410
      %v547 = vunpack.c.l.b16 %v411
      %v548 = vunpack.c.l.b16 %v412
      %v549 = vunpack.c.l.b16 %v413
      %v550 = vunpack.c.l.b16 %v414
      %v551 = vunpack.c.l.b16 %v415
      %v552 = vunpack.c.l.b16 %v416
      %v553 = vunpack.c.l.b16 %v417
      %v554 = vunpack.c.l.b16 %v418
      %v555 = vunpack.c.l.b16 %v419
      %v556 = vunpack.c.l.b16 %v420
      %v557 = vunpack.c.l.b16 %v421
      %v558 = vunpack.c.l.b16 %v422
      %v559 = vunpack.c.l.b16 %v423
      %v560 = vunpack.c.l.b16 %v424
      %v561 = vunpack.c.l.b16 %v425
      %v562 = vunpack.c.l.b16 %v426
      %v563 = vunpack.c.l.b16 %v427
      %v564 = vunpack.c.l.b16 %v428
      %v565 = vunpack.c.l.b16 %v429
      %v566 = vunpack.c.l.b16 %v430
      %v567 = vunpack.c.l.b16 %v431
      %v568 = vunpack.c.l.b16 %v432
      %v569 = vunpack.c.l.b16 %v433
      %v570 = vunpack.c.l.b16 %v434
      %v571 = vunpack.c.l.b16 %v435
      %v572 = vunpack.c.l.b16 %v436
      %v573 = vunpack.c.l.b16 %v437
      %v574 = vunpack.c.l.b16 %v438
      %v575 = vunpack.c.l.b16 %v439
      %v576 = vunpack.c.l.b16 %v440
      %v577 = vunpack.c.l.b16 %v441
      %v578 = vunpack.c.l.b16 %v442
      %v579 = vunpack.c.l.b16 %v443
      %v580 = vunpack.c.l.b16 %v444
      %v581 = vpack.c.b16 %v518, %v517
      %v582 = vpack.c.b16 %v520, %v519
      %v583 = vpack.c.b16 %v522, %v521
      %v584 = vpack.c.b16 %v524, %v523
      %v585 = vpack.c.b16 %v526, %v525
      %v586 = vpack.c.b16 %v528, %v527
      %v587 = vpack.c.b16 %v530, %v529
      %v588 = vpack.c.b16 %v532, %v531
      %v589 = vpack.c.b16 %v534, %v533
      %v590 = vpack.c.b16 %v536, %v535
      %v591 = vpack.c.b16 %v538, %v537
      %v592 = vpack.c.b16 %v540, %v539
      %v593 = vpack.c.b16 %v542, %v541
      %v594 = vpack.c.b16 %v544, %v543
      %v595 = vpack.c.b16 %v546, %v545
      %v596 = vpack.c.b16 %v548, %v547
      %v597 = vpack.c.b16 %v550, %v549
      %v598 = vpack.c.b16 %v552, %v551
      %v599 = vpack.c.b16 %v554, %v553
      %v600 = vpack.c.b16 %v556, %v555
      %v601 = vpack.c.b16 %v558, %v557
      %v602 = vpack.c.b16 %v560, %v559
      %v603 = vpack.c.b16 %v562, %v561
      %v604 = vpack.c.b16 %v564, %v563
      %v605 = vpack.c.b16 %v566, %v565
      %v606 = vpack.c.b16 %v568, %v567
      %v607 = vpack.c.b16 %v570, %v569
      %v608 = vpack.c.b16 %v572, %v571
      %v609 = vpack.c.b16 %v574, %v573
      %v610 = vpack.c.b16 %v576, %v575
      %v611 = vpack.c.b16 %v578, %v577
      %v612 = vpack.c.b16 %v580, %v579
      %vm613 = vcmask 64512
      %v615 = vsel %vm613, %v581, 0
      %v618 = vsel %vm613, %v582, 0
      %v621 = vsel %vm613, %v583, 0
      %v624 = vsel %vm613, %v584, 0
      %v627 = vsel %vm613, %v585, 0
      %v630 = vsel %vm613, %v586, 0
      %v633 = vsel %vm613, %v587, 0
      %v636 = vsel %vm613, %v588, 0
      %v639 = vsel %vm613, %v589, 0
      %v642 = vsel %vm613, %v590, 0
      %v645 = vsel %vm613, %v591, 0
      %v648 = vsel %vm613, %v592, 0
      %v651 = vsel %vm613, %v593, 0
      %v654 = vsel %vm613, %v594, 0
      %v657 = vsel %vm613, %v595, 0
      %v660 = vsel %vm613, %v596, 0
      %v663 = vsel %vm613, %v597, 0
      %v666 = vsel %vm613, %v598, 0
      %v669 = vsel %vm613, %v599, 0
      %v672 = vsel %vm613, %v600, 0
      %v675 = vsel %vm613, %v601, 0
      %v678 = vsel %vm613, %v602, 0
      %v681 = vsel %vm613, %v603, 0
      %v684 = vsel %vm613, %v604, 0
      %v687 = vsel %vm613, %v605, 0
      %v690 = vsel %vm613, %v606, 0
      %v693 = vsel %vm613, %v607, 0
      %v696 = vsel %vm613, %v608, 0
      %v699 = vsel %vm613, %v609, 0
      %v702 = vsel %vm613, %v610, 0
      %v705 = vsel %vm613, %v611, 0
      %v708 = vsel %vm613, %v612, 0
      %vm710 = vcmask 1043456
      %v712 = vsel %vm710, %v445, 0
      %714 = vmatprep.subr.bf16.mxu0 0
      %715 = vmatpush1.bf16.msra.mxu0 %v712
      %716 = vmatprep.subr.bf16.mxu0 0
      %717 = vmatpush1.bf16.msra.mxu0 0
      %718 = vmatprep.subr.bf16.mxu0 0
      %719 = vmatpush1.bf16.msra.mxu0 0
      %720 = vmatprep.subr.bf16.mxu0 0
      %721 = vmatpush1.bf16.msra.mxu0 0
      %722 = vmatprep.subr.bf16.mxu0 0
      %723 = vmatpush1.bf16.msra.mxu0 0
      %724 = vmatprep.subr.bf16.mxu0 0
      %725 = vmatpush1.bf16.msra.mxu0 0
      %726 = vmatprep.subr.bf16.mxu0 0
      %727 = vmatpush1.bf16.msra.mxu0 0
      %728 = vmatprep.subr.bf16.mxu0 0
      %729 = vmatpush1.bf16.msra.mxu0 0
      %730 = vmatprep.subr.bf16.mxu0 0
      %731 = vmatpush1.bf16.msra.mxu0 0
      %732 = vmatprep.subr.bf16.mxu0 0
      %733 = vmatpush1.bf16.msra.mxu0 0
      %734 = vmatprep.subr.bf16.mxu0 0
      %735 = vmatpush1.bf16.msra.mxu0 0
      %736 = vmatprep.subr.bf16.mxu0 0
      %737 = vmatpush1.bf16.msra.mxu0 0
      %738 = vmatprep.subr.bf16.mxu0 0
      %739 = vmatpush1.bf16.msra.mxu0 0
      %740 = vmatprep.subr.bf16.mxu0 0
      %741 = vmatpush1.bf16.msra.mxu0 0
      %742 = vmatprep.subr.bf16.mxu0 0
      %743 = vmatpush1.bf16.msra.mxu0 0
      %744 = vmatprep.subr.bf16.mxu0 0
      %745 = vmatpush1.bf16.msra.mxu0 0
      %746 = vmatprep.mubr.bf16.mxu0 0
      %747 = vmatmul.mubr.bf16.gmra.mrb[0].mxu0 %v615
      %v748 = vpop.f32.mrb[0].mxu0
      %v749 = vadd.f32 %v451, %v748
      %v750 = vpop.f32.mrb[0].mxu0
      %v751 = vpop.f32.mrb[0].mxu0
      %v752 = vadd.f32 %v451, %v751
      %v753 = vpop.f32.mrb[0].mxu0
      %754 = vmatprep.mubr.bf16.mxu0 0
      %755 = vmatmul.mubr.bf16.gmra.mrb[0].mxu0 %v618
      %v756 = vpop.f32.mrb[0].mxu0
      %v757 = vadd.f32 %v451, %v756
      %v758 = vpop.f32.mrb[0].mxu0
      %v759 = vpop.f32.mrb[0].mxu0
      %v760 = vadd.f32 %v451, %v759
      %v761 = vpop.f32.mrb[0].mxu0
      %762 = vmatprep.mubr.bf16.mxu0 0
      %763 = vmatmul.mubr.bf16.gmra.mrb[0].mxu0 %v621
      %v764 = vpop.f32.mrb[0].mxu0
      %v765 = vadd.f32 %v451, %v764
      %v766 = vpop.f32.mrb[0].mxu0
      %v767 = vpop.f32.mrb[0].mxu0
      %v768 = vadd.f32 %v451, %v767
      %v769 = vpop.f32.mrb[0].mxu0
      %770 = vmatprep.mubr.bf16.mxu0 0
      %771 = vmatmul.mubr.bf16.gmra.mrb[0].mxu0 %v624
      %v772 = vpop.f32.mrb[0].mxu0
      %v773 = vadd.f32 %v451, %v772
      %v774 = vpop.f32.mrb[0].mxu0
      %v775 = vpop.f32.mrb[0].mxu0
      %v776 = vadd.f32 %v451, %v775
      %v777 = vpop.f32.mrb[0].mxu0
      %778 = vmatprep.mubr.bf16.mxu0 0
      %779 = vmatmul.mubr.bf16.gmra.mrb[0].mxu0 %v627
      %v780 = vpop.f32.mrb[0].mxu0
      %v781 = vadd.f32 %v451, %v780
      %v782 = vpop.f32.mrb[0].mxu0
      %v783 = vpop.f32.mrb[0].mxu0
      %v784 = vadd.f32 %v451, %v783
      %v785 = vpop.f32.mrb[0].mxu0
      %786 = vmatprep.mubr.bf16.mxu0 0
      %787 = vmatmul.mubr.bf16.gmra.mrb[0].mxu0 %v630
      %v788 = vpop.f32.mrb[0].mxu0
      %v789 = vadd.f32 %v451, %v788
      %v790 = vpop.f32.mrb[0].mxu0
      %v791 = vpop.f32.mrb[0].mxu0
      %v792 = vadd.f32 %v451, %v791
      %v793 = vpop.f32.mrb[0].mxu0
      %794 = vmatprep.mubr.bf16.mxu0 0
      %795 = vmatmul.mubr.bf16.gmra.mrb[0].mxu0 %v633
      %v796 = vpop.f32.mrb[0].mxu0
      %v797 = vadd.f32 %v451, %v796
      %v798 = vpop.f32.mrb[0].mxu0
      %v799 = vpop.f32.mrb[0].mxu0
      %v800 = vadd.f32 %v451, %v799
      %v801 = vpop.f32.mrb[0].mxu0
      %802 = vmatprep.mubr.bf16.mxu0 0
      %803 = vmatmul.mubr.bf16.gmra.mrb[0].mxu0 %v636
      %v804 = vpop.f32.mrb[0].mxu0
      %v805 = vadd.f32 %v451, %v804
      %v806 = vpop.f32.mrb[0].mxu0
      %v807 = vpop.f32.mrb[0].mxu0
      %v808 = vadd.f32 %v451, %v807
      %v809 = vpop.f32.mrb[0].mxu0
      %810 = vmatprep.mubr.bf16.mxu0 0
      %811 = vmatmul.mubr.bf16.gmra.mrb[0].mxu0 %v639
      %v812 = vpop.f32.mrb[0].mxu0
      %v813 = vadd.f32 %v451, %v812
      %v814 = vpop.f32.mrb[0].mxu0
      %v815 = vpop.f32.mrb[0].mxu0
      %v816 = vadd.f32 %v451, %v815
      %v817 = vpop.f32.mrb[0].mxu0
      %818 = vmatprep.mubr.bf16.mxu0 0
      %819 = vmatmul.mubr.bf16.gmra.mrb[0].mxu0 %v642
      %v820 = vpop.f32.mrb[0].mxu0
      %v821 = vadd.f32 %v451, %v820
      %v822 = vpop.f32.mrb[0].mxu0
      %v823 = vpop.f32.mrb[0].mxu0
      %v824 = vadd.f32 %v451, %v823
      %v825 = vpop.f32.mrb[0].mxu0
      %826 = vmatprep.mubr.bf16.mxu0 0
      %827 = vmatmul.mubr.bf16.gmra.mrb[0].mxu0 %v645
      %v828 = vpop.f32.mrb[0].mxu0
      %v829 = vadd.f32 %v451, %v828
      %v830 = vpop.f32.mrb[0].mxu0
      %v831 = vpop.f32.mrb[0].mxu0
      %v832 = vadd.f32 %v451, %v831
      %v833 = vpop.f32.mrb[0].mxu0
      %834 = vmatprep.mubr.bf16.mxu0 0
      %835 = vmatmul.mubr.bf16.gmra.mrb[0].mxu0 %v648
      %v836 = vpop.f32.mrb[0].mxu0
      %v837 = vadd.f32 %v451, %v836
      %v838 = vpop.f32.mrb[0].mxu0
      %v839 = vpop.f32.mrb[0].mxu0
      %v840 = vadd.f32 %v451, %v839
      %v841 = vpop.f32.mrb[0].mxu0
      %842 = vmatprep.mubr.bf16.mxu0 0
      %843 = vmatmul.mubr.bf16.gmra.mrb[0].mxu0 %v651
      %v844 = vpop.f32.mrb[0].mxu0
      %v845 = vadd.f32 %v451, %v844
      %v846 = vpop.f32.mrb[0].mxu0
      %v847 = vpop.f32.mrb[0].mxu0
      %v848 = vadd.f32 %v451, %v847
      %v849 = vpop.f32.mrb[0].mxu0
      %850 = vmatprep.mubr.bf16.mxu0 0
      %851 = vmatmul.mubr.bf16.gmra.mrb[0].mxu0 %v654
      %v852 = vpop.f32.mrb[0].mxu0
      %v853 = vadd.f32 %v451, %v852
      %v854 = vpop.f32.mrb[0].mxu0
      %v855 = vpop.f32.mrb[0].mxu0
      %v856 = vadd.f32 %v451, %v855
      %v857 = vpop.f32.mrb[0].mxu0
      %858 = vmatprep.mubr.bf16.mxu0 0
      %859 = vmatmul.mubr.bf16.gmra.mrb[0].mxu0 %v657
      %v860 = vpop.f32.mrb[0].mxu0
      %v861 = vadd.f32 %v451, %v860
      %v862 = vpop.f32.mrb[0].mxu0
      %v863 = vpop.f32.mrb[0].mxu0
      %v864 = vadd.f32 %v451, %v863
      %v865 = vpop.f32.mrb[0].mxu0
      %866 = vmatprep.mubr.bf16.mxu0 0
      %867 = vmatmul.mubr.bf16.gmra.mrb[0].mxu0 %v660
      %v868 = vpop.f32.mrb[0].mxu0
      %v869 = vadd.f32 %v451, %v868
      %v870 = vpop.f32.mrb[0].mxu0
      %v871 = vpop.f32.mrb[0].mxu0
      %v872 = vadd.f32 %v451, %v871
      %v873 = vpop.f32.mrb[0].mxu0
      %874 = vmatprep.mubr.bf16.mxu0 0
      %875 = vmatmul.mubr.bf16.gmra.mrb[0].mxu0 %v663
      %v876 = vpop.f32.mrb[0].mxu0
      %v877 = vadd.f32 %v451, %v876
      %v878 = vpop.f32.mrb[0].mxu0
      %v879 = vpop.f32.mrb[0].mxu0
      %v880 = vadd.f32 %v451, %v879
      %v881 = vpop.f32.mrb[0].mxu0
      %882 = vmatprep.mubr.bf16.mxu0 0
      %883 = vmatmul.mubr.bf16.gmra.mrb[0].mxu0 %v666
      %v884 = vpop.f32.mrb[0].mxu0
      %v885 = vadd.f32 %v451, %v884
      %v886 = vpop.f32.mrb[0].mxu0
      %v887 = vpop.f32.mrb[0].mxu0
      %v888 = vadd.f32 %v451, %v887
      %v889 = vpop.f32.mrb[0].mxu0
      %890 = vmatprep.mubr.bf16.mxu0 0
      %891 = vmatmul.mubr.bf16.gmra.mrb[0].mxu0 %v669
      %v892 = vpop.f32.mrb[0].mxu0
      %v893 = vadd.f32 %v451, %v892
      %v894 = vpop.f32.mrb[0].mxu0
      %v895 = vpop.f32.mrb[0].mxu0
      %v896 = vadd.f32 %v451, %v895
      %v897 = vpop.f32.mrb[0].mxu0
      %898 = vmatprep.mubr.bf16.mxu0 0
      %899 = vmatmul.mubr.bf16.gmra.mrb[0].mxu0 %v672
      %v900 = vpop.f32.mrb[0].mxu0
      %v901 = vadd.f32 %v451, %v900
      %v902 = vpop.f32.mrb[0].mxu0
      %v903 = vpop.f32.mrb[0].mxu0
      %v904 = vadd.f32 %v451, %v903
      %v905 = vpop.f32.mrb[0].mxu0
      %906 = vmatprep.mubr.bf16.mxu0 0
      %907 = vmatmul.mubr.bf16.gmra.mrb[0].mxu0 %v675
      %v908 = vpop.f32.mrb[0].mxu0
      %v909 = vadd.f32 %v451, %v908
      %v910 = vpop.f32.mrb[0].mxu0
      %v911 = vpop.f32.mrb[0].mxu0
      %v912 = vadd.f32 %v451, %v911
      %v913 = vpop.f32.mrb[0].mxu0
      %914 = vmatprep.mubr.bf16.mxu0 0
      %915 = vmatmul.mubr.bf16.gmra.mrb[0].mxu0 %v678
      %v916 = vpop.f32.mrb[0].mxu0
      %v917 = vadd.f32 %v451, %v916
      %v918 = vpop.f32.mrb[0].mxu0
      %v919 = vpop.f32.mrb[0].mxu0
      %v920 = vadd.f32 %v451, %v919
      %v921 = vpop.f32.mrb[0].mxu0
      %922 = vmatprep.mubr.bf16.mxu0 0
      %923 = vmatmul.mubr.bf16.gmra.mrb[0].mxu0 %v681
      %v924 = vpop.f32.mrb[0].mxu0
      %v925 = vadd.f32 %v451, %v924
      %v926 = vpop.f32.mrb[0].mxu0
      %v927 = vpop.f32.mrb[0].mxu0
      %v928 = vadd.f32 %v451, %v927
      %v929 = vpop.f32.mrb[0].mxu0
      %930 = vmatprep.mubr.bf16.mxu0 0
      %931 = vmatmul.mubr.bf16.gmra.mrb[0].mxu0 %v684
      %v932 = vpop.f32.mrb[0].mxu0
      %v933 = vadd.f32 %v451, %v932
      %v934 = vpop.f32.mrb[0].mxu0
      %v935 = vpop.f32.mrb[0].mxu0
      %v936 = vadd.f32 %v451, %v935
      %v937 = vpop.f32.mrb[0].mxu0
      %938 = vmatprep.mubr.bf16.mxu0 0
      %939 = vmatmul.mubr.bf16.gmra.mrb[0].mxu0 %v687
      %v940 = vpop.f32.mrb[0].mxu0
      %v941 = vadd.f32 %v451, %v940
      %v942 = vpop.f32.mrb[0].mxu0
      %v943 = vpop.f32.mrb[0].mxu0
      %v944 = vadd.f32 %v451, %v943
      %v945 = vpop.f32.mrb[0].mxu0
      %946 = vmatprep.mubr.bf16.mxu0 0
      %947 = vmatmul.mubr.bf16.gmra.mrb[0].mxu0 %v690
      %v948 = vpop.f32.mrb[0].mxu0
      %v949 = vadd.f32 %v451, %v948
      %v950 = vpop.f32.mrb[0].mxu0
      %v951 = vpop.f32.mrb[0].mxu0
      %v952 = vadd.f32 %v451, %v951
      %v953 = vpop.f32.mrb[0].mxu0
      %954 = vmatprep.mubr.bf16.mxu0 0
      %955 = vmatmul.mubr.bf16.gmra.mrb[0].mxu0 %v693
      %v956 = vpop.f32.mrb[0].mxu0
      %v957 = vadd.f32 %v451, %v956
      %v958 = vpop.f32.mrb[0].mxu0
      %v959 = vpop.f32.mrb[0].mxu0
      %v960 = vadd.f32 %v451, %v959
      %v961 = vpop.f32.mrb[0].mxu0
      %962 = vmatprep.mubr.bf16.mxu0 0
      %963 = vmatmul.mubr.bf16.gmra.mrb[0].mxu0 %v696
      %v964 = vpop.f32.mrb[0].mxu0
      %v965 = vadd.f32 %v451, %v964
      %v966 = vpop.f32.mrb[0].mxu0
      %v967 = vpop.f32.mrb[0].mxu0
      %v968 = vadd.f32 %v451, %v967
      %v969 = vpop.f32.mrb[0].mxu0
      %970 = vmatprep.mubr.bf16.mxu0 0
      %971 = vmatmul.mubr.bf16.gmra.mrb[0].mxu0 %v699
      %v972 = vpop.f32.mrb[0].mxu0
      %v973 = vadd.f32 %v451, %v972
      %v974 = vpop.f32.mrb[0].mxu0
      %v975 = vpop.f32.mrb[0].mxu0
      %v976 = vadd.f32 %v451, %v975
      %v977 = vpop.f32.mrb[0].mxu0
      %978 = vmatprep.mubr.bf16.mxu0 0
      %979 = vmatmul.mubr.bf16.gmra.mrb[0].mxu0 %v702
      %v980 = vpop.f32.mrb[0].mxu0
      %v981 = vadd.f32 %v451, %v980
      %v982 = vpop.f32.mrb[0].mxu0
      %v983 = vpop.f32.mrb[0].mxu0
      %v984 = vadd.f32 %v451, %v983
      %v985 = vpop.f32.mrb[0].mxu0
      %986 = vmatprep.mubr.bf16.mxu0 0
      %987 = vmatmul.mubr.bf16.gmra.mrb[0].mxu0 %v705
      %v988 = vpop.f32.mrb[0].mxu0
      %v989 = vadd.f32 %v451, %v988
      %v990 = vpop.f32.mrb[0].mxu0
      %v991 = vpop.f32.mrb[0].mxu0
      %v992 = vadd.f32 %v451, %v991
      %v993 = vpop.f32.mrb[0].mxu0
      %994 = vmatprep.mubr.bf16.mxu0 0
      %995 = vmatmul.mubr.bf16.gmra.mrb[0].mxu0 %v708
      %v996 = vpop.f32.mrb[0].mxu0
      %v997 = vadd.f32 %v451, %v996
      %v998 = vpop.f32.mrb[0].mxu0
      %v999 = vpop.f32.mrb[0].mxu0
      %v1000 = vadd.f32 %v451, %v999
      %v1001 = vpop.f32.mrb[0].mxu0
      %1002 = vdwg.mxu0
      %v1003 = vld [vmem:[%s366] sm:$0xff]
      %v1004 = vld [vmem:[%s366 + $0x8] sm:$0xff]
      %v1005 = vld [vmem:[%s366 + $0x10] sm:$0xff]
      %v1006 = vld [vmem:[%s366 + $0x18] sm:$0xff]
      %v1007 = vld [vmem:[%s366 + $0x20] sm:$0xff]
      %v1008 = vld [vmem:[%s366 + $0x28] sm:$0xff]
      %v1009 = vld [vmem:[%s366 + $0x30] sm:$0xff]
      %v1010 = vld [vmem:[%s366 + $0x38] sm:$0xff]
      %v1011 = vld [vmem:[%s366 + $0x40] sm:$0xff]
      %v1012 = vld [vmem:[%s366 + $0x48] sm:$0xff]
      %v1013 = vld [vmem:[%s366 + $0x50] sm:$0xff]
      %v1014 = vld [vmem:[%s366 + $0x58] sm:$0xff]
      %v1015 = vld [vmem:[%s366 + $0x60] sm:$0xff]
      %v1016 = vld [vmem:[%s366 + $0x68] sm:$0xff]
      %v1017 = vld [vmem:[%s366 + $0x70] sm:$0xff]
      %v1018 = vld [vmem:[%s366 + $0x78] sm:$0xff]
      %v1019 = vld [vmem:[%s366 + $0x80] sm:$0xff]
      %v1020 = vld [vmem:[%s366 + $0x88] sm:$0xff]
      %v1021 = vld [vmem:[%s366 + $0x90] sm:$0xff]
      %v1022 = vld [vmem:[%s366 + $0x98] sm:$0xff]
      %v1023 = vld [vmem:[%s366 + $0xa0] sm:$0xff]
      %v1024 = vld [vmem:[%s366 + $0xa8] sm:$0xff]
      %v1025 = vld [vmem:[%s366 + $0xb0] sm:$0xff]
      %v1026 = vld [vmem:[%s366 + $0xb8] sm:$0xff]
      %v1027 = vld [vmem:[%s366 + $0xc0] sm:$0xff]
      %v1028 = vld [vmem:[%s366 + $0xc8] sm:$0xff]
      %v1029 = vld [vmem:[%s366 + $0xd0] sm:$0xff]
      %v1030 = vld [vmem:[%s366 + $0xd8] sm:$0xff]
      %v1031 = vld [vmem:[%s366 + $0xe0] sm:$0xff]
      %v1032 = vld [vmem:[%s366 + $0xe8] sm:$0xff]
      %v1033 = vld [vmem:[%s366 + $0xf0] sm:$0xff]
      %v1034 = vld [vmem:[%s366 + $0xf8] sm:$0xff]
      %v1035 = vld [vmem:[%s366 + $0x100] sm:$0xff]
      %v1036 = vld [vmem:[%s366 + $0x108] sm:$0xff]
      %v1037 = vld [vmem:[%s366 + $0x110] sm:$0xff]
      %v1038 = vld [vmem:[%s366 + $0x118] sm:$0xff]
      %v1039 = vld [vmem:[%s366 + $0x120] sm:$0xff]
      %v1040 = vld [vmem:[%s366 + $0x128] sm:$0xff]
      %v1041 = vld [vmem:[%s366 + $0x130] sm:$0xff]
      %v1042 = vld [vmem:[%s366 + $0x138] sm:$0xff]
      %v1043 = vld [vmem:[%s366 + $0x140] sm:$0xff]
      %v1044 = vld [vmem:[%s366 + $0x148] sm:$0xff]
      %v1045 = vld [vmem:[%s366 + $0x150] sm:$0xff]
      %v1046 = vld [vmem:[%s366 + $0x158] sm:$0xff]
      %v1047 = vld [vmem:[%s366 + $0x160] sm:$0xff]
      %v1048 = vld [vmem:[%s366 + $0x168] sm:$0xff]
      %v1049 = vld [vmem:[%s366 + $0x170] sm:$0xff]
      %v1050 = vld [vmem:[%s366 + $0x178] sm:$0xff]
      %v1051 = vld [vmem:[%s366 + $0x180] sm:$0xff]
      %v1052 = vld [vmem:[%s366 + $0x188] sm:$0xff]
      %v1053 = vld [vmem:[%s366 + $0x190] sm:$0xff]
      %v1054 = vld [vmem:[%s366 + $0x198] sm:$0xff]
      %v1055 = vld [vmem:[%s366 + $0x1a0] sm:$0xff]
      %v1056 = vld [vmem:[%s366 + $0x1a8] sm:$0xff]
      %v1057 = vld [vmem:[%s366 + $0x1b0] sm:$0xff]
      %v1058 = vld [vmem:[%s366 + $0x1b8] sm:$0xff]
      %v1059 = vld [vmem:[%s366 + $0x1c0] sm:$0xff]
      %v1060 = vld [vmem:[%s366 + $0x1c8] sm:$0xff]
      %v1061 = vld [vmem:[%s366 + $0x1d0] sm:$0xff]
      %v1062 = vld [vmem:[%s366 + $0x1d8] sm:$0xff]
      %v1063 = vld [vmem:[%s366 + $0x1e0] sm:$0xff]
      %v1064 = vld [vmem:[%s366 + $0x1e8] sm:$0xff]
      %v1065 = vld [vmem:[%s366 + $0x1f0] sm:$0xff]
      %v1066 = vld [vmem:[%s366 + $0x1f8] sm:$0xff]
      %v1067 = vadd.f32 %v1003, %v749
      %v1068 = vadd.f32 %v1004, %v752
      %v1069 = vadd.f32 %v1005, %v757
      %v1070 = vadd.f32 %v1006, %v760
      %v1071 = vadd.f32 %v1007, %v765
      %v1072 = vadd.f32 %v1008, %v768
      %v1073 = vadd.f32 %v1009, %v773
      %v1074 = vadd.f32 %v1010, %v776
      %v1075 = vadd.f32 %v1011, %v781
      %v1076 = vadd.f32 %v1012, %v784
      %v1077 = vadd.f32 %v1013, %v789
      %v1078 = vadd.f32 %v1014, %v792
      %v1079 = vadd.f32 %v1015, %v797
      %v1080 = vadd.f32 %v1016, %v800
      %v1081 = vadd.f32 %v1017, %v805
      %v1082 = vadd.f32 %v1018, %v808
      %v1083 = vadd.f32 %v1019, %v813
      %v1084 = vadd.f32 %v1020, %v816
      %v1085 = vadd.f32 %v1021, %v821
      %v1086 = vadd.f32 %v1022, %v824
      %v1087 = vadd.f32 %v1023, %v829
      %v1088 = vadd.f32 %v1024, %v832
      %v1089 = vadd.f32 %v1025, %v837
      %v1090 = vadd.f32 %v1026, %v840
      %v1091 = vadd.f32 %v1027, %v845
      %v1092 = vadd.f32 %v1028, %v848
      %v1093 = vadd.f32 %v1029, %v853
      %v1094 = vadd.f32 %v1030, %v856
      %v1095 = vadd.f32 %v1031, %v861
      %v1096 = vadd.f32 %v1032, %v864
      %v1097 = vadd.f32 %v1033, %v869
      %v1098 = vadd.f32 %v1034, %v872
      %v1099 = vadd.f32 %v1035, %v877
      %v1100 = vadd.f32 %v1036, %v880
      %v1101 = vadd.f32 %v1037, %v885
      %v1102 = vadd.f32 %v1038, %v888
      %v1103 = vadd.f32 %v1039, %v893
      %v1104 = vadd.f32 %v1040, %v896
      %v1105 = vadd.f32 %v1041, %v901
      %v1106 = vadd.f32 %v1042, %v904
      %v1107 = vadd.f32 %v1043, %v909
      %v1108 = vadd.f32 %v1044, %v912
      %v1109 = vadd.f32 %v1045, %v917
      %v1110 = vadd.f32 %v1046, %v920
      %v1111 = vadd.f32 %v1047, %v925
      %v1112 = vadd.f32 %v1048, %v928
      %v1113 = vadd.f32 %v1049, %v933
      %v1114 = vadd.f32 %v1050, %v936
      %v1115 = vadd.f32 %v1051, %v941
      %v1116 = vadd.f32 %v1052, %v944
      %v1117 = vadd.f32 %v1053, %v949
      %v1118 = vadd.f32 %v1054, %v952
      %v1119 = vadd.f32 %v1055, %v957
      %v1120 = vadd.f32 %v1056, %v960
      %v1121 = vadd.f32 %v1057, %v965
      %v1122 = vadd.f32 %v1058, %v968
      %v1123 = vadd.f32 %v1059, %v973
      %v1124 = vadd.f32 %v1060, %v976
      %v1125 = vadd.f32 %v1061, %v981
      %v1126 = vadd.f32 %v1062, %v984
      %v1127 = vadd.f32 %v1063, %v989
      %v1128 = vadd.f32 %v1064, %v992
      %v1129 = vadd.f32 %v1065, %v997
      %v1130 = vadd.f32 %v1066, %v1000
      %v1131 = vpack.c.bf16 %v1068, %v1067
      %v1132 = vpack.c.bf16 %v1070, %v1069
      %v1133 = vpack.c.bf16 %v1072, %v1071
      %v1134 = vpack.c.bf16 %v1074, %v1073
      %v1135 = vpack.c.bf16 %v1076, %v1075
      %v1136 = vpack.c.bf16 %v1078, %v1077
      %v1137 = vpack.c.bf16 %v1080, %v1079
      %v1138 = vpack.c.bf16 %v1082, %v1081
      %v1139 = vpack.c.bf16 %v1084, %v1083
      %v1140 = vpack.c.bf16 %v1086, %v1085
      %v1141 = vpack.c.bf16 %v1088, %v1087
      %v1142 = vpack.c.bf16 %v1090, %v1089
      %v1143 = vpack.c.bf16 %v1092, %v1091
      %v1144 = vpack.c.bf16 %v1094, %v1093
      %v1145 = vpack.c.bf16 %v1096, %v1095
      %v1146 = vpack.c.bf16 %v1098, %v1097
      %v1147 = vpack.c.bf16 %v1100, %v1099
      %v1148 = vpack.c.bf16 %v1102, %v1101
      %v1149 = vpack.c.bf16 %v1104, %v1103
      %v1150 = vpack.c.bf16 %v1106, %v1105
      %v1151 = vpack.c.bf16 %v1108, %v1107
      %v1152 = vpack.c.bf16 %v1110, %v1109
      %v1153 = vpack.c.bf16 %v1112, %v1111
      %v1154 = vpack.c.bf16 %v1114, %v1113
      %v1155 = vpack.c.bf16 %v1116, %v1115
      %v1156 = vpack.c.bf16 %v1118, %v1117
      %v1157 = vpack.c.bf16 %v1120, %v1119
      %v1158 = vpack.c.bf16 %v1122, %v1121
      %v1159 = vpack.c.bf16 %v1124, %v1123
      %v1160 = vpack.c.bf16 %v1126, %v1125
      %v1161 = vpack.c.bf16 %v1128, %v1127
      %v1162 = vpack.c.bf16 %v1130, %v1129
      %v1163 = vld [vmem:[%s5] sm:$0xf]
      %v1164 = vld [vmem:[%s6] sm:$0x1]
      %v1166 = vlaneseq
      %v1167 = vshrl.u32 %v1166, 7
      %v1168 = vsub.s32 0, %v1167
      %v1169 = vrot.slane %v1164, %v1168
      %v1172 = vsel %vm613, %v1131, 0
      %v1175 = vsel %vm613, %v1132, 0
      %v1178 = vsel %vm613, %v1133, 0
      %v1181 = vsel %vm613, %v1134, 0
      %v1184 = vsel %vm613, %v1135, 0
      %v1187 = vsel %vm613, %v1136, 0
      %v1190 = vsel %vm613, %v1137, 0
      %v1193 = vsel %vm613, %v1138, 0
      %v1196 = vsel %vm613, %v1139, 0
      %v1199 = vsel %vm613, %v1140, 0
      %v1202 = vsel %vm613, %v1141, 0
      %v1205 = vsel %vm613, %v1142, 0
      %v1208 = vsel %vm613, %v1143, 0
      %v1211 = vsel %vm613, %v1144, 0
      %v1214 = vsel %vm613, %v1145, 0
      %v1217 = vsel %vm613, %v1146, 0
      %v1220 = vsel %vm613, %v1147, 0
      %v1223 = vsel %vm613, %v1148, 0
      %v1226 = vsel %vm613, %v1149, 0
      %v1229 = vsel %vm613, %v1150, 0
      %v1232 = vsel %vm613, %v1151, 0
      %v1235 = vsel %vm613, %v1152, 0
      %v1238 = vsel %vm613, %v1153, 0
      %v1241 = vsel %vm613, %v1154, 0
      %v1244 = vsel %vm613, %v1155, 0
      %v1247 = vsel %vm613, %v1156, 0
      %v1250 = vsel %vm613, %v1157, 0
      %v1253 = vsel %vm613, %v1158, 0
      %v1256 = vsel %vm613, %v1159, 0
      %v1259 = vsel %vm613, %v1160, 0
      %v1262 = vsel %vm613, %v1161, 0
      %v1265 = vsel %vm613, %v1162, 0
      %v1268 = vsel %vm710, %v1163, 0
      %1270 = vmatprep.subr.bf16.mxu0 0
      %1271 = vmatpush1.bf16.msra.mxu0 %v1268
      %1272 = vmatprep.subr.bf16.mxu0 0
      %1273 = vmatpush1.bf16.msra.mxu0 0
      %1274 = vmatprep.subr.bf16.mxu0 0
      %1275 = vmatpush1.bf16.msra.mxu0 0
      %1276 = vmatprep.subr.bf16.mxu0 0
      %1277 = vmatpush1.bf16.msra.mxu0 0
      %1278 = vmatprep.subr.bf16.mxu0 0
      %1279 = vmatpush1.bf16.msra.mxu0 0
      %1280 = vmatprep.subr.bf16.mxu0 0
      %1281 = vmatpush1.bf16.msra.mxu0 0
      %1282 = vmatprep.subr.bf16.mxu0 0
      %1283 = vmatpush1.bf16.msra.mxu0 0
      %1284 = vmatprep.subr.bf16.mxu0 0
      %1285 = vmatpush1.bf16.msra.mxu0 0
      %1286 = vmatprep.subr.bf16.mxu0 0
      %1287 = vmatpush1.bf16.msra.mxu0 0
      %1288 = vmatprep.subr.bf16.mxu0 0
      %1289 = vmatpush1.bf16.msra.mxu0 0
      %1290 = vmatprep.subr.bf16.mxu0 0
      %1291 = vmatpush1.bf16.msra.mxu0 0
      %1292 = vmatprep.subr.bf16.mxu0 0
      %1293 = vmatpush1.bf16.msra.mxu0 0
      %1294 = vmatprep.subr.bf16.mxu0 0
      %1295 = vmatpush1.bf16.msra.mxu0 0
      %1296 = vmatprep.subr.bf16.mxu0 0
      %1297 = vmatpush1.bf16.msra.mxu0 0
      %1298 = vmatprep.subr.bf16.mxu0 0
      %1299 = vmatpush1.bf16.msra.mxu0 0
      %1300 = vmatprep.subr.bf16.mxu0 0
      %1301 = vmatpush1.bf16.msra.mxu0 0
      %1302 = vmatprep.mubr.bf16.mxu0 0
      %1303 = vmatmul.mubr.bf16.gmra.mrb[0].mxu0 %v1172
      %v1304 = vpop.f32.mrb[0].mxu0
      %v1305 = vadd.f32 %v1169, %v1304
      %v1306 = vpop.f32.mrb[0].mxu0
      %v1307 = vpop.f32.mrb[0].mxu0
      %v1308 = vadd.f32 %v1169, %v1307
      %v1309 = vpop.f32.mrb[0].mxu0
      %1310 = vmatprep.mubr.bf16.mxu0 0
      %1311 = vmatmul.mubr.bf16.gmra.mrb[0].mxu0 %v1175
      %v1312 = vpop.f32.mrb[0].mxu0
      %v1313 = vadd.f32 %v1169, %v1312
      %v1314 = vpop.f32.mrb[0].mxu0
      %v1315 = vpop.f32.mrb[0].mxu0
      %v1316 = vadd.f32 %v1169, %v1315
      %v1317 = vpop.f32.mrb[0].mxu0
      %1318 = vmatprep.mubr.bf16.mxu0 0
      %1319 = vmatmul.mubr.bf16.gmra.mrb[0].mxu0 %v1178
      %v1320 = vpop.f32.mrb[0].mxu0
      %v1321 = vadd.f32 %v1169, %v1320
      %v1322 = vpop.f32.mrb[0].mxu0
      %v1323 = vpop.f32.mrb[0].mxu0
      %v1324 = vadd.f32 %v1169, %v1323
      %v1325 = vpop.f32.mrb[0].mxu0
      %1326 = vmatprep.mubr.bf16.mxu0 0
      %1327 = vmatmul.mubr.bf16.gmra.mrb[0].mxu0 %v1181
      %v1328 = vpop.f32.mrb[0].mxu0
      %v1329 = vadd.f32 %v1169, %v1328
      %v1330 = vpop.f32.mrb[0].mxu0
      %v1331 = vpop.f32.mrb[0].mxu0
      %v1332 = vadd.f32 %v1169, %v1331
      %v1333 = vpop.f32.mrb[0].mxu0
      %1334 = vmatprep.mubr.bf16.mxu0 0
      %1335 = vmatmul.mubr.bf16.gmra.mrb[0].mxu0 %v1184
      %v1336 = vpop.f32.mrb[0].mxu0
      %v1337 = vadd.f32 %v1169, %v1336
      %v1338 = vpop.f32.mrb[0].mxu0
      %v1339 = vpop.f32.mrb[0].mxu0
      %v1340 = vadd.f32 %v1169, %v1339
      %v1341 = vpop.f32.mrb[0].mxu0
      %1342 = vmatprep.mubr.bf16.mxu0 0
      %1343 = vmatmul.mubr.bf16.gmra.mrb[0].mxu0 %v1187
      %v1344 = vpop.f32.mrb[0].mxu0
      %v1345 = vadd.f32 %v1169, %v1344
      %v1346 = vpop.f32.mrb[0].mxu0
      %v1347 = vpop.f32.mrb[0].mxu0
      %v1348 = vadd.f32 %v1169, %v1347
      %v1349 = vpop.f32.mrb[0].mxu0
      %1350 = vmatprep.mubr.bf16.mxu0 0
      %1351 = vmatmul.mubr.bf16.gmra.mrb[0].mxu0 %v1190
      %v1352 = vpop.f32.mrb[0].mxu0
      %v1353 = vadd.f32 %v1169, %v1352
      %v1354 = vpop.f32.mrb[0].mxu0
      %v1355 = vpop.f32.mrb[0].mxu0
      %v1356 = vadd.f32 %v1169, %v1355
      %v1357 = vpop.f32.mrb[0].mxu0
      %1358 = vmatprep.mubr.bf16.mxu0 0
      %1359 = vmatmul.mubr.bf16.gmra.mrb[0].mxu0 %v1193
      %v1360 = vpop.f32.mrb[0].mxu0
      %v1361 = vadd.f32 %v1169, %v1360
      %v1362 = vpop.f32.mrb[0].mxu0
      %v1363 = vpop.f32.mrb[0].mxu0
      %v1364 = vadd.f32 %v1169, %v1363
      %v1365 = vpop.f32.mrb[0].mxu0
      %1366 = vmatprep.mubr.bf16.mxu0 0
      %1367 = vmatmul.mubr.bf16.gmra.mrb[0].mxu0 %v1196
      %v1368 = vpop.f32.mrb[0].mxu0
      %v1369 = vadd.f32 %v1169, %v1368
      %v1370 = vpop.f32.mrb[0].mxu0
      %v1371 = vpop.f32.mrb[0].mxu0
      %v1372 = vadd.f32 %v1169, %v1371
      %v1373 = vpop.f32.mrb[0].mxu0
      %1374 = vmatprep.mubr.bf16.mxu0 0
      %1375 = vmatmul.mubr.bf16.gmra.mrb[0].mxu0 %v1199
      %v1376 = vpop.f32.mrb[0].mxu0
      %v1377 = vadd.f32 %v1169, %v1376
      %v1378 = vpop.f32.mrb[0].mxu0
      %v1379 = vpop.f32.mrb[0].mxu0
      %v1380 = vadd.f32 %v1169, %v1379
      %v1381 = vpop.f32.mrb[0].mxu0
      %1382 = vmatprep.mubr.bf16.mxu0 0
      %1383 = vmatmul.mubr.bf16.gmra.mrb[0].mxu0 %v1202
      %v1384 = vpop.f32.mrb[0].mxu0
      %v1385 = vadd.f32 %v1169, %v1384
      %v1386 = vpop.f32.mrb[0].mxu0
      %v1387 = vpop.f32.mrb[0].mxu0
      %v1388 = vadd.f32 %v1169, %v1387
      %v1389 = vpop.f32.mrb[0].mxu0
      %1390 = vmatprep.mubr.bf16.mxu0 0
      %1391 = vmatmul.mubr.bf16.gmra.mrb[0].mxu0 %v1205
      %v1392 = vpop.f32.mrb[0].mxu0
      %v1393 = vadd.f32 %v1169, %v1392
      %v1394 = vpop.f32.mrb[0].mxu0
      %v1395 = vpop.f32.mrb[0].mxu0
      %v1396 = vadd.f32 %v1169, %v1395
      %v1397 = vpop.f32.mrb[0].mxu0
      %1398 = vmatprep.mubr.bf16.mxu0 0
      %1399 = vmatmul.mubr.bf16.gmra.mrb[0].mxu0 %v1208
      %v1400 = vpop.f32.mrb[0].mxu0
      %v1401 = vadd.f32 %v1169, %v1400
      %v1402 = vpop.f32.mrb[0].mxu0
      %v1403 = vpop.f32.mrb[0].mxu0
      %v1404 = vadd.f32 %v1169, %v1403
      %v1405 = vpop.f32.mrb[0].mxu0
      %1406 = vmatprep.mubr.bf16.mxu0 0
      %1407 = vmatmul.mubr.bf16.gmra.mrb[0].mxu0 %v1211
      %v1408 = vpop.f32.mrb[0].mxu0
      %v1409 = vadd.f32 %v1169, %v1408
      %v1410 = vpop.f32.mrb[0].mxu0
      %v1411 = vpop.f32.mrb[0].mxu0
      %v1412 = vadd.f32 %v1169, %v1411
      %v1413 = vpop.f32.mrb[0].mxu0
      %1414 = vmatprep.mubr.bf16.mxu0 0
      %1415 = vmatmul.mubr.bf16.gmra.mrb[0].mxu0 %v1214
      %v1416 = vpop.f32.mrb[0].mxu0
      %v1417 = vadd.f32 %v1169, %v1416
      %v1418 = vpop.f32.mrb[0].mxu0
      %v1419 = vpop.f32.mrb[0].mxu0
      %v1420 = vadd.f32 %v1169, %v1419
      %v1421 = vpop.f32.mrb[0].mxu0
      %1422 = vmatprep.mubr.bf16.mxu0 0
      %1423 = vmatmul.mubr.bf16.gmra.mrb[0].mxu0 %v1217
      %v1424 = vpop.f32.mrb[0].mxu0
      %v1425 = vadd.f32 %v1169, %v1424
      %v1426 = vpop.f32.mrb[0].mxu0
      %v1427 = vpop.f32.mrb[0].mxu0
      %v1428 = vadd.f32 %v1169, %v1427
      %v1429 = vpop.f32.mrb[0].mxu0
      %1430 = vmatprep.mubr.bf16.mxu0 0
      %1431 = vmatmul.mubr.bf16.gmra.mrb[0].mxu0 %v1220
      %v1432 = vpop.f32.mrb[0].mxu0
      %v1433 = vadd.f32 %v1169, %v1432
      %v1434 = vpop.f32.mrb[0].mxu0
      %v1435 = vpop.f32.mrb[0].mxu0
      %v1436 = vadd.f32 %v1169, %v1435
      %v1437 = vpop.f32.mrb[0].mxu0
      %1438 = vmatprep.mubr.bf16.mxu0 0
      %1439 = vmatmul.mubr.bf16.gmra.mrb[0].mxu0 %v1223
      %v1440 = vpop.f32.mrb[0].mxu0
      %v1441 = vadd.f32 %v1169, %v1440
      %v1442 = vpop.f32.mrb[0].mxu0
      %v1443 = vpop.f32.mrb[0].mxu0
      %v1444 = vadd.f32 %v1169, %v1443
      %v1445 = vpop.f32.mrb[0].mxu0
      %1446 = vmatprep.mubr.bf16.mxu0 0
      %1447 = vmatmul.mubr.bf16.gmra.mrb[0].mxu0 %v1226
      %v1448 = vpop.f32.mrb[0].mxu0
      %v1449 = vadd.f32 %v1169, %v1448
      %v1450 = vpop.f32.mrb[0].mxu0
      %v1451 = vpop.f32.mrb[0].mxu0
      %v1452 = vadd.f32 %v1169, %v1451
      %v1453 = vpop.f32.mrb[0].mxu0
      %1454 = vmatprep.mubr.bf16.mxu0 0
      %1455 = vmatmul.mubr.bf16.gmra.mrb[0].mxu0 %v1229
      %v1456 = vpop.f32.mrb[0].mxu0
      %v1457 = vadd.f32 %v1169, %v1456
      %v1458 = vpop.f32.mrb[0].mxu0
      %v1459 = vpop.f32.mrb[0].mxu0
      %v1460 = vadd.f32 %v1169, %v1459
      %v1461 = vpop.f32.mrb[0].mxu0
      %1462 = vmatprep.mubr.bf16.mxu0 0
      %1463 = vmatmul.mubr.bf16.gmra.mrb[0].mxu0 %v1232
      %v1464 = vpop.f32.mrb[0].mxu0
      %v1465 = vadd.f32 %v1169, %v1464
      %v1466 = vpop.f32.mrb[0].mxu0
      %v1467 = vpop.f32.mrb[0].mxu0
      %v1468 = vadd.f32 %v1169, %v1467
      %v1469 = vpop.f32.mrb[0].mxu0
      %1470 = vmatprep.mubr.bf16.mxu0 0
      %1471 = vmatmul.mubr.bf16.gmra.mrb[0].mxu0 %v1235
      %v1472 = vpop.f32.mrb[0].mxu0
      %v1473 = vadd.f32 %v1169, %v1472
      %v1474 = vpop.f32.mrb[0].mxu0
      %v1475 = vpop.f32.mrb[0].mxu0
      %v1476 = vadd.f32 %v1169, %v1475
      %v1477 = vpop.f32.mrb[0].mxu0
      %1478 = vmatprep.mubr.bf16.mxu0 0
      %1479 = vmatmul.mubr.bf16.gmra.mrb[0].mxu0 %v1238
      %v1480 = vpop.f32.mrb[0].mxu0
      %v1481 = vadd.f32 %v1169, %v1480
      %v1482 = vpop.f32.mrb[0].mxu0
      %v1483 = vpop.f32.mrb[0].mxu0
      %v1484 = vadd.f32 %v1169, %v1483
      %v1485 = vpop.f32.mrb[0].mxu0
      %1486 = vmatprep.mubr.bf16.mxu0 0
      %1487 = vmatmul.mubr.bf16.gmra.mrb[0].mxu0 %v1241
      %v1488 = vpop.f32.mrb[0].mxu0
      %v1489 = vadd.f32 %v1169, %v1488
      %v1490 = vpop.f32.mrb[0].mxu0
      %v1491 = vpop.f32.mrb[0].mxu0
      %v1492 = vadd.f32 %v1169, %v1491
      %v1493 = vpop.f32.mrb[0].mxu0
      %1494 = vmatprep.mubr.bf16.mxu0 0
      %1495 = vmatmul.mubr.bf16.gmra.mrb[0].mxu0 %v1244
      %v1496 = vpop.f32.mrb[0].mxu0
      %v1497 = vadd.f32 %v1169, %v1496
      %v1498 = vpop.f32.mrb[0].mxu0
      %v1499 = vpop.f32.mrb[0].mxu0
      %v1500 = vadd.f32 %v1169, %v1499
      %v1501 = vpop.f32.mrb[0].mxu0
      %1502 = vmatprep.mubr.bf16.mxu0 0
      %1503 = vmatmul.mubr.bf16.gmra.mrb[0].mxu0 %v1247
      %v1504 = vpop.f32.mrb[0].mxu0
      %v1505 = vadd.f32 %v1169, %v1504
      %v1506 = vpop.f32.mrb[0].mxu0
      %v1507 = vpop.f32.mrb[0].mxu0
      %v1508 = vadd.f32 %v1169, %v1507
      %v1509 = vpop.f32.mrb[0].mxu0
      %1510 = vmatprep.mubr.bf16.mxu0 0
      %1511 = vmatmul.mubr.bf16.gmra.mrb[0].mxu0 %v1250
      %v1512 = vpop.f32.mrb[0].mxu0
      %v1513 = vadd.f32 %v1169, %v1512
      %v1514 = vpop.f32.mrb[0].mxu0
      %v1515 = vpop.f32.mrb[0].mxu0
      %v1516 = vadd.f32 %v1169, %v1515
      %v1517 = vpop.f32.mrb[0].mxu0
      %1518 = vmatprep.mubr.bf16.mxu0 0
      %1519 = vmatmul.mubr.bf16.gmra.mrb[0].mxu0 %v1253
      %v1520 = vpop.f32.mrb[0].mxu0
      %v1521 = vadd.f32 %v1169, %v1520
      %v1522 = vpop.f32.mrb[0].mxu0
      %v1523 = vpop.f32.mrb[0].mxu0
      %v1524 = vadd.f32 %v1169, %v1523
      %v1525 = vpop.f32.mrb[0].mxu0
      %1526 = vmatprep.mubr.bf16.mxu0 0
      %1527 = vmatmul.mubr.bf16.gmra.mrb[0].mxu0 %v1256
      %v1528 = vpop.f32.mrb[0].mxu0
      %v1529 = vadd.f32 %v1169, %v1528
      %v1530 = vpop.f32.mrb[0].mxu0
      %v1531 = vpop.f32.mrb[0].mxu0
      %v1532 = vadd.f32 %v1169, %v1531
      %v1533 = vpop.f32.mrb[0].mxu0
      %1534 = vmatprep.mubr.bf16.mxu0 0
      %1535 = vmatmul.mubr.bf16.gmra.mrb[0].mxu0 %v1259
      %v1536 = vpop.f32.mrb[0].mxu0
      %v1537 = vadd.f32 %v1169, %v1536
      %v1538 = vpop.f32.mrb[0].mxu0
      %v1539 = vpop.f32.mrb[0].mxu0
      %v1540 = vadd.f32 %v1169, %v1539
      %v1541 = vpop.f32.mrb[0].mxu0
      %1542 = vmatprep.mubr.bf16.mxu0 0
      %1543 = vmatmul.mubr.bf16.gmra.mrb[0].mxu0 %v1262
      %v1544 = vpop.f32.mrb[0].mxu0
      %v1545 = vadd.f32 %v1169, %v1544
      %v1546 = vpop.f32.mrb[0].mxu0
      %v1547 = vpop.f32.mrb[0].mxu0
      %v1548 = vadd.f32 %v1169, %v1547
      %v1549 = vpop.f32.mrb[0].mxu0
      %1550 = vmatprep.mubr.bf16.mxu0 0
      %1551 = vmatmul.mubr.bf16.gmra.mrb[0].mxu0 %v1265
      %v1552 = vpop.f32.mrb[0].mxu0
      %v1553 = vadd.f32 %v1169, %v1552
      %v1554 = vpop.f32.mrb[0].mxu0
      %v1555 = vpop.f32.mrb[0].mxu0
      %v1556 = vadd.f32 %v1169, %v1555
      %v1557 = vpop.f32.mrb[0].mxu0
      %1558 = vdwg.mxu0
      %v1559 = vxor.u32 %v1305, 2147483648
      %v1560 = vxor.u32 %v1308, 2147483648
      %v1561 = vxor.u32 %v1313, 2147483648
      %v1562 = vxor.u32 %v1316, 2147483648
      %v1563 = vxor.u32 %v1321, 2147483648
      %v1564 = vxor.u32 %v1324, 2147483648
      %v1565 = vxor.u32 %v1329, 2147483648
      %v1566 = vxor.u32 %v1332, 2147483648
      %v1567 = vxor.u32 %v1337, 2147483648
      %v1568 = vxor.u32 %v1340, 2147483648
      %v1569 = vxor.u32 %v1345, 2147483648
      %v1570 = vxor.u32 %v1348, 2147483648
      %v1571 = vxor.u32 %v1353, 2147483648
      %v1572 = vxor.u32 %v1356, 2147483648
      %v1573 = vxor.u32 %v1361, 2147483648
      %v1574 = vxor.u32 %v1364, 2147483648
      %v1575 = vxor.u32 %v1369, 2147483648
      %v1576 = vxor.u32 %v1372, 2147483648
      %v1577 = vxor.u32 %v1377, 2147483648
      %v1578 = vxor.u32 %v1380, 2147483648
      %v1579 = vxor.u32 %v1385, 2147483648
      %v1580 = vxor.u32 %v1388, 2147483648
      %v1581 = vxor.u32 %v1393, 2147483648
      %v1582 = vxor.u32 %v1396, 2147483648
      %v1583 = vxor.u32 %v1401, 2147483648
      %v1584 = vxor.u32 %v1404, 2147483648
      %v1585 = vxor.u32 %v1409, 2147483648
      %v1586 = vxor.u32 %v1412, 2147483648
      %v1587 = vxor.u32 %v1417, 2147483648
      %v1588 = vxor.u32 %v1420, 2147483648
      %v1589 = vxor.u32 %v1425, 2147483648
      %v1590 = vxor.u32 %v1428, 2147483648
      %v1591 = vxor.u32 %v1433, 2147483648
      %v1592 = vxor.u32 %v1436, 2147483648
      %v1593 = vxor.u32 %v1441, 2147483648
      %v1594 = vxor.u32 %v1444, 2147483648
      %v1595 = vxor.u32 %v1449, 2147483648
      %v1596 = vxor.u32 %v1452, 2147483648
      %v1597 = vxor.u32 %v1457, 2147483648
      %v1598 = vxor.u32 %v1460, 2147483648
      %v1599 = vxor.u32 %v1465, 2147483648
      %v1600 = vxor.u32 %v1468, 2147483648
      %v1601 = vxor.u32 %v1473, 2147483648
      %v1602 = vxor.u32 %v1476, 2147483648
      %v1603 = vxor.u32 %v1481, 2147483648
      %v1604 = vxor.u32 %v1484, 2147483648
      %v1605 = vxor.u32 %v1489, 2147483648
      %v1606 = vxor.u32 %v1492, 2147483648
      %v1607 = vxor.u32 %v1497, 2147483648
      %v1608 = vxor.u32 %v1500, 2147483648
      %v1609 = vxor.u32 %v1505, 2147483648
      %v1610 = vxor.u32 %v1508, 2147483648
      %v1611 = vxor.u32 %v1513, 2147483648
      %v1612 = vxor.u32 %v1516, 2147483648
      %v1613 = vxor.u32 %v1521, 2147483648
      %v1614 = vxor.u32 %v1524, 2147483648
      %v1615 = vxor.u32 %v1529, 2147483648
      %v1616 = vxor.u32 %v1532, 2147483648
      %v1617 = vxor.u32 %v1537, 2147483648
      %v1618 = vxor.u32 %v1540, 2147483648
      %v1619 = vxor.u32 %v1545, 2147483648
      %v1620 = vxor.u32 %v1548, 2147483648
      %v1621 = vxor.u32 %v1553, 2147483648
      %v1622 = vxor.u32 %v1556, 2147483648
      %v1623 = vmul.f32 %v1559, 1.442695
      %v1624 = vpow.pop %v1623
      %v1625 = vmul.f32 %v1560, 1.442695
      %v1626 = vpow.pop %v1625
      %v1627 = vmul.f32 %v1561, 1.442695
      %v1628 = vpow.pop %v1627
      %v1629 = vmul.f32 %v1562, 1.442695
      %v1630 = vpow.pop %v1629
      %v1631 = vmul.f32 %v1563, 1.442695
      %v1632 = vpow.pop %v1631
      %v1633 = vmul.f32 %v1564, 1.442695
      %v1634 = vpow.pop %v1633
      %v1635 = vmul.f32 %v1565, 1.442695
      %v1636 = vpow.pop %v1635
      %v1637 = vmul.f32 %v1566, 1.442695
      %v1638 = vpow.pop %v1637
      %v1639 = vmul.f32 %v1567, 1.442695
      %v1640 = vpow.pop %v1639
      %v1641 = vmul.f32 %v1568, 1.442695
      %v1642 = vpow.pop %v1641
      %v1643 = vmul.f32 %v1569, 1.442695
      %v1644 = vpow.pop %v1643
      %v1645 = vmul.f32 %v1570, 1.442695
      %v1646 = vpow.pop %v1645
      %v1647 = vmul.f32 %v1571, 1.442695
      %v1648 = vpow.pop %v1647
      %v1649 = vmul.f32 %v1572, 1.442695
      %v1650 = vpow.pop %v1649
      %v1651 = vmul.f32 %v1573, 1.442695
      %v1652 = vpow.pop %v1651
      %v1653 = vmul.f32 %v1574, 1.442695
      %v1654 = vpow.pop %v1653
      %v1655 = vmul.f32 %v1575, 1.442695
      %v1656 = vpow.pop %v1655
      %v1657 = vmul.f32 %v1576, 1.442695
      %v1658 = vpow.pop %v1657
      %v1659 = vmul.f32 %v1577, 1.442695
      %v1660 = vpow.pop %v1659
      %v1661 = vmul.f32 %v1578, 1.442695
      %v1662 = vpow.pop %v1661
      %v1663 = vmul.f32 %v1579, 1.442695
      %v1664 = vpow.pop %v1663
      %v1665 = vmul.f32 %v1580, 1.442695
      %v1666 = vpow.pop %v1665
      %v1667 = vmul.f32 %v1581, 1.442695
      %v1668 = vpow.pop %v1667
      %v1669 = vmul.f32 %v1582, 1.442695
      %v1670 = vpow.pop %v1669
      %v1671 = vmul.f32 %v1583, 1.442695
      %v1672 = vpow.pop %v1671
      %v1673 = vmul.f32 %v1584, 1.442695
      %v1674 = vpow.pop %v1673
      %v1675 = vmul.f32 %v1585, 1.442695
      %v1676 = vpow.pop %v1675
      %v1677 = vmul.f32 %v1586, 1.442695
      %v1678 = vpow.pop %v1677
      %v1679 = vmul.f32 %v1587, 1.442695
      %v1680 = vpow.pop %v1679
      %v1681 = vmul.f32 %v1588, 1.442695
      %v1682 = vpow.pop %v1681
      %v1683 = vmul.f32 %v1589, 1.442695
      %v1684 = vpow.pop %v1683
      %v1685 = vmul.f32 %v1590, 1.442695
      %v1686 = vpow.pop %v1685
      %v1687 = vmul.f32 %v1591, 1.442695
      %v1688 = vpow.pop %v1687
      %v1689 = vmul.f32 %v1592, 1.442695
      %v1690 = vpow.pop %v1689
      %v1691 = vmul.f32 %v1593, 1.442695
      %v1692 = vpow.pop %v1691
      %v1693 = vmul.f32 %v1594, 1.442695
      %v1694 = vpow.pop %v1693
      %v1695 = vmul.f32 %v1595, 1.442695
      %v1696 = vpow.pop %v1695
      %v1697 = vmul.f32 %v1596, 1.442695
      %v1698 = vpow.pop %v1697
      %v1699 = vmul.f32 %v1597, 1.442695
      %v1700 = vpow.pop %v1699
      %v1701 = vmul.f32 %v1598, 1.442695
      %v1702 = vpow.pop %v1701
      %v1703 = vmul.f32 %v1599, 1.442695
      %v1704 = vpow.pop %v1703
      %v1705 = vmul.f32 %v1600, 1.442695
      %v1706 = vpow.pop %v1705
      %v1707 = vmul.f32 %v1601, 1.442695
      %v1708 = vpow.pop %v1707
      %v1709 = vmul.f32 %v1602, 1.442695
      %v1710 = vpow.pop %v1709
      %v1711 = vmul.f32 %v1603, 1.442695
      %v1712 = vpow.pop %v1711
      %v1713 = vmul.f32 %v1604, 1.442695
      %v1714 = vpow.pop %v1713
      %v1715 = vmul.f32 %v1605, 1.442695
      %v1716 = vpow.pop %v1715
      %v1717 = vmul.f32 %v1606, 1.442695
      %v1718 = vpow.pop %v1717
      %v1719 = vmul.f32 %v1607, 1.442695
      %v1720 = vpow.pop %v1719
      %v1721 = vmul.f32 %v1608, 1.442695
      %v1722 = vpow.pop %v1721
      %v1723 = vmul.f32 %v1609, 1.442695
      %v1724 = vpow.pop %v1723
      %v1725 = vmul.f32 %v1610, 1.442695
      %v1726 = vpow.pop %v1725
      %v1727 = vmul.f32 %v1611, 1.442695
      %v1728 = vpow.pop %v1727
      %v1729 = vmul.f32 %v1612, 1.442695
      %v1730 = vpow.pop %v1729
      %v1731 = vmul.f32 %v1613, 1.442695
      %v1732 = vpow.pop %v1731
      %v1733 = vmul.f32 %v1614, 1.442695
      %v1734 = vpow.pop %v1733
      %v1735 = vmul.f32 %v1615, 1.442695
      %v1736 = vpow.pop %v1735
      %v1737 = vmul.f32 %v1616, 1.442695
      %v1738 = vpow.pop %v1737
      %v1739 = vmul.f32 %v1617, 1.442695
      %v1740 = vpow.pop %v1739
      %v1741 = vmul.f32 %v1618, 1.442695
      %v1742 = vpow.pop %v1741
      %v1743 = vmul.f32 %v1619, 1.442695
      %v1744 = vpow.pop %v1743
      %v1745 = vmul.f32 %v1620, 1.442695
      %v1746 = vpow.pop %v1745
      %v1747 = vmul.f32 %v1621, 1.442695
      %v1748 = vpow.pop %v1747
      %v1749 = vmul.f32 %v1622, 1.442695
      %v1750 = vpow.pop %v1749
      %v1751 = vadd.f32 %v1624, 1.0
      %v1752 = vadd.f32 %v1626, 1.0
      %v1753 = vadd.f32 %v1628, 1.0
      %v1754 = vadd.f32 %v1630, 1.0
      %v1755 = vadd.f32 %v1632, 1.0
      %v1756 = vadd.f32 %v1634, 1.0
      %v1757 = vadd.f32 %v1636, 1.0
      %v1758 = vadd.f32 %v1638, 1.0
      %v1759 = vadd.f32 %v1640, 1.0
      %v1760 = vadd.f32 %v1642, 1.0
      %v1761 = vadd.f32 %v1644, 1.0
      %v1762 = vadd.f32 %v1646, 1.0
      %v1763 = vadd.f32 %v1648, 1.0
      %v1764 = vadd.f32 %v1650, 1.0
      %v1765 = vadd.f32 %v1652, 1.0
      %v1766 = vadd.f32 %v1654, 1.0
      %v1767 = vadd.f32 %v1656, 1.0
      %v1768 = vadd.f32 %v1658, 1.0
      %v1769 = vadd.f32 %v1660, 1.0
      %v1770 = vadd.f32 %v1662, 1.0
      %v1771 = vadd.f32 %v1664, 1.0
      %v1772 = vadd.f32 %v1666, 1.0
      %v1773 = vadd.f32 %v1668, 1.0
      %v1774 = vadd.f32 %v1670, 1.0
      %v1775 = vadd.f32 %v1672, 1.0
      %v1776 = vadd.f32 %v1674, 1.0
      %v1777 = vadd.f32 %v1676, 1.0
      %v1778 = vadd.f32 %v1678, 1.0
      %v1779 = vadd.f32 %v1680, 1.0
      %v1780 = vadd.f32 %v1682, 1.0
      %v1781 = vadd.f32 %v1684, 1.0
      %v1782 = vadd.f32 %v1686, 1.0
      %v1783 = vadd.f32 %v1688, 1.0
      %v1784 = vadd.f32 %v1690, 1.0
      %v1785 = vadd.f32 %v1692, 1.0
      %v1786 = vadd.f32 %v1694, 1.0
      %v1787 = vadd.f32 %v1696, 1.0
      %v1788 = vadd.f32 %v1698, 1.0
      %v1789 = vadd.f32 %v1700, 1.0
      %v1790 = vadd.f32 %v1702, 1.0
      %v1791 = vadd.f32 %v1704, 1.0
      %v1792 = vadd.f32 %v1706, 1.0
      %v1793 = vadd.f32 %v1708, 1.0
      %v1794 = vadd.f32 %v1710, 1.0
      %v1795 = vadd.f32 %v1712, 1.0
      %v1796 = vadd.f32 %v1714, 1.0
      %v1797 = vadd.f32 %v1716, 1.0
      %v1798 = vadd.f32 %v1718, 1.0
      %v1799 = vadd.f32 %v1720, 1.0
      %v1800 = vadd.f32 %v1722, 1.0
      %v1801 = vadd.f32 %v1724, 1.0
      %v1802 = vadd.f32 %v1726, 1.0
      %v1803 = vadd.f32 %v1728, 1.0
      %v1804 = vadd.f32 %v1730, 1.0
      %v1805 = vadd.f32 %v1732, 1.0
      %v1806 = vadd.f32 %v1734, 1.0
      %v1807 = vadd.f32 %v1736, 1.0
      %v1808 = vadd.f32 %v1738, 1.0
      %v1809 = vadd.f32 %v1740, 1.0
      %v1810 = vadd.f32 %v1742, 1.0
      %v1811 = vadd.f32 %v1744, 1.0
      %v1812 = vadd.f32 %v1746, 1.0
      %v1813 = vadd.f32 %v1748, 1.0
      %v1814 = vadd.f32 %v1750, 1.0
      %v1815 = vrcp.pop %v1751
      %v1816 = vmul.f32 1.0, %v1815
      %v1817 = vrcp.pop %v1752
      %v1818 = vmul.f32 1.0, %v1817
      %v1819 = vrcp.pop %v1753
      %v1820 = vmul.f32 1.0, %v1819
      %v1821 = vrcp.pop %v1754
      %v1822 = vmul.f32 1.0, %v1821
      %v1823 = vrcp.pop %v1755
      %v1824 = vmul.f32 1.0, %v1823
      %v1825 = vrcp.pop %v1756
      %v1826 = vmul.f32 1.0, %v1825
      %v1827 = vrcp.pop %v1757
      %v1828 = vmul.f32 1.0, %v1827
      %v1829 = vrcp.pop %v1758
      %v1830 = vmul.f32 1.0, %v1829
      %v1831 = vrcp.pop %v1759
      %v1832 = vmul.f32 1.0, %v1831
      %v1833 = vrcp.pop %v1760
      %v1834 = vmul.f32 1.0, %v1833
      %v1835 = vrcp.pop %v1761
      %v1836 = vmul.f32 1.0, %v1835
      %v1837 = vrcp.pop %v1762
      %v1838 = vmul.f32 1.0, %v1837
      %v1839 = vrcp.pop %v1763
      %v1840 = vmul.f32 1.0, %v1839
      %v1841 = vrcp.pop %v1764
      %v1842 = vmul.f32 1.0, %v1841
      %v1843 = vrcp.pop %v1765
      %v1844 = vmul.f32 1.0, %v1843
      %v1845 = vrcp.pop %v1766
      %v1846 = vmul.f32 1.0, %v1845
      %v1847 = vrcp.pop %v1767
      %v1848 = vmul.f32 1.0, %v1847
      %v1849 = vrcp.pop %v1768
      %v1850 = vmul.f32 1.0, %v1849
      %v1851 = vrcp.pop %v1769
      %v1852 = vmul.f32 1.0, %v1851
      %v1853 = vrcp.pop %v1770
      %v1854 = vmul.f32 1.0, %v1853
      %v1855 = vrcp.pop %v1771
      %v1856 = vmul.f32 1.0, %v1855
      %v1857 = vrcp.pop %v1772
      %v1858 = vmul.f32 1.0, %v1857
      %v1859 = vrcp.pop %v1773
      %v1860 = vmul.f32 1.0, %v1859
      %v1861 = vrcp.pop %v1774
      %v1862 = vmul.f32 1.0, %v1861
      %v1863 = vrcp.pop %v1775
      %v1864 = vmul.f32 1.0, %v1863
      %v1865 = vrcp.pop %v1776
      %v1866 = vmul.f32 1.0, %v1865
      %v1867 = vrcp.pop %v1777
      %v1868 = vmul.f32 1.0, %v1867
      %v1869 = vrcp.pop %v1778
      %v1870 = vmul.f32 1.0, %v1869
      %v1871 = vrcp.pop %v1779
      %v1872 = vmul.f32 1.0, %v1871
      %v1873 = vrcp.pop %v1780
      %v1874 = vmul.f32 1.0, %v1873
      %v1875 = vrcp.pop %v1781
      %v1876 = vmul.f32 1.0, %v1875
      %v1877 = vrcp.pop %v1782
      %v1878 = vmul.f32 1.0, %v1877
      %v1879 = vrcp.pop %v1783
      %v1880 = vmul.f32 1.0, %v1879
      %v1881 = vrcp.pop %v1784
      %v1882 = vmul.f32 1.0, %v1881
      %v1883 = vrcp.pop %v1785
      %v1884 = vmul.f32 1.0, %v1883
      %v1885 = vrcp.pop %v1786
      %v1886 = vmul.f32 1.0, %v1885
      %v1887 = vrcp.pop %v1787
      %v1888 = vmul.f32 1.0, %v1887
      %v1889 = vrcp.pop %v1788
      %v1890 = vmul.f32 1.0, %v1889
      %v1891 = vrcp.pop %v1789
      %v1892 = vmul.f32 1.0, %v1891
      %v1893 = vrcp.pop %v1790
      %v1894 = vmul.f32 1.0, %v1893
      %v1895 = vrcp.pop %v1791
      %v1896 = vmul.f32 1.0, %v1895
      %v1897 = vrcp.pop %v1792
      %v1898 = vmul.f32 1.0, %v1897
      %v1899 = vrcp.pop %v1793
      %v1900 = vmul.f32 1.0, %v1899
      %v1901 = vrcp.pop %v1794
      %v1902 = vmul.f32 1.0, %v1901
      %v1903 = vrcp.pop %v1795
      %v1904 = vmul.f32 1.0, %v1903
      %v1905 = vrcp.pop %v1796
      %v1906 = vmul.f32 1.0, %v1905
      %v1907 = vrcp.pop %v1797
      %v1908 = vmul.f32 1.0, %v1907
      %v1909 = vrcp.pop %v1798
      %v1910 = vmul.f32 1.0, %v1909
      %v1911 = vrcp.pop %v1799
      %v1912 = vmul.f32 1.0, %v1911
      %v1913 = vrcp.pop %v1800
      %v1914 = vmul.f32 1.0, %v1913
      %v1915 = vrcp.pop %v1801
      %v1916 = vmul.f32 1.0, %v1915
      %v1917 = vrcp.pop %v1802
      %v1918 = vmul.f32 1.0, %v1917
      %v1919 = vrcp.pop %v1803
      %v1920 = vmul.f32 1.0, %v1919
      %v1921 = vrcp.pop %v1804
      %v1922 = vmul.f32 1.0, %v1921
      %v1923 = vrcp.pop %v1805
      %v1924 = vmul.f32 1.0, %v1923
      %v1925 = vrcp.pop %v1806
      %v1926 = vmul.f32 1.0, %v1925
      %v1927 = vrcp.pop %v1807
      %v1928 = vmul.f32 1.0, %v1927
      %v1929 = vrcp.pop %v1808
      %v1930 = vmul.f32 1.0, %v1929
      %v1931 = vrcp.pop %v1809
      %v1932 = vmul.f32 1.0, %v1931
      %v1933 = vrcp.pop %v1810
      %v1934 = vmul.f32 1.0, %v1933
      %v1935 = vrcp.pop %v1811
      %v1936 = vmul.f32 1.0, %v1935
      %v1937 = vrcp.pop %v1812
      %v1938 = vmul.f32 1.0, %v1937
      %v1939 = vrcp.pop %v1813
      %v1940 = vmul.f32 1.0, %v1939
      %v1941 = vrcp.pop %v1814
      %v1942 = vmul.f32 1.0, %v1941
      %v1943 = vld [vmem:[%s372] sm:$0xf]
      %v1944 = vld [vmem:[%s372 + $0x4] sm:$0xf]
      %v1945 = vld [vmem:[%s372 + $0x8] sm:$0xf]
      %v1946 = vld [vmem:[%s372 + $0xc] sm:$0xf]
      %v1947 = vld [vmem:[%s372 + $0x10] sm:$0xf]
      %v1948 = vld [vmem:[%s372 + $0x14] sm:$0xf]
      %v1949 = vld [vmem:[%s372 + $0x18] sm:$0xf]
      %v1950 = vld [vmem:[%s372 + $0x1c] sm:$0xf]
      %v1951 = vld [vmem:[%s372 + $0x20] sm:$0xf]
      %v1952 = vld [vmem:[%s372 + $0x24] sm:$0xf]
      %v1953 = vld [vmem:[%s372 + $0x28] sm:$0xf]
      %v1954 = vld [vmem:[%s372 + $0x2c] sm:$0xf]
      %v1955 = vld [vmem:[%s372 + $0x30] sm:$0xf]
      %v1956 = vld [vmem:[%s372 + $0x34] sm:$0xf]
      %v1957 = vld [vmem:[%s372 + $0x38] sm:$0xf]
      %v1958 = vld [vmem:[%s372 + $0x3c] sm:$0xf]
      %v1959 = vld [vmem:[%s372 + $0x40] sm:$0xf]
      %v1960 = vld [vmem:[%s372 + $0x44] sm:$0xf]
      %v1961 = vld [vmem:[%s372 + $0x48] sm:$0xf]
      %v1962 = vld [vmem:[%s372 + $0x4c] sm:$0xf]
      %v1963 = vld [vmem:[%s372 + $0x50] sm:$0xf]
      %v1964 = vld [vmem:[%s372 + $0x54] sm:$0xf]
      %v1965 = vld [vmem:[%s372 + $0x58] sm:$0xf]
      %v1966 = vld [vmem:[%s372 + $0x5c] sm:$0xf]
      %v1967 = vld [vmem:[%s372 + $0x60] sm:$0xf]
      %v1968 = vld [vmem:[%s372 + $0x64] sm:$0xf]
      %v1969 = vld [vmem:[%s372 + $0x68] sm:$0xf]
      %v1970 = vld [vmem:[%s372 + $0x6c] sm:$0xf]
      %v1971 = vld [vmem:[%s372 + $0x70] sm:$0xf]
      %v1972 = vld [vmem:[%s372 + $0x74] sm:$0xf]
      %v1973 = vld [vmem:[%s372 + $0x78] sm:$0xf]
      %v1974 = vld [vmem:[%s372 + $0x7c] sm:$0xf]
      %v1975 = vld [vmem:[%s372 + $0x80] sm:$0xf]
      %v1976 = vld [vmem:[%s372 + $0x84] sm:$0xf]
      %v1977 = vld [vmem:[%s372 + $0x88] sm:$0xf]
      %v1978 = vld [vmem:[%s372 + $0x8c] sm:$0xf]
      %v1979 = vld [vmem:[%s372 + $0x90] sm:$0xf]
      %v1980 = vld [vmem:[%s372 + $0x94] sm:$0xf]
      %v1981 = vld [vmem:[%s372 + $0x98] sm:$0xf]
      %v1982 = vld [vmem:[%s372 + $0x9c] sm:$0xf]
      %v1983 = vld [vmem:[%s372 + $0xa0] sm:$0xf]
      %v1984 = vld [vmem:[%s372 + $0xa4] sm:$0xf]
      %v1985 = vld [vmem:[%s372 + $0xa8] sm:$0xf]
      %v1986 = vld [vmem:[%s372 + $0xac] sm:$0xf]
      %v1987 = vld [vmem:[%s372 + $0xb0] sm:$0xf]
      %v1988 = vld [vmem:[%s372 + $0xb4] sm:$0xf]
      %v1989 = vld [vmem:[%s372 + $0xb8] sm:$0xf]
      %v1990 = vld [vmem:[%s372 + $0xbc] sm:$0xf]
      %v1991 = vld [vmem:[%s372 + $0xc0] sm:$0xf]
      %v1992 = vld [vmem:[%s372 + $0xc4] sm:$0xf]
      %v1993 = vld [vmem:[%s372 + $0xc8] sm:$0xf]
      %v1994 = vld [vmem:[%s372 + $0xcc] sm:$0xf]
      %v1995 = vld [vmem:[%s372 + $0xd0] sm:$0xf]
      %v1996 = vld [vmem:[%s372 + $0xd4] sm:$0xf]
      %v1997 = vld [vmem:[%s372 + $0xd8] sm:$0xf]
      %v1998 = vld [vmem:[%s372 + $0xdc] sm:$0xf]
      %v1999 = vld [vmem:[%s372 + $0xe0] sm:$0xf]
      %v2000 = vld [vmem:[%s372 + $0xe4] sm:$0xf]
      %v2001 = vld [vmem:[%s372 + $0xe8] sm:$0xf]
      %v2002 = vld [vmem:[%s372 + $0xec] sm:$0xf]
      %v2003 = vld [vmem:[%s372 + $0xf0] sm:$0xf]
      %v2004 = vld [vmem:[%s372 + $0xf4] sm:$0xf]
      %v2005 = vld [vmem:[%s372 + $0xf8] sm:$0xf]
      %v2006 = vld [vmem:[%s372 + $0xfc] sm:$0xf]
      %v2007 = vunpack.c.l.bf16 %v1943
      %v2008 = vunpack.c.l.bf16 %v1944
      %v2009 = vunpack.c.l.bf16 %v1945
      %v2010 = vunpack.c.l.bf16 %v1946
      %v2011 = vunpack.c.l.bf16 %v1947
      %v2012 = vunpack.c.l.bf16 %v1948
      %v2013 = vunpack.c.l.bf16 %v1949
      %v2014 = vunpack.c.l.bf16 %v1950
      %v2015 = vunpack.c.l.bf16 %v1951
      %v2016 = vunpack.c.l.bf16 %v1952
      %v2017 = vunpack.c.l.bf16 %v1953
      %v2018 = vunpack.c.l.bf16 %v1954
      %v2019 = vunpack.c.l.bf16 %v1955
      %v2020 = vunpack.c.l.bf16 %v1956
      %v2021 = vunpack.c.l.bf16 %v1957
      %v2022 = vunpack.c.l.bf16 %v1958
      %v2023 = vunpack.c.l.bf16 %v1959
      %v2024 = vunpack.c.l.bf16 %v1960
      %v2025 = vunpack.c.l.bf16 %v1961
      %v2026 = vunpack.c.l.bf16 %v1962
      %v2027 = vunpack.c.l.bf16 %v1963
      %v2028 = vunpack.c.l.bf16 %v1964
      %v2029 = vunpack.c.l.bf16 %v1965
      %v2030 = vunpack.c.l.bf16 %v1966
      %v2031 = vunpack.c.l.bf16 %v1967
      %v2032 = vunpack.c.l.bf16 %v1968
      %v2033 = vunpack.c.l.bf16 %v1969
      %v2034 = vunpack.c.l.bf16 %v1970
      %v2035 = vunpack.c.l.bf16 %v1971
      %v2036 = vunpack.c.l.bf16 %v1972
      %v2037 = vunpack.c.l.bf16 %v1973
      %v2038 = vunpack.c.l.bf16 %v1974
      %v2039 = vunpack.c.l.bf16 %v1975
      %v2040 = vunpack.c.l.bf16 %v1976
      %v2041 = vunpack.c.l.bf16 %v1977
      %v2042 = vunpack.c.l.bf16 %v1978
      %v2043 = vunpack.c.l.bf16 %v1979
      %v2044 = vunpack.c.l.bf16 %v1980
      %v2045 = vunpack.c.l.bf16 %v1981
      %v2046 = vunpack.c.l.bf16 %v1982
      %v2047 = vunpack.c.l.bf16 %v1983
      %v2048 = vunpack.c.l.bf16 %v1984
      %v2049 = vunpack.c.l.bf16 %v1985
      %v2050 = vunpack.c.l.bf16 %v1986
      %v2051 = vunpack.c.l.bf16 %v1987
      %v2052 = vunpack.c.l.bf16 %v1988
      %v2053 = vunpack.c.l.bf16 %v1989
      %v2054 = vunpack.c.l.bf16 %v1990
      %v2055 = vunpack.c.l.bf16 %v1991
      %v2056 = vunpack.c.l.bf16 %v1992
      %v2057 = vunpack.c.l.bf16 %v1993
      %v2058 = vunpack.c.l.bf16 %v1994
      %v2059 = vunpack.c.l.bf16 %v1995
      %v2060 = vunpack.c.l.bf16 %v1996
      %v2061 = vunpack.c.l.bf16 %v1997
      %v2062 = vunpack.c.l.bf16 %v1998
      %v2063 = vunpack.c.l.bf16 %v1999
      %v2064 = vunpack.c.l.bf16 %v2000
      %v2065 = vunpack.c.l.bf16 %v2001
      %v2066 = vunpack.c.l.bf16 %v2002
      %v2067 = vunpack.c.l.bf16 %v2003
      %v2068 = vunpack.c.l.bf16 %v2004
      %v2069 = vunpack.c.l.bf16 %v2005
      %v2070 = vunpack.c.l.bf16 %v2006
      %v2071 = vmul.f32 %v2007, %v1816
      %v2072 = vmul.f32 %v2008, %v1818
      %v2073 = vmul.f32 %v2009, %v1820
      %v2074 = vmul.f32 %v2010, %v1822
      %v2075 = vmul.f32 %v2011, %v1824
      %v2076 = vmul.f32 %v2012, %v1826
      %v2077 = vmul.f32 %v2013, %v1828
      %v2078 = vmul.f32 %v2014, %v1830
      %v2079 = vmul.f32 %v2015, %v1832
      %v2080 = vmul.f32 %v2016, %v1834
      %v2081 = vmul.f32 %v2017, %v1836
      %v2082 = vmul.f32 %v2018, %v1838
      %v2083 = vmul.f32 %v2019, %v1840
      %v2084 = vmul.f32 %v2020, %v1842
      %v2085 = vmul.f32 %v2021, %v1844
      %v2086 = vmul.f32 %v2022, %v1846
      %v2087 = vmul.f32 %v2023, %v1848
      %v2088 = vmul.f32 %v2024, %v1850
      %v2089 = vmul.f32 %v2025, %v1852
      %v2090 = vmul.f32 %v2026, %v1854
      %v2091 = vmul.f32 %v2027, %v1856
      %v2092 = vmul.f32 %v2028, %v1858
      %v2093 = vmul.f32 %v2029, %v1860
      %v2094 = vmul.f32 %v2030, %v1862
      %v2095 = vmul.f32 %v2031, %v1864
      %v2096 = vmul.f32 %v2032, %v1866
      %v2097 = vmul.f32 %v2033, %v1868
      %v2098 = vmul.f32 %v2034, %v1870
      %v2099 = vmul.f32 %v2035, %v1872
      %v2100 = vmul.f32 %v2036, %v1874
      %v2101 = vmul.f32 %v2037, %v1876
      %v2102 = vmul.f32 %v2038, %v1878
      %v2103 = vmul.f32 %v2039, %v1880
      %v2104 = vmul.f32 %v2040, %v1882
      %v2105 = vmul.f32 %v2041, %v1884
      %v2106 = vmul.f32 %v2042, %v1886
      %v2107 = vmul.f32 %v2043, %v1888
      %v2108 = vmul.f32 %v2044, %v1890
      %v2109 = vmul.f32 %v2045, %v1892
      %v2110 = vmul.f32 %v2046, %v1894
      %v2111 = vmul.f32 %v2047, %v1896
      %v2112 = vmul.f32 %v2048, %v1898
      %v2113 = vmul.f32 %v2049, %v1900
      %v2114 = vmul.f32 %v2050, %v1902
      %v2115 = vmul.f32 %v2051, %v1904
      %v2116 = vmul.f32 %v2052, %v1906
      %v2117 = vmul.f32 %v2053, %v1908
      %v2118 = vmul.f32 %v2054, %v1910
      %v2119 = vmul.f32 %v2055, %v1912
      %v2120 = vmul.f32 %v2056, %v1914
      %v2121 = vmul.f32 %v2057, %v1916
      %v2122 = vmul.f32 %v2058, %v1918
      %v2123 = vmul.f32 %v2059, %v1920
      %v2124 = vmul.f32 %v2060, %v1922
      %v2125 = vmul.f32 %v2061, %v1924
      %v2126 = vmul.f32 %v2062, %v1926
      %v2127 = vmul.f32 %v2063, %v1928
      %v2128 = vmul.f32 %v2064, %v1930
      %v2129 = vmul.f32 %v2065, %v1932
      %v2130 = vmul.f32 %v2066, %v1934
      %v2131 = vmul.f32 %v2067, %v1936
      %v2132 = vmul.f32 %v2068, %v1938
      %v2133 = vmul.f32 %v2069, %v1940
      %v2134 = vmul.f32 %v2070, %v1942
      %v2135 = vpack.c.bf16 %v2072, %v2071
      %v2136 = vpack.c.bf16 %v2074, %v2073
      %v2137 = vpack.c.bf16 %v2076, %v2075
      %v2138 = vpack.c.bf16 %v2078, %v2077
      %v2139 = vpack.c.bf16 %v2080, %v2079
      %v2140 = vpack.c.bf16 %v2082, %v2081
      %v2141 = vpack.c.bf16 %v2084, %v2083
      %v2142 = vpack.c.bf16 %v2086, %v2085
      %v2143 = vpack.c.bf16 %v2088, %v2087
      %v2144 = vpack.c.bf16 %v2090, %v2089
      %v2145 = vpack.c.bf16 %v2092, %v2091
      %v2146 = vpack.c.bf16 %v2094, %v2093
      %v2147 = vpack.c.bf16 %v2096, %v2095
      %v2148 = vpack.c.bf16 %v2098, %v2097
      %v2149 = vpack.c.bf16 %v2100, %v2099
      %v2150 = vpack.c.bf16 %v2102, %v2101
      %v2151 = vpack.c.bf16 %v2104, %v2103
      %v2152 = vpack.c.bf16 %v2106, %v2105
      %v2153 = vpack.c.bf16 %v2108, %v2107
      %v2154 = vpack.c.bf16 %v2110, %v2109
      %v2155 = vpack.c.bf16 %v2112, %v2111
      %v2156 = vpack.c.bf16 %v2114, %v2113
      %v2157 = vpack.c.bf16 %v2116, %v2115
      %v2158 = vpack.c.bf16 %v2118, %v2117
      %v2159 = vpack.c.bf16 %v2120, %v2119
      %v2160 = vpack.c.bf16 %v2122, %v2121
      %v2161 = vpack.c.bf16 %v2124, %v2123
      %v2162 = vpack.c.bf16 %v2126, %v2125
      %v2163 = vpack.c.bf16 %v2128, %v2127
      %v2164 = vpack.c.bf16 %v2130, %v2129
      %v2165 = vpack.c.bf16 %v2132, %v2131
      %v2166 = vpack.c.bf16 %v2134, %v2133
      %v2167 = vld [vmem:[%s7] sm:$0xf]
      %v2168 = vld [vmem:[%s7 + $0x4] sm:$0xf]
      %v2169 = vld [vmem:[%s7 + $0x8] sm:$0xf]
      %v2170 = vld [vmem:[%s7 + $0xc] sm:$0xf]
      %v2171 = vld [vmem:[%s8] sm:$0x1]
      %v2173 = vlaneseq
      %v2174 = vshrl.u32 %v2173, 7
      %v2175 = vsub.s32 0, %v2174
      %v2176 = vrot.slane %v2171, %v2175
      %v2182 = vunpack.c.l.b16 %v2167
      %v2183 = vunpack.c.l.b16 %v2168
      %v2184 = vunpack.c.l.b16 %v2169
      %v2185 = vunpack.c.l.b16 %v2170
      %v2186 = vpack.c.b16 %v2183, %v2182
      %v2187 = vpack.c.b16 %v2185, %v2184
      %vm2190 = vcmask 261120
      %v2192 = vsel %vm2190, %v2135, 0
      %v2195 = vsel %vm2190, %v2136, 0
      %v2198 = vsel %vm2190, %v2137, 0
      %v2201 = vsel %vm2190, %v2138, 0
      %v2204 = vsel %vm2190, %v2139, 0
      %v2207 = vsel %vm2190, %v2140, 0
      %v2210 = vsel %vm2190, %v2141, 0
      %v2213 = vsel %vm2190, %v2142, 0
      %v2216 = vsel %vm2190, %v2143, 0
      %v2219 = vsel %vm2190, %v2144, 0
      %v2222 = vsel %vm2190, %v2145, 0
      %v2225 = vsel %vm2190, %v2146, 0
      %v2228 = vsel %vm2190, %v2147, 0
      %v2231 = vsel %vm2190, %v2148, 0
      %v2234 = vsel %vm2190, %v2149, 0
      %v2237 = vsel %vm2190, %v2150, 0
      %v2240 = vsel %vm2190, %v2151, 0
      %v2243 = vsel %vm2190, %v2152, 0
      %v2246 = vsel %vm2190, %v2153, 0
      %v2249 = vsel %vm2190, %v2154, 0
      %v2252 = vsel %vm2190, %v2155, 0
      %v2255 = vsel %vm2190, %v2156, 0
      %v2258 = vsel %vm2190, %v2157, 0
      %v2261 = vsel %vm2190, %v2158, 0
      %v2264 = vsel %vm2190, %v2159, 0
      %v2267 = vsel %vm2190, %v2160, 0
      %v2270 = vsel %vm2190, %v2161, 0
      %v2273 = vsel %vm2190, %v2162, 0
      %v2276 = vsel %vm2190, %v2163, 0
      %v2279 = vsel %vm2190, %v2164, 0
      %v2282 = vsel %vm2190, %v2165, 0
      %v2285 = vsel %vm2190, %v2166, 0
      %2287 = vmatprep.subr.bf16.mxu0 0
      %2288 = vmatpush1.bf16.msra.mxu0 %v2186
      %2289 = vmatprep.subr.bf16.mxu0 0
      %2290 = vmatpush1.bf16.msra.mxu0 %v2187
      %2291 = vmatprep.subr.bf16.mxu0 0
      %2292 = vmatpush1.bf16.msra.mxu0 0
      %2293 = vmatprep.subr.bf16.mxu0 0
      %2294 = vmatpush1.bf16.msra.mxu0 0
      %2295 = vmatprep.subr.bf16.mxu0 0
      %2296 = vmatpush1.bf16.msra.mxu0 0
      %2297 = vmatprep.subr.bf16.mxu0 0
      %2298 = vmatpush1.bf16.msra.mxu0 0
      %2299 = vmatprep.subr.bf16.mxu0 0
      %2300 = vmatpush1.bf16.msra.mxu0 0
      %2301 = vmatprep.subr.bf16.mxu0 0
      %2302 = vmatpush1.bf16.msra.mxu0 0
      %2303 = vmatprep.subr.bf16.mxu0 0
      %2304 = vmatpush1.bf16.msra.mxu0 0
      %2305 = vmatprep.subr.bf16.mxu0 0
      %2306 = vmatpush1.bf16.msra.mxu0 0
      %2307 = vmatprep.subr.bf16.mxu0 0
      %2308 = vmatpush1.bf16.msra.mxu0 0
      %2309 = vmatprep.subr.bf16.mxu0 0
      %2310 = vmatpush1.bf16.msra.mxu0 0
      %2311 = vmatprep.subr.bf16.mxu0 0
      %2312 = vmatpush1.bf16.msra.mxu0 0
      %2313 = vmatprep.subr.bf16.mxu0 0
      %2314 = vmatpush1.bf16.msra.mxu0 0
      %2315 = vmatprep.subr.bf16.mxu0 0
      %2316 = vmatpush1.bf16.msra.mxu0 0
      %2317 = vmatprep.subr.bf16.mxu0 0
      %2318 = vmatpush1.bf16.msra.mxu0 0
      %2319 = vmatprep.mubr.bf16.mxu0 0
      %2320 = vmatmul.mubr.bf16.gmra.mrb[0].mxu0 %v2192
      %v2321 = vpop.f32.mrb[0].mxu0
      %v2322 = vadd.f32 %v2176, %v2321
      %v2323 = vpop.f32.mrb[0].mxu0
      %v2324 = vpop.f32.mrb[0].mxu0
      %v2325 = vadd.f32 %v2176, %v2324
      %v2326 = vpop.f32.mrb[0].mxu0
      %2327 = vmatprep.mubr.bf16.mxu0 0
      %2328 = vmatmul.mubr.bf16.gmra.mrb[0].mxu0 %v2195
      %v2329 = vpop.f32.mrb[0].mxu0
      %v2330 = vadd.f32 %v2176, %v2329
      %v2331 = vpop.f32.mrb[0].mxu0
      %v2332 = vpop.f32.mrb[0].mxu0
      %v2333 = vadd.f32 %v2176, %v2332
      %v2334 = vpop.f32.mrb[0].mxu0
      %2335 = vmatprep.mubr.bf16.mxu0 0
      %2336 = vmatmul.mubr.bf16.gmra.mrb[0].mxu0 %v2198
      %v2337 = vpop.f32.mrb[0].mxu0
      %v2338 = vadd.f32 %v2176, %v2337
      %v2339 = vpop.f32.mrb[0].mxu0
      %v2340 = vpop.f32.mrb[0].mxu0
      %v2341 = vadd.f32 %v2176, %v2340
      %v2342 = vpop.f32.mrb[0].mxu0
      %2343 = vmatprep.mubr.bf16.mxu0 0
      %2344 = vmatmul.mubr.bf16.gmra.mrb[0].mxu0 %v2201
      %v2345 = vpop.f32.mrb[0].mxu0
      %v2346 = vadd.f32 %v2176, %v2345
      %v2347 = vpop.f32.mrb[0].mxu0
      %v2348 = vpop.f32.mrb[0].mxu0
      %v2349 = vadd.f32 %v2176, %v2348
      %v2350 = vpop.f32.mrb[0].mxu0
      %2351 = vmatprep.mubr.bf16.mxu0 0
      %2352 = vmatmul.mubr.bf16.gmra.mrb[0].mxu0 %v2204
      %v2353 = vpop.f32.mrb[0].mxu0
      %v2354 = vadd.f32 %v2176, %v2353
      %v2355 = vpop.f32.mrb[0].mxu0
      %v2356 = vpop.f32.mrb[0].mxu0
      %v2357 = vadd.f32 %v2176, %v2356
      %v2358 = vpop.f32.mrb[0].mxu0
      %2359 = vmatprep.mubr.bf16.mxu0 0
      %2360 = vmatmul.mubr.bf16.gmra.mrb[0].mxu0 %v2207
      %v2361 = vpop.f32.mrb[0].mxu0
      %v2362 = vadd.f32 %v2176, %v2361
      %v2363 = vpop.f32.mrb[0].mxu0
      %v2364 = vpop.f32.mrb[0].mxu0
      %v2365 = vadd.f32 %v2176, %v2364
      %v2366 = vpop.f32.mrb[0].mxu0
      %2367 = vmatprep.mubr.bf16.mxu0 0
      %2368 = vmatmul.mubr.bf16.gmra.mrb[0].mxu0 %v2210
      %v2369 = vpop.f32.mrb[0].mxu0
      %v2370 = vadd.f32 %v2176, %v2369
      %v2371 = vpop.f32.mrb[0].mxu0
      %v2372 = vpop.f32.mrb[0].mxu0
      %v2373 = vadd.f32 %v2176, %v2372
      %v2374 = vpop.f32.mrb[0].mxu0
      %2375 = vmatprep.mubr.bf16.mxu0 0
      %2376 = vmatmul.mubr.bf16.gmra.mrb[0].mxu0 %v2213
      %v2377 = vpop.f32.mrb[0].mxu0
      %v2378 = vadd.f32 %v2176, %v2377
      %v2379 = vpop.f32.mrb[0].mxu0
      %v2380 = vpop.f32.mrb[0].mxu0
      %v2381 = vadd.f32 %v2176, %v2380
      %v2382 = vpop.f32.mrb[0].mxu0
      %2383 = vmatprep.mubr.bf16.mxu0 0
      %2384 = vmatmul.mubr.bf16.gmra.mrb[0].mxu0 %v2216
      %v2385 = vpop.f32.mrb[0].mxu0
      %v2386 = vadd.f32 %v2176, %v2385
      %v2387 = vpop.f32.mrb[0].mxu0
      %v2388 = vpop.f32.mrb[0].mxu0
      %v2389 = vadd.f32 %v2176, %v2388
      %v2390 = vpop.f32.mrb[0].mxu0
      %2391 = vmatprep.mubr.bf16.mxu0 0
      %2392 = vmatmul.mubr.bf16.gmra.mrb[0].mxu0 %v2219
      %v2393 = vpop.f32.mrb[0].mxu0
      %v2394 = vadd.f32 %v2176, %v2393
      %v2395 = vpop.f32.mrb[0].mxu0
      %v2396 = vpop.f32.mrb[0].mxu0
      %v2397 = vadd.f32 %v2176, %v2396
      %v2398 = vpop.f32.mrb[0].mxu0
      %2399 = vmatprep.mubr.bf16.mxu0 0
      %2400 = vmatmul.mubr.bf16.gmra.mrb[0].mxu0 %v2222
      %v2401 = vpop.f32.mrb[0].mxu0
      %v2402 = vadd.f32 %v2176, %v2401
      %v2403 = vpop.f32.mrb[0].mxu0
      %v2404 = vpop.f32.mrb[0].mxu0
      %v2405 = vadd.f32 %v2176, %v2404
      %v2406 = vpop.f32.mrb[0].mxu0
      %2407 = vmatprep.mubr.bf16.mxu0 0
      %2408 = vmatmul.mubr.bf16.gmra.mrb[0].mxu0 %v2225
      %v2409 = vpop.f32.mrb[0].mxu0
      %v2410 = vadd.f32 %v2176, %v2409
      %v2411 = vpop.f32.mrb[0].mxu0
      %v2412 = vpop.f32.mrb[0].mxu0
      %v2413 = vadd.f32 %v2176, %v2412
      %v2414 = vpop.f32.mrb[0].mxu0
      %2415 = vmatprep.mubr.bf16.mxu0 0
      %2416 = vmatmul.mubr.bf16.gmra.mrb[0].mxu0 %v2228
      %v2417 = vpop.f32.mrb[0].mxu0
      %v2418 = vadd.f32 %v2176, %v2417
      %v2419 = vpop.f32.mrb[0].mxu0
      %v2420 = vpop.f32.mrb[0].mxu0
      %v2421 = vadd.f32 %v2176, %v2420
      %v2422 = vpop.f32.mrb[0].mxu0
      %2423 = vmatprep.mubr.bf16.mxu0 0
      %2424 = vmatmul.mubr.bf16.gmra.mrb[0].mxu0 %v2231
      %v2425 = vpop.f32.mrb[0].mxu0
      %v2426 = vadd.f32 %v2176, %v2425
      %v2427 = vpop.f32.mrb[0].mxu0
      %v2428 = vpop.f32.mrb[0].mxu0
      %v2429 = vadd.f32 %v2176, %v2428
      %v2430 = vpop.f32.mrb[0].mxu0
      %2431 = vmatprep.mubr.bf16.mxu0 0
      %2432 = vmatmul.mubr.bf16.gmra.mrb[0].mxu0 %v2234
      %v2433 = vpop.f32.mrb[0].mxu0
      %v2434 = vadd.f32 %v2176, %v2433
      %v2435 = vpop.f32.mrb[0].mxu0
      %v2436 = vpop.f32.mrb[0].mxu0
      %v2437 = vadd.f32 %v2176, %v2436
      %v2438 = vpop.f32.mrb[0].mxu0
      %2439 = vmatprep.mubr.bf16.mxu0 0
      %2440 = vmatmul.mubr.bf16.gmra.mrb[0].mxu0 %v2237
      %v2441 = vpop.f32.mrb[0].mxu0
      %v2442 = vadd.f32 %v2176, %v2441
      %v2443 = vpop.f32.mrb[0].mxu0
      %v2444 = vpop.f32.mrb[0].mxu0
      %v2445 = vadd.f32 %v2176, %v2444
      %v2446 = vpop.f32.mrb[0].mxu0
      %2447 = vmatprep.mubr.bf16.mxu0 0
      %2448 = vmatmul.mubr.bf16.gmra.mrb[0].mxu0 %v2240
      %v2449 = vpop.f32.mrb[0].mxu0
      %v2450 = vadd.f32 %v2176, %v2449
      %v2451 = vpop.f32.mrb[0].mxu0
      %v2452 = vpop.f32.mrb[0].mxu0
      %v2453 = vadd.f32 %v2176, %v2452
      %v2454 = vpop.f32.mrb[0].mxu0
      %2455 = vmatprep.mubr.bf16.mxu0 0
      %2456 = vmatmul.mubr.bf16.gmra.mrb[0].mxu0 %v2243
      %v2457 = vpop.f32.mrb[0].mxu0
      %v2458 = vadd.f32 %v2176, %v2457
      %v2459 = vpop.f32.mrb[0].mxu0
      %v2460 = vpop.f32.mrb[0].mxu0
      %v2461 = vadd.f32 %v2176, %v2460
      %v2462 = vpop.f32.mrb[0].mxu0
      %2463 = vmatprep.mubr.bf16.mxu0 0
      %2464 = vmatmul.mubr.bf16.gmra.mrb[0].mxu0 %v2246
      %v2465 = vpop.f32.mrb[0].mxu0
      %v2466 = vadd.f32 %v2176, %v2465
      %v2467 = vpop.f32.mrb[0].mxu0
      %v2468 = vpop.f32.mrb[0].mxu0
      %v2469 = vadd.f32 %v2176, %v2468
      %v2470 = vpop.f32.mrb[0].mxu0
      %2471 = vmatprep.mubr.bf16.mxu0 0
      %2472 = vmatmul.mubr.bf16.gmra.mrb[0].mxu0 %v2249
      %v2473 = vpop.f32.mrb[0].mxu0
      %v2474 = vadd.f32 %v2176, %v2473
      %v2475 = vpop.f32.mrb[0].mxu0
      %v2476 = vpop.f32.mrb[0].mxu0
      %v2477 = vadd.f32 %v2176, %v2476
      %v2478 = vpop.f32.mrb[0].mxu0
      %2479 = vmatprep.mubr.bf16.mxu0 0
      %2480 = vmatmul.mubr.bf16.gmra.mrb[0].mxu0 %v2252
      %v2481 = vpop.f32.mrb[0].mxu0
      %v2482 = vadd.f32 %v2176, %v2481
      %v2483 = vpop.f32.mrb[0].mxu0
      %v2484 = vpop.f32.mrb[0].mxu0
      %v2485 = vadd.f32 %v2176, %v2484
      %v2486 = vpop.f32.mrb[0].mxu0
      %2487 = vmatprep.mubr.bf16.mxu0 0
      %2488 = vmatmul.mubr.bf16.gmra.mrb[0].mxu0 %v2255
      %v2489 = vpop.f32.mrb[0].mxu0
      %v2490 = vadd.f32 %v2176, %v2489
      %v2491 = vpop.f32.mrb[0].mxu0
      %v2492 = vpop.f32.mrb[0].mxu0
      %v2493 = vadd.f32 %v2176, %v2492
      %v2494 = vpop.f32.mrb[0].mxu0
      %2495 = vmatprep.mubr.bf16.mxu0 0
      %2496 = vmatmul.mubr.bf16.gmra.mrb[0].mxu0 %v2258
      %v2497 = vpop.f32.mrb[0].mxu0
      %v2498 = vadd.f32 %v2176, %v2497
      %v2499 = vpop.f32.mrb[0].mxu0
      %v2500 = vpop.f32.mrb[0].mxu0
      %v2501 = vadd.f32 %v2176, %v2500
      %v2502 = vpop.f32.mrb[0].mxu0
      %2503 = vmatprep.mubr.bf16.mxu0 0
      %2504 = vmatmul.mubr.bf16.gmra.mrb[0].mxu0 %v2261
      %v2505 = vpop.f32.mrb[0].mxu0
      %v2506 = vadd.f32 %v2176, %v2505
      %v2507 = vpop.f32.mrb[0].mxu0
      %v2508 = vpop.f32.mrb[0].mxu0
      %v2509 = vadd.f32 %v2176, %v2508
      %v2510 = vpop.f32.mrb[0].mxu0
      %2511 = vmatprep.mubr.bf16.mxu0 0
      %2512 = vmatmul.mubr.bf16.gmra.mrb[0].mxu0 %v2264
      %v2513 = vpop.f32.mrb[0].mxu0
      %v2514 = vadd.f32 %v2176, %v2513
      %v2515 = vpop.f32.mrb[0].mxu0
      %v2516 = vpop.f32.mrb[0].mxu0
      %v2517 = vadd.f32 %v2176, %v2516
      %v2518 = vpop.f32.mrb[0].mxu0
      %2519 = vmatprep.mubr.bf16.mxu0 0
      %2520 = vmatmul.mubr.bf16.gmra.mrb[0].mxu0 %v2267
      %v2521 = vpop.f32.mrb[0].mxu0
      %v2522 = vadd.f32 %v2176, %v2521
      %v2523 = vpop.f32.mrb[0].mxu0
      %v2524 = vpop.f32.mrb[0].mxu0
      %v2525 = vadd.f32 %v2176, %v2524
      %v2526 = vpop.f32.mrb[0].mxu0
      %2527 = vmatprep.mubr.bf16.mxu0 0
      %2528 = vmatmul.mubr.bf16.gmra.mrb[0].mxu0 %v2270
      %v2529 = vpop.f32.mrb[0].mxu0
      %v2530 = vadd.f32 %v2176, %v2529
      %v2531 = vpop.f32.mrb[0].mxu0
      %v2532 = vpop.f32.mrb[0].mxu0
      %v2533 = vadd.f32 %v2176, %v2532
      %v2534 = vpop.f32.mrb[0].mxu0
      %2535 = vmatprep.mubr.bf16.mxu0 0
      %2536 = vmatmul.mubr.bf16.gmra.mrb[0].mxu0 %v2273
      %v2537 = vpop.f32.mrb[0].mxu0
      %v2538 = vadd.f32 %v2176, %v2537
      %v2539 = vpop.f32.mrb[0].mxu0
      %v2540 = vpop.f32.mrb[0].mxu0
      %v2541 = vadd.f32 %v2176, %v2540
      %v2542 = vpop.f32.mrb[0].mxu0
      %2543 = vmatprep.mubr.bf16.mxu0 0
      %2544 = vmatmul.mubr.bf16.gmra.mrb[0].mxu0 %v2276
      %v2545 = vpop.f32.mrb[0].mxu0
      %v2546 = vadd.f32 %v2176, %v2545
      %v2547 = vpop.f32.mrb[0].mxu0
      %v2548 = vpop.f32.mrb[0].mxu0
      %v2549 = vadd.f32 %v2176, %v2548
      %v2550 = vpop.f32.mrb[0].mxu0
      %2551 = vmatprep.mubr.bf16.mxu0 0
      %2552 = vmatmul.mubr.bf16.gmra.mrb[0].mxu0 %v2279
      %v2553 = vpop.f32.mrb[0].mxu0
      %v2554 = vadd.f32 %v2176, %v2553
      %v2555 = vpop.f32.mrb[0].mxu0
      %v2556 = vpop.f32.mrb[0].mxu0
      %v2557 = vadd.f32 %v2176, %v2556
      %v2558 = vpop.f32.mrb[0].mxu0
      %2559 = vmatprep.mubr.bf16.mxu0 0
      %2560 = vmatmul.mubr.bf16.gmra.mrb[0].mxu0 %v2282
      %v2561 = vpop.f32.mrb[0].mxu0
      %v2562 = vadd.f32 %v2176, %v2561
      %v2563 = vpop.f32.mrb[0].mxu0
      %v2564 = vpop.f32.mrb[0].mxu0
      %v2565 = vadd.f32 %v2176, %v2564
      %v2566 = vpop.f32.mrb[0].mxu0
      %2567 = vmatprep.mubr.bf16.mxu0 0
      %2568 = vmatmul.mubr.bf16.gmra.mrb[0].mxu0 %v2285
      %v2569 = vpop.f32.mrb[0].mxu0
      %v2570 = vadd.f32 %v2176, %v2569
      %v2571 = vpop.f32.mrb[0].mxu0
      %v2572 = vpop.f32.mrb[0].mxu0
      %v2573 = vadd.f32 %v2176, %v2572
      %v2574 = vpop.f32.mrb[0].mxu0
      %2575 = vdwg.mxu0
      %vm2576 = vcmask 130048
      %2577 = vst.msk [vmem:[%s378] sm:$0xff] %vm2576, %v2322
      %2578 = vst.msk [vmem:[%s378 + $0x8] sm:$0xff] %vm2576, %v2325
      %2579 = vst.msk [vmem:[%s378 + $0x10] sm:$0xff] %vm2576, %v2330
      %2580 = vst.msk [vmem:[%s378 + $0x18] sm:$0xff] %vm2576, %v2333
      %2581 = vst.msk [vmem:[%s378 + $0x20] sm:$0xff] %vm2576, %v2338
      %2582 = vst.msk [vmem:[%s378 + $0x28] sm:$0xff] %vm2576, %v2341
      %2583 = vst.msk [vmem:[%s378 + $0x30] sm:$0xff] %vm2576, %v2346
      %2584 = vst.msk [vmem:[%s378 + $0x38] sm:$0xff] %vm2576, %v2349
      %2585 = vst.msk [vmem:[%s378 + $0x40] sm:$0xff] %vm2576, %v2354
      %2586 = vst.msk [vmem:[%s378 + $0x48] sm:$0xff] %vm2576, %v2357
      %2587 = vst.msk [vmem:[%s378 + $0x50] sm:$0xff] %vm2576, %v2362
      %2588 = vst.msk [vmem:[%s378 + $0x58] sm:$0xff] %vm2576, %v2365
      %2589 = vst.msk [vmem:[%s378 + $0x60] sm:$0xff] %vm2576, %v2370
      %2590 = vst.msk [vmem:[%s378 + $0x68] sm:$0xff] %vm2576, %v2373
      %2591 = vst.msk [vmem:[%s378 + $0x70] sm:$0xff] %vm2576, %v2378
      %2592 = vst.msk [vmem:[%s378 + $0x78] sm:$0xff] %vm2576, %v2381
      %2593 = vst.msk [vmem:[%s378 + $0x80] sm:$0xff] %vm2576, %v2386
      %2594 = vst.msk [vmem:[%s378 + $0x88] sm:$0xff] %vm2576, %v2389
      %2595 = vst.msk [vmem:[%s378 + $0x90] sm:$0xff] %vm2576, %v2394
      %2596 = vst.msk [vmem:[%s378 + $0x98] sm:$0xff] %vm2576, %v2397
      %2597 = vst.msk [vmem:[%s378 + $0xa0] sm:$0xff] %vm2576, %v2402
      %2598 = vst.msk [vmem:[%s378 + $0xa8] sm:$0xff] %vm2576, %v2405
      %2599 = vst.msk [vmem:[%s378 + $0xb0] sm:$0xff] %vm2576, %v2410
      %2600 = vst.msk [vmem:[%s378 + $0xb8] sm:$0xff] %vm2576, %v2413
      %2601 = vst.msk [vmem:[%s378 + $0xc0] sm:$0xff] %vm2576, %v2418
      %2602 = vst.msk [vmem:[%s378 + $0xc8] sm:$0xff] %vm2576, %v2421
      %2603 = vst.msk [vmem:[%s378 + $0xd0] sm:$0xff] %vm2576, %v2426
      %2604 = vst.msk [vmem:[%s378 + $0xd8] sm:$0xff] %vm2576, %v2429
      %2605 = vst.msk [vmem:[%s378 + $0xe0] sm:$0xff] %vm2576, %v2434
      %2606 = vst.msk [vmem:[%s378 + $0xe8] sm:$0xff] %vm2576, %v2437
      %2607 = vst.msk [vmem:[%s378 + $0xf0] sm:$0xff] %vm2576, %v2442
      %2608 = vst.msk [vmem:[%s378 + $0xf8] sm:$0xff] %vm2576, %v2445
      %2609 = vst.msk [vmem:[%s378 + $0x100] sm:$0xff] %vm2576, %v2450
      %2610 = vst.msk [vmem:[%s378 + $0x108] sm:$0xff] %vm2576, %v2453
      %2611 = vst.msk [vmem:[%s378 + $0x110] sm:$0xff] %vm2576, %v2458
      %2612 = vst.msk [vmem:[%s378 + $0x118] sm:$0xff] %vm2576, %v2461
      %2613 = vst.msk [vmem:[%s378 + $0x120] sm:$0xff] %vm2576, %v2466
      %2614 = vst.msk [vmem:[%s378 + $0x128] sm:$0xff] %vm2576, %v2469
      %2615 = vst.msk [vmem:[%s378 + $0x130] sm:$0xff] %vm2576, %v2474
      %2616 = vst.msk [vmem:[%s378 + $0x138] sm:$0xff] %vm2576, %v2477
      %2617 = vst.msk [vmem:[%s378 + $0x140] sm:$0xff] %vm2576, %v2482
      %2618 = vst.msk [vmem:[%s378 + $0x148] sm:$0xff] %vm2576, %v2485
      %2619 = vst.msk [vmem:[%s378 + $0x150] sm:$0xff] %vm2576, %v2490
      %2620 = vst.msk [vmem:[%s378 + $0x158] sm:$0xff] %vm2576, %v2493
      %2621 = vst.msk [vmem:[%s378 + $0x160] sm:$0xff] %vm2576, %v2498
      %2622 = vst.msk [vmem:[%s378 + $0x168] sm:$0xff] %vm2576, %v2501
      %2623 = vst.msk [vmem:[%s378 + $0x170] sm:$0xff] %vm2576, %v2506
      %2624 = vst.msk [vmem:[%s378 + $0x178] sm:$0xff] %vm2576, %v2509
      %2625 = vst.msk [vmem:[%s378 + $0x180] sm:$0xff] %vm2576, %v2514
      %2626 = vst.msk [vmem:[%s378 + $0x188] sm:$0xff] %vm2576, %v2517
      %2627 = vst.msk [vmem:[%s378 + $0x190] sm:$0xff] %vm2576, %v2522
      %2628 = vst.msk [vmem:[%s378 + $0x198] sm:$0xff] %vm2576, %v2525
      %2629 = vst.msk [vmem:[%s378 + $0x1a0] sm:$0xff] %vm2576, %v2530
      %2630 = vst.msk [vmem:[%s378 + $0x1a8] sm:$0xff] %vm2576, %v2533
      %2631 = vst.msk [vmem:[%s378 + $0x1b0] sm:$0xff] %vm2576, %v2538
      %2632 = vst.msk [vmem:[%s378 + $0x1b8] sm:$0xff] %vm2576, %v2541
      %2633 = vst.msk [vmem:[%s378 + $0x1c0] sm:$0xff] %vm2576, %v2546
      %2634 = vst.msk [vmem:[%s378 + $0x1c8] sm:$0xff] %vm2576, %v2549
      %2635 = vst.msk [vmem:[%s378 + $0x1d0] sm:$0xff] %vm2576, %v2554
      %2636 = vst.msk [vmem:[%s378 + $0x1d8] sm:$0xff] %vm2576, %v2557
      %2637 = vst.msk [vmem:[%s378 + $0x1e0] sm:$0xff] %vm2576, %v2562
      %2638 = vst.msk [vmem:[%s378 + $0x1e8] sm:$0xff] %vm2576, %v2565
      %2639 = vst.msk [vmem:[%s378 + $0x1f0] sm:$0xff] %vm2576, %v2570
      %2640 = vst.msk [vmem:[%s378 + $0x1f8] sm:$0xff] %vm2576, %v2573
      %s2641 = smul.u32 64, %s20
      %p2642 = scmp.lt.s32.totalorder %s2641, 511
      %s2643 = scalar_select %p2642, %s2641, 511
      %s2644 = smul.addr %s2643, 8
      %s2645 = scalar_lea.vmem %s9, %s2644
      // Predicated region
      $region57: #{weight_upsample_forward.11} parent=55 // pred_check
        %p2646 = pneg %p242
      $region58: #{weight_upsample_forward.11} parent=55 // pred_check_branch
        %2648 = sbr.rel (%p2646) target = $region60
      $region59: #{weight_upsample_forward.11} parent=55 // pred_region
        %s2649 = smul.u32 64, %s20
      $region60: #{weight_upsample_forward.11} parent=55 // pred_fallthru
        _
    $region56: #{weight_upsample_forward.11} parent=5 // pred_fallthru
      _
    %p2650 = scmp.le.s32.totalorder 2, %s15
    // Predicated region
    $region61: #{weight_upsample_forward.11} parent=5 // pred_check
      %p2651 = pneg %p2650
    $region62: #{weight_upsample_forward.11} parent=5 // pred_check_branch
      %2653 = sbr.rel (%p2651) target = $region64
    $region63: #{weight_upsample_forward.11} parent=5 // pred_region
      %s2654 = ssub.s32 %s15, 2
      // Predicated region
      $region65: #{weight_upsample_forward.11} parent=63 // pred_check
        %p2655 = pneg %p248
      $region66: #{weight_upsample_forward.11} parent=63 // pred_check_branch
        %2657 = sbr.rel (%p2655) target = $region68
      $region67: #{weight_upsample_forward.11} parent=63 // pred_region
        %s2658 = smul.u32 64, %s21
        %p2659 = scmp.lt.s32.totalorder %s2658, 511
        %s2660 = scalar_select %p2659, %s2658, 511
        %s2661 = smul.addr %s2660, 8
        %s2662 = scalar_lea.vmem %s9, %s2661
      $region68: #{weight_upsample_forward.11} parent=63 // pred_fallthru
        _
    $region64: #{weight_upsample_forward.11} parent=5 // pred_fallthru
      _
  $region6: #{weight_upsample_forward.11} parent=0 // loop_footer
    %s19 = sadd.s32 1, %s15
  $region7: #{weight_upsample_forward.11} parent=0 // loop_footer_branch
    %14 = sbr.rel target = $region3
  $region8: #{weight_upsample_forward.11} parent=0 // loop_exit
    _

</llo_original>
